<compile_context>
chip_gen: v6e
topology: v6e:2x2x1
jax: 0.10.0
libtpu: 0.0.40
codegen_flags: <defaults>
</compile_context>

<pallas_src>
import functools

import jax
import jax.numpy as jnp
from jax.experimental import pallas as pl
from jax.experimental.pallas import tpu as pltpu


def _caiaclsf_kernel(x_ref, w1_ref, b1_ref, w2_ref, b2_ref, o_ref):
    # x_ref:  (tile_m, 4096)        w1_ref: (4096, 1024)   [VMEM-resident]
    # b1_ref: (1, 1024)             w2_ref: (1024, n_classes)
    # b2_ref: (1, n_classes)        o_ref:  (tile_m, n_classes)
    x = jnp.maximum(x_ref[...], 0.0).astype(w1_ref.dtype)          # relu(x)
    h = jnp.dot(x, w1_ref[...], preferred_element_type=jnp.float32)
    h = jnp.maximum(h + b1_ref[...], 0.0)                          # relu(fc1(x))
    logits = jnp.dot(h.astype(w2_ref.dtype), w2_ref[...],
                     preferred_element_type=jnp.float32) + b2_ref[...]
    o_ref[...] = jax.nn.sigmoid(logits).astype(o_ref.dtype)        # sigmoid(fc2(.))


def _round_up(x, m):
    return ((x + m - 1) // m) * m


def _resident_spec(block_shape, index_map):
    # Grid-invariant operand: keep a single VMEM copy (no double buffer).
    # Fall back silently if this jax version's BlockSpec lacks pipeline_mode.
    try:
        return pl.BlockSpec(block_shape, index_map, pipeline_mode=pl.Buffered(1))
    except TypeError:
        return pl.BlockSpec(block_shape, index_map)


def prepare_params(w1, b1, w2, b2, *, matmul_dtype=jnp.float32):
    """One-time parameter prep (call OUTSIDE the jitted forward).

    Converts PyTorch Linear (out, in) weights to the kernel's (in, out) layout
    and optionally casts the large fc1 weight to bf16 for the weight-bandwidth-
    bound small-batch regime (keep f32 for strict numerical parity).
    """
    w1_io = jnp.transpose(jnp.asarray(w1)).astype(matmul_dtype)       # (4096, 1024)
    w2_io = jnp.transpose(jnp.asarray(w2)).astype(jnp.float32)        # (1024, n_classes)
    b1_r = jnp.asarray(b1, jnp.float32).reshape(1, -1)
    b2_r = jnp.asarray(b2, jnp.float32).reshape(1, -1)
    return w1_io, b1_r, w2_io, b2_r


@functools.partial(jax.jit, static_argnames=("tile_m",))
def caiaclsf_forward(x, w1_io, b1_r, w2_io, b2_r, *, tile_m=512):
    """x: (M, 4096) f32.  w1_io: (4096, 1024), b1_r: (1, 1024),
    w2_io: (1024, n_classes), b2_r: (1, n_classes)  (from prepare_params)."""
    m, k_in = x.shape
    hdim = w1_io.shape[1]
    n_out = w2_io.shape[1]

    # M tile: multiple of 8 (sublanes), capped near M.  No padding of x — Pallas
    # handles the ragged last M block; its garbage rows are never written back.
    # Default 512 is sized for v7x's 64 MiB VMEM; v5e/v6e can use 1024-2048.
    tile_m_eff = _round_up(min(tile_m, _round_up(m, 8)), 8)
    grid = (pl.cdiv(m, tile_m_eff),)

    # VMEM budget hint: x (double-buffered) + W1 (counted twice to stay valid
    # even without single-buffering) + headroom for small residents/output.
    itemsize_x = jnp.dtype(x.dtype).itemsize
    itemsize_w1 = jnp.dtype(w1_io.dtype).itemsize
    vmem_limit = min(
        2 * tile_m_eff * k_in * itemsize_x
        + 2 * k_in * hdim * itemsize_w1
        + (8 << 20),
        120 << 20,
    )

    out = pl.pallas_call(
        _caiaclsf_kernel,
        out_shape=jax.ShapeDtypeStruct((m, n_out), jnp.float32),
        grid_spec=pltpu.PrefetchScalarGridSpec(
            num_scalar_prefetch=0,
            grid=grid,
            in_specs=[
                pl.BlockSpec((tile_m_eff, k_in), lambda i: (i, 0)),     # x (streamed)
                _resident_spec((k_in, hdim), lambda i: (0, 0)),         # W1 (resident)
                _resident_spec((1, hdim), lambda i: (0, 0)),            # b1 (resident)
                _resident_spec((hdim, n_out), lambda i: (0, 0)),        # W2 (resident)
                _resident_spec((1, n_out), lambda i: (0, 0)),           # b2 (resident)
            ],
            out_specs=pl.BlockSpec((tile_m_eff, n_out), lambda i: (i, 0)),
        ),
        compiler_params=pltpu.CompilerParams(
            dimension_semantics=("parallel",),
            vmem_limit_bytes=int(vmem_limit),
        ),
    )(x, w1_io, b1_r, w2_io, b2_r)

    return out


def _reference(x, w1, b1, w2, b2):
    """Pure-JAX reference reproducing the PyTorch forward (PyTorch weight layout)."""
    x = jnp.maximum(x, 0.0)
    h = jnp.maximum(x @ w1.T + b1, 0.0)
    return jax.nn.sigmoid(h @ w2.T + b2)


if __name__ == "__main__":
    # Shapes implied by the module: features = 4096, hidden = 1024, n_classes = 2.
    batch, in_features, hidden, n_classes = 16, 4096, 1024, 2

    key = jax.random.PRNGKey(0)
    k0, k1, k2, k3, k4 = jax.random.split(key, 5)

    x = jax.random.normal(k0, (batch, in_features), dtype=jnp.float32)
    w1 = jax.random.normal(k1, (hidden, in_features), dtype=jnp.float32) * 0.02
    b1 = jax.random.normal(k2, (hidden,), dtype=jnp.float32) * 0.02
    w2 = jax.random.normal(k3, (n_classes, hidden), dtype=jnp.float32) * 0.02
    b2 = jax.random.normal(k4, (n_classes,), dtype=jnp.float32) * 0.02

    # One-time layout prep (the per-call transpose was the biggest perf bug).
    w1_io, b1_r, w2_io, b2_r = prepare_params(w1, b1, w2, b2)

    out = caiaclsf_forward(x, w1_io, b1_r, w2_io, b2_r)
    out = jax.block_until_ready(out)

    ref = _reference(x, w1, b1, w2, b2)
    assert out.shape == (batch, n_classes), out.shape
    assert jnp.allclose(out, ref, atol=1e-4, rtol=1e-4), float(jnp.max(jnp.abs(out - ref)))

    print("KERNEL_OK")
</pallas_src>

<mosaic_0001>
module attributes {stable_mosaic.version = 11 : i64} {
  func.func @_caiaclsf_kernel(%arg0: i32, %arg1: memref<16x4096xf32, #tpu.memory_space<vmem>>, %arg2: memref<4096x1024xf32, #tpu.memory_space<vmem>>, %arg3: memref<1x1024xf32, #tpu.memory_space<vmem>>, %arg4: memref<1024x2xf32, #tpu.memory_space<vmem>>, %arg5: memref<1x2xf32, #tpu.memory_space<vmem>>, %arg6: memref<16x2xf32, #tpu.memory_space<vmem>>) attributes {dimension_semantics = [#tpu.dimension_semantics<parallel>], iteration_bounds = array<i64: 1>, scalar_prefetch = 0 : i64, scratch_operands = 0 : i64, tpu.core_type = #tpu.core_type<tc>, window_params = [{transform_indices = @transform_0, window_bounds = array<i64: 16, 4096>}, {pipeline_mode = #tpu.pipeline_mode<synchronous>, transform_indices = @transform_1, window_bounds = array<i64: 4096, 1024>}, {pipeline_mode = #tpu.pipeline_mode<synchronous>, transform_indices = @transform_2, window_bounds = array<i64: 1, 1024>}, {pipeline_mode = #tpu.pipeline_mode<synchronous>, transform_indices = @transform_3, window_bounds = array<i64: 1024, 2>}, {pipeline_mode = #tpu.pipeline_mode<synchronous>, transform_indices = @transform_4, window_bounds = array<i64: 1, 2>}, {transform_indices = @transform_5, window_bounds = array<i64: 16, 2>}]} {
    %c0 = arith.constant 0 : index
    %c0_0 = arith.constant 0 : index
    %0 = vector.load %arg1[%c0, %c0_0] : memref<16x4096xf32, #tpu.memory_space<vmem>>, vector<16x4096xf32>
    %cst = arith.constant 0.000000e+00 : f32
    %1 = vector.broadcast %cst : f32 to vector<16x4096xf32>
    %2 = arith.maximumf %0, %1 : vector<16x4096xf32>
    %c0_1 = arith.constant 0 : index
    %c0_2 = arith.constant 0 : index
    %3 = vector.load %arg2[%c0_1, %c0_2] : memref<4096x1024xf32, #tpu.memory_space<vmem>>, vector<4096x1024xf32>
    %cst_3 = arith.constant dense<0.000000e+00> : vector<16x1024xf32>
    %4 = tpu.matmul %2, %3, %cst_3 {dimension_numbers = #tpu.dot_dimension_numbers<[1], [0], [0], [1], [0, 0, 1, 1], [], []>} : vector<16x4096xf32>, vector<4096x1024xf32>, vector<16x1024xf32> -> vector<16x1024xf32>
    %c0_4 = arith.constant 0 : index
    %c0_5 = arith.constant 0 : index
    %5 = vector.load %arg3[%c0_4, %c0_5] : memref<1x1024xf32, #tpu.memory_space<vmem>>, vector<1x1024xf32>
    %6 = vector.broadcast %5 : vector<1x1024xf32> to vector<16x1024xf32>
    %7 = arith.addf %4, %6 : vector<16x1024xf32>
    %cst_6 = arith.constant 0.000000e+00 : f32
    %8 = vector.broadcast %cst_6 : f32 to vector<16x1024xf32>
    %9 = arith.maximumf %7, %8 : vector<16x1024xf32>
    %c0_7 = arith.constant 0 : index
    %c0_8 = arith.constant 0 : index
    %10 = vector.load %arg4[%c0_7, %c0_8] : memref<1024x2xf32, #tpu.memory_space<vmem>>, vector<1024x2xf32>
    %cst_9 = arith.constant dense<0.000000e+00> : vector<16x2xf32>
    %11 = tpu.matmul %9, %10, %cst_9 {dimension_numbers = #tpu.dot_dimension_numbers<[1], [0], [0], [1], [0, 0, 1, 1], [], []>} : vector<16x1024xf32>, vector<1024x2xf32>, vector<16x2xf32> -> vector<16x2xf32>
    %c0_10 = arith.constant 0 : index
    %c0_11 = arith.constant 0 : index
    %12 = vector.load %arg5[%c0_10, %c0_11] : memref<1x2xf32, #tpu.memory_space<vmem>>, vector<1x2xf32>
    %13 = vector.broadcast %12 : vector<1x2xf32> to vector<16x2xf32>
    %14 = arith.addf %11, %13 : vector<16x2xf32>
    %15 = arith.negf %14 : vector<16x2xf32>
    %16 = math.exp %15 : vector<16x2xf32>
    %cst_12 = arith.constant 1.000000e+00 : f32
    %17 = vector.broadcast %cst_12 : f32 to vector<16x2xf32>
    %18 = arith.addf %17, %16 : vector<16x2xf32>
    %19 = arith.divf %17, %18 : vector<16x2xf32>
    %c0_13 = arith.constant 0 : index
    %c0_14 = arith.constant 0 : index
    %20 = vector.load %arg6[%c0_13, %c0_14] : memref<16x2xf32, #tpu.memory_space<vmem>>, vector<16x2xf32>
    tpu.vector_store %arg6[%c0_13, %c0_14], %19 {strides = array<i32>} : memref<16x2xf32, #tpu.memory_space<vmem>>, vector<16x2xf32>,
    return
  }
  func.func @transform_0(%arg0: i32) -> (i32, i32) {
    %c0_i32 = arith.constant 0 : i32
    %c0_i32_0 = arith.constant 0 : i32
    return %arg0, %c0_i32 : i32, i32
  }
  func.func @transform_1(%arg0: i32) -> (i32, i32) {
    %c0_i32 = arith.constant 0 : i32
    %c0_i32_0 = arith.constant 0 : i32
    %c0_i32_1 = arith.constant 0 : i32
    return %c0_i32, %c0_i32_0 : i32, i32
  }
  func.func @transform_2(%arg0: i32) -> (i32, i32) {
    %c0_i32 = arith.constant 0 : i32
    %c0_i32_0 = arith.constant 0 : i32
    %c0_i32_1 = arith.constant 0 : i32
    return %c0_i32, %c0_i32_0 : i32, i32
  }
  func.func @transform_3(%arg0: i32) -> (i32, i32) {
    %c0_i32 = arith.constant 0 : i32
    %c0_i32_0 = arith.constant 0 : i32
    %c0_i32_1 = arith.constant 0 : i32
    return %c0_i32, %c0_i32_0 : i32, i32
  }
  func.func @transform_4(%arg0: i32) -> (i32, i32) {
    %c0_i32 = arith.constant 0 : i32
    %c0_i32_0 = arith.constant 0 : i32
    %c0_i32_1 = arith.constant 0 : i32
    return %c0_i32, %c0_i32_0 : i32, i32
  }
  func.func @transform_5(%arg0: i32) -> (i32, i32) {
    %c0_i32 = arith.constant 0 : i32
    %c0_i32_0 = arith.constant 0 : i32
    return %arg0, %c0_i32 : i32, i32
  }
}

</mosaic_0001>

<llo_original>
// kernel: caiaclsf_forward.1
$region0: #{caiaclsf_forward.1}
  #allocation0 [shape = 'u32[]', space=smem, size = 0x4, offset = 0x4, fixed_abs, tag = 'smem constant byte address 0x4 - core index']
  #allocation1 [shape = 'u32[144,128]{1,0:T(1,128)}', space=vmem, size = 0x12000, scoped, tag = 'internal scratch']
  %s0 = inlined_call_operand.hbm [shape: f32[16,4096], index: 0, kind: input, shape index: {}]
  %s1 = inlined_call_operand.hbm [shape: f32[4096,1024], index: 1, kind: input, shape index: {}]
  %s2 = inlined_call_operand.hbm [shape: f32[1,1024], index: 2, kind: input, shape index: {}]
  %s3 = inlined_call_operand.vmem [shape: f32[1024,2], index: 3, kind: input, shape index: {}]
  %s4 = inlined_call_operand.hbm [shape: f32[1,2], index: 4, kind: input, shape index: {}]
  %s5 = inlined_call_operand.vmem [shape: f32[16,2], index: 5, kind: output, shape index: {}]
  %s6 = sld [smem:[#allocation0]]
  $region46: #{caiaclsf_forward.1} parent=0
    _
  %s8 = ssub.s32 1, %s6
  %s9 = scalar_select 0, %s8, %s6
  $region1: #{caiaclsf_forward.1} parent=0
    #allocation2 [shape = 'u8[262144]{0}', space=vmem, size = 0x40000, scoped, tag = 'input window, operand 0, single buffered']
    #allocation3 [shape = 's32[1]{0}', space=sflag, size = 0x4, scoped, tag = 'scoped memory for caiaclsf_forward.1']
    #allocation4 [shape = 'u8[16777216]{0}', space=vmem, size = 0x1000000, scoped, tag = 'input window, operand 1, single buffered']
    #allocation5 [shape = 's32[1]{0}', space=sflag, size = 0x4, scoped, tag = 'scoped memory for caiaclsf_forward.1']
    #allocation6 [shape = 'u8[4096]{0}', space=vmem, size = 0x1000, scoped, tag = 'input window, operand 2, single buffered']
    #allocation7 [shape = 'u8[512]{0}', space=vmem, size = 0x400, scoped, tag = 'input window, operand 4, single buffered']
    #allocation8 [shape = 's32[1]{0}', space=sflag, size = 0x4, scoped, tag = 'scoped memory for caiaclsf_forward.1']
    %10 = vsyncpa [#allocation3], 0
    %11 = vsyncpa [#allocation5], 0
    %12 = vsyncpa [#allocation8], 0
    // Predicated region
    $region2: #{caiaclsf_forward.1} parent=1 // pred_check
      _
    $region3: #{caiaclsf_forward.1} parent=1 // pred_check_branch
      %14 = sbr.rel (0) target = $region5
    $region4: #{caiaclsf_forward.1} parent=1 // pred_region
      %s16 = ssub.s32 8192, 8192
      %17 = vsyncadd [#allocation3], %s16
      %s18 = sshll.u32 [#allocation2], 4
      %s19 = int_to_ptr.vmem [resolvable:$true] %s18
      %24 = dma.hbm_to_vmem [thread:$0]  %s0, 8192, %s19, [#allocation3], 4096, 4096, 256
    $region5: #{caiaclsf_forward.1} parent=1 // pred_fallthru
      _
    // Predicated region
    $region6: #{caiaclsf_forward.1} parent=1 // pred_check
      _
    $region7: #{caiaclsf_forward.1} parent=1 // pred_check_branch
      %26 = sbr.rel (0) target = $region9
    $region8: #{caiaclsf_forward.1} parent=1 // pred_region
      %s28 = ssub.s32 524288, 524288
      %29 = vsyncadd [#allocation5], %s28
      %s30 = sshll.u32 [#allocation4], 4
      %s31 = int_to_ptr.vmem [resolvable:$true] %s30
      %36 = dma.hbm_to_vmem [thread:$0]  %s1, 524288, %s31, [#allocation5], 1024, 1024, 64
    $region9: #{caiaclsf_forward.1} parent=1 // pred_fallthru
      _
    // Predicated region
    $region10: #{caiaclsf_forward.1} parent=1 // pred_check
      _
    $region11: #{caiaclsf_forward.1} parent=1 // pred_check_branch
      %38 = sbr.rel (0) target = $region13
    $region12: #{caiaclsf_forward.1} parent=1 // pred_region
      %s40 = ssub.s32 128, 128
      %41 = vsyncadd [#allocation5], %s40
      %s43 = sshll.u32 [#allocation6], 4
      %s44 = int_to_ptr.vmem [resolvable:$true] %s43
      %46 = dma.hbm_to_vmem [thread:$0]  %s2, 128, %s44, [#allocation5]
    $region13: #{caiaclsf_forward.1} parent=1 // pred_fallthru
      _
    // Predicated region
    $region14: #{caiaclsf_forward.1} parent=1 // pred_check
      _
    $region15: #{caiaclsf_forward.1} parent=1 // pred_check_branch
      %48 = sbr.rel (0) target = $region17
    $region16: #{caiaclsf_forward.1} parent=1 // pred_region
      _
    $region17: #{caiaclsf_forward.1} parent=1 // pred_fallthru
      _
    // Predicated region
    $region18: #{caiaclsf_forward.1} parent=1 // pred_check
      _
    $region19: #{caiaclsf_forward.1} parent=1 // pred_check_branch
      %50 = sbr.rel (0) target = $region21
    $region20: #{caiaclsf_forward.1} parent=1 // pred_region
      %s52 = ssub.s32 16, 16
      %53 = vsyncadd [#allocation8], %s52
      %s55 = sshll.u32 [#allocation7], 4
      %s56 = int_to_ptr.vmem [resolvable:$true] %s55
      %58 = dma.hbm_to_vmem [thread:$0]  %s4, 16, %s56, [#allocation8]
    $region21: #{caiaclsf_forward.1} parent=1 // pred_fallthru
      _
    // Predicated region
    $region22: #{caiaclsf_forward.1} parent=1 // pred_check
      _
    $region23: #{caiaclsf_forward.1} parent=1 // pred_check_branch
      %60 = sbr.rel (0) target = $region25
    $region24: #{caiaclsf_forward.1} parent=1 // pred_region
      %61 = dma.done [#allocation3], 8192
    $region25: #{caiaclsf_forward.1} parent=1 // pred_fallthru
      _
    // Predicated region
    $region26: #{caiaclsf_forward.1} parent=1 // pred_check
      _
    $region27: #{caiaclsf_forward.1} parent=1 // pred_check_branch
      %63 = sbr.rel (0) target = $region29
    $region28: #{caiaclsf_forward.1} parent=1 // pred_region
      %64 = dma.done [#allocation5], 524288
    $region29: #{caiaclsf_forward.1} parent=1 // pred_fallthru
      _
    // Predicated region
    $region30: #{caiaclsf_forward.1} parent=1 // pred_check
      _
    $region31: #{caiaclsf_forward.1} parent=1 // pred_check_branch
      %66 = sbr.rel (0) target = $region33
    $region32: #{caiaclsf_forward.1} parent=1 // pred_region
      %67 = dma.done [#allocation5], 128
    $region33: #{caiaclsf_forward.1} parent=1 // pred_fallthru
      _
    // Predicated region
    $region34: #{caiaclsf_forward.1} parent=1 // pred_check
      _
    $region35: #{caiaclsf_forward.1} parent=1 // pred_check_branch
      %69 = sbr.rel (0) target = $region37
    $region36: #{caiaclsf_forward.1} parent=1 // pred_region
      %70 = dma.done [#allocation8], 16
    $region37: #{caiaclsf_forward.1} parent=1 // pred_fallthru
      _
    %v71 = vld [vmem:[#allocation2] sm:$0xff]
    %v72 = vld [vmem:[#allocation2 + $0x8] sm:$0xff]
    %v73 = vld [vmem:[#allocation2 + $0x10] sm:$0xff]
    %v74 = vld [vmem:[#allocation2 + $0x18] sm:$0xff]
    %v75 = vld [vmem:[#allocation2 + $0x20] sm:$0xff]
    %v76 = vld [vmem:[#allocation2 + $0x28] sm:$0xff]
    %v77 = vld [vmem:[#allocation2 + $0x30] sm:$0xff]
    %v78 = vld [vmem:[#allocation2 + $0x38] sm:$0xff]
    %v79 = vld [vmem:[#allocation2 + $0x40] sm:$0xff]
    %v80 = vld [vmem:[#allocation2 + $0x48] sm:$0xff]
    %v81 = vld [vmem:[#allocation2 + $0x50] sm:$0xff]
    %v82 = vld [vmem:[#allocation2 + $0x58] sm:$0xff]
    %v83 = vld [vmem:[#allocation2 + $0x60] sm:$0xff]
    %v84 = vld [vmem:[#allocation2 + $0x68] sm:$0xff]
    %v85 = vld [vmem:[#allocation2 + $0x70] sm:$0xff]
    %v86 = vld [vmem:[#allocation2 + $0x78] sm:$0xff]
    %v87 = vld [vmem:[#allocation2 + $0x80] sm:$0xff]
    %v88 = vld [vmem:[#allocation2 + $0x88] sm:$0xff]
    %v89 = vld [vmem:[#allocation2 + $0x90] sm:$0xff]
    %v90 = vld [vmem:[#allocation2 + $0x98] sm:$0xff]
    %v91 = vld [vmem:[#allocation2 + $0xa0] sm:$0xff]
    %v92 = vld [vmem:[#allocation2 + $0xa8] sm:$0xff]
    %v93 = vld [vmem:[#allocation2 + $0xb0] sm:$0xff]
    %v94 = vld [vmem:[#allocation2 + $0xb8] sm:$0xff]
    %v95 = vld [vmem:[#allocation2 + $0xc0] sm:$0xff]
    %v96 = vld [vmem:[#allocation2 + $0xc8] sm:$0xff]
    %v97 = vld [vmem:[#allocation2 + $0xd0] sm:$0xff]
    %v98 = vld [vmem:[#allocation2 + $0xd8] sm:$0xff]
    %v99 = vld [vmem:[#allocation2 + $0xe0] sm:$0xff]
    %v100 = vld [vmem:[#allocation2 + $0xe8] sm:$0xff]
    %v101 = vld [vmem:[#allocation2 + $0xf0] sm:$0xff]
    %v102 = vld [vmem:[#allocation2 + $0xf8] sm:$0xff]
    %v103 = vld [vmem:[#allocation2 + $0x100] sm:$0xff]
    %v104 = vld [vmem:[#allocation2 + $0x108] sm:$0xff]
    %v105 = vld [vmem:[#allocation2 + $0x110] sm:$0xff]
    %v106 = vld [vmem:[#allocation2 + $0x118] sm:$0xff]
    %v107 = vld [vmem:[#allocation2 + $0x120] sm:$0xff]
    %v108 = vld [vmem:[#allocation2 + $0x128] sm:$0xff]
    %v109 = vld [vmem:[#allocation2 + $0x130] sm:$0xff]
    %v110 = vld [vmem:[#allocation2 + $0x138] sm:$0xff]
    %v111 = vld [vmem:[#allocation2 + $0x140] sm:$0xff]
    %v112 = vld [vmem:[#allocation2 + $0x148] sm:$0xff]
    %v113 = vld [vmem:[#allocation2 + $0x150] sm:$0xff]
    %v114 = vld [vmem:[#allocation2 + $0x158] sm:$0xff]
    %v115 = vld [vmem:[#allocation2 + $0x160] sm:$0xff]
    %v116 = vld [vmem:[#allocation2 + $0x168] sm:$0xff]
    %v117 = vld [vmem:[#allocation2 + $0x170] sm:$0xff]
    %v118 = vld [vmem:[#allocation2 + $0x178] sm:$0xff]
    %v119 = vld [vmem:[#allocation2 + $0x180] sm:$0xff]
    %v120 = vld [vmem:[#allocation2 + $0x188] sm:$0xff]
    %v121 = vld [vmem:[#allocation2 + $0x190] sm:$0xff]
    %v122 = vld [vmem:[#allocation2 + $0x198] sm:$0xff]
    %v123 = vld [vmem:[#allocation2 + $0x1a0] sm:$0xff]
    %v124 = vld [vmem:[#allocation2 + $0x1a8] sm:$0xff]
    %v125 = vld [vmem:[#allocation2 + $0x1b0] sm:$0xff]
    %v126 = vld [vmem:[#allocation2 + $0x1b8] sm:$0xff]
    %v127 = vld [vmem:[#allocation2 + $0x1c0] sm:$0xff]
    %v128 = vld [vmem:[#allocation2 + $0x1c8] sm:$0xff]
    %v129 = vld [vmem:[#allocation2 + $0x1d0] sm:$0xff]
    %v130 = vld [vmem:[#allocation2 + $0x1d8] sm:$0xff]
    %v131 = vld [vmem:[#allocation2 + $0x1e0] sm:$0xff]
    %v132 = vld [vmem:[#allocation2 + $0x1e8] sm:$0xff]
    %v133 = vld [vmem:[#allocation2 + $0x1f0] sm:$0xff]
    %v134 = vld [vmem:[#allocation2 + $0x1f8] sm:$0xff]
    %v135 = vmax.f32 %v71, 0.0
    %v136 = vmax.f32 %v72, 0.0
    %v137 = vmax.f32 %v73, 0.0
    %v138 = vmax.f32 %v74, 0.0
    %v139 = vmax.f32 %v75, 0.0
    %v140 = vmax.f32 %v76, 0.0
    %v141 = vmax.f32 %v77, 0.0
    %v142 = vmax.f32 %v78, 0.0
    %v143 = vmax.f32 %v79, 0.0
    %v144 = vmax.f32 %v80, 0.0
    %v145 = vmax.f32 %v81, 0.0
    %v146 = vmax.f32 %v82, 0.0
    %v147 = vmax.f32 %v83, 0.0
    %v148 = vmax.f32 %v84, 0.0
    %v149 = vmax.f32 %v85, 0.0
    %v150 = vmax.f32 %v86, 0.0
    %v151 = vmax.f32 %v87, 0.0
    %v152 = vmax.f32 %v88, 0.0
    %v153 = vmax.f32 %v89, 0.0
    %v154 = vmax.f32 %v90, 0.0
    %v155 = vmax.f32 %v91, 0.0
    %v156 = vmax.f32 %v92, 0.0
    %v157 = vmax.f32 %v93, 0.0
    %v158 = vmax.f32 %v94, 0.0
    %v159 = vmax.f32 %v95, 0.0
    %v160 = vmax.f32 %v96, 0.0
    %v161 = vmax.f32 %v97, 0.0
    %v162 = vmax.f32 %v98, 0.0
    %v163 = vmax.f32 %v99, 0.0
    %v164 = vmax.f32 %v100, 0.0
    %v165 = vmax.f32 %v101, 0.0
    %v166 = vmax.f32 %v102, 0.0
    %v167 = vmax.f32 %v103, 0.0
    %v168 = vmax.f32 %v104, 0.0
    %v169 = vmax.f32 %v105, 0.0
    %v170 = vmax.f32 %v106, 0.0
    %v171 = vmax.f32 %v107, 0.0
    %v172 = vmax.f32 %v108, 0.0
    %v173 = vmax.f32 %v109, 0.0
    %v174 = vmax.f32 %v110, 0.0
    %v175 = vmax.f32 %v111, 0.0
    %v176 = vmax.f32 %v112, 0.0
    %v177 = vmax.f32 %v113, 0.0
    %v178 = vmax.f32 %v114, 0.0
    %v179 = vmax.f32 %v115, 0.0
    %v180 = vmax.f32 %v116, 0.0
    %v181 = vmax.f32 %v117, 0.0
    %v182 = vmax.f32 %v118, 0.0
    %v183 = vmax.f32 %v119, 0.0
    %v184 = vmax.f32 %v120, 0.0
    %v185 = vmax.f32 %v121, 0.0
    %v186 = vmax.f32 %v122, 0.0
    %v187 = vmax.f32 %v123, 0.0
    %v188 = vmax.f32 %v124, 0.0
    %v189 = vmax.f32 %v125, 0.0
    %v190 = vmax.f32 %v126, 0.0
    %v191 = vmax.f32 %v127, 0.0
    %v192 = vmax.f32 %v128, 0.0
    %v193 = vmax.f32 %v129, 0.0
    %v194 = vmax.f32 %v130, 0.0
    %v195 = vmax.f32 %v131, 0.0
    %v196 = vmax.f32 %v132, 0.0
    %v197 = vmax.f32 %v133, 0.0
    %v198 = vmax.f32 %v134, 0.0
    %v199 = vld [vmem:[#allocation4] sm:$0xff]
    %v200 = vld [vmem:[#allocation4 + $0x8] sm:$0xff]
    %v201 = vld [vmem:[#allocation4 + $0x10] sm:$0xff]
    %v202 = vld [vmem:[#allocation4 + $0x18] sm:$0xff]
    %v203 = vld [vmem:[#allocation4 + $0x20] sm:$0xff]
    %v204 = vld [vmem:[#allocation4 + $0x28] sm:$0xff]
    %v205 = vld [vmem:[#allocation4 + $0x30] sm:$0xff]
    %v206 = vld [vmem:[#allocation4 + $0x38] sm:$0xff]
    %v207 = vld [vmem:[#allocation4 + $0x40] sm:$0xff]
    %v208 = vld [vmem:[#allocation4 + $0x48] sm:$0xff]
    %v209 = vld [vmem:[#allocation4 + $0x50] sm:$0xff]
    %v210 = vld [vmem:[#allocation4 + $0x58] sm:$0xff]
    %v211 = vld [vmem:[#allocation4 + $0x60] sm:$0xff]
    %v212 = vld [vmem:[#allocation4 + $0x68] sm:$0xff]
    %v213 = vld [vmem:[#allocation4 + $0x70] sm:$0xff]
    %v214 = vld [vmem:[#allocation4 + $0x78] sm:$0xff]
    %v215 = vld [vmem:[#allocation4 + $0x80] sm:$0xff]
    %v216 = vld [vmem:[#allocation4 + $0x88] sm:$0xff]
    %v217 = vld [vmem:[#allocation4 + $0x90] sm:$0xff]
    %v218 = vld [vmem:[#allocation4 + $0x98] sm:$0xff]
    %v219 = vld [vmem:[#allocation4 + $0xa0] sm:$0xff]
    %v220 = vld [vmem:[#allocation4 + $0xa8] sm:$0xff]
    %v221 = vld [vmem:[#allocation4 + $0xb0] sm:$0xff]
    %v222 = vld [vmem:[#allocation4 + $0xb8] sm:$0xff]
    %v223 = vld [vmem:[#allocation4 + $0xc0] sm:$0xff]
    %v224 = vld [vmem:[#allocation4 + $0xc8] sm:$0xff]
    %v225 = vld [vmem:[#allocation4 + $0xd0] sm:$0xff]
    %v226 = vld [vmem:[#allocation4 + $0xd8] sm:$0xff]
    %v227 = vld [vmem:[#allocation4 + $0xe0] sm:$0xff]
    %v228 = vld [vmem:[#allocation4 + $0xe8] sm:$0xff]
    %v229 = vld [vmem:[#allocation4 + $0xf0] sm:$0xff]
    %v230 = vld [vmem:[#allocation4 + $0xf8] sm:$0xff]
    %v231 = vld [vmem:[#allocation4 + $0x100] sm:$0xff]
    %v232 = vld [vmem:[#allocation4 + $0x108] sm:$0xff]
    %v233 = vld [vmem:[#allocation4 + $0x110] sm:$0xff]
    %v234 = vld [vmem:[#allocation4 + $0x118] sm:$0xff]
    %v235 = vld [vmem:[#allocation4 + $0x120] sm:$0xff]
    %v236 = vld [vmem:[#allocation4 + $0x128] sm:$0xff]
    %v237 = vld [vmem:[#allocation4 + $0x130] sm:$0xff]
    %v238 = vld [vmem:[#allocation4 + $0x138] sm:$0xff]
    %v239 = vld [vmem:[#allocation4 + $0x140] sm:$0xff]
    %v240 = vld [vmem:[#allocation4 + $0x148] sm:$0xff]
    %v241 = vld [vmem:[#allocation4 + $0x150] sm:$0xff]
    %v242 = vld [vmem:[#allocation4 + $0x158] sm:$0xff]
    %v243 = vld [vmem:[#allocation4 + $0x160] sm:$0xff]
    %v244 = vld [vmem:[#allocation4 + $0x168] sm:$0xff]
    %v245 = vld [vmem:[#allocation4 + $0x170] sm:$0xff]
    %v246 = vld [vmem:[#allocation4 + $0x178] sm:$0xff]
    %v247 = vld [vmem:[#allocation4 + $0x180] sm:$0xff]
    %v248 = vld [vmem:[#allocation4 + $0x188] sm:$0xff]
    %v249 = vld [vmem:[#allocation4 + $0x190] sm:$0xff]
    %v250 = vld [vmem:[#allocation4 + $0x198] sm:$0xff]
    %v251 = vld [vmem:[#allocation4 + $0x1a0] sm:$0xff]
    %v252 = vld [vmem:[#allocation4 + $0x1a8] sm:$0xff]
    %v253 = vld [vmem:[#allocation4 + $0x1b0] sm:$0xff]
    %v254 = vld [vmem:[#allocation4 + $0x1b8] sm:$0xff]
    %v255 = vld [vmem:[#allocation4 + $0x1c0] sm:$0xff]
    %v256 = vld [vmem:[#allocation4 + $0x1c8] sm:$0xff]
    %v257 = vld [vmem:[#allocation4 + $0x1d0] sm:$0xff]
    %v258 = vld [vmem:[#allocation4 + $0x1d8] sm:$0xff]
    %v259 = vld [vmem:[#allocation4 + $0x1e0] sm:$0xff]
    %v260 = vld [vmem:[#allocation4 + $0x1e8] sm:$0xff]
    %v261 = vld [vmem:[#allocation4 + $0x1f0] sm:$0xff]
    %v262 = vld [vmem:[#allocation4 + $0x1f8] sm:$0xff]
    %v263 = vld [vmem:[#allocation4 + $0x200] sm:$0xff]
    %v264 = vld [vmem:[#allocation4 + $0x208] sm:$0xff]
    %v265 = vld [vmem:[#allocation4 + $0x210] sm:$0xff]
    %v266 = vld [vmem:[#allocation4 + $0x218] sm:$0xff]
    %v267 = vld [vmem:[#allocation4 + $0x220] sm:$0xff]
    %v268 = vld [vmem:[#allocation4 + $0x228] sm:$0xff]
    %v269 = vld [vmem:[#allocation4 + $0x230] sm:$0xff]
    %v270 = vld [vmem:[#allocation4 + $0x238] sm:$0xff]
    %v271 = vld [vmem:[#allocation4 + $0x240] sm:$0xff]
    %v272 = vld [vmem:[#allocation4 + $0x248] sm:$0xff]
    %v273 = vld [vmem:[#allocation4 + $0x250] sm:$0xff]
    %v274 = vld [vmem:[#allocation4 + $0x258] sm:$0xff]
    %v275 = vld [vmem:[#allocation4 + $0x260] sm:$0xff]
    %v276 = vld [vmem:[#allocation4 + $0x268] sm:$0xff]
    %v277 = vld [vmem:[#allocation4 + $0x270] sm:$0xff]
    %v278 = vld [vmem:[#allocation4 + $0x278] sm:$0xff]
    %v279 = vld [vmem:[#allocation4 + $0x280] sm:$0xff]
    %v280 = vld [vmem:[#allocation4 + $0x288] sm:$0xff]
    %v281 = vld [vmem:[#allocation4 + $0x290] sm:$0xff]
    %v282 = vld [vmem:[#allocation4 + $0x298] sm:$0xff]
    %v283 = vld [vmem:[#allocation4 + $0x2a0] sm:$0xff]
    %v284 = vld [vmem:[#allocation4 + $0x2a8] sm:$0xff]
    %v285 = vld [vmem:[#allocation4 + $0x2b0] sm:$0xff]
    %v286 = vld [vmem:[#allocation4 + $0x2b8] sm:$0xff]
    %v287 = vld [vmem:[#allocation4 + $0x2c0] sm:$0xff]
    %v288 = vld [vmem:[#allocation4 + $0x2c8] sm:$0xff]
    %v289 = vld [vmem:[#allocation4 + $0x2d0] sm:$0xff]
    %v290 = vld [vmem:[#allocation4 + $0x2d8] sm:$0xff]
    %v291 = vld [vmem:[#allocation4 + $0x2e0] sm:$0xff]
    %v292 = vld [vmem:[#allocation4 + $0x2e8] sm:$0xff]
    %v293 = vld [vmem:[#allocation4 + $0x2f0] sm:$0xff]
    %v294 = vld [vmem:[#allocation4 + $0x2f8] sm:$0xff]
    %v295 = vld [vmem:[#allocation4 + $0x300] sm:$0xff]
    %v296 = vld [vmem:[#allocation4 + $0x308] sm:$0xff]
    %v297 = vld [vmem:[#allocation4 + $0x310] sm:$0xff]
    %v298 = vld [vmem:[#allocation4 + $0x318] sm:$0xff]
    %v299 = vld [vmem:[#allocation4 + $0x320] sm:$0xff]
    %v300 = vld [vmem:[#allocation4 + $0x328] sm:$0xff]
    %v301 = vld [vmem:[#allocation4 + $0x330] sm:$0xff]
    %v302 = vld [vmem:[#allocation4 + $0x338] sm:$0xff]
    %v303 = vld [vmem:[#allocation4 + $0x340] sm:$0xff]
    %v304 = vld [vmem:[#allocation4 + $0x348] sm:$0xff]
    %v305 = vld [vmem:[#allocation4 + $0x350] sm:$0xff]
    %v306 = vld [vmem:[#allocation4 + $0x358] sm:$0xff]
    %v307 = vld [vmem:[#allocation4 + $0x360] sm:$0xff]
    %v308 = vld [vmem:[#allocation4 + $0x368] sm:$0xff]
    %v309 = vld [vmem:[#allocation4 + $0x370] sm:$0xff]
    %v310 = vld [vmem:[#allocation4 + $0x378] sm:$0xff]
    %v311 = vld [vmem:[#allocation4 + $0x380] sm:$0xff]
    %v312 = vld [vmem:[#allocation4 + $0x388] sm:$0xff]
    %v313 = vld [vmem:[#allocation4 + $0x390] sm:$0xff]
    %v314 = vld [vmem:[#allocation4 + $0x398] sm:$0xff]
    %v315 = vld [vmem:[#allocation4 + $0x3a0] sm:$0xff]
    %v316 = vld [vmem:[#allocation4 + $0x3a8] sm:$0xff]
    %v317 = vld [vmem:[#allocation4 + $0x3b0] sm:$0xff]
    %v318 = vld [vmem:[#allocation4 + $0x3b8] sm:$0xff]
    %v319 = vld [vmem:[#allocation4 + $0x3c0] sm:$0xff]
    %v320 = vld [vmem:[#allocation4 + $0x3c8] sm:$0xff]
    %v321 = vld [vmem:[#allocation4 + $0x3d0] sm:$0xff]
    %v322 = vld [vmem:[#allocation4 + $0x3d8] sm:$0xff]
    %v323 = vld [vmem:[#allocation4 + $0x3e0] sm:$0xff]
    %v324 = vld [vmem:[#allocation4 + $0x3e8] sm:$0xff]
    %v325 = vld [vmem:[#allocation4 + $0x3f0] sm:$0xff]
    %v326 = vld [vmem:[#allocation4 + $0x3f8] sm:$0xff]
    %v327 = vld [vmem:[#allocation4 + $0x400] sm:$0xff]
    %v328 = vld [vmem:[#allocation4 + $0x408] sm:$0xff]
    %v329 = vld [vmem:[#allocation4 + $0x410] sm:$0xff]
    %v330 = vld [vmem:[#allocation4 + $0x418] sm:$0xff]
    %v331 = vld [vmem:[#allocation4 + $0x420] sm:$0xff]
    %v332 = vld [vmem:[#allocation4 + $0x428] sm:$0xff]
    %v333 = vld [vmem:[#allocation4 + $0x430] sm:$0xff]
    %v334 = vld [vmem:[#allocation4 + $0x438] sm:$0xff]
    %v335 = vld [vmem:[#allocation4 + $0x440] sm:$0xff]
    %v336 = vld [vmem:[#allocation4 + $0x448] sm:$0xff]
    %v337 = vld [vmem:[#allocation4 + $0x450] sm:$0xff]
    %v338 = vld [vmem:[#allocation4 + $0x458] sm:$0xff]
    %v339 = vld [vmem:[#allocation4 + $0x460] sm:$0xff]
    %v340 = vld [vmem:[#allocation4 + $0x468] sm:$0xff]
    %v341 = vld [vmem:[#allocation4 + $0x470] sm:$0xff]
    %v342 = vld [vmem:[#allocation4 + $0x478] sm:$0xff]
    %v343 = vld [vmem:[#allocation4 + $0x480] sm:$0xff]
    %v344 = vld [vmem:[#allocation4 + $0x488] sm:$0xff]
    %v345 = vld [vmem:[#allocation4 + $0x490] sm:$0xff]
    %v346 = vld [vmem:[#allocation4 + $0x498] sm:$0xff]
    %v347 = vld [vmem:[#allocation4 + $0x4a0] sm:$0xff]
    %v348 = vld [vmem:[#allocation4 + $0x4a8] sm:$0xff]
    %v349 = vld [vmem:[#allocation4 + $0x4b0] sm:$0xff]
    %v350 = vld [vmem:[#allocation4 + $0x4b8] sm:$0xff]
    %v351 = vld [vmem:[#allocation4 + $0x4c0] sm:$0xff]
    %v352 = vld [vmem:[#allocation4 + $0x4c8] sm:$0xff]
    %v353 = vld [vmem:[#allocation4 + $0x4d0] sm:$0xff]
    %v354 = vld [vmem:[#allocation4 + $0x4d8] sm:$0xff]
    %v355 = vld [vmem:[#allocation4 + $0x4e0] sm:$0xff]
    %v356 = vld [vmem:[#allocation4 + $0x4e8] sm:$0xff]
    %v357 = vld [vmem:[#allocation4 + $0x4f0] sm:$0xff]
    %v358 = vld [vmem:[#allocation4 + $0x4f8] sm:$0xff]
    %v359 = vld [vmem:[#allocation4 + $0x500] sm:$0xff]
    %v360 = vld [vmem:[#allocation4 + $0x508] sm:$0xff]
    %v361 = vld [vmem:[#allocation4 + $0x510] sm:$0xff]
    %v362 = vld [vmem:[#allocation4 + $0x518] sm:$0xff]
    %v363 = vld [vmem:[#allocation4 + $0x520] sm:$0xff]
    %v364 = vld [vmem:[#allocation4 + $0x528] sm:$0xff]
    %v365 = vld [vmem:[#allocation4 + $0x530] sm:$0xff]
    %v366 = vld [vmem:[#allocation4 + $0x538] sm:$0xff]
    %v367 = vld [vmem:[#allocation4 + $0x540] sm:$0xff]
    %v368 = vld [vmem:[#allocation4 + $0x548] sm:$0xff]
    %v369 = vld [vmem:[#allocation4 + $0x550] sm:$0xff]
    %v370 = vld [vmem:[#allocation4 + $0x558] sm:$0xff]
    %v371 = vld [vmem:[#allocation4 + $0x560] sm:$0xff]
    %v372 = vld [vmem:[#allocation4 + $0x568] sm:$0xff]
    %v373 = vld [vmem:[#allocation4 + $0x570] sm:$0xff]
    %v374 = vld [vmem:[#allocation4 + $0x578] sm:$0xff]
    %v375 = vld [vmem:[#allocation4 + $0x580] sm:$0xff]
    %v376 = vld [vmem:[#allocation4 + $0x588] sm:$0xff]
    %v377 = vld [vmem:[#allocation4 + $0x590] sm:$0xff]
    %v378 = vld [vmem:[#allocation4 + $0x598] sm:$0xff]
    %v379 = vld [vmem:[#allocation4 + $0x5a0] sm:$0xff]
    %v380 = vld [vmem:[#allocation4 + $0x5a8] sm:$0xff]
    %v381 = vld [vmem:[#allocation4 + $0x5b0] sm:$0xff]
    %v382 = vld [vmem:[#allocation4 + $0x5b8] sm:$0xff]
    %v383 = vld [vmem:[#allocation4 + $0x5c0] sm:$0xff]
    %v384 = vld [vmem:[#allocation4 + $0x5c8] sm:$0xff]
    %v385 = vld [vmem:[#allocation4 + $0x5d0] sm:$0xff]
    %v386 = vld [vmem:[#allocation4 + $0x5d8] sm:$0xff]
    %v387 = vld [vmem:[#allocation4 + $0x5e0] sm:$0xff]
    %v388 = vld [vmem:[#allocation4 + $0x5e8] sm:$0xff]
    %v389 = vld [vmem:[#allocation4 + $0x5f0] sm:$0xff]
    %v390 = vld [vmem:[#allocation4 + $0x5f8] sm:$0xff]
    %v391 = vld [vmem:[#allocation4 + $0x600] sm:$0xff]
    %v392 = vld [vmem:[#allocation4 + $0x608] sm:$0xff]
    %v393 = vld [vmem:[#allocation4 + $0x610] sm:$0xff]
    %v394 = vld [vmem:[#allocation4 + $0x618] sm:$0xff]
    %v395 = vld [vmem:[#allocation4 + $0x620] sm:$0xff]
    %v396 = vld [vmem:[#allocation4 + $0x628] sm:$0xff]
    %v397 = vld [vmem:[#allocation4 + $0x630] sm:$0xff]
    %v398 = vld [vmem:[#allocation4 + $0x638] sm:$0xff]
    %v399 = vld [vmem:[#allocation4 + $0x640] sm:$0xff]
    %v400 = vld [vmem:[#allocation4 + $0x648] sm:$0xff]
    %v401 = vld [vmem:[#allocation4 + $0x650] sm:$0xff]
    %v402 = vld [vmem:[#allocation4 + $0x658] sm:$0xff]
    %v403 = vld [vmem:[#allocation4 + $0x660] sm:$0xff]
    %v404 = vld [vmem:[#allocation4 + $0x668] sm:$0xff]
    %v405 = vld [vmem:[#allocation4 + $0x670] sm:$0xff]
    %v406 = vld [vmem:[#allocation4 + $0x678] sm:$0xff]
    %v407 = vld [vmem:[#allocation4 + $0x680] sm:$0xff]
    %v408 = vld [vmem:[#allocation4 + $0x688] sm:$0xff]
    %v409 = vld [vmem:[#allocation4 + $0x690] sm:$0xff]
    %v410 = vld [vmem:[#allocation4 + $0x698] sm:$0xff]
    %v411 = vld [vmem:[#allocation4 + $0x6a0] sm:$0xff]
    %v412 = vld [vmem:[#allocation4 + $0x6a8] sm:$0xff]
    %v413 = vld [vmem:[#allocation4 + $0x6b0] sm:$0xff]
    %v414 = vld [vmem:[#allocation4 + $0x6b8] sm:$0xff]
    %v415 = vld [vmem:[#allocation4 + $0x6c0] sm:$0xff]
    %v416 = vld [vmem:[#allocation4 + $0x6c8] sm:$0xff]
    %v417 = vld [vmem:[#allocation4 + $0x6d0] sm:$0xff]
    %v418 = vld [vmem:[#allocation4 + $0x6d8] sm:$0xff]
    %v419 = vld [vmem:[#allocation4 + $0x6e0] sm:$0xff]
    %v420 = vld [vmem:[#allocation4 + $0x6e8] sm:$0xff]
    %v421 = vld [vmem:[#allocation4 + $0x6f0] sm:$0xff]
    %v422 = vld [vmem:[#allocation4 + $0x6f8] sm:$0xff]
    %v423 = vld [vmem:[#allocation4 + $0x700] sm:$0xff]
    %v424 = vld [vmem:[#allocation4 + $0x708] sm:$0xff]
    %v425 = vld [vmem:[#allocation4 + $0x710] sm:$0xff]
    %v426 = vld [vmem:[#allocation4 + $0x718] sm:$0xff]
    %v427 = vld [vmem:[#allocation4 + $0x720] sm:$0xff]
    %v428 = vld [vmem:[#allocation4 + $0x728] sm:$0xff]
    %v429 = vld [vmem:[#allocation4 + $0x730] sm:$0xff]
    %v430 = vld [vmem:[#allocation4 + $0x738] sm:$0xff]
    %v431 = vld [vmem:[#allocation4 + $0x740] sm:$0xff]
    %v432 = vld [vmem:[#allocation4 + $0x748] sm:$0xff]
    %v433 = vld [vmem:[#allocation4 + $0x750] sm:$0xff]
    %v434 = vld [vmem:[#allocation4 + $0x758] sm:$0xff]
    %v435 = vld [vmem:[#allocation4 + $0x760] sm:$0xff]
    %v436 = vld [vmem:[#allocation4 + $0x768] sm:$0xff]
    %v437 = vld [vmem:[#allocation4 + $0x770] sm:$0xff]
    %v438 = vld [vmem:[#allocation4 + $0x778] sm:$0xff]
    %v439 = vld [vmem:[#allocation4 + $0x780] sm:$0xff]
    %v440 = vld [vmem:[#allocation4 + $0x788] sm:$0xff]
    %v441 = vld [vmem:[#allocation4 + $0x790] sm:$0xff]
    %v442 = vld [vmem:[#allocation4 + $0x798] sm:$0xff]
    %v443 = vld [vmem:[#allocation4 + $0x7a0] sm:$0xff]
    %v444 = vld [vmem:[#allocation4 + $0x7a8] sm:$0xff]
    %v445 = vld [vmem:[#allocation4 + $0x7b0] sm:$0xff]
    %v446 = vld [vmem:[#allocation4 + $0x7b8] sm:$0xff]
    %v447 = vld [vmem:[#allocation4 + $0x7c0] sm:$0xff]
    %v448 = vld [vmem:[#allocation4 + $0x7c8] sm:$0xff]
    %v449 = vld [vmem:[#allocation4 + $0x7d0] sm:$0xff]
    %v450 = vld [vmem:[#allocation4 + $0x7d8] sm:$0xff]
    %v451 = vld [vmem:[#allocation4 + $0x7e0] sm:$0xff]
    %v452 = vld [vmem:[#allocation4 + $0x7e8] sm:$0xff]
    %v453 = vld [vmem:[#allocation4 + $0x7f0] sm:$0xff]
    %v454 = vld [vmem:[#allocation4 + $0x7f8] sm:$0xff]
    %v455 = vld [vmem:[#allocation4 + $0x800] sm:$0xff]
    %v456 = vld [vmem:[#allocation4 + $0x808] sm:$0xff]
    %v457 = vld [vmem:[#allocation4 + $0x810] sm:$0xff]
    %v458 = vld [vmem:[#allocation4 + $0x818] sm:$0xff]
    %v459 = vld [vmem:[#allocation4 + $0x820] sm:$0xff]
    %v460 = vld [vmem:[#allocation4 + $0x828] sm:$0xff]
    %v461 = vld [vmem:[#allocation4 + $0x830] sm:$0xff]
    %v462 = vld [vmem:[#allocation4 + $0x838] sm:$0xff]
    %v463 = vld [vmem:[#allocation4 + $0x840] sm:$0xff]
    %v464 = vld [vmem:[#allocation4 + $0x848] sm:$0xff]
    %v465 = vld [vmem:[#allocation4 + $0x850] sm:$0xff]
    %v466 = vld [vmem:[#allocation4 + $0x858] sm:$0xff]
    %v467 = vld [vmem:[#allocation4 + $0x860] sm:$0xff]
    %v468 = vld [vmem:[#allocation4 + $0x868] sm:$0xff]
    %v469 = vld [vmem:[#allocation4 + $0x870] sm:$0xff]
    %v470 = vld [vmem:[#allocation4 + $0x878] sm:$0xff]
    %v471 = vld [vmem:[#allocation4 + $0x880] sm:$0xff]
    %v472 = vld [vmem:[#allocation4 + $0x888] sm:$0xff]
    %v473 = vld [vmem:[#allocation4 + $0x890] sm:$0xff]
    %v474 = vld [vmem:[#allocation4 + $0x898] sm:$0xff]
    %v475 = vld [vmem:[#allocation4 + $0x8a0] sm:$0xff]
    %v476 = vld [vmem:[#allocation4 + $0x8a8] sm:$0xff]
    %v477 = vld [vmem:[#allocation4 + $0x8b0] sm:$0xff]
    %v478 = vld [vmem:[#allocation4 + $0x8b8] sm:$0xff]
    %v479 = vld [vmem:[#allocation4 + $0x8c0] sm:$0xff]
    %v480 = vld [vmem:[#allocation4 + $0x8c8] sm:$0xff]
    %v481 = vld [vmem:[#allocation4 + $0x8d0] sm:$0xff]
    %v482 = vld [vmem:[#allocation4 + $0x8d8] sm:$0xff]
    %v483 = vld [vmem:[#allocation4 + $0x8e0] sm:$0xff]
    %v484 = vld [vmem:[#allocation4 + $0x8e8] sm:$0xff]
    %v485 = vld [vmem:[#allocation4 + $0x8f0] sm:$0xff]
    %v486 = vld [vmem:[#allocation4 + $0x8f8] sm:$0xff]
    %v487 = vld [vmem:[#allocation4 + $0x900] sm:$0xff]
    %v488 = vld [vmem:[#allocation4 + $0x908] sm:$0xff]
    %v489 = vld [vmem:[#allocation4 + $0x910] sm:$0xff]
    %v490 = vld [vmem:[#allocation4 + $0x918] sm:$0xff]
    %v491 = vld [vmem:[#allocation4 + $0x920] sm:$0xff]
    %v492 = vld [vmem:[#allocation4 + $0x928] sm:$0xff]
    %v493 = vld [vmem:[#allocation4 + $0x930] sm:$0xff]
    %v494 = vld [vmem:[#allocation4 + $0x938] sm:$0xff]
    %v495 = vld [vmem:[#allocation4 + $0x940] sm:$0xff]
    %v496 = vld [vmem:[#allocation4 + $0x948] sm:$0xff]
    %v497 = vld [vmem:[#allocation4 + $0x950] sm:$0xff]
    %v498 = vld [vmem:[#allocation4 + $0x958] sm:$0xff]
    %v499 = vld [vmem:[#allocation4 + $0x960] sm:$0xff]
    %v500 = vld [vmem:[#allocation4 + $0x968] sm:$0xff]
    %v501 = vld [vmem:[#allocation4 + $0x970] sm:$0xff]
    %v502 = vld [vmem:[#allocation4 + $0x978] sm:$0xff]
    %v503 = vld [vmem:[#allocation4 + $0x980] sm:$0xff]
    %v504 = vld [vmem:[#allocation4 + $0x988] sm:$0xff]
    %v505 = vld [vmem:[#allocation4 + $0x990] sm:$0xff]
    %v506 = vld [vmem:[#allocation4 + $0x998] sm:$0xff]
    %v507 = vld [vmem:[#allocation4 + $0x9a0] sm:$0xff]
    %v508 = vld [vmem:[#allocation4 + $0x9a8] sm:$0xff]
    %v509 = vld [vmem:[#allocation4 + $0x9b0] sm:$0xff]
    %v510 = vld [vmem:[#allocation4 + $0x9b8] sm:$0xff]
    %v511 = vld [vmem:[#allocation4 + $0x9c0] sm:$0xff]
    %v512 = vld [vmem:[#allocation4 + $0x9c8] sm:$0xff]
    %v513 = vld [vmem:[#allocation4 + $0x9d0] sm:$0xff]
    %v514 = vld [vmem:[#allocation4 + $0x9d8] sm:$0xff]
    %v515 = vld [vmem:[#allocation4 + $0x9e0] sm:$0xff]
    %v516 = vld [vmem:[#allocation4 + $0x9e8] sm:$0xff]
    %v517 = vld [vmem:[#allocation4 + $0x9f0] sm:$0xff]
    %v518 = vld [vmem:[#allocation4 + $0x9f8] sm:$0xff]
    %v519 = vld [vmem:[#allocation4 + $0xa00] sm:$0xff]
    %v520 = vld [vmem:[#allocation4 + $0xa08] sm:$0xff]
    %v521 = vld [vmem:[#allocation4 + $0xa10] sm:$0xff]
    %v522 = vld [vmem:[#allocation4 + $0xa18] sm:$0xff]
    %v523 = vld [vmem:[#allocation4 + $0xa20] sm:$0xff]
    %v524 = vld [vmem:[#allocation4 + $0xa28] sm:$0xff]
    %v525 = vld [vmem:[#allocation4 + $0xa30] sm:$0xff]
    %v526 = vld [vmem:[#allocation4 + $0xa38] sm:$0xff]
    %v527 = vld [vmem:[#allocation4 + $0xa40] sm:$0xff]
    %v528 = vld [vmem:[#allocation4 + $0xa48] sm:$0xff]
    %v529 = vld [vmem:[#allocation4 + $0xa50] sm:$0xff]
    %v530 = vld [vmem:[#allocation4 + $0xa58] sm:$0xff]
    %v531 = vld [vmem:[#allocation4 + $0xa60] sm:$0xff]
    %v532 = vld [vmem:[#allocation4 + $0xa68] sm:$0xff]
    %v533 = vld [vmem:[#allocation4 + $0xa70] sm:$0xff]
    %v534 = vld [vmem:[#allocation4 + $0xa78] sm:$0xff]
    %v535 = vld [vmem:[#allocation4 + $0xa80] sm:$0xff]
    %v536 = vld [vmem:[#allocation4 + $0xa88] sm:$0xff]
    %v537 = vld [vmem:[#allocation4 + $0xa90] sm:$0xff]
    %v538 = vld [vmem:[#allocation4 + $0xa98] sm:$0xff]
    %v539 = vld [vmem:[#allocation4 + $0xaa0] sm:$0xff]
    %v540 = vld [vmem:[#allocation4 + $0xaa8] sm:$0xff]
    %v541 = vld [vmem:[#allocation4 + $0xab0] sm:$0xff]
    %v542 = vld [vmem:[#allocation4 + $0xab8] sm:$0xff]
    %v543 = vld [vmem:[#allocation4 + $0xac0] sm:$0xff]
    %v544 = vld [vmem:[#allocation4 + $0xac8] sm:$0xff]
    %v545 = vld [vmem:[#allocation4 + $0xad0] sm:$0xff]
    %v546 = vld [vmem:[#allocation4 + $0xad8] sm:$0xff]
    %v547 = vld [vmem:[#allocation4 + $0xae0] sm:$0xff]
    %v548 = vld [vmem:[#allocation4 + $0xae8] sm:$0xff]
    %v549 = vld [vmem:[#allocation4 + $0xaf0] sm:$0xff]
    %v550 = vld [vmem:[#allocation4 + $0xaf8] sm:$0xff]
    %v551 = vld [vmem:[#allocation4 + $0xb00] sm:$0xff]
    %v552 = vld [vmem:[#allocation4 + $0xb08] sm:$0xff]
    %v553 = vld [vmem:[#allocation4 + $0xb10] sm:$0xff]
    %v554 = vld [vmem:[#allocation4 + $0xb18] sm:$0xff]
    %v555 = vld [vmem:[#allocation4 + $0xb20] sm:$0xff]
    %v556 = vld [vmem:[#allocation4 + $0xb28] sm:$0xff]
    %v557 = vld [vmem:[#allocation4 + $0xb30] sm:$0xff]
    %v558 = vld [vmem:[#allocation4 + $0xb38] sm:$0xff]
    %v559 = vld [vmem:[#allocation4 + $0xb40] sm:$0xff]
    %v560 = vld [vmem:[#allocation4 + $0xb48] sm:$0xff]
    %v561 = vld [vmem:[#allocation4 + $0xb50] sm:$0xff]
    %v562 = vld [vmem:[#allocation4 + $0xb58] sm:$0xff]
    %v563 = vld [vmem:[#allocation4 + $0xb60] sm:$0xff]
    %v564 = vld [vmem:[#allocation4 + $0xb68] sm:$0xff]
    %v565 = vld [vmem:[#allocation4 + $0xb70] sm:$0xff]
    %v566 = vld [vmem:[#allocation4 + $0xb78] sm:$0xff]
    %v567 = vld [vmem:[#allocation4 + $0xb80] sm:$0xff]
    %v568 = vld [vmem:[#allocation4 + $0xb88] sm:$0xff]
    %v569 = vld [vmem:[#allocation4 + $0xb90] sm:$0xff]
    %v570 = vld [vmem:[#allocation4 + $0xb98] sm:$0xff]
    %v571 = vld [vmem:[#allocation4 + $0xba0] sm:$0xff]
    %v572 = vld [vmem:[#allocation4 + $0xba8] sm:$0xff]
    %v573 = vld [vmem:[#allocation4 + $0xbb0] sm:$0xff]
    %v574 = vld [vmem:[#allocation4 + $0xbb8] sm:$0xff]
    %v575 = vld [vmem:[#allocation4 + $0xbc0] sm:$0xff]
    %v576 = vld [vmem:[#allocation4 + $0xbc8] sm:$0xff]
    %v577 = vld [vmem:[#allocation4 + $0xbd0] sm:$0xff]
    %v578 = vld [vmem:[#allocation4 + $0xbd8] sm:$0xff]
    %v579 = vld [vmem:[#allocation4 + $0xbe0] sm:$0xff]
    %v580 = vld [vmem:[#allocation4 + $0xbe8] sm:$0xff]
    %v581 = vld [vmem:[#allocation4 + $0xbf0] sm:$0xff]
    %v582 = vld [vmem:[#allocation4 + $0xbf8] sm:$0xff]
    %v583 = vld [vmem:[#allocation4 + $0xc00] sm:$0xff]
    %v584 = vld [vmem:[#allocation4 + $0xc08] sm:$0xff]
    %v585 = vld [vmem:[#allocation4 + $0xc10] sm:$0xff]
    %v586 = vld [vmem:[#allocation4 + $0xc18] sm:$0xff]
    %v587 = vld [vmem:[#allocation4 + $0xc20] sm:$0xff]
    %v588 = vld [vmem:[#allocation4 + $0xc28] sm:$0xff]
    %v589 = vld [vmem:[#allocation4 + $0xc30] sm:$0xff]
    %v590 = vld [vmem:[#allocation4 + $0xc38] sm:$0xff]
    %v591 = vld [vmem:[#allocation4 + $0xc40] sm:$0xff]
    %v592 = vld [vmem:[#allocation4 + $0xc48] sm:$0xff]
    %v593 = vld [vmem:[#allocation4 + $0xc50] sm:$0xff]
    %v594 = vld [vmem:[#allocation4 + $0xc58] sm:$0xff]
    %v595 = vld [vmem:[#allocation4 + $0xc60] sm:$0xff]
    %v596 = vld [vmem:[#allocation4 + $0xc68] sm:$0xff]
    %v597 = vld [vmem:[#allocation4 + $0xc70] sm:$0xff]
    %v598 = vld [vmem:[#allocation4 + $0xc78] sm:$0xff]
    %v599 = vld [vmem:[#allocation4 + $0xc80] sm:$0xff]
    %v600 = vld [vmem:[#allocation4 + $0xc88] sm:$0xff]
    %v601 = vld [vmem:[#allocation4 + $0xc90] sm:$0xff]
    %v602 = vld [vmem:[#allocation4 + $0xc98] sm:$0xff]
    %v603 = vld [vmem:[#allocation4 + $0xca0] sm:$0xff]
    %v604 = vld [vmem:[#allocation4 + $0xca8] sm:$0xff]
    %v605 = vld [vmem:[#allocation4 + $0xcb0] sm:$0xff]
    %v606 = vld [vmem:[#allocation4 + $0xcb8] sm:$0xff]
    %v607 = vld [vmem:[#allocation4 + $0xcc0] sm:$0xff]
    %v608 = vld [vmem:[#allocation4 + $0xcc8] sm:$0xff]
    %v609 = vld [vmem:[#allocation4 + $0xcd0] sm:$0xff]
    %v610 = vld [vmem:[#allocation4 + $0xcd8] sm:$0xff]
    %v611 = vld [vmem:[#allocation4 + $0xce0] sm:$0xff]
    %v612 = vld [vmem:[#allocation4 + $0xce8] sm:$0xff]
    %v613 = vld [vmem:[#allocation4 + $0xcf0] sm:$0xff]
    %v614 = vld [vmem:[#allocation4 + $0xcf8] sm:$0xff]
    %v615 = vld [vmem:[#allocation4 + $0xd00] sm:$0xff]
    %v616 = vld [vmem:[#allocation4 + $0xd08] sm:$0xff]
    %v617 = vld [vmem:[#allocation4 + $0xd10] sm:$0xff]
    %v618 = vld [vmem:[#allocation4 + $0xd18] sm:$0xff]
    %v619 = vld [vmem:[#allocation4 + $0xd20] sm:$0xff]
    %v620 = vld [vmem:[#allocation4 + $0xd28] sm:$0xff]
    %v621 = vld [vmem:[#allocation4 + $0xd30] sm:$0xff]
    %v622 = vld [vmem:[#allocation4 + $0xd38] sm:$0xff]
    %v623 = vld [vmem:[#allocation4 + $0xd40] sm:$0xff]
    %v624 = vld [vmem:[#allocation4 + $0xd48] sm:$0xff]
    %v625 = vld [vmem:[#allocation4 + $0xd50] sm:$0xff]
    %v626 = vld [vmem:[#allocation4 + $0xd58] sm:$0xff]
    %v627 = vld [vmem:[#allocation4 + $0xd60] sm:$0xff]
    %v628 = vld [vmem:[#allocation4 + $0xd68] sm:$0xff]
    %v629 = vld [vmem:[#allocation4 + $0xd70] sm:$0xff]
    %v630 = vld [vmem:[#allocation4 + $0xd78] sm:$0xff]
    %v631 = vld [vmem:[#allocation4 + $0xd80] sm:$0xff]
    %v632 = vld [vmem:[#allocation4 + $0xd88] sm:$0xff]
    %v633 = vld [vmem:[#allocation4 + $0xd90] sm:$0xff]
    %v634 = vld [vmem:[#allocation4 + $0xd98] sm:$0xff]
    %v635 = vld [vmem:[#allocation4 + $0xda0] sm:$0xff]
    %v636 = vld [vmem:[#allocation4 + $0xda8] sm:$0xff]
    %v637 = vld [vmem:[#allocation4 + $0xdb0] sm:$0xff]
    %v638 = vld [vmem:[#allocation4 + $0xdb8] sm:$0xff]
    %v639 = vld [vmem:[#allocation4 + $0xdc0] sm:$0xff]
    %v640 = vld [vmem:[#allocation4 + $0xdc8] sm:$0xff]
    %v641 = vld [vmem:[#allocation4 + $0xdd0] sm:$0xff]
    %v642 = vld [vmem:[#allocation4 + $0xdd8] sm:$0xff]
    %v643 = vld [vmem:[#allocation4 + $0xde0] sm:$0xff]
    %v644 = vld [vmem:[#allocation4 + $0xde8] sm:$0xff]
    %v645 = vld [vmem:[#allocation4 + $0xdf0] sm:$0xff]
    %v646 = vld [vmem:[#allocation4 + $0xdf8] sm:$0xff]
    %v647 = vld [vmem:[#allocation4 + $0xe00] sm:$0xff]
    %v648 = vld [vmem:[#allocation4 + $0xe08] sm:$0xff]
    %v649 = vld [vmem:[#allocation4 + $0xe10] sm:$0xff]
    %v650 = vld [vmem:[#allocation4 + $0xe18] sm:$0xff]
    %v651 = vld [vmem:[#allocation4 + $0xe20] sm:$0xff]
    %v652 = vld [vmem:[#allocation4 + $0xe28] sm:$0xff]
    %v653 = vld [vmem:[#allocation4 + $0xe30] sm:$0xff]
    %v654 = vld [vmem:[#allocation4 + $0xe38] sm:$0xff]
    %v655 = vld [vmem:[#allocation4 + $0xe40] sm:$0xff]
    %v656 = vld [vmem:[#allocation4 + $0xe48] sm:$0xff]
    %v657 = vld [vmem:[#allocation4 + $0xe50] sm:$0xff]
    %v658 = vld [vmem:[#allocation4 + $0xe58] sm:$0xff]
    %v659 = vld [vmem:[#allocation4 + $0xe60] sm:$0xff]
    %v660 = vld [vmem:[#allocation4 + $0xe68] sm:$0xff]
    %v661 = vld [vmem:[#allocation4 + $0xe70] sm:$0xff]
    %v662 = vld [vmem:[#allocation4 + $0xe78] sm:$0xff]
    %v663 = vld [vmem:[#allocation4 + $0xe80] sm:$0xff]
    %v664 = vld [vmem:[#allocation4 + $0xe88] sm:$0xff]
    %v665 = vld [vmem:[#allocation4 + $0xe90] sm:$0xff]
    %v666 = vld [vmem:[#allocation4 + $0xe98] sm:$0xff]
    %v667 = vld [vmem:[#allocation4 + $0xea0] sm:$0xff]
    %v668 = vld [vmem:[#allocation4 + $0xea8] sm:$0xff]
    %v669 = vld [vmem:[#allocation4 + $0xeb0] sm:$0xff]
    %v670 = vld [vmem:[#allocation4 + $0xeb8] sm:$0xff]
    %v671 = vld [vmem:[#allocation4 + $0xec0] sm:$0xff]
    %v672 = vld [vmem:[#allocation4 + $0xec8] sm:$0xff]
    %v673 = vld [vmem:[#allocation4 + $0xed0] sm:$0xff]
    %v674 = vld [vmem:[#allocation4 + $0xed8] sm:$0xff]
    %v675 = vld [vmem:[#allocation4 + $0xee0] sm:$0xff]
    %v676 = vld [vmem:[#allocation4 + $0xee8] sm:$0xff]
    %v677 = vld [vmem:[#allocation4 + $0xef0] sm:$0xff]
    %v678 = vld [vmem:[#allocation4 + $0xef8] sm:$0xff]
    %v679 = vld [vmem:[#allocation4 + $0xf00] sm:$0xff]
    %v680 = vld [vmem:[#allocation4 + $0xf08] sm:$0xff]
    %v681 = vld [vmem:[#allocation4 + $0xf10] sm:$0xff]
    %v682 = vld [vmem:[#allocation4 + $0xf18] sm:$0xff]
    %v683 = vld [vmem:[#allocation4 + $0xf20] sm:$0xff]
    %v684 = vld [vmem:[#allocation4 + $0xf28] sm:$0xff]
    %v685 = vld [vmem:[#allocation4 + $0xf30] sm:$0xff]
    %v686 = vld [vmem:[#allocation4 + $0xf38] sm:$0xff]
    %v687 = vld [vmem:[#allocation4 + $0xf40] sm:$0xff]
    %v688 = vld [vmem:[#allocation4 + $0xf48] sm:$0xff]
    %v689 = vld [vmem:[#allocation4 + $0xf50] sm:$0xff]
    %v690 = vld [vmem:[#allocation4 + $0xf58] sm:$0xff]
    %v691 = vld [vmem:[#allocation4 + $0xf60] sm:$0xff]
    %v692 = vld [vmem:[#allocation4 + $0xf68] sm:$0xff]
    %v693 = vld [vmem:[#allocation4 + $0xf70] sm:$0xff]
    %v694 = vld [vmem:[#allocation4 + $0xf78] sm:$0xff]
    %v695 = vld [vmem:[#allocation4 + $0xf80] sm:$0xff]
    %v696 = vld [vmem:[#allocation4 + $0xf88] sm:$0xff]
    %v697 = vld [vmem:[#allocation4 + $0xf90] sm:$0xff]
    %v698 = vld [vmem:[#allocation4 + $0xf98] sm:$0xff]
    %v699 = vld [vmem:[#allocation4 + $0xfa0] sm:$0xff]
    %v700 = vld [vmem:[#allocation4 + $0xfa8] sm:$0xff]
    %v701 = vld [vmem:[#allocation4 + $0xfb0] sm:$0xff]
    %v702 = vld [vmem:[#allocation4 + $0xfb8] sm:$0xff]
    %v703 = vld [vmem:[#allocation4 + $0xfc0] sm:$0xff]
    %v704 = vld [vmem:[#allocation4 + $0xfc8] sm:$0xff]
    %v705 = vld [vmem:[#allocation4 + $0xfd0] sm:$0xff]
    %v706 = vld [vmem:[#allocation4 + $0xfd8] sm:$0xff]
    %v707 = vld [vmem:[#allocation4 + $0xfe0] sm:$0xff]
    %v708 = vld [vmem:[#allocation4 + $0xfe8] sm:$0xff]
    %v709 = vld [vmem:[#allocation4 + $0xff0] sm:$0xff]
    %v710 = vld [vmem:[#allocation4 + $0xff8] sm:$0xff]
    %v711 = vld [vmem:[#allocation4 + $0x1000] sm:$0xff]
    %v712 = vld [vmem:[#allocation4 + $0x1008] sm:$0xff]
    %v713 = vld [vmem:[#allocation4 + $0x1010] sm:$0xff]
    %v714 = vld [vmem:[#allocation4 + $0x1018] sm:$0xff]
    %v715 = vld [vmem:[#allocation4 + $0x1020] sm:$0xff]
    %v716 = vld [vmem:[#allocation4 + $0x1028] sm:$0xff]
    %v717 = vld [vmem:[#allocation4 + $0x1030] sm:$0xff]
    %v718 = vld [vmem:[#allocation4 + $0x1038] sm:$0xff]
    %v719 = vld [vmem:[#allocation4 + $0x1040] sm:$0xff]
    %v720 = vld [vmem:[#allocation4 + $0x1048] sm:$0xff]
    %v721 = vld [vmem:[#allocation4 + $0x1050] sm:$0xff]
    %v722 = vld [vmem:[#allocation4 + $0x1058] sm:$0xff]
    %v723 = vld [vmem:[#allocation4 + $0x1060] sm:$0xff]
    %v724 = vld [vmem:[#allocation4 + $0x1068] sm:$0xff]
    %v725 = vld [vmem:[#allocation4 + $0x1070] sm:$0xff]
    %v726 = vld [vmem:[#allocation4 + $0x1078] sm:$0xff]
    %v727 = vld [vmem:[#allocation4 + $0x1080] sm:$0xff]
    %v728 = vld [vmem:[#allocation4 + $0x1088] sm:$0xff]
    %v729 = vld [vmem:[#allocation4 + $0x1090] sm:$0xff]
    %v730 = vld [vmem:[#allocation4 + $0x1098] sm:$0xff]
    %v731 = vld [vmem:[#allocation4 + $0x10a0] sm:$0xff]
    %v732 = vld [vmem:[#allocation4 + $0x10a8] sm:$0xff]
    %v733 = vld [vmem:[#allocation4 + $0x10b0] sm:$0xff]
    %v734 = vld [vmem:[#allocation4 + $0x10b8] sm:$0xff]
    %v735 = vld [vmem:[#allocation4 + $0x10c0] sm:$0xff]
    %v736 = vld [vmem:[#allocation4 + $0x10c8] sm:$0xff]
    %v737 = vld [vmem:[#allocation4 + $0x10d0] sm:$0xff]
    %v738 = vld [vmem:[#allocation4 + $0x10d8] sm:$0xff]
    %v739 = vld [vmem:[#allocation4 + $0x10e0] sm:$0xff]
    %v740 = vld [vmem:[#allocation4 + $0x10e8] sm:$0xff]
    %v741 = vld [vmem:[#allocation4 + $0x10f0] sm:$0xff]
    %v742 = vld [vmem:[#allocation4 + $0x10f8] sm:$0xff]
    %v743 = vld [vmem:[#allocation4 + $0x1100] sm:$0xff]
    %v744 = vld [vmem:[#allocation4 + $0x1108] sm:$0xff]
    %v745 = vld [vmem:[#allocation4 + $0x1110] sm:$0xff]
    %v746 = vld [vmem:[#allocation4 + $0x1118] sm:$0xff]
    %v747 = vld [vmem:[#allocation4 + $0x1120] sm:$0xff]
    %v748 = vld [vmem:[#allocation4 + $0x1128] sm:$0xff]
    %v749 = vld [vmem:[#allocation4 + $0x1130] sm:$0xff]
    %v750 = vld [vmem:[#allocation4 + $0x1138] sm:$0xff]
    %v751 = vld [vmem:[#allocation4 + $0x1140] sm:$0xff]
    %v752 = vld [vmem:[#allocation4 + $0x1148] sm:$0xff]
    %v753 = vld [vmem:[#allocation4 + $0x1150] sm:$0xff]
    %v754 = vld [vmem:[#allocation4 + $0x1158] sm:$0xff]
    %v755 = vld [vmem:[#allocation4 + $0x1160] sm:$0xff]
    %v756 = vld [vmem:[#allocation4 + $0x1168] sm:$0xff]
    %v757 = vld [vmem:[#allocation4 + $0x1170] sm:$0xff]
    %v758 = vld [vmem:[#allocation4 + $0x1178] sm:$0xff]
    %v759 = vld [vmem:[#allocation4 + $0x1180] sm:$0xff]
    %v760 = vld [vmem:[#allocation4 + $0x1188] sm:$0xff]
    %v761 = vld [vmem:[#allocation4 + $0x1190] sm:$0xff]
    %v762 = vld [vmem:[#allocation4 + $0x1198] sm:$0xff]
    %v763 = vld [vmem:[#allocation4 + $0x11a0] sm:$0xff]
    %v764 = vld [vmem:[#allocation4 + $0x11a8] sm:$0xff]
    %v765 = vld [vmem:[#allocation4 + $0x11b0] sm:$0xff]
    %v766 = vld [vmem:[#allocation4 + $0x11b8] sm:$0xff]
    %v767 = vld [vmem:[#allocation4 + $0x11c0] sm:$0xff]
    %v768 = vld [vmem:[#allocation4 + $0x11c8] sm:$0xff]
    %v769 = vld [vmem:[#allocation4 + $0x11d0] sm:$0xff]
    %v770 = vld [vmem:[#allocation4 + $0x11d8] sm:$0xff]
    %v771 = vld [vmem:[#allocation4 + $0x11e0] sm:$0xff]
    %v772 = vld [vmem:[#allocation4 + $0x11e8] sm:$0xff]
    %v773 = vld [vmem:[#allocation4 + $0x11f0] sm:$0xff]
    %v774 = vld [vmem:[#allocation4 + $0x11f8] sm:$0xff]
    %v775 = vld [vmem:[#allocation4 + $0x1200] sm:$0xff]
    %v776 = vld [vmem:[#allocation4 + $0x1208] sm:$0xff]
    %v777 = vld [vmem:[#allocation4 + $0x1210] sm:$0xff]
    %v778 = vld [vmem:[#allocation4 + $0x1218] sm:$0xff]
    %v779 = vld [vmem:[#allocation4 + $0x1220] sm:$0xff]
    %v780 = vld [vmem:[#allocation4 + $0x1228] sm:$0xff]
    %v781 = vld [vmem:[#allocation4 + $0x1230] sm:$0xff]
    %v782 = vld [vmem:[#allocation4 + $0x1238] sm:$0xff]
    %v783 = vld [vmem:[#allocation4 + $0x1240] sm:$0xff]
    %v784 = vld [vmem:[#allocation4 + $0x1248] sm:$0xff]
    %v785 = vld [vmem:[#allocation4 + $0x1250] sm:$0xff]
    %v786 = vld [vmem:[#allocation4 + $0x1258] sm:$0xff]
    %v787 = vld [vmem:[#allocation4 + $0x1260] sm:$0xff]
    %v788 = vld [vmem:[#allocation4 + $0x1268] sm:$0xff]
    %v789 = vld [vmem:[#allocation4 + $0x1270] sm:$0xff]
    %v790 = vld [vmem:[#allocation4 + $0x1278] sm:$0xff]
    %v791 = vld [vmem:[#allocation4 + $0x1280] sm:$0xff]
    %v792 = vld [vmem:[#allocation4 + $0x1288] sm:$0xff]
    %v793 = vld [vmem:[#allocation4 + $0x1290] sm:$0xff]
    %v794 = vld [vmem:[#allocation4 + $0x1298] sm:$0xff]
    %v795 = vld [vmem:[#allocation4 + $0x12a0] sm:$0xff]
    %v796 = vld [vmem:[#allocation4 + $0x12a8] sm:$0xff]
    %v797 = vld [vmem:[#allocation4 + $0x12b0] sm:$0xff]
    %v798 = vld [vmem:[#allocation4 + $0x12b8] sm:$0xff]
    %v799 = vld [vmem:[#allocation4 + $0x12c0] sm:$0xff]
    %v800 = vld [vmem:[#allocation4 + $0x12c8] sm:$0xff]
    %v801 = vld [vmem:[#allocation4 + $0x12d0] sm:$0xff]
    %v802 = vld [vmem:[#allocation4 + $0x12d8] sm:$0xff]
    %v803 = vld [vmem:[#allocation4 + $0x12e0] sm:$0xff]
    %v804 = vld [vmem:[#allocation4 + $0x12e8] sm:$0xff]
    %v805 = vld [vmem:[#allocation4 + $0x12f0] sm:$0xff]
    %v806 = vld [vmem:[#allocation4 + $0x12f8] sm:$0xff]
    %v807 = vld [vmem:[#allocation4 + $0x1300] sm:$0xff]
    %v808 = vld [vmem:[#allocation4 + $0x1308] sm:$0xff]
    %v809 = vld [vmem:[#allocation4 + $0x1310] sm:$0xff]
    %v810 = vld [vmem:[#allocation4 + $0x1318] sm:$0xff]
    %v811 = vld [vmem:[#allocation4 + $0x1320] sm:$0xff]
    %v812 = vld [vmem:[#allocation4 + $0x1328] sm:$0xff]
    %v813 = vld [vmem:[#allocation4 + $0x1330] sm:$0xff]
    %v814 = vld [vmem:[#allocation4 + $0x1338] sm:$0xff]
    %v815 = vld [vmem:[#allocation4 + $0x1340] sm:$0xff]
    %v816 = vld [vmem:[#allocation4 + $0x1348] sm:$0xff]
    %v817 = vld [vmem:[#allocation4 + $0x1350] sm:$0xff]
    %v818 = vld [vmem:[#allocation4 + $0x1358] sm:$0xff]
    %v819 = vld [vmem:[#allocation4 + $0x1360] sm:$0xff]
    %v820 = vld [vmem:[#allocation4 + $0x1368] sm:$0xff]
    %v821 = vld [vmem:[#allocation4 + $0x1370] sm:$0xff]
    %v822 = vld [vmem:[#allocation4 + $0x1378] sm:$0xff]
    %v823 = vld [vmem:[#allocation4 + $0x1380] sm:$0xff]
    %v824 = vld [vmem:[#allocation4 + $0x1388] sm:$0xff]
    %v825 = vld [vmem:[#allocation4 + $0x1390] sm:$0xff]
    %v826 = vld [vmem:[#allocation4 + $0x1398] sm:$0xff]
    %v827 = vld [vmem:[#allocation4 + $0x13a0] sm:$0xff]
    %v828 = vld [vmem:[#allocation4 + $0x13a8] sm:$0xff]
    %v829 = vld [vmem:[#allocation4 + $0x13b0] sm:$0xff]
    %v830 = vld [vmem:[#allocation4 + $0x13b8] sm:$0xff]
    %v831 = vld [vmem:[#allocation4 + $0x13c0] sm:$0xff]
    %v832 = vld [vmem:[#allocation4 + $0x13c8] sm:$0xff]
    %v833 = vld [vmem:[#allocation4 + $0x13d0] sm:$0xff]
    %v834 = vld [vmem:[#allocation4 + $0x13d8] sm:$0xff]
    %v835 = vld [vmem:[#allocation4 + $0x13e0] sm:$0xff]
    %v836 = vld [vmem:[#allocation4 + $0x13e8] sm:$0xff]
    %v837 = vld [vmem:[#allocation4 + $0x13f0] sm:$0xff]
    %v838 = vld [vmem:[#allocation4 + $0x13f8] sm:$0xff]
    %v839 = vld [vmem:[#allocation4 + $0x1400] sm:$0xff]
    %v840 = vld [vmem:[#allocation4 + $0x1408] sm:$0xff]
    %v841 = vld [vmem:[#allocation4 + $0x1410] sm:$0xff]
    %v842 = vld [vmem:[#allocation4 + $0x1418] sm:$0xff]
    %v843 = vld [vmem:[#allocation4 + $0x1420] sm:$0xff]
    %v844 = vld [vmem:[#allocation4 + $0x1428] sm:$0xff]
    %v845 = vld [vmem:[#allocation4 + $0x1430] sm:$0xff]
    %v846 = vld [vmem:[#allocation4 + $0x1438] sm:$0xff]
    %v847 = vld [vmem:[#allocation4 + $0x1440] sm:$0xff]
    %v848 = vld [vmem:[#allocation4 + $0x1448] sm:$0xff]
    %v849 = vld [vmem:[#allocation4 + $0x1450] sm:$0xff]
    %v850 = vld [vmem:[#allocation4 + $0x1458] sm:$0xff]
    %v851 = vld [vmem:[#allocation4 + $0x1460] sm:$0xff]
    %v852 = vld [vmem:[#allocation4 + $0x1468] sm:$0xff]
    %v853 = vld [vmem:[#allocation4 + $0x1470] sm:$0xff]
    %v854 = vld [vmem:[#allocation4 + $0x1478] sm:$0xff]
    %v855 = vld [vmem:[#allocation4 + $0x1480] sm:$0xff]
    %v856 = vld [vmem:[#allocation4 + $0x1488] sm:$0xff]
    %v857 = vld [vmem:[#allocation4 + $0x1490] sm:$0xff]
    %v858 = vld [vmem:[#allocation4 + $0x1498] sm:$0xff]
    %v859 = vld [vmem:[#allocation4 + $0x14a0] sm:$0xff]
    %v860 = vld [vmem:[#allocation4 + $0x14a8] sm:$0xff]
    %v861 = vld [vmem:[#allocation4 + $0x14b0] sm:$0xff]
    %v862 = vld [vmem:[#allocation4 + $0x14b8] sm:$0xff]
    %v863 = vld [vmem:[#allocation4 + $0x14c0] sm:$0xff]
    %v864 = vld [vmem:[#allocation4 + $0x14c8] sm:$0xff]
    %v865 = vld [vmem:[#allocation4 + $0x14d0] sm:$0xff]
    %v866 = vld [vmem:[#allocation4 + $0x14d8] sm:$0xff]
    %v867 = vld [vmem:[#allocation4 + $0x14e0] sm:$0xff]
    %v868 = vld [vmem:[#allocation4 + $0x14e8] sm:$0xff]
    %v869 = vld [vmem:[#allocation4 + $0x14f0] sm:$0xff]
    %v870 = vld [vmem:[#allocation4 + $0x14f8] sm:$0xff]
    %v871 = vld [vmem:[#allocation4 + $0x1500] sm:$0xff]
    %v872 = vld [vmem:[#allocation4 + $0x1508] sm:$0xff]
    %v873 = vld [vmem:[#allocation4 + $0x1510] sm:$0xff]
    %v874 = vld [vmem:[#allocation4 + $0x1518] sm:$0xff]
    %v875 = vld [vmem:[#allocation4 + $0x1520] sm:$0xff]
    %v876 = vld [vmem:[#allocation4 + $0x1528] sm:$0xff]
    %v877 = vld [vmem:[#allocation4 + $0x1530] sm:$0xff]
    %v878 = vld [vmem:[#allocation4 + $0x1538] sm:$0xff]
    %v879 = vld [vmem:[#allocation4 + $0x1540] sm:$0xff]
    %v880 = vld [vmem:[#allocation4 + $0x1548] sm:$0xff]
    %v881 = vld [vmem:[#allocation4 + $0x1550] sm:$0xff]
    %v882 = vld [vmem:[#allocation4 + $0x1558] sm:$0xff]
    %v883 = vld [vmem:[#allocation4 + $0x1560] sm:$0xff]
    %v884 = vld [vmem:[#allocation4 + $0x1568] sm:$0xff]
    %v885 = vld [vmem:[#allocation4 + $0x1570] sm:$0xff]
    %v886 = vld [vmem:[#allocation4 + $0x1578] sm:$0xff]
    %v887 = vld [vmem:[#allocation4 + $0x1580] sm:$0xff]
    %v888 = vld [vmem:[#allocation4 + $0x1588] sm:$0xff]
    %v889 = vld [vmem:[#allocation4 + $0x1590] sm:$0xff]
    %v890 = vld [vmem:[#allocation4 + $0x1598] sm:$0xff]
    %v891 = vld [vmem:[#allocation4 + $0x15a0] sm:$0xff]
    %v892 = vld [vmem:[#allocation4 + $0x15a8] sm:$0xff]
    %v893 = vld [vmem:[#allocation4 + $0x15b0] sm:$0xff]
    %v894 = vld [vmem:[#allocation4 + $0x15b8] sm:$0xff]
    %v895 = vld [vmem:[#allocation4 + $0x15c0] sm:$0xff]
    %v896 = vld [vmem:[#allocation4 + $0x15c8] sm:$0xff]
    %v897 = vld [vmem:[#allocation4 + $0x15d0] sm:$0xff]
    %v898 = vld [vmem:[#allocation4 + $0x15d8] sm:$0xff]
    %v899 = vld [vmem:[#allocation4 + $0x15e0] sm:$0xff]
    %v900 = vld [vmem:[#allocation4 + $0x15e8] sm:$0xff]
    %v901 = vld [vmem:[#allocation4 + $0x15f0] sm:$0xff]
    %v902 = vld [vmem:[#allocation4 + $0x15f8] sm:$0xff]
    %v903 = vld [vmem:[#allocation4 + $0x1600] sm:$0xff]
    %v904 = vld [vmem:[#allocation4 + $0x1608] sm:$0xff]
    %v905 = vld [vmem:[#allocation4 + $0x1610] sm:$0xff]
    %v906 = vld [vmem:[#allocation4 + $0x1618] sm:$0xff]
    %v907 = vld [vmem:[#allocation4 + $0x1620] sm:$0xff]
    %v908 = vld [vmem:[#allocation4 + $0x1628] sm:$0xff]
    %v909 = vld [vmem:[#allocation4 + $0x1630] sm:$0xff]
    %v910 = vld [vmem:[#allocation4 + $0x1638] sm:$0xff]
    %v911 = vld [vmem:[#allocation4 + $0x1640] sm:$0xff]
    %v912 = vld [vmem:[#allocation4 + $0x1648] sm:$0xff]
    %v913 = vld [vmem:[#allocation4 + $0x1650] sm:$0xff]
    %v914 = vld [vmem:[#allocation4 + $0x1658] sm:$0xff]
    %v915 = vld [vmem:[#allocation4 + $0x1660] sm:$0xff]
    %v916 = vld [vmem:[#allocation4 + $0x1668] sm:$0xff]
    %v917 = vld [vmem:[#allocation4 + $0x1670] sm:$0xff]
    %v918 = vld [vmem:[#allocation4 + $0x1678] sm:$0xff]
    %v919 = vld [vmem:[#allocation4 + $0x1680] sm:$0xff]
    %v920 = vld [vmem:[#allocation4 + $0x1688] sm:$0xff]
    %v921 = vld [vmem:[#allocation4 + $0x1690] sm:$0xff]
    %v922 = vld [vmem:[#allocation4 + $0x1698] sm:$0xff]
    %v923 = vld [vmem:[#allocation4 + $0x16a0] sm:$0xff]
    %v924 = vld [vmem:[#allocation4 + $0x16a8] sm:$0xff]
    %v925 = vld [vmem:[#allocation4 + $0x16b0] sm:$0xff]
    %v926 = vld [vmem:[#allocation4 + $0x16b8] sm:$0xff]
    %v927 = vld [vmem:[#allocation4 + $0x16c0] sm:$0xff]
    %v928 = vld [vmem:[#allocation4 + $0x16c8] sm:$0xff]
    %v929 = vld [vmem:[#allocation4 + $0x16d0] sm:$0xff]
    %v930 = vld [vmem:[#allocation4 + $0x16d8] sm:$0xff]
    %v931 = vld [vmem:[#allocation4 + $0x16e0] sm:$0xff]
    %v932 = vld [vmem:[#allocation4 + $0x16e8] sm:$0xff]
    %v933 = vld [vmem:[#allocation4 + $0x16f0] sm:$0xff]
    %v934 = vld [vmem:[#allocation4 + $0x16f8] sm:$0xff]
    %v935 = vld [vmem:[#allocation4 + $0x1700] sm:$0xff]
    %v936 = vld [vmem:[#allocation4 + $0x1708] sm:$0xff]
    %v937 = vld [vmem:[#allocation4 + $0x1710] sm:$0xff]
    %v938 = vld [vmem:[#allocation4 + $0x1718] sm:$0xff]
    %v939 = vld [vmem:[#allocation4 + $0x1720] sm:$0xff]
    %v940 = vld [vmem:[#allocation4 + $0x1728] sm:$0xff]
    %v941 = vld [vmem:[#allocation4 + $0x1730] sm:$0xff]
    %v942 = vld [vmem:[#allocation4 + $0x1738] sm:$0xff]
    %v943 = vld [vmem:[#allocation4 + $0x1740] sm:$0xff]
    %v944 = vld [vmem:[#allocation4 + $0x1748] sm:$0xff]
    %v945 = vld [vmem:[#allocation4 + $0x1750] sm:$0xff]
    %v946 = vld [vmem:[#allocation4 + $0x1758] sm:$0xff]
    %v947 = vld [vmem:[#allocation4 + $0x1760] sm:$0xff]
    %v948 = vld [vmem:[#allocation4 + $0x1768] sm:$0xff]
    %v949 = vld [vmem:[#allocation4 + $0x1770] sm:$0xff]
    %v950 = vld [vmem:[#allocation4 + $0x1778] sm:$0xff]
    %v951 = vld [vmem:[#allocation4 + $0x1780] sm:$0xff]
    %v952 = vld [vmem:[#allocation4 + $0x1788] sm:$0xff]
    %v953 = vld [vmem:[#allocation4 + $0x1790] sm:$0xff]
    %v954 = vld [vmem:[#allocation4 + $0x1798] sm:$0xff]
    %v955 = vld [vmem:[#allocation4 + $0x17a0] sm:$0xff]
    %v956 = vld [vmem:[#allocation4 + $0x17a8] sm:$0xff]
    %v957 = vld [vmem:[#allocation4 + $0x17b0] sm:$0xff]
    %v958 = vld [vmem:[#allocation4 + $0x17b8] sm:$0xff]
    %v959 = vld [vmem:[#allocation4 + $0x17c0] sm:$0xff]
    %v960 = vld [vmem:[#allocation4 + $0x17c8] sm:$0xff]
    %v961 = vld [vmem:[#allocation4 + $0x17d0] sm:$0xff]
    %v962 = vld [vmem:[#allocation4 + $0x17d8] sm:$0xff]
    %v963 = vld [vmem:[#allocation4 + $0x17e0] sm:$0xff]
    %v964 = vld [vmem:[#allocation4 + $0x17e8] sm:$0xff]
    %v965 = vld [vmem:[#allocation4 + $0x17f0] sm:$0xff]
    %v966 = vld [vmem:[#allocation4 + $0x17f8] sm:$0xff]
    %v967 = vld [vmem:[#allocation4 + $0x1800] sm:$0xff]
    %v968 = vld [vmem:[#allocation4 + $0x1808] sm:$0xff]
    %v969 = vld [vmem:[#allocation4 + $0x1810] sm:$0xff]
    %v970 = vld [vmem:[#allocation4 + $0x1818] sm:$0xff]
    %v971 = vld [vmem:[#allocation4 + $0x1820] sm:$0xff]
    %v972 = vld [vmem:[#allocation4 + $0x1828] sm:$0xff]
    %v973 = vld [vmem:[#allocation4 + $0x1830] sm:$0xff]
    %v974 = vld [vmem:[#allocation4 + $0x1838] sm:$0xff]
    %v975 = vld [vmem:[#allocation4 + $0x1840] sm:$0xff]
    %v976 = vld [vmem:[#allocation4 + $0x1848] sm:$0xff]
    %v977 = vld [vmem:[#allocation4 + $0x1850] sm:$0xff]
    %v978 = vld [vmem:[#allocation4 + $0x1858] sm:$0xff]
    %v979 = vld [vmem:[#allocation4 + $0x1860] sm:$0xff]
    %v980 = vld [vmem:[#allocation4 + $0x1868] sm:$0xff]
    %v981 = vld [vmem:[#allocation4 + $0x1870] sm:$0xff]
    %v982 = vld [vmem:[#allocation4 + $0x1878] sm:$0xff]
    %v983 = vld [vmem:[#allocation4 + $0x1880] sm:$0xff]
    %v984 = vld [vmem:[#allocation4 + $0x1888] sm:$0xff]
    %v985 = vld [vmem:[#allocation4 + $0x1890] sm:$0xff]
    %v986 = vld [vmem:[#allocation4 + $0x1898] sm:$0xff]
    %v987 = vld [vmem:[#allocation4 + $0x18a0] sm:$0xff]
    %v988 = vld [vmem:[#allocation4 + $0x18a8] sm:$0xff]
    %v989 = vld [vmem:[#allocation4 + $0x18b0] sm:$0xff]
    %v990 = vld [vmem:[#allocation4 + $0x18b8] sm:$0xff]
    %v991 = vld [vmem:[#allocation4 + $0x18c0] sm:$0xff]
    %v992 = vld [vmem:[#allocation4 + $0x18c8] sm:$0xff]
    %v993 = vld [vmem:[#allocation4 + $0x18d0] sm:$0xff]
    %v994 = vld [vmem:[#allocation4 + $0x18d8] sm:$0xff]
    %v995 = vld [vmem:[#allocation4 + $0x18e0] sm:$0xff]
    %v996 = vld [vmem:[#allocation4 + $0x18e8] sm:$0xff]
    %v997 = vld [vmem:[#allocation4 + $0x18f0] sm:$0xff]
    %v998 = vld [vmem:[#allocation4 + $0x18f8] sm:$0xff]
    %v999 = vld [vmem:[#allocation4 + $0x1900] sm:$0xff]
    %v1000 = vld [vmem:[#allocation4 + $0x1908] sm:$0xff]
    %v1001 = vld [vmem:[#allocation4 + $0x1910] sm:$0xff]
    %v1002 = vld [vmem:[#allocation4 + $0x1918] sm:$0xff]
    %v1003 = vld [vmem:[#allocation4 + $0x1920] sm:$0xff]
    %v1004 = vld [vmem:[#allocation4 + $0x1928] sm:$0xff]
    %v1005 = vld [vmem:[#allocation4 + $0x1930] sm:$0xff]
    %v1006 = vld [vmem:[#allocation4 + $0x1938] sm:$0xff]
    %v1007 = vld [vmem:[#allocation4 + $0x1940] sm:$0xff]
    %v1008 = vld [vmem:[#allocation4 + $0x1948] sm:$0xff]
    %v1009 = vld [vmem:[#allocation4 + $0x1950] sm:$0xff]
    %v1010 = vld [vmem:[#allocation4 + $0x1958] sm:$0xff]
    %v1011 = vld [vmem:[#allocation4 + $0x1960] sm:$0xff]
    %v1012 = vld [vmem:[#allocation4 + $0x1968] sm:$0xff]
    %v1013 = vld [vmem:[#allocation4 + $0x1970] sm:$0xff]
    %v1014 = vld [vmem:[#allocation4 + $0x1978] sm:$0xff]
    %v1015 = vld [vmem:[#allocation4 + $0x1980] sm:$0xff]
    %v1016 = vld [vmem:[#allocation4 + $0x1988] sm:$0xff]
    %v1017 = vld [vmem:[#allocation4 + $0x1990] sm:$0xff]
    %v1018 = vld [vmem:[#allocation4 + $0x1998] sm:$0xff]
    %v1019 = vld [vmem:[#allocation4 + $0x19a0] sm:$0xff]
    %v1020 = vld [vmem:[#allocation4 + $0x19a8] sm:$0xff]
    %v1021 = vld [vmem:[#allocation4 + $0x19b0] sm:$0xff]
    %v1022 = vld [vmem:[#allocation4 + $0x19b8] sm:$0xff]
    %v1023 = vld [vmem:[#allocation4 + $0x19c0] sm:$0xff]
    %v1024 = vld [vmem:[#allocation4 + $0x19c8] sm:$0xff]
    %v1025 = vld [vmem:[#allocation4 + $0x19d0] sm:$0xff]
    %v1026 = vld [vmem:[#allocation4 + $0x19d8] sm:$0xff]
    %v1027 = vld [vmem:[#allocation4 + $0x19e0] sm:$0xff]
    %v1028 = vld [vmem:[#allocation4 + $0x19e8] sm:$0xff]
    %v1029 = vld [vmem:[#allocation4 + $0x19f0] sm:$0xff]
    %v1030 = vld [vmem:[#allocation4 + $0x19f8] sm:$0xff]
    %v1031 = vld [vmem:[#allocation4 + $0x1a00] sm:$0xff]
    %v1032 = vld [vmem:[#allocation4 + $0x1a08] sm:$0xff]
    %v1033 = vld [vmem:[#allocation4 + $0x1a10] sm:$0xff]
    %v1034 = vld [vmem:[#allocation4 + $0x1a18] sm:$0xff]
    %v1035 = vld [vmem:[#allocation4 + $0x1a20] sm:$0xff]
    %v1036 = vld [vmem:[#allocation4 + $0x1a28] sm:$0xff]
    %v1037 = vld [vmem:[#allocation4 + $0x1a30] sm:$0xff]
    %v1038 = vld [vmem:[#allocation4 + $0x1a38] sm:$0xff]
    %v1039 = vld [vmem:[#allocation4 + $0x1a40] sm:$0xff]
    %v1040 = vld [vmem:[#allocation4 + $0x1a48] sm:$0xff]
    %v1041 = vld [vmem:[#allocation4 + $0x1a50] sm:$0xff]
    %v1042 = vld [vmem:[#allocation4 + $0x1a58] sm:$0xff]
    %v1043 = vld [vmem:[#allocation4 + $0x1a60] sm:$0xff]
    %v1044 = vld [vmem:[#allocation4 + $0x1a68] sm:$0xff]
    %v1045 = vld [vmem:[#allocation4 + $0x1a70] sm:$0xff]
    %v1046 = vld [vmem:[#allocation4 + $0x1a78] sm:$0xff]
    %v1047 = vld [vmem:[#allocation4 + $0x1a80] sm:$0xff]
    %v1048 = vld [vmem:[#allocation4 + $0x1a88] sm:$0xff]
    %v1049 = vld [vmem:[#allocation4 + $0x1a90] sm:$0xff]
    %v1050 = vld [vmem:[#allocation4 + $0x1a98] sm:$0xff]
    %v1051 = vld [vmem:[#allocation4 + $0x1aa0] sm:$0xff]
    %v1052 = vld [vmem:[#allocation4 + $0x1aa8] sm:$0xff]
    %v1053 = vld [vmem:[#allocation4 + $0x1ab0] sm:$0xff]
    %v1054 = vld [vmem:[#allocation4 + $0x1ab8] sm:$0xff]
    %v1055 = vld [vmem:[#allocation4 + $0x1ac0] sm:$0xff]
    %v1056 = vld [vmem:[#allocation4 + $0x1ac8] sm:$0xff]
    %v1057 = vld [vmem:[#allocation4 + $0x1ad0] sm:$0xff]
    %v1058 = vld [vmem:[#allocation4 + $0x1ad8] sm:$0xff]
    %v1059 = vld [vmem:[#allocation4 + $0x1ae0] sm:$0xff]
    %v1060 = vld [vmem:[#allocation4 + $0x1ae8] sm:$0xff]
    %v1061 = vld [vmem:[#allocation4 + $0x1af0] sm:$0xff]
    %v1062 = vld [vmem:[#allocation4 + $0x1af8] sm:$0xff]
    %v1063 = vld [vmem:[#allocation4 + $0x1b00] sm:$0xff]
    %v1064 = vld [vmem:[#allocation4 + $0x1b08] sm:$0xff]
    %v1065 = vld [vmem:[#allocation4 + $0x1b10] sm:$0xff]
    %v1066 = vld [vmem:[#allocation4 + $0x1b18] sm:$0xff]
    %v1067 = vld [vmem:[#allocation4 + $0x1b20] sm:$0xff]
    %v1068 = vld [vmem:[#allocation4 + $0x1b28] sm:$0xff]
    %v1069 = vld [vmem:[#allocation4 + $0x1b30] sm:$0xff]
    %v1070 = vld [vmem:[#allocation4 + $0x1b38] sm:$0xff]
    %v1071 = vld [vmem:[#allocation4 + $0x1b40] sm:$0xff]
    %v1072 = vld [vmem:[#allocation4 + $0x1b48] sm:$0xff]
    %v1073 = vld [vmem:[#allocation4 + $0x1b50] sm:$0xff]
    %v1074 = vld [vmem:[#allocation4 + $0x1b58] sm:$0xff]
    %v1075 = vld [vmem:[#allocation4 + $0x1b60] sm:$0xff]
    %v1076 = vld [vmem:[#allocation4 + $0x1b68] sm:$0xff]
    %v1077 = vld [vmem:[#allocation4 + $0x1b70] sm:$0xff]
    %v1078 = vld [vmem:[#allocation4 + $0x1b78] sm:$0xff]
    %v1079 = vld [vmem:[#allocation4 + $0x1b80] sm:$0xff]
    %v1080 = vld [vmem:[#allocation4 + $0x1b88] sm:$0xff]
    %v1081 = vld [vmem:[#allocation4 + $0x1b90] sm:$0xff]
    %v1082 = vld [vmem:[#allocation4 + $0x1b98] sm:$0xff]
    %v1083 = vld [vmem:[#allocation4 + $0x1ba0] sm:$0xff]
    %v1084 = vld [vmem:[#allocation4 + $0x1ba8] sm:$0xff]
    %v1085 = vld [vmem:[#allocation4 + $0x1bb0] sm:$0xff]
    %v1086 = vld [vmem:[#allocation4 + $0x1bb8] sm:$0xff]
    %v1087 = vld [vmem:[#allocation4 + $0x1bc0] sm:$0xff]
    %v1088 = vld [vmem:[#allocation4 + $0x1bc8] sm:$0xff]
    %v1089 = vld [vmem:[#allocation4 + $0x1bd0] sm:$0xff]
    %v1090 = vld [vmem:[#allocation4 + $0x1bd8] sm:$0xff]
    %v1091 = vld [vmem:[#allocation4 + $0x1be0] sm:$0xff]
    %v1092 = vld [vmem:[#allocation4 + $0x1be8] sm:$0xff]
    %v1093 = vld [vmem:[#allocation4 + $0x1bf0] sm:$0xff]
    %v1094 = vld [vmem:[#allocation4 + $0x1bf8] sm:$0xff]
    %v1095 = vld [vmem:[#allocation4 + $0x1c00] sm:$0xff]
    %v1096 = vld [vmem:[#allocation4 + $0x1c08] sm:$0xff]
    %v1097 = vld [vmem:[#allocation4 + $0x1c10] sm:$0xff]
    %v1098 = vld [vmem:[#allocation4 + $0x1c18] sm:$0xff]
    %v1099 = vld [vmem:[#allocation4 + $0x1c20] sm:$0xff]
    %v1100 = vld [vmem:[#allocation4 + $0x1c28] sm:$0xff]
    %v1101 = vld [vmem:[#allocation4 + $0x1c30] sm:$0xff]
    %v1102 = vld [vmem:[#allocation4 + $0x1c38] sm:$0xff]
    %v1103 = vld [vmem:[#allocation4 + $0x1c40] sm:$0xff]
    %v1104 = vld [vmem:[#allocation4 + $0x1c48] sm:$0xff]
    %v1105 = vld [vmem:[#allocation4 + $0x1c50] sm:$0xff]
    %v1106 = vld [vmem:[#allocation4 + $0x1c58] sm:$0xff]
    %v1107 = vld [vmem:[#allocation4 + $0x1c60] sm:$0xff]
    %v1108 = vld [vmem:[#allocation4 + $0x1c68] sm:$0xff]
    %v1109 = vld [vmem:[#allocation4 + $0x1c70] sm:$0xff]
    %v1110 = vld [vmem:[#allocation4 + $0x1c78] sm:$0xff]
    %v1111 = vld [vmem:[#allocation4 + $0x1c80] sm:$0xff]
    %v1112 = vld [vmem:[#allocation4 + $0x1c88] sm:$0xff]
    %v1113 = vld [vmem:[#allocation4 + $0x1c90] sm:$0xff]
    %v1114 = vld [vmem:[#allocation4 + $0x1c98] sm:$0xff]
    %v1115 = vld [vmem:[#allocation4 + $0x1ca0] sm:$0xff]
    %v1116 = vld [vmem:[#allocation4 + $0x1ca8] sm:$0xff]
    %v1117 = vld [vmem:[#allocation4 + $0x1cb0] sm:$0xff]
    %v1118 = vld [vmem:[#allocation4 + $0x1cb8] sm:$0xff]
    %v1119 = vld [vmem:[#allocation4 + $0x1cc0] sm:$0xff]
    %v1120 = vld [vmem:[#allocation4 + $0x1cc8] sm:$0xff]
    %v1121 = vld [vmem:[#allocation4 + $0x1cd0] sm:$0xff]
    %v1122 = vld [vmem:[#allocation4 + $0x1cd8] sm:$0xff]
    %v1123 = vld [vmem:[#allocation4 + $0x1ce0] sm:$0xff]
    %v1124 = vld [vmem:[#allocation4 + $0x1ce8] sm:$0xff]
    %v1125 = vld [vmem:[#allocation4 + $0x1cf0] sm:$0xff]
    %v1126 = vld [vmem:[#allocation4 + $0x1cf8] sm:$0xff]
    %v1127 = vld [vmem:[#allocation4 + $0x1d00] sm:$0xff]
    %v1128 = vld [vmem:[#allocation4 + $0x1d08] sm:$0xff]
    %v1129 = vld [vmem:[#allocation4 + $0x1d10] sm:$0xff]
    %v1130 = vld [vmem:[#allocation4 + $0x1d18] sm:$0xff]
    %v1131 = vld [vmem:[#allocation4 + $0x1d20] sm:$0xff]
    %v1132 = vld [vmem:[#allocation4 + $0x1d28] sm:$0xff]
    %v1133 = vld [vmem:[#allocation4 + $0x1d30] sm:$0xff]
    %v1134 = vld [vmem:[#allocation4 + $0x1d38] sm:$0xff]
    %v1135 = vld [vmem:[#allocation4 + $0x1d40] sm:$0xff]
    %v1136 = vld [vmem:[#allocation4 + $0x1d48] sm:$0xff]
    %v1137 = vld [vmem:[#allocation4 + $0x1d50] sm:$0xff]
    %v1138 = vld [vmem:[#allocation4 + $0x1d58] sm:$0xff]
    %v1139 = vld [vmem:[#allocation4 + $0x1d60] sm:$0xff]
    %v1140 = vld [vmem:[#allocation4 + $0x1d68] sm:$0xff]
    %v1141 = vld [vmem:[#allocation4 + $0x1d70] sm:$0xff]
    %v1142 = vld [vmem:[#allocation4 + $0x1d78] sm:$0xff]
    %v1143 = vld [vmem:[#allocation4 + $0x1d80] sm:$0xff]
    %v1144 = vld [vmem:[#allocation4 + $0x1d88] sm:$0xff]
    %v1145 = vld [vmem:[#allocation4 + $0x1d90] sm:$0xff]
    %v1146 = vld [vmem:[#allocation4 + $0x1d98] sm:$0xff]
    %v1147 = vld [vmem:[#allocation4 + $0x1da0] sm:$0xff]
    %v1148 = vld [vmem:[#allocation4 + $0x1da8] sm:$0xff]
    %v1149 = vld [vmem:[#allocation4 + $0x1db0] sm:$0xff]
    %v1150 = vld [vmem:[#allocation4 + $0x1db8] sm:$0xff]
    %v1151 = vld [vmem:[#allocation4 + $0x1dc0] sm:$0xff]
    %v1152 = vld [vmem:[#allocation4 + $0x1dc8] sm:$0xff]
    %v1153 = vld [vmem:[#allocation4 + $0x1dd0] sm:$0xff]
    %v1154 = vld [vmem:[#allocation4 + $0x1dd8] sm:$0xff]
    %v1155 = vld [vmem:[#allocation4 + $0x1de0] sm:$0xff]
    %v1156 = vld [vmem:[#allocation4 + $0x1de8] sm:$0xff]
    %v1157 = vld [vmem:[#allocation4 + $0x1df0] sm:$0xff]
    %v1158 = vld [vmem:[#allocation4 + $0x1df8] sm:$0xff]
    %v1159 = vld [vmem:[#allocation4 + $0x1e00] sm:$0xff]
    %v1160 = vld [vmem:[#allocation4 + $0x1e08] sm:$0xff]
    %v1161 = vld [vmem:[#allocation4 + $0x1e10] sm:$0xff]
    %v1162 = vld [vmem:[#allocation4 + $0x1e18] sm:$0xff]
    %v1163 = vld [vmem:[#allocation4 + $0x1e20] sm:$0xff]
    %v1164 = vld [vmem:[#allocation4 + $0x1e28] sm:$0xff]
    %v1165 = vld [vmem:[#allocation4 + $0x1e30] sm:$0xff]
    %v1166 = vld [vmem:[#allocation4 + $0x1e38] sm:$0xff]
    %v1167 = vld [vmem:[#allocation4 + $0x1e40] sm:$0xff]
    %v1168 = vld [vmem:[#allocation4 + $0x1e48] sm:$0xff]
    %v1169 = vld [vmem:[#allocation4 + $0x1e50] sm:$0xff]
    %v1170 = vld [vmem:[#allocation4 + $0x1e58] sm:$0xff]
    %v1171 = vld [vmem:[#allocation4 + $0x1e60] sm:$0xff]
    %v1172 = vld [vmem:[#allocation4 + $0x1e68] sm:$0xff]
    %v1173 = vld [vmem:[#allocation4 + $0x1e70] sm:$0xff]
    %v1174 = vld [vmem:[#allocation4 + $0x1e78] sm:$0xff]
    %v1175 = vld [vmem:[#allocation4 + $0x1e80] sm:$0xff]
    %v1176 = vld [vmem:[#allocation4 + $0x1e88] sm:$0xff]
    %v1177 = vld [vmem:[#allocation4 + $0x1e90] sm:$0xff]
    %v1178 = vld [vmem:[#allocation4 + $0x1e98] sm:$0xff]
    %v1179 = vld [vmem:[#allocation4 + $0x1ea0] sm:$0xff]
    %v1180 = vld [vmem:[#allocation4 + $0x1ea8] sm:$0xff]
    %v1181 = vld [vmem:[#allocation4 + $0x1eb0] sm:$0xff]
    %v1182 = vld [vmem:[#allocation4 + $0x1eb8] sm:$0xff]
    %v1183 = vld [vmem:[#allocation4 + $0x1ec0] sm:$0xff]
    %v1184 = vld [vmem:[#allocation4 + $0x1ec8] sm:$0xff]
    %v1185 = vld [vmem:[#allocation4 + $0x1ed0] sm:$0xff]
    %v1186 = vld [vmem:[#allocation4 + $0x1ed8] sm:$0xff]
    %v1187 = vld [vmem:[#allocation4 + $0x1ee0] sm:$0xff]
    %v1188 = vld [vmem:[#allocation4 + $0x1ee8] sm:$0xff]
    %v1189 = vld [vmem:[#allocation4 + $0x1ef0] sm:$0xff]
    %v1190 = vld [vmem:[#allocation4 + $0x1ef8] sm:$0xff]
    %v1191 = vld [vmem:[#allocation4 + $0x1f00] sm:$0xff]
    %v1192 = vld [vmem:[#allocation4 + $0x1f08] sm:$0xff]
    %v1193 = vld [vmem:[#allocation4 + $0x1f10] sm:$0xff]
    %v1194 = vld [vmem:[#allocation4 + $0x1f18] sm:$0xff]
    %v1195 = vld [vmem:[#allocation4 + $0x1f20] sm:$0xff]
    %v1196 = vld [vmem:[#allocation4 + $0x1f28] sm:$0xff]
    %v1197 = vld [vmem:[#allocation4 + $0x1f30] sm:$0xff]
    %v1198 = vld [vmem:[#allocation4 + $0x1f38] sm:$0xff]
    %v1199 = vld [vmem:[#allocation4 + $0x1f40] sm:$0xff]
    %v1200 = vld [vmem:[#allocation4 + $0x1f48] sm:$0xff]
    %v1201 = vld [vmem:[#allocation4 + $0x1f50] sm:$0xff]
    %v1202 = vld [vmem:[#allocation4 + $0x1f58] sm:$0xff]
    %v1203 = vld [vmem:[#allocation4 + $0x1f60] sm:$0xff]
    %v1204 = vld [vmem:[#allocation4 + $0x1f68] sm:$0xff]
    %v1205 = vld [vmem:[#allocation4 + $0x1f70] sm:$0xff]
    %v1206 = vld [vmem:[#allocation4 + $0x1f78] sm:$0xff]
    %v1207 = vld [vmem:[#allocation4 + $0x1f80] sm:$0xff]
    %v1208 = vld [vmem:[#allocation4 + $0x1f88] sm:$0xff]
    %v1209 = vld [vmem:[#allocation4 + $0x1f90] sm:$0xff]
    %v1210 = vld [vmem:[#allocation4 + $0x1f98] sm:$0xff]
    %v1211 = vld [vmem:[#allocation4 + $0x1fa0] sm:$0xff]
    %v1212 = vld [vmem:[#allocation4 + $0x1fa8] sm:$0xff]
    %v1213 = vld [vmem:[#allocation4 + $0x1fb0] sm:$0xff]
    %v1214 = vld [vmem:[#allocation4 + $0x1fb8] sm:$0xff]
    %v1215 = vld [vmem:[#allocation4 + $0x1fc0] sm:$0xff]
    %v1216 = vld [vmem:[#allocation4 + $0x1fc8] sm:$0xff]
    %v1217 = vld [vmem:[#allocation4 + $0x1fd0] sm:$0xff]
    %v1218 = vld [vmem:[#allocation4 + $0x1fd8] sm:$0xff]
    %v1219 = vld [vmem:[#allocation4 + $0x1fe0] sm:$0xff]
    %v1220 = vld [vmem:[#allocation4 + $0x1fe8] sm:$0xff]
    %v1221 = vld [vmem:[#allocation4 + $0x1ff0] sm:$0xff]
    %v1222 = vld [vmem:[#allocation4 + $0x1ff8] sm:$0xff]
    %v1223 = vld [vmem:[#allocation4 + $0x2000] sm:$0xff]
    %v1224 = vld [vmem:[#allocation4 + $0x2008] sm:$0xff]
    %v1225 = vld [vmem:[#allocation4 + $0x2010] sm:$0xff]
    %v1226 = vld [vmem:[#allocation4 + $0x2018] sm:$0xff]
    %v1227 = vld [vmem:[#allocation4 + $0x2020] sm:$0xff]
    %v1228 = vld [vmem:[#allocation4 + $0x2028] sm:$0xff]
    %v1229 = vld [vmem:[#allocation4 + $0x2030] sm:$0xff]
    %v1230 = vld [vmem:[#allocation4 + $0x2038] sm:$0xff]
    %v1231 = vld [vmem:[#allocation4 + $0x2040] sm:$0xff]
    %v1232 = vld [vmem:[#allocation4 + $0x2048] sm:$0xff]
    %v1233 = vld [vmem:[#allocation4 + $0x2050] sm:$0xff]
    %v1234 = vld [vmem:[#allocation4 + $0x2058] sm:$0xff]
    %v1235 = vld [vmem:[#allocation4 + $0x2060] sm:$0xff]
    %v1236 = vld [vmem:[#allocation4 + $0x2068] sm:$0xff]
    %v1237 = vld [vmem:[#allocation4 + $0x2070] sm:$0xff]
    %v1238 = vld [vmem:[#allocation4 + $0x2078] sm:$0xff]
    %v1239 = vld [vmem:[#allocation4 + $0x2080] sm:$0xff]
    %v1240 = vld [vmem:[#allocation4 + $0x2088] sm:$0xff]
    %v1241 = vld [vmem:[#allocation4 + $0x2090] sm:$0xff]
    %v1242 = vld [vmem:[#allocation4 + $0x2098] sm:$0xff]
    %v1243 = vld [vmem:[#allocation4 + $0x20a0] sm:$0xff]
    %v1244 = vld [vmem:[#allocation4 + $0x20a8] sm:$0xff]
    %v1245 = vld [vmem:[#allocation4 + $0x20b0] sm:$0xff]
    %v1246 = vld [vmem:[#allocation4 + $0x20b8] sm:$0xff]
    %v1247 = vld [vmem:[#allocation4 + $0x20c0] sm:$0xff]
    %v1248 = vld [vmem:[#allocation4 + $0x20c8] sm:$0xff]
    %v1249 = vld [vmem:[#allocation4 + $0x20d0] sm:$0xff]
    %v1250 = vld [vmem:[#allocation4 + $0x20d8] sm:$0xff]
    %v1251 = vld [vmem:[#allocation4 + $0x20e0] sm:$0xff]
    %v1252 = vld [vmem:[#allocation4 + $0x20e8] sm:$0xff]
    %v1253 = vld [vmem:[#allocation4 + $0x20f0] sm:$0xff]
    %v1254 = vld [vmem:[#allocation4 + $0x20f8] sm:$0xff]
    %v1255 = vld [vmem:[#allocation4 + $0x2100] sm:$0xff]
    %v1256 = vld [vmem:[#allocation4 + $0x2108] sm:$0xff]
    %v1257 = vld [vmem:[#allocation4 + $0x2110] sm:$0xff]
    %v1258 = vld [vmem:[#allocation4 + $0x2118] sm:$0xff]
    %v1259 = vld [vmem:[#allocation4 + $0x2120] sm:$0xff]
    %v1260 = vld [vmem:[#allocation4 + $0x2128] sm:$0xff]
    %v1261 = vld [vmem:[#allocation4 + $0x2130] sm:$0xff]
    %v1262 = vld [vmem:[#allocation4 + $0x2138] sm:$0xff]
    %v1263 = vld [vmem:[#allocation4 + $0x2140] sm:$0xff]
    %v1264 = vld [vmem:[#allocation4 + $0x2148] sm:$0xff]
    %v1265 = vld [vmem:[#allocation4 + $0x2150] sm:$0xff]
    %v1266 = vld [vmem:[#allocation4 + $0x2158] sm:$0xff]
    %v1267 = vld [vmem:[#allocation4 + $0x2160] sm:$0xff]
    %v1268 = vld [vmem:[#allocation4 + $0x2168] sm:$0xff]
    %v1269 = vld [vmem:[#allocation4 + $0x2170] sm:$0xff]
    %v1270 = vld [vmem:[#allocation4 + $0x2178] sm:$0xff]
    %v1271 = vld [vmem:[#allocation4 + $0x2180] sm:$0xff]
    %v1272 = vld [vmem:[#allocation4 + $0x2188] sm:$0xff]
    %v1273 = vld [vmem:[#allocation4 + $0x2190] sm:$0xff]
    %v1274 = vld [vmem:[#allocation4 + $0x2198] sm:$0xff]
    %v1275 = vld [vmem:[#allocation4 + $0x21a0] sm:$0xff]
    %v1276 = vld [vmem:[#allocation4 + $0x21a8] sm:$0xff]
    %v1277 = vld [vmem:[#allocation4 + $0x21b0] sm:$0xff]
    %v1278 = vld [vmem:[#allocation4 + $0x21b8] sm:$0xff]
    %v1279 = vld [vmem:[#allocation4 + $0x21c0] sm:$0xff]
    %v1280 = vld [vmem:[#allocation4 + $0x21c8] sm:$0xff]
    %v1281 = vld [vmem:[#allocation4 + $0x21d0] sm:$0xff]
    %v1282 = vld [vmem:[#allocation4 + $0x21d8] sm:$0xff]
    %v1283 = vld [vmem:[#allocation4 + $0x21e0] sm:$0xff]
    %v1284 = vld [vmem:[#allocation4 + $0x21e8] sm:$0xff]
    %v1285 = vld [vmem:[#allocation4 + $0x21f0] sm:$0xff]
    %v1286 = vld [vmem:[#allocation4 + $0x21f8] sm:$0xff]
    %v1287 = vld [vmem:[#allocation4 + $0x2200] sm:$0xff]
    %v1288 = vld [vmem:[#allocation4 + $0x2208] sm:$0xff]
    %v1289 = vld [vmem:[#allocation4 + $0x2210] sm:$0xff]
    %v1290 = vld [vmem:[#allocation4 + $0x2218] sm:$0xff]
    %v1291 = vld [vmem:[#allocation4 + $0x2220] sm:$0xff]
    %v1292 = vld [vmem:[#allocation4 + $0x2228] sm:$0xff]
    %v1293 = vld [vmem:[#allocation4 + $0x2230] sm:$0xff]
    %v1294 = vld [vmem:[#allocation4 + $0x2238] sm:$0xff]
    %v1295 = vld [vmem:[#allocation4 + $0x2240] sm:$0xff]
    %v1296 = vld [vmem:[#allocation4 + $0x2248] sm:$0xff]
    %v1297 = vld [vmem:[#allocation4 + $0x2250] sm:$0xff]
    %v1298 = vld [vmem:[#allocation4 + $0x2258] sm:$0xff]
    %v1299 = vld [vmem:[#allocation4 + $0x2260] sm:$0xff]
    %v1300 = vld [vmem:[#allocation4 + $0x2268] sm:$0xff]
    %v1301 = vld [vmem:[#allocation4 + $0x2270] sm:$0xff]
    %v1302 = vld [vmem:[#allocation4 + $0x2278] sm:$0xff]
    %v1303 = vld [vmem:[#allocation4 + $0x2280] sm:$0xff]
    %v1304 = vld [vmem:[#allocation4 + $0x2288] sm:$0xff]
    %v1305 = vld [vmem:[#allocation4 + $0x2290] sm:$0xff]
    %v1306 = vld [vmem:[#allocation4 + $0x2298] sm:$0xff]
    %v1307 = vld [vmem:[#allocation4 + $0x22a0] sm:$0xff]
    %v1308 = vld [vmem:[#allocation4 + $0x22a8] sm:$0xff]
    %v1309 = vld [vmem:[#allocation4 + $0x22b0] sm:$0xff]
    %v1310 = vld [vmem:[#allocation4 + $0x22b8] sm:$0xff]
    %v1311 = vld [vmem:[#allocation4 + $0x22c0] sm:$0xff]
    %v1312 = vld [vmem:[#allocation4 + $0x22c8] sm:$0xff]
    %v1313 = vld [vmem:[#allocation4 + $0x22d0] sm:$0xff]
    %v1314 = vld [vmem:[#allocation4 + $0x22d8] sm:$0xff]
    %v1315 = vld [vmem:[#allocation4 + $0x22e0] sm:$0xff]
    %v1316 = vld [vmem:[#allocation4 + $0x22e8] sm:$0xff]
    %v1317 = vld [vmem:[#allocation4 + $0x22f0] sm:$0xff]
    %v1318 = vld [vmem:[#allocation4 + $0x22f8] sm:$0xff]
    %v1319 = vld [vmem:[#allocation4 + $0x2300] sm:$0xff]
    %v1320 = vld [vmem:[#allocation4 + $0x2308] sm:$0xff]
    %v1321 = vld [vmem:[#allocation4 + $0x2310] sm:$0xff]
    %v1322 = vld [vmem:[#allocation4 + $0x2318] sm:$0xff]
    %v1323 = vld [vmem:[#allocation4 + $0x2320] sm:$0xff]
    %v1324 = vld [vmem:[#allocation4 + $0x2328] sm:$0xff]
    %v1325 = vld [vmem:[#allocation4 + $0x2330] sm:$0xff]
    %v1326 = vld [vmem:[#allocation4 + $0x2338] sm:$0xff]
    %v1327 = vld [vmem:[#allocation4 + $0x2340] sm:$0xff]
    %v1328 = vld [vmem:[#allocation4 + $0x2348] sm:$0xff]
    %v1329 = vld [vmem:[#allocation4 + $0x2350] sm:$0xff]
    %v1330 = vld [vmem:[#allocation4 + $0x2358] sm:$0xff]
    %v1331 = vld [vmem:[#allocation4 + $0x2360] sm:$0xff]
    %v1332 = vld [vmem:[#allocation4 + $0x2368] sm:$0xff]
    %v1333 = vld [vmem:[#allocation4 + $0x2370] sm:$0xff]
    %v1334 = vld [vmem:[#allocation4 + $0x2378] sm:$0xff]
    %v1335 = vld [vmem:[#allocation4 + $0x2380] sm:$0xff]
    %v1336 = vld [vmem:[#allocation4 + $0x2388] sm:$0xff]
    %v1337 = vld [vmem:[#allocation4 + $0x2390] sm:$0xff]
    %v1338 = vld [vmem:[#allocation4 + $0x2398] sm:$0xff]
    %v1339 = vld [vmem:[#allocation4 + $0x23a0] sm:$0xff]
    %v1340 = vld [vmem:[#allocation4 + $0x23a8] sm:$0xff]
    %v1341 = vld [vmem:[#allocation4 + $0x23b0] sm:$0xff]
    %v1342 = vld [vmem:[#allocation4 + $0x23b8] sm:$0xff]
    %v1343 = vld [vmem:[#allocation4 + $0x23c0] sm:$0xff]
    %v1344 = vld [vmem:[#allocation4 + $0x23c8] sm:$0xff]
    %v1345 = vld [vmem:[#allocation4 + $0x23d0] sm:$0xff]
    %v1346 = vld [vmem:[#allocation4 + $0x23d8] sm:$0xff]
    %v1347 = vld [vmem:[#allocation4 + $0x23e0] sm:$0xff]
    %v1348 = vld [vmem:[#allocation4 + $0x23e8] sm:$0xff]
    %v1349 = vld [vmem:[#allocation4 + $0x23f0] sm:$0xff]
    %v1350 = vld [vmem:[#allocation4 + $0x23f8] sm:$0xff]
    %v1351 = vld [vmem:[#allocation4 + $0x2400] sm:$0xff]
    %v1352 = vld [vmem:[#allocation4 + $0x2408] sm:$0xff]
    %v1353 = vld [vmem:[#allocation4 + $0x2410] sm:$0xff]
    %v1354 = vld [vmem:[#allocation4 + $0x2418] sm:$0xff]
    %v1355 = vld [vmem:[#allocation4 + $0x2420] sm:$0xff]
    %v1356 = vld [vmem:[#allocation4 + $0x2428] sm:$0xff]
    %v1357 = vld [vmem:[#allocation4 + $0x2430] sm:$0xff]
    %v1358 = vld [vmem:[#allocation4 + $0x2438] sm:$0xff]
    %v1359 = vld [vmem:[#allocation4 + $0x2440] sm:$0xff]
    %v1360 = vld [vmem:[#allocation4 + $0x2448] sm:$0xff]
    %v1361 = vld [vmem:[#allocation4 + $0x2450] sm:$0xff]
    %v1362 = vld [vmem:[#allocation4 + $0x2458] sm:$0xff]
    %v1363 = vld [vmem:[#allocation4 + $0x2460] sm:$0xff]
    %v1364 = vld [vmem:[#allocation4 + $0x2468] sm:$0xff]
    %v1365 = vld [vmem:[#allocation4 + $0x2470] sm:$0xff]
    %v1366 = vld [vmem:[#allocation4 + $0x2478] sm:$0xff]
    %v1367 = vld [vmem:[#allocation4 + $0x2480] sm:$0xff]
    %v1368 = vld [vmem:[#allocation4 + $0x2488] sm:$0xff]
    %v1369 = vld [vmem:[#allocation4 + $0x2490] sm:$0xff]
    %v1370 = vld [vmem:[#allocation4 + $0x2498] sm:$0xff]
    %v1371 = vld [vmem:[#allocation4 + $0x24a0] sm:$0xff]
    %v1372 = vld [vmem:[#allocation4 + $0x24a8] sm:$0xff]
    %v1373 = vld [vmem:[#allocation4 + $0x24b0] sm:$0xff]
    %v1374 = vld [vmem:[#allocation4 + $0x24b8] sm:$0xff]
    %v1375 = vld [vmem:[#allocation4 + $0x24c0] sm:$0xff]
    %v1376 = vld [vmem:[#allocation4 + $0x24c8] sm:$0xff]
    %v1377 = vld [vmem:[#allocation4 + $0x24d0] sm:$0xff]
    %v1378 = vld [vmem:[#allocation4 + $0x24d8] sm:$0xff]
    %v1379 = vld [vmem:[#allocation4 + $0x24e0] sm:$0xff]
    %v1380 = vld [vmem:[#allocation4 + $0x24e8] sm:$0xff]
    %v1381 = vld [vmem:[#allocation4 + $0x24f0] sm:$0xff]
    %v1382 = vld [vmem:[#allocation4 + $0x24f8] sm:$0xff]
    %v1383 = vld [vmem:[#allocation4 + $0x2500] sm:$0xff]
    %v1384 = vld [vmem:[#allocation4 + $0x2508] sm:$0xff]
    %v1385 = vld [vmem:[#allocation4 + $0x2510] sm:$0xff]
    %v1386 = vld [vmem:[#allocation4 + $0x2518] sm:$0xff]
    %v1387 = vld [vmem:[#allocation4 + $0x2520] sm:$0xff]
    %v1388 = vld [vmem:[#allocation4 + $0x2528] sm:$0xff]
    %v1389 = vld [vmem:[#allocation4 + $0x2530] sm:$0xff]
    %v1390 = vld [vmem:[#allocation4 + $0x2538] sm:$0xff]
    %v1391 = vld [vmem:[#allocation4 + $0x2540] sm:$0xff]
    %v1392 = vld [vmem:[#allocation4 + $0x2548] sm:$0xff]
    %v1393 = vld [vmem:[#allocation4 + $0x2550] sm:$0xff]
    %v1394 = vld [vmem:[#allocation4 + $0x2558] sm:$0xff]
    %v1395 = vld [vmem:[#allocation4 + $0x2560] sm:$0xff]
    %v1396 = vld [vmem:[#allocation4 + $0x2568] sm:$0xff]
    %v1397 = vld [vmem:[#allocation4 + $0x2570] sm:$0xff]
    %v1398 = vld [vmem:[#allocation4 + $0x2578] sm:$0xff]
    %v1399 = vld [vmem:[#allocation4 + $0x2580] sm:$0xff]
    %v1400 = vld [vmem:[#allocation4 + $0x2588] sm:$0xff]
    %v1401 = vld [vmem:[#allocation4 + $0x2590] sm:$0xff]
    %v1402 = vld [vmem:[#allocation4 + $0x2598] sm:$0xff]
    %v1403 = vld [vmem:[#allocation4 + $0x25a0] sm:$0xff]
    %v1404 = vld [vmem:[#allocation4 + $0x25a8] sm:$0xff]
    %v1405 = vld [vmem:[#allocation4 + $0x25b0] sm:$0xff]
    %v1406 = vld [vmem:[#allocation4 + $0x25b8] sm:$0xff]
    %v1407 = vld [vmem:[#allocation4 + $0x25c0] sm:$0xff]
    %v1408 = vld [vmem:[#allocation4 + $0x25c8] sm:$0xff]
    %v1409 = vld [vmem:[#allocation4 + $0x25d0] sm:$0xff]
    %v1410 = vld [vmem:[#allocation4 + $0x25d8] sm:$0xff]
    %v1411 = vld [vmem:[#allocation4 + $0x25e0] sm:$0xff]
    %v1412 = vld [vmem:[#allocation4 + $0x25e8] sm:$0xff]
    %v1413 = vld [vmem:[#allocation4 + $0x25f0] sm:$0xff]
    %v1414 = vld [vmem:[#allocation4 + $0x25f8] sm:$0xff]
    %v1415 = vld [vmem:[#allocation4 + $0x2600] sm:$0xff]
    %v1416 = vld [vmem:[#allocation4 + $0x2608] sm:$0xff]
    %v1417 = vld [vmem:[#allocation4 + $0x2610] sm:$0xff]
    %v1418 = vld [vmem:[#allocation4 + $0x2618] sm:$0xff]
    %v1419 = vld [vmem:[#allocation4 + $0x2620] sm:$0xff]
    %v1420 = vld [vmem:[#allocation4 + $0x2628] sm:$0xff]
    %v1421 = vld [vmem:[#allocation4 + $0x2630] sm:$0xff]
    %v1422 = vld [vmem:[#allocation4 + $0x2638] sm:$0xff]
    %v1423 = vld [vmem:[#allocation4 + $0x2640] sm:$0xff]
    %v1424 = vld [vmem:[#allocation4 + $0x2648] sm:$0xff]
    %v1425 = vld [vmem:[#allocation4 + $0x2650] sm:$0xff]
    %v1426 = vld [vmem:[#allocation4 + $0x2658] sm:$0xff]
    %v1427 = vld [vmem:[#allocation4 + $0x2660] sm:$0xff]
    %v1428 = vld [vmem:[#allocation4 + $0x2668] sm:$0xff]
    %v1429 = vld [vmem:[#allocation4 + $0x2670] sm:$0xff]
    %v1430 = vld [vmem:[#allocation4 + $0x2678] sm:$0xff]
    %v1431 = vld [vmem:[#allocation4 + $0x2680] sm:$0xff]
    %v1432 = vld [vmem:[#allocation4 + $0x2688] sm:$0xff]
    %v1433 = vld [vmem:[#allocation4 + $0x2690] sm:$0xff]
    %v1434 = vld [vmem:[#allocation4 + $0x2698] sm:$0xff]
    %v1435 = vld [vmem:[#allocation4 + $0x26a0] sm:$0xff]
    %v1436 = vld [vmem:[#allocation4 + $0x26a8] sm:$0xff]
    %v1437 = vld [vmem:[#allocation4 + $0x26b0] sm:$0xff]
    %v1438 = vld [vmem:[#allocation4 + $0x26b8] sm:$0xff]
    %v1439 = vld [vmem:[#allocation4 + $0x26c0] sm:$0xff]
    %v1440 = vld [vmem:[#allocation4 + $0x26c8] sm:$0xff]
    %v1441 = vld [vmem:[#allocation4 + $0x26d0] sm:$0xff]
    %v1442 = vld [vmem:[#allocation4 + $0x26d8] sm:$0xff]
    %v1443 = vld [vmem:[#allocation4 + $0x26e0] sm:$0xff]
    %v1444 = vld [vmem:[#allocation4 + $0x26e8] sm:$0xff]
    %v1445 = vld [vmem:[#allocation4 + $0x26f0] sm:$0xff]
    %v1446 = vld [vmem:[#allocation4 + $0x26f8] sm:$0xff]
    %v1447 = vld [vmem:[#allocation4 + $0x2700] sm:$0xff]
    %v1448 = vld [vmem:[#allocation4 + $0x2708] sm:$0xff]
    %v1449 = vld [vmem:[#allocation4 + $0x2710] sm:$0xff]
    %v1450 = vld [vmem:[#allocation4 + $0x2718] sm:$0xff]
    %v1451 = vld [vmem:[#allocation4 + $0x2720] sm:$0xff]
    %v1452 = vld [vmem:[#allocation4 + $0x2728] sm:$0xff]
    %v1453 = vld [vmem:[#allocation4 + $0x2730] sm:$0xff]
    %v1454 = vld [vmem:[#allocation4 + $0x2738] sm:$0xff]
    %v1455 = vld [vmem:[#allocation4 + $0x2740] sm:$0xff]
    %v1456 = vld [vmem:[#allocation4 + $0x2748] sm:$0xff]
    %v1457 = vld [vmem:[#allocation4 + $0x2750] sm:$0xff]
    %v1458 = vld [vmem:[#allocation4 + $0x2758] sm:$0xff]
    %v1459 = vld [vmem:[#allocation4 + $0x2760] sm:$0xff]
    %v1460 = vld [vmem:[#allocation4 + $0x2768] sm:$0xff]
    %v1461 = vld [vmem:[#allocation4 + $0x2770] sm:$0xff]
    %v1462 = vld [vmem:[#allocation4 + $0x2778] sm:$0xff]
    %v1463 = vld [vmem:[#allocation4 + $0x2780] sm:$0xff]
    %v1464 = vld [vmem:[#allocation4 + $0x2788] sm:$0xff]
    %v1465 = vld [vmem:[#allocation4 + $0x2790] sm:$0xff]
    %v1466 = vld [vmem:[#allocation4 + $0x2798] sm:$0xff]
    %v1467 = vld [vmem:[#allocation4 + $0x27a0] sm:$0xff]
    %v1468 = vld [vmem:[#allocation4 + $0x27a8] sm:$0xff]
    %v1469 = vld [vmem:[#allocation4 + $0x27b0] sm:$0xff]
    %v1470 = vld [vmem:[#allocation4 + $0x27b8] sm:$0xff]
    %v1471 = vld [vmem:[#allocation4 + $0x27c0] sm:$0xff]
    %v1472 = vld [vmem:[#allocation4 + $0x27c8] sm:$0xff]
    %v1473 = vld [vmem:[#allocation4 + $0x27d0] sm:$0xff]
    %v1474 = vld [vmem:[#allocation4 + $0x27d8] sm:$0xff]
    %v1475 = vld [vmem:[#allocation4 + $0x27e0] sm:$0xff]
    %v1476 = vld [vmem:[#allocation4 + $0x27e8] sm:$0xff]
    %v1477 = vld [vmem:[#allocation4 + $0x27f0] sm:$0xff]
    %v1478 = vld [vmem:[#allocation4 + $0x27f8] sm:$0xff]
    %v1479 = vld [vmem:[#allocation4 + $0x2800] sm:$0xff]
    %v1480 = vld [vmem:[#allocation4 + $0x2808] sm:$0xff]
    %v1481 = vld [vmem:[#allocation4 + $0x2810] sm:$0xff]
    %v1482 = vld [vmem:[#allocation4 + $0x2818] sm:$0xff]
    %v1483 = vld [vmem:[#allocation4 + $0x2820] sm:$0xff]
    %v1484 = vld [vmem:[#allocation4 + $0x2828] sm:$0xff]
    %v1485 = vld [vmem:[#allocation4 + $0x2830] sm:$0xff]
    %v1486 = vld [vmem:[#allocation4 + $0x2838] sm:$0xff]
    %v1487 = vld [vmem:[#allocation4 + $0x2840] sm:$0xff]
    %v1488 = vld [vmem:[#allocation4 + $0x2848] sm:$0xff]
    %v1489 = vld [vmem:[#allocation4 + $0x2850] sm:$0xff]
    %v1490 = vld [vmem:[#allocation4 + $0x2858] sm:$0xff]
    %v1491 = vld [vmem:[#allocation4 + $0x2860] sm:$0xff]
    %v1492 = vld [vmem:[#allocation4 + $0x2868] sm:$0xff]
    %v1493 = vld [vmem:[#allocation4 + $0x2870] sm:$0xff]
    %v1494 = vld [vmem:[#allocation4 + $0x2878] sm:$0xff]
    %v1495 = vld [vmem:[#allocation4 + $0x2880] sm:$0xff]
    %v1496 = vld [vmem:[#allocation4 + $0x2888] sm:$0xff]
    %v1497 = vld [vmem:[#allocation4 + $0x2890] sm:$0xff]
    %v1498 = vld [vmem:[#allocation4 + $0x2898] sm:$0xff]
    %v1499 = vld [vmem:[#allocation4 + $0x28a0] sm:$0xff]
    %v1500 = vld [vmem:[#allocation4 + $0x28a8] sm:$0xff]
    %v1501 = vld [vmem:[#allocation4 + $0x28b0] sm:$0xff]
    %v1502 = vld [vmem:[#allocation4 + $0x28b8] sm:$0xff]
    %v1503 = vld [vmem:[#allocation4 + $0x28c0] sm:$0xff]
    %v1504 = vld [vmem:[#allocation4 + $0x28c8] sm:$0xff]
    %v1505 = vld [vmem:[#allocation4 + $0x28d0] sm:$0xff]
    %v1506 = vld [vmem:[#allocation4 + $0x28d8] sm:$0xff]
    %v1507 = vld [vmem:[#allocation4 + $0x28e0] sm:$0xff]
    %v1508 = vld [vmem:[#allocation4 + $0x28e8] sm:$0xff]
    %v1509 = vld [vmem:[#allocation4 + $0x28f0] sm:$0xff]
    %v1510 = vld [vmem:[#allocation4 + $0x28f8] sm:$0xff]
    %v1511 = vld [vmem:[#allocation4 + $0x2900] sm:$0xff]
    %v1512 = vld [vmem:[#allocation4 + $0x2908] sm:$0xff]
    %v1513 = vld [vmem:[#allocation4 + $0x2910] sm:$0xff]
    %v1514 = vld [vmem:[#allocation4 + $0x2918] sm:$0xff]
    %v1515 = vld [vmem:[#allocation4 + $0x2920] sm:$0xff]
    %v1516 = vld [vmem:[#allocation4 + $0x2928] sm:$0xff]
    %v1517 = vld [vmem:[#allocation4 + $0x2930] sm:$0xff]
    %v1518 = vld [vmem:[#allocation4 + $0x2938] sm:$0xff]
    %v1519 = vld [vmem:[#allocation4 + $0x2940] sm:$0xff]
    %v1520 = vld [vmem:[#allocation4 + $0x2948] sm:$0xff]
    %v1521 = vld [vmem:[#allocation4 + $0x2950] sm:$0xff]
    %v1522 = vld [vmem:[#allocation4 + $0x2958] sm:$0xff]
    %v1523 = vld [vmem:[#allocation4 + $0x2960] sm:$0xff]
    %v1524 = vld [vmem:[#allocation4 + $0x2968] sm:$0xff]
    %v1525 = vld [vmem:[#allocation4 + $0x2970] sm:$0xff]
    %v1526 = vld [vmem:[#allocation4 + $0x2978] sm:$0xff]
    %v1527 = vld [vmem:[#allocation4 + $0x2980] sm:$0xff]
    %v1528 = vld [vmem:[#allocation4 + $0x2988] sm:$0xff]
    %v1529 = vld [vmem:[#allocation4 + $0x2990] sm:$0xff]
    %v1530 = vld [vmem:[#allocation4 + $0x2998] sm:$0xff]
    %v1531 = vld [vmem:[#allocation4 + $0x29a0] sm:$0xff]
    %v1532 = vld [vmem:[#allocation4 + $0x29a8] sm:$0xff]
    %v1533 = vld [vmem:[#allocation4 + $0x29b0] sm:$0xff]
    %v1534 = vld [vmem:[#allocation4 + $0x29b8] sm:$0xff]
    %v1535 = vld [vmem:[#allocation4 + $0x29c0] sm:$0xff]
    %v1536 = vld [vmem:[#allocation4 + $0x29c8] sm:$0xff]
    %v1537 = vld [vmem:[#allocation4 + $0x29d0] sm:$0xff]
    %v1538 = vld [vmem:[#allocation4 + $0x29d8] sm:$0xff]
    %v1539 = vld [vmem:[#allocation4 + $0x29e0] sm:$0xff]
    %v1540 = vld [vmem:[#allocation4 + $0x29e8] sm:$0xff]
    %v1541 = vld [vmem:[#allocation4 + $0x29f0] sm:$0xff]
    %v1542 = vld [vmem:[#allocation4 + $0x29f8] sm:$0xff]
    %v1543 = vld [vmem:[#allocation4 + $0x2a00] sm:$0xff]
    %v1544 = vld [vmem:[#allocation4 + $0x2a08] sm:$0xff]
    %v1545 = vld [vmem:[#allocation4 + $0x2a10] sm:$0xff]
    %v1546 = vld [vmem:[#allocation4 + $0x2a18] sm:$0xff]
    %v1547 = vld [vmem:[#allocation4 + $0x2a20] sm:$0xff]
    %v1548 = vld [vmem:[#allocation4 + $0x2a28] sm:$0xff]
    %v1549 = vld [vmem:[#allocation4 + $0x2a30] sm:$0xff]
    %v1550 = vld [vmem:[#allocation4 + $0x2a38] sm:$0xff]
    %v1551 = vld [vmem:[#allocation4 + $0x2a40] sm:$0xff]
    %v1552 = vld [vmem:[#allocation4 + $0x2a48] sm:$0xff]
    %v1553 = vld [vmem:[#allocation4 + $0x2a50] sm:$0xff]
    %v1554 = vld [vmem:[#allocation4 + $0x2a58] sm:$0xff]
    %v1555 = vld [vmem:[#allocation4 + $0x2a60] sm:$0xff]
    %v1556 = vld [vmem:[#allocation4 + $0x2a68] sm:$0xff]
    %v1557 = vld [vmem:[#allocation4 + $0x2a70] sm:$0xff]
    %v1558 = vld [vmem:[#allocation4 + $0x2a78] sm:$0xff]
    %v1559 = vld [vmem:[#allocation4 + $0x2a80] sm:$0xff]
    %v1560 = vld [vmem:[#allocation4 + $0x2a88] sm:$0xff]
    %v1561 = vld [vmem:[#allocation4 + $0x2a90] sm:$0xff]
    %v1562 = vld [vmem:[#allocation4 + $0x2a98] sm:$0xff]
    %v1563 = vld [vmem:[#allocation4 + $0x2aa0] sm:$0xff]
    %v1564 = vld [vmem:[#allocation4 + $0x2aa8] sm:$0xff]
    %v1565 = vld [vmem:[#allocation4 + $0x2ab0] sm:$0xff]
    %v1566 = vld [vmem:[#allocation4 + $0x2ab8] sm:$0xff]
    %v1567 = vld [vmem:[#allocation4 + $0x2ac0] sm:$0xff]
    %v1568 = vld [vmem:[#allocation4 + $0x2ac8] sm:$0xff]
    %v1569 = vld [vmem:[#allocation4 + $0x2ad0] sm:$0xff]
    %v1570 = vld [vmem:[#allocation4 + $0x2ad8] sm:$0xff]
    %v1571 = vld [vmem:[#allocation4 + $0x2ae0] sm:$0xff]
    %v1572 = vld [vmem:[#allocation4 + $0x2ae8] sm:$0xff]
    %v1573 = vld [vmem:[#allocation4 + $0x2af0] sm:$0xff]
    %v1574 = vld [vmem:[#allocation4 + $0x2af8] sm:$0xff]
    %v1575 = vld [vmem:[#allocation4 + $0x2b00] sm:$0xff]
    %v1576 = vld [vmem:[#allocation4 + $0x2b08] sm:$0xff]
    %v1577 = vld [vmem:[#allocation4 + $0x2b10] sm:$0xff]
    %v1578 = vld [vmem:[#allocation4 + $0x2b18] sm:$0xff]
    %v1579 = vld [vmem:[#allocation4 + $0x2b20] sm:$0xff]
    %v1580 = vld [vmem:[#allocation4 + $0x2b28] sm:$0xff]
    %v1581 = vld [vmem:[#allocation4 + $0x2b30] sm:$0xff]
    %v1582 = vld [vmem:[#allocation4 + $0x2b38] sm:$0xff]
    %v1583 = vld [vmem:[#allocation4 + $0x2b40] sm:$0xff]
    %v1584 = vld [vmem:[#allocation4 + $0x2b48] sm:$0xff]
    %v1585 = vld [vmem:[#allocation4 + $0x2b50] sm:$0xff]
    %v1586 = vld [vmem:[#allocation4 + $0x2b58] sm:$0xff]
    %v1587 = vld [vmem:[#allocation4 + $0x2b60] sm:$0xff]
    %v1588 = vld [vmem:[#allocation4 + $0x2b68] sm:$0xff]
    %v1589 = vld [vmem:[#allocation4 + $0x2b70] sm:$0xff]
    %v1590 = vld [vmem:[#allocation4 + $0x2b78] sm:$0xff]
    %v1591 = vld [vmem:[#allocation4 + $0x2b80] sm:$0xff]
    %v1592 = vld [vmem:[#allocation4 + $0x2b88] sm:$0xff]
    %v1593 = vld [vmem:[#allocation4 + $0x2b90] sm:$0xff]
    %v1594 = vld [vmem:[#allocation4 + $0x2b98] sm:$0xff]
    %v1595 = vld [vmem:[#allocation4 + $0x2ba0] sm:$0xff]
    %v1596 = vld [vmem:[#allocation4 + $0x2ba8] sm:$0xff]
    %v1597 = vld [vmem:[#allocation4 + $0x2bb0] sm:$0xff]
    %v1598 = vld [vmem:[#allocation4 + $0x2bb8] sm:$0xff]
    %v1599 = vld [vmem:[#allocation4 + $0x2bc0] sm:$0xff]
    %v1600 = vld [vmem:[#allocation4 + $0x2bc8] sm:$0xff]
    %v1601 = vld [vmem:[#allocation4 + $0x2bd0] sm:$0xff]
    %v1602 = vld [vmem:[#allocation4 + $0x2bd8] sm:$0xff]
    %v1603 = vld [vmem:[#allocation4 + $0x2be0] sm:$0xff]
    %v1604 = vld [vmem:[#allocation4 + $0x2be8] sm:$0xff]
    %v1605 = vld [vmem:[#allocation4 + $0x2bf0] sm:$0xff]
    %v1606 = vld [vmem:[#allocation4 + $0x2bf8] sm:$0xff]
    %v1607 = vld [vmem:[#allocation4 + $0x2c00] sm:$0xff]
    %v1608 = vld [vmem:[#allocation4 + $0x2c08] sm:$0xff]
    %v1609 = vld [vmem:[#allocation4 + $0x2c10] sm:$0xff]
    %v1610 = vld [vmem:[#allocation4 + $0x2c18] sm:$0xff]
    %v1611 = vld [vmem:[#allocation4 + $0x2c20] sm:$0xff]
    %v1612 = vld [vmem:[#allocation4 + $0x2c28] sm:$0xff]
    %v1613 = vld [vmem:[#allocation4 + $0x2c30] sm:$0xff]
    %v1614 = vld [vmem:[#allocation4 + $0x2c38] sm:$0xff]
    %v1615 = vld [vmem:[#allocation4 + $0x2c40] sm:$0xff]
    %v1616 = vld [vmem:[#allocation4 + $0x2c48] sm:$0xff]
    %v1617 = vld [vmem:[#allocation4 + $0x2c50] sm:$0xff]
    %v1618 = vld [vmem:[#allocation4 + $0x2c58] sm:$0xff]
    %v1619 = vld [vmem:[#allocation4 + $0x2c60] sm:$0xff]
    %v1620 = vld [vmem:[#allocation4 + $0x2c68] sm:$0xff]
    %v1621 = vld [vmem:[#allocation4 + $0x2c70] sm:$0xff]
    %v1622 = vld [vmem:[#allocation4 + $0x2c78] sm:$0xff]
    %v1623 = vld [vmem:[#allocation4 + $0x2c80] sm:$0xff]
    %v1624 = vld [vmem:[#allocation4 + $0x2c88] sm:$0xff]
    %v1625 = vld [vmem:[#allocation4 + $0x2c90] sm:$0xff]
    %v1626 = vld [vmem:[#allocation4 + $0x2c98] sm:$0xff]
    %v1627 = vld [vmem:[#allocation4 + $0x2ca0] sm:$0xff]
    %v1628 = vld [vmem:[#allocation4 + $0x2ca8] sm:$0xff]
    %v1629 = vld [vmem:[#allocation4 + $0x2cb0] sm:$0xff]
    %v1630 = vld [vmem:[#allocation4 + $0x2cb8] sm:$0xff]
    %v1631 = vld [vmem:[#allocation4 + $0x2cc0] sm:$0xff]
    %v1632 = vld [vmem:[#allocation4 + $0x2cc8] sm:$0xff]
    %v1633 = vld [vmem:[#allocation4 + $0x2cd0] sm:$0xff]
    %v1634 = vld [vmem:[#allocation4 + $0x2cd8] sm:$0xff]
    %v1635 = vld [vmem:[#allocation4 + $0x2ce0] sm:$0xff]
    %v1636 = vld [vmem:[#allocation4 + $0x2ce8] sm:$0xff]
    %v1637 = vld [vmem:[#allocation4 + $0x2cf0] sm:$0xff]
    %v1638 = vld [vmem:[#allocation4 + $0x2cf8] sm:$0xff]
    %v1639 = vld [vmem:[#allocation4 + $0x2d00] sm:$0xff]
    %v1640 = vld [vmem:[#allocation4 + $0x2d08] sm:$0xff]
    %v1641 = vld [vmem:[#allocation4 + $0x2d10] sm:$0xff]
    %v1642 = vld [vmem:[#allocation4 + $0x2d18] sm:$0xff]
    %v1643 = vld [vmem:[#allocation4 + $0x2d20] sm:$0xff]
    %v1644 = vld [vmem:[#allocation4 + $0x2d28] sm:$0xff]
    %v1645 = vld [vmem:[#allocation4 + $0x2d30] sm:$0xff]
    %v1646 = vld [vmem:[#allocation4 + $0x2d38] sm:$0xff]
    %v1647 = vld [vmem:[#allocation4 + $0x2d40] sm:$0xff]
    %v1648 = vld [vmem:[#allocation4 + $0x2d48] sm:$0xff]
    %v1649 = vld [vmem:[#allocation4 + $0x2d50] sm:$0xff]
    %v1650 = vld [vmem:[#allocation4 + $0x2d58] sm:$0xff]
    %v1651 = vld [vmem:[#allocation4 + $0x2d60] sm:$0xff]
    %v1652 = vld [vmem:[#allocation4 + $0x2d68] sm:$0xff]
    %v1653 = vld [vmem:[#allocation4 + $0x2d70] sm:$0xff]
    %v1654 = vld [vmem:[#allocation4 + $0x2d78] sm:$0xff]
    %v1655 = vld [vmem:[#allocation4 + $0x2d80] sm:$0xff]
    %v1656 = vld [vmem:[#allocation4 + $0x2d88] sm:$0xff]
    %v1657 = vld [vmem:[#allocation4 + $0x2d90] sm:$0xff]
    %v1658 = vld [vmem:[#allocation4 + $0x2d98] sm:$0xff]
    %v1659 = vld [vmem:[#allocation4 + $0x2da0] sm:$0xff]
    %v1660 = vld [vmem:[#allocation4 + $0x2da8] sm:$0xff]
    %v1661 = vld [vmem:[#allocation4 + $0x2db0] sm:$0xff]
    %v1662 = vld [vmem:[#allocation4 + $0x2db8] sm:$0xff]
    %v1663 = vld [vmem:[#allocation4 + $0x2dc0] sm:$0xff]
    %v1664 = vld [vmem:[#allocation4 + $0x2dc8] sm:$0xff]
    %v1665 = vld [vmem:[#allocation4 + $0x2dd0] sm:$0xff]
    %v1666 = vld [vmem:[#allocation4 + $0x2dd8] sm:$0xff]
    %v1667 = vld [vmem:[#allocation4 + $0x2de0] sm:$0xff]
    %v1668 = vld [vmem:[#allocation4 + $0x2de8] sm:$0xff]
    %v1669 = vld [vmem:[#allocation4 + $0x2df0] sm:$0xff]
    %v1670 = vld [vmem:[#allocation4 + $0x2df8] sm:$0xff]
    %v1671 = vld [vmem:[#allocation4 + $0x2e00] sm:$0xff]
    %v1672 = vld [vmem:[#allocation4 + $0x2e08] sm:$0xff]
    %v1673 = vld [vmem:[#allocation4 + $0x2e10] sm:$0xff]
    %v1674 = vld [vmem:[#allocation4 + $0x2e18] sm:$0xff]
    %v1675 = vld [vmem:[#allocation4 + $0x2e20] sm:$0xff]
    %v1676 = vld [vmem:[#allocation4 + $0x2e28] sm:$0xff]
    %v1677 = vld [vmem:[#allocation4 + $0x2e30] sm:$0xff]
    %v1678 = vld [vmem:[#allocation4 + $0x2e38] sm:$0xff]
    %v1679 = vld [vmem:[#allocation4 + $0x2e40] sm:$0xff]
    %v1680 = vld [vmem:[#allocation4 + $0x2e48] sm:$0xff]
    %v1681 = vld [vmem:[#allocation4 + $0x2e50] sm:$0xff]
    %v1682 = vld [vmem:[#allocation4 + $0x2e58] sm:$0xff]
    %v1683 = vld [vmem:[#allocation4 + $0x2e60] sm:$0xff]
    %v1684 = vld [vmem:[#allocation4 + $0x2e68] sm:$0xff]
    %v1685 = vld [vmem:[#allocation4 + $0x2e70] sm:$0xff]
    %v1686 = vld [vmem:[#allocation4 + $0x2e78] sm:$0xff]
    %v1687 = vld [vmem:[#allocation4 + $0x2e80] sm:$0xff]
    %v1688 = vld [vmem:[#allocation4 + $0x2e88] sm:$0xff]
    %v1689 = vld [vmem:[#allocation4 + $0x2e90] sm:$0xff]
    %v1690 = vld [vmem:[#allocation4 + $0x2e98] sm:$0xff]
    %v1691 = vld [vmem:[#allocation4 + $0x2ea0] sm:$0xff]
    %v1692 = vld [vmem:[#allocation4 + $0x2ea8] sm:$0xff]
    %v1693 = vld [vmem:[#allocation4 + $0x2eb0] sm:$0xff]
    %v1694 = vld [vmem:[#allocation4 + $0x2eb8] sm:$0xff]
    %v1695 = vld [vmem:[#allocation4 + $0x2ec0] sm:$0xff]
    %v1696 = vld [vmem:[#allocation4 + $0x2ec8] sm:$0xff]
    %v1697 = vld [vmem:[#allocation4 + $0x2ed0] sm:$0xff]
    %v1698 = vld [vmem:[#allocation4 + $0x2ed8] sm:$0xff]
    %v1699 = vld [vmem:[#allocation4 + $0x2ee0] sm:$0xff]
    %v1700 = vld [vmem:[#allocation4 + $0x2ee8] sm:$0xff]
    %v1701 = vld [vmem:[#allocation4 + $0x2ef0] sm:$0xff]
    %v1702 = vld [vmem:[#allocation4 + $0x2ef8] sm:$0xff]
    %v1703 = vld [vmem:[#allocation4 + $0x2f00] sm:$0xff]
    %v1704 = vld [vmem:[#allocation4 + $0x2f08] sm:$0xff]
    %v1705 = vld [vmem:[#allocation4 + $0x2f10] sm:$0xff]
    %v1706 = vld [vmem:[#allocation4 + $0x2f18] sm:$0xff]
    %v1707 = vld [vmem:[#allocation4 + $0x2f20] sm:$0xff]
    %v1708 = vld [vmem:[#allocation4 + $0x2f28] sm:$0xff]
    %v1709 = vld [vmem:[#allocation4 + $0x2f30] sm:$0xff]
    %v1710 = vld [vmem:[#allocation4 + $0x2f38] sm:$0xff]
    %v1711 = vld [vmem:[#allocation4 + $0x2f40] sm:$0xff]
    %v1712 = vld [vmem:[#allocation4 + $0x2f48] sm:$0xff]
    %v1713 = vld [vmem:[#allocation4 + $0x2f50] sm:$0xff]
    %v1714 = vld [vmem:[#allocation4 + $0x2f58] sm:$0xff]
    %v1715 = vld [vmem:[#allocation4 + $0x2f60] sm:$0xff]
    %v1716 = vld [vmem:[#allocation4 + $0x2f68] sm:$0xff]
    %v1717 = vld [vmem:[#allocation4 + $0x2f70] sm:$0xff]
    %v1718 = vld [vmem:[#allocation4 + $0x2f78] sm:$0xff]
    %v1719 = vld [vmem:[#allocation4 + $0x2f80] sm:$0xff]
    %v1720 = vld [vmem:[#allocation4 + $0x2f88] sm:$0xff]
    %v1721 = vld [vmem:[#allocation4 + $0x2f90] sm:$0xff]
    %v1722 = vld [vmem:[#allocation4 + $0x2f98] sm:$0xff]
    %v1723 = vld [vmem:[#allocation4 + $0x2fa0] sm:$0xff]
    %v1724 = vld [vmem:[#allocation4 + $0x2fa8] sm:$0xff]
    %v1725 = vld [vmem:[#allocation4 + $0x2fb0] sm:$0xff]
    %v1726 = vld [vmem:[#allocation4 + $0x2fb8] sm:$0xff]
    %v1727 = vld [vmem:[#allocation4 + $0x2fc0] sm:$0xff]
    %v1728 = vld [vmem:[#allocation4 + $0x2fc8] sm:$0xff]
    %v1729 = vld [vmem:[#allocation4 + $0x2fd0] sm:$0xff]
    %v1730 = vld [vmem:[#allocation4 + $0x2fd8] sm:$0xff]
    %v1731 = vld [vmem:[#allocation4 + $0x2fe0] sm:$0xff]
    %v1732 = vld [vmem:[#allocation4 + $0x2fe8] sm:$0xff]
    %v1733 = vld [vmem:[#allocation4 + $0x2ff0] sm:$0xff]
    %v1734 = vld [vmem:[#allocation4 + $0x2ff8] sm:$0xff]
    %v1735 = vld [vmem:[#allocation4 + $0x3000] sm:$0xff]
    %v1736 = vld [vmem:[#allocation4 + $0x3008] sm:$0xff]
    %v1737 = vld [vmem:[#allocation4 + $0x3010] sm:$0xff]
    %v1738 = vld [vmem:[#allocation4 + $0x3018] sm:$0xff]
    %v1739 = vld [vmem:[#allocation4 + $0x3020] sm:$0xff]
    %v1740 = vld [vmem:[#allocation4 + $0x3028] sm:$0xff]
    %v1741 = vld [vmem:[#allocation4 + $0x3030] sm:$0xff]
    %v1742 = vld [vmem:[#allocation4 + $0x3038] sm:$0xff]
    %v1743 = vld [vmem:[#allocation4 + $0x3040] sm:$0xff]
    %v1744 = vld [vmem:[#allocation4 + $0x3048] sm:$0xff]
    %v1745 = vld [vmem:[#allocation4 + $0x3050] sm:$0xff]
    %v1746 = vld [vmem:[#allocation4 + $0x3058] sm:$0xff]
    %v1747 = vld [vmem:[#allocation4 + $0x3060] sm:$0xff]
    %v1748 = vld [vmem:[#allocation4 + $0x3068] sm:$0xff]
    %v1749 = vld [vmem:[#allocation4 + $0x3070] sm:$0xff]
    %v1750 = vld [vmem:[#allocation4 + $0x3078] sm:$0xff]
    %v1751 = vld [vmem:[#allocation4 + $0x3080] sm:$0xff]
    %v1752 = vld [vmem:[#allocation4 + $0x3088] sm:$0xff]
    %v1753 = vld [vmem:[#allocation4 + $0x3090] sm:$0xff]
    %v1754 = vld [vmem:[#allocation4 + $0x3098] sm:$0xff]
    %v1755 = vld [vmem:[#allocation4 + $0x30a0] sm:$0xff]
    %v1756 = vld [vmem:[#allocation4 + $0x30a8] sm:$0xff]
    %v1757 = vld [vmem:[#allocation4 + $0x30b0] sm:$0xff]
    %v1758 = vld [vmem:[#allocation4 + $0x30b8] sm:$0xff]
    %v1759 = vld [vmem:[#allocation4 + $0x30c0] sm:$0xff]
    %v1760 = vld [vmem:[#allocation4 + $0x30c8] sm:$0xff]
    %v1761 = vld [vmem:[#allocation4 + $0x30d0] sm:$0xff]
    %v1762 = vld [vmem:[#allocation4 + $0x30d8] sm:$0xff]
    %v1763 = vld [vmem:[#allocation4 + $0x30e0] sm:$0xff]
    %v1764 = vld [vmem:[#allocation4 + $0x30e8] sm:$0xff]
    %v1765 = vld [vmem:[#allocation4 + $0x30f0] sm:$0xff]
    %v1766 = vld [vmem:[#allocation4 + $0x30f8] sm:$0xff]
    %v1767 = vld [vmem:[#allocation4 + $0x3100] sm:$0xff]
    %v1768 = vld [vmem:[#allocation4 + $0x3108] sm:$0xff]
    %v1769 = vld [vmem:[#allocation4 + $0x3110] sm:$0xff]
    %v1770 = vld [vmem:[#allocation4 + $0x3118] sm:$0xff]
    %v1771 = vld [vmem:[#allocation4 + $0x3120] sm:$0xff]
    %v1772 = vld [vmem:[#allocation4 + $0x3128] sm:$0xff]
    %v1773 = vld [vmem:[#allocation4 + $0x3130] sm:$0xff]
    %v1774 = vld [vmem:[#allocation4 + $0x3138] sm:$0xff]
    %v1775 = vld [vmem:[#allocation4 + $0x3140] sm:$0xff]
    %v1776 = vld [vmem:[#allocation4 + $0x3148] sm:$0xff]
    %v1777 = vld [vmem:[#allocation4 + $0x3150] sm:$0xff]
    %v1778 = vld [vmem:[#allocation4 + $0x3158] sm:$0xff]
    %v1779 = vld [vmem:[#allocation4 + $0x3160] sm:$0xff]
    %v1780 = vld [vmem:[#allocation4 + $0x3168] sm:$0xff]
    %v1781 = vld [vmem:[#allocation4 + $0x3170] sm:$0xff]
    %v1782 = vld [vmem:[#allocation4 + $0x3178] sm:$0xff]
    %v1783 = vld [vmem:[#allocation4 + $0x3180] sm:$0xff]
    %v1784 = vld [vmem:[#allocation4 + $0x3188] sm:$0xff]
    %v1785 = vld [vmem:[#allocation4 + $0x3190] sm:$0xff]
    %v1786 = vld [vmem:[#allocation4 + $0x3198] sm:$0xff]
    %v1787 = vld [vmem:[#allocation4 + $0x31a0] sm:$0xff]
    %v1788 = vld [vmem:[#allocation4 + $0x31a8] sm:$0xff]
    %v1789 = vld [vmem:[#allocation4 + $0x31b0] sm:$0xff]
    %v1790 = vld [vmem:[#allocation4 + $0x31b8] sm:$0xff]
    %v1791 = vld [vmem:[#allocation4 + $0x31c0] sm:$0xff]
    %v1792 = vld [vmem:[#allocation4 + $0x31c8] sm:$0xff]
    %v1793 = vld [vmem:[#allocation4 + $0x31d0] sm:$0xff]
    %v1794 = vld [vmem:[#allocation4 + $0x31d8] sm:$0xff]
    %v1795 = vld [vmem:[#allocation4 + $0x31e0] sm:$0xff]
    %v1796 = vld [vmem:[#allocation4 + $0x31e8] sm:$0xff]
    %v1797 = vld [vmem:[#allocation4 + $0x31f0] sm:$0xff]
    %v1798 = vld [vmem:[#allocation4 + $0x31f8] sm:$0xff]
    %v1799 = vld [vmem:[#allocation4 + $0x3200] sm:$0xff]
    %v1800 = vld [vmem:[#allocation4 + $0x3208] sm:$0xff]
    %v1801 = vld [vmem:[#allocation4 + $0x3210] sm:$0xff]
    %v1802 = vld [vmem:[#allocation4 + $0x3218] sm:$0xff]
    %v1803 = vld [vmem:[#allocation4 + $0x3220] sm:$0xff]
    %v1804 = vld [vmem:[#allocation4 + $0x3228] sm:$0xff]
    %v1805 = vld [vmem:[#allocation4 + $0x3230] sm:$0xff]
    %v1806 = vld [vmem:[#allocation4 + $0x3238] sm:$0xff]
    %v1807 = vld [vmem:[#allocation4 + $0x3240] sm:$0xff]
    %v1808 = vld [vmem:[#allocation4 + $0x3248] sm:$0xff]
    %v1809 = vld [vmem:[#allocation4 + $0x3250] sm:$0xff]
    %v1810 = vld [vmem:[#allocation4 + $0x3258] sm:$0xff]
    %v1811 = vld [vmem:[#allocation4 + $0x3260] sm:$0xff]
    %v1812 = vld [vmem:[#allocation4 + $0x3268] sm:$0xff]
    %v1813 = vld [vmem:[#allocation4 + $0x3270] sm:$0xff]
    %v1814 = vld [vmem:[#allocation4 + $0x3278] sm:$0xff]
    %v1815 = vld [vmem:[#allocation4 + $0x3280] sm:$0xff]
    %v1816 = vld [vmem:[#allocation4 + $0x3288] sm:$0xff]
    %v1817 = vld [vmem:[#allocation4 + $0x3290] sm:$0xff]
    %v1818 = vld [vmem:[#allocation4 + $0x3298] sm:$0xff]
    %v1819 = vld [vmem:[#allocation4 + $0x32a0] sm:$0xff]
    %v1820 = vld [vmem:[#allocation4 + $0x32a8] sm:$0xff]
    %v1821 = vld [vmem:[#allocation4 + $0x32b0] sm:$0xff]
    %v1822 = vld [vmem:[#allocation4 + $0x32b8] sm:$0xff]
    %v1823 = vld [vmem:[#allocation4 + $0x32c0] sm:$0xff]
    %v1824 = vld [vmem:[#allocation4 + $0x32c8] sm:$0xff]
    %v1825 = vld [vmem:[#allocation4 + $0x32d0] sm:$0xff]
    %v1826 = vld [vmem:[#allocation4 + $0x32d8] sm:$0xff]
    %v1827 = vld [vmem:[#allocation4 + $0x32e0] sm:$0xff]
    %v1828 = vld [vmem:[#allocation4 + $0x32e8] sm:$0xff]
    %v1829 = vld [vmem:[#allocation4 + $0x32f0] sm:$0xff]
    %v1830 = vld [vmem:[#allocation4 + $0x32f8] sm:$0xff]
    %v1831 = vld [vmem:[#allocation4 + $0x3300] sm:$0xff]
    %v1832 = vld [vmem:[#allocation4 + $0x3308] sm:$0xff]
    %v1833 = vld [vmem:[#allocation4 + $0x3310] sm:$0xff]
    %v1834 = vld [vmem:[#allocation4 + $0x3318] sm:$0xff]
    %v1835 = vld [vmem:[#allocation4 + $0x3320] sm:$0xff]
    %v1836 = vld [vmem:[#allocation4 + $0x3328] sm:$0xff]
    %v1837 = vld [vmem:[#allocation4 + $0x3330] sm:$0xff]
    %v1838 = vld [vmem:[#allocation4 + $0x3338] sm:$0xff]
    %v1839 = vld [vmem:[#allocation4 + $0x3340] sm:$0xff]
    %v1840 = vld [vmem:[#allocation4 + $0x3348] sm:$0xff]
    %v1841 = vld [vmem:[#allocation4 + $0x3350] sm:$0xff]
    %v1842 = vld [vmem:[#allocation4 + $0x3358] sm:$0xff]
    %v1843 = vld [vmem:[#allocation4 + $0x3360] sm:$0xff]
    %v1844 = vld [vmem:[#allocation4 + $0x3368] sm:$0xff]
    %v1845 = vld [vmem:[#allocation4 + $0x3370] sm:$0xff]
    %v1846 = vld [vmem:[#allocation4 + $0x3378] sm:$0xff]
    %v1847 = vld [vmem:[#allocation4 + $0x3380] sm:$0xff]
    %v1848 = vld [vmem:[#allocation4 + $0x3388] sm:$0xff]
    %v1849 = vld [vmem:[#allocation4 + $0x3390] sm:$0xff]
    %v1850 = vld [vmem:[#allocation4 + $0x3398] sm:$0xff]
    %v1851 = vld [vmem:[#allocation4 + $0x33a0] sm:$0xff]
    %v1852 = vld [vmem:[#allocation4 + $0x33a8] sm:$0xff]
    %v1853 = vld [vmem:[#allocation4 + $0x33b0] sm:$0xff]
    %v1854 = vld [vmem:[#allocation4 + $0x33b8] sm:$0xff]
    %v1855 = vld [vmem:[#allocation4 + $0x33c0] sm:$0xff]
    %v1856 = vld [vmem:[#allocation4 + $0x33c8] sm:$0xff]
    %v1857 = vld [vmem:[#allocation4 + $0x33d0] sm:$0xff]
    %v1858 = vld [vmem:[#allocation4 + $0x33d8] sm:$0xff]
    %v1859 = vld [vmem:[#allocation4 + $0x33e0] sm:$0xff]
    %v1860 = vld [vmem:[#allocation4 + $0x33e8] sm:$0xff]
    %v1861 = vld [vmem:[#allocation4 + $0x33f0] sm:$0xff]
    %v1862 = vld [vmem:[#allocation4 + $0x33f8] sm:$0xff]
    %v1863 = vld [vmem:[#allocation4 + $0x3400] sm:$0xff]
    %v1864 = vld [vmem:[#allocation4 + $0x3408] sm:$0xff]
    %v1865 = vld [vmem:[#allocation4 + $0x3410] sm:$0xff]
    %v1866 = vld [vmem:[#allocation4 + $0x3418] sm:$0xff]
    %v1867 = vld [vmem:[#allocation4 + $0x3420] sm:$0xff]
    %v1868 = vld [vmem:[#allocation4 + $0x3428] sm:$0xff]
    %v1869 = vld [vmem:[#allocation4 + $0x3430] sm:$0xff]
    %v1870 = vld [vmem:[#allocation4 + $0x3438] sm:$0xff]
    %v1871 = vld [vmem:[#allocation4 + $0x3440] sm:$0xff]
    %v1872 = vld [vmem:[#allocation4 + $0x3448] sm:$0xff]
    %v1873 = vld [vmem:[#allocation4 + $0x3450] sm:$0xff]
    %v1874 = vld [vmem:[#allocation4 + $0x3458] sm:$0xff]
    %v1875 = vld [vmem:[#allocation4 + $0x3460] sm:$0xff]
    %v1876 = vld [vmem:[#allocation4 + $0x3468] sm:$0xff]
    %v1877 = vld [vmem:[#allocation4 + $0x3470] sm:$0xff]
    %v1878 = vld [vmem:[#allocation4 + $0x3478] sm:$0xff]
    %v1879 = vld [vmem:[#allocation4 + $0x3480] sm:$0xff]
    %v1880 = vld [vmem:[#allocation4 + $0x3488] sm:$0xff]
    %v1881 = vld [vmem:[#allocation4 + $0x3490] sm:$0xff]
    %v1882 = vld [vmem:[#allocation4 + $0x3498] sm:$0xff]
    %v1883 = vld [vmem:[#allocation4 + $0x34a0] sm:$0xff]
    %v1884 = vld [vmem:[#allocation4 + $0x34a8] sm:$0xff]
    %v1885 = vld [vmem:[#allocation4 + $0x34b0] sm:$0xff]
    %v1886 = vld [vmem:[#allocation4 + $0x34b8] sm:$0xff]
    %v1887 = vld [vmem:[#allocation4 + $0x34c0] sm:$0xff]
    %v1888 = vld [vmem:[#allocation4 + $0x34c8] sm:$0xff]
    %v1889 = vld [vmem:[#allocation4 + $0x34d0] sm:$0xff]
    %v1890 = vld [vmem:[#allocation4 + $0x34d8] sm:$0xff]
    %v1891 = vld [vmem:[#allocation4 + $0x34e0] sm:$0xff]
    %v1892 = vld [vmem:[#allocation4 + $0x34e8] sm:$0xff]
    %v1893 = vld [vmem:[#allocation4 + $0x34f0] sm:$0xff]
    %v1894 = vld [vmem:[#allocation4 + $0x34f8] sm:$0xff]
    %v1895 = vld [vmem:[#allocation4 + $0x3500] sm:$0xff]
    %v1896 = vld [vmem:[#allocation4 + $0x3508] sm:$0xff]
    %v1897 = vld [vmem:[#allocation4 + $0x3510] sm:$0xff]
    %v1898 = vld [vmem:[#allocation4 + $0x3518] sm:$0xff]
    %v1899 = vld [vmem:[#allocation4 + $0x3520] sm:$0xff]
    %v1900 = vld [vmem:[#allocation4 + $0x3528] sm:$0xff]
    %v1901 = vld [vmem:[#allocation4 + $0x3530] sm:$0xff]
    %v1902 = vld [vmem:[#allocation4 + $0x3538] sm:$0xff]
    %v1903 = vld [vmem:[#allocation4 + $0x3540] sm:$0xff]
    %v1904 = vld [vmem:[#allocation4 + $0x3548] sm:$0xff]
    %v1905 = vld [vmem:[#allocation4 + $0x3550] sm:$0xff]
    %v1906 = vld [vmem:[#allocation4 + $0x3558] sm:$0xff]
    %v1907 = vld [vmem:[#allocation4 + $0x3560] sm:$0xff]
    %v1908 = vld [vmem:[#allocation4 + $0x3568] sm:$0xff]
    %v1909 = vld [vmem:[#allocation4 + $0x3570] sm:$0xff]
    %v1910 = vld [vmem:[#allocation4 + $0x3578] sm:$0xff]
    %v1911 = vld [vmem:[#allocation4 + $0x3580] sm:$0xff]
    %v1912 = vld [vmem:[#allocation4 + $0x3588] sm:$0xff]
    %v1913 = vld [vmem:[#allocation4 + $0x3590] sm:$0xff]
    %v1914 = vld [vmem:[#allocation4 + $0x3598] sm:$0xff]
    %v1915 = vld [vmem:[#allocation4 + $0x35a0] sm:$0xff]
    %v1916 = vld [vmem:[#allocation4 + $0x35a8] sm:$0xff]
    %v1917 = vld [vmem:[#allocation4 + $0x35b0] sm:$0xff]
    %v1918 = vld [vmem:[#allocation4 + $0x35b8] sm:$0xff]
    %v1919 = vld [vmem:[#allocation4 + $0x35c0] sm:$0xff]
    %v1920 = vld [vmem:[#allocation4 + $0x35c8] sm:$0xff]
    %v1921 = vld [vmem:[#allocation4 + $0x35d0] sm:$0xff]
    %v1922 = vld [vmem:[#allocation4 + $0x35d8] sm:$0xff]
    %v1923 = vld [vmem:[#allocation4 + $0x35e0] sm:$0xff]
    %v1924 = vld [vmem:[#allocation4 + $0x35e8] sm:$0xff]
    %v1925 = vld [vmem:[#allocation4 + $0x35f0] sm:$0xff]
    %v1926 = vld [vmem:[#allocation4 + $0x35f8] sm:$0xff]
    %v1927 = vld [vmem:[#allocation4 + $0x3600] sm:$0xff]
    %v1928 = vld [vmem:[#allocation4 + $0x3608] sm:$0xff]
    %v1929 = vld [vmem:[#allocation4 + $0x3610] sm:$0xff]
    %v1930 = vld [vmem:[#allocation4 + $0x3618] sm:$0xff]
    %v1931 = vld [vmem:[#allocation4 + $0x3620] sm:$0xff]
    %v1932 = vld [vmem:[#allocation4 + $0x3628] sm:$0xff]
    %v1933 = vld [vmem:[#allocation4 + $0x3630] sm:$0xff]
    %v1934 = vld [vmem:[#allocation4 + $0x3638] sm:$0xff]
    %v1935 = vld [vmem:[#allocation4 + $0x3640] sm:$0xff]
    %v1936 = vld [vmem:[#allocation4 + $0x3648] sm:$0xff]
    %v1937 = vld [vmem:[#allocation4 + $0x3650] sm:$0xff]
    %v1938 = vld [vmem:[#allocation4 + $0x3658] sm:$0xff]
    %v1939 = vld [vmem:[#allocation4 + $0x3660] sm:$0xff]
    %v1940 = vld [vmem:[#allocation4 + $0x3668] sm:$0xff]
    %v1941 = vld [vmem:[#allocation4 + $0x3670] sm:$0xff]
    %v1942 = vld [vmem:[#allocation4 + $0x3678] sm:$0xff]
    %v1943 = vld [vmem:[#allocation4 + $0x3680] sm:$0xff]
    %v1944 = vld [vmem:[#allocation4 + $0x3688] sm:$0xff]
    %v1945 = vld [vmem:[#allocation4 + $0x3690] sm:$0xff]
    %v1946 = vld [vmem:[#allocation4 + $0x3698] sm:$0xff]
    %v1947 = vld [vmem:[#allocation4 + $0x36a0] sm:$0xff]
    %v1948 = vld [vmem:[#allocation4 + $0x36a8] sm:$0xff]
    %v1949 = vld [vmem:[#allocation4 + $0x36b0] sm:$0xff]
    %v1950 = vld [vmem:[#allocation4 + $0x36b8] sm:$0xff]
    %v1951 = vld [vmem:[#allocation4 + $0x36c0] sm:$0xff]
    %v1952 = vld [vmem:[#allocation4 + $0x36c8] sm:$0xff]
    %v1953 = vld [vmem:[#allocation4 + $0x36d0] sm:$0xff]
    %v1954 = vld [vmem:[#allocation4 + $0x36d8] sm:$0xff]
    %v1955 = vld [vmem:[#allocation4 + $0x36e0] sm:$0xff]
    %v1956 = vld [vmem:[#allocation4 + $0x36e8] sm:$0xff]
    %v1957 = vld [vmem:[#allocation4 + $0x36f0] sm:$0xff]
    %v1958 = vld [vmem:[#allocation4 + $0x36f8] sm:$0xff]
    %v1959 = vld [vmem:[#allocation4 + $0x3700] sm:$0xff]
    %v1960 = vld [vmem:[#allocation4 + $0x3708] sm:$0xff]
    %v1961 = vld [vmem:[#allocation4 + $0x3710] sm:$0xff]
    %v1962 = vld [vmem:[#allocation4 + $0x3718] sm:$0xff]
    %v1963 = vld [vmem:[#allocation4 + $0x3720] sm:$0xff]
    %v1964 = vld [vmem:[#allocation4 + $0x3728] sm:$0xff]
    %v1965 = vld [vmem:[#allocation4 + $0x3730] sm:$0xff]
    %v1966 = vld [vmem:[#allocation4 + $0x3738] sm:$0xff]
    %v1967 = vld [vmem:[#allocation4 + $0x3740] sm:$0xff]
    %v1968 = vld [vmem:[#allocation4 + $0x3748] sm:$0xff]
    %v1969 = vld [vmem:[#allocation4 + $0x3750] sm:$0xff]
    %v1970 = vld [vmem:[#allocation4 + $0x3758] sm:$0xff]
    %v1971 = vld [vmem:[#allocation4 + $0x3760] sm:$0xff]
    %v1972 = vld [vmem:[#allocation4 + $0x3768] sm:$0xff]
    %v1973 = vld [vmem:[#allocation4 + $0x3770] sm:$0xff]
    %v1974 = vld [vmem:[#allocation4 + $0x3778] sm:$0xff]
    %v1975 = vld [vmem:[#allocation4 + $0x3780] sm:$0xff]
    %v1976 = vld [vmem:[#allocation4 + $0x3788] sm:$0xff]
    %v1977 = vld [vmem:[#allocation4 + $0x3790] sm:$0xff]
    %v1978 = vld [vmem:[#allocation4 + $0x3798] sm:$0xff]
    %v1979 = vld [vmem:[#allocation4 + $0x37a0] sm:$0xff]
    %v1980 = vld [vmem:[#allocation4 + $0x37a8] sm:$0xff]
    %v1981 = vld [vmem:[#allocation4 + $0x37b0] sm:$0xff]
    %v1982 = vld [vmem:[#allocation4 + $0x37b8] sm:$0xff]
    %v1983 = vld [vmem:[#allocation4 + $0x37c0] sm:$0xff]
    %v1984 = vld [vmem:[#allocation4 + $0x37c8] sm:$0xff]
    %v1985 = vld [vmem:[#allocation4 + $0x37d0] sm:$0xff]
    %v1986 = vld [vmem:[#allocation4 + $0x37d8] sm:$0xff]
    %v1987 = vld [vmem:[#allocation4 + $0x37e0] sm:$0xff]
    %v1988 = vld [vmem:[#allocation4 + $0x37e8] sm:$0xff]
    %v1989 = vld [vmem:[#allocation4 + $0x37f0] sm:$0xff]
    %v1990 = vld [vmem:[#allocation4 + $0x37f8] sm:$0xff]
    %v1991 = vld [vmem:[#allocation4 + $0x3800] sm:$0xff]
    %v1992 = vld [vmem:[#allocation4 + $0x3808] sm:$0xff]
    %v1993 = vld [vmem:[#allocation4 + $0x3810] sm:$0xff]
    %v1994 = vld [vmem:[#allocation4 + $0x3818] sm:$0xff]
    %v1995 = vld [vmem:[#allocation4 + $0x3820] sm:$0xff]
    %v1996 = vld [vmem:[#allocation4 + $0x3828] sm:$0xff]
    %v1997 = vld [vmem:[#allocation4 + $0x3830] sm:$0xff]
    %v1998 = vld [vmem:[#allocation4 + $0x3838] sm:$0xff]
    %v1999 = vld [vmem:[#allocation4 + $0x3840] sm:$0xff]
    %v2000 = vld [vmem:[#allocation4 + $0x3848] sm:$0xff]
    %v2001 = vld [vmem:[#allocation4 + $0x3850] sm:$0xff]
    %v2002 = vld [vmem:[#allocation4 + $0x3858] sm:$0xff]
    %v2003 = vld [vmem:[#allocation4 + $0x3860] sm:$0xff]
    %v2004 = vld [vmem:[#allocation4 + $0x3868] sm:$0xff]
    %v2005 = vld [vmem:[#allocation4 + $0x3870] sm:$0xff]
    %v2006 = vld [vmem:[#allocation4 + $0x3878] sm:$0xff]
    %v2007 = vld [vmem:[#allocation4 + $0x3880] sm:$0xff]
    %v2008 = vld [vmem:[#allocation4 + $0x3888] sm:$0xff]
    %v2009 = vld [vmem:[#allocation4 + $0x3890] sm:$0xff]
    %v2010 = vld [vmem:[#allocation4 + $0x3898] sm:$0xff]
    %v2011 = vld [vmem:[#allocation4 + $0x38a0] sm:$0xff]
    %v2012 = vld [vmem:[#allocation4 + $0x38a8] sm:$0xff]
    %v2013 = vld [vmem:[#allocation4 + $0x38b0] sm:$0xff]
    %v2014 = vld [vmem:[#allocation4 + $0x38b8] sm:$0xff]
    %v2015 = vld [vmem:[#allocation4 + $0x38c0] sm:$0xff]
    %v2016 = vld [vmem:[#allocation4 + $0x38c8] sm:$0xff]
    %v2017 = vld [vmem:[#allocation4 + $0x38d0] sm:$0xff]
    %v2018 = vld [vmem:[#allocation4 + $0x38d8] sm:$0xff]
    %v2019 = vld [vmem:[#allocation4 + $0x38e0] sm:$0xff]
    %v2020 = vld [vmem:[#allocation4 + $0x38e8] sm:$0xff]
    %v2021 = vld [vmem:[#allocation4 + $0x38f0] sm:$0xff]
    %v2022 = vld [vmem:[#allocation4 + $0x38f8] sm:$0xff]
    %v2023 = vld [vmem:[#allocation4 + $0x3900] sm:$0xff]
    %v2024 = vld [vmem:[#allocation4 + $0x3908] sm:$0xff]
    %v2025 = vld [vmem:[#allocation4 + $0x3910] sm:$0xff]
    %v2026 = vld [vmem:[#allocation4 + $0x3918] sm:$0xff]
    %v2027 = vld [vmem:[#allocation4 + $0x3920] sm:$0xff]
    %v2028 = vld [vmem:[#allocation4 + $0x3928] sm:$0xff]
    %v2029 = vld [vmem:[#allocation4 + $0x3930] sm:$0xff]
    %v2030 = vld [vmem:[#allocation4 + $0x3938] sm:$0xff]
    %v2031 = vld [vmem:[#allocation4 + $0x3940] sm:$0xff]
    %v2032 = vld [vmem:[#allocation4 + $0x3948] sm:$0xff]
    %v2033 = vld [vmem:[#allocation4 + $0x3950] sm:$0xff]
    %v2034 = vld [vmem:[#allocation4 + $0x3958] sm:$0xff]
    %v2035 = vld [vmem:[#allocation4 + $0x3960] sm:$0xff]
    %v2036 = vld [vmem:[#allocation4 + $0x3968] sm:$0xff]
    %v2037 = vld [vmem:[#allocation4 + $0x3970] sm:$0xff]
    %v2038 = vld [vmem:[#allocation4 + $0x3978] sm:$0xff]
    %v2039 = vld [vmem:[#allocation4 + $0x3980] sm:$0xff]
    %v2040 = vld [vmem:[#allocation4 + $0x3988] sm:$0xff]
    %v2041 = vld [vmem:[#allocation4 + $0x3990] sm:$0xff]
    %v2042 = vld [vmem:[#allocation4 + $0x3998] sm:$0xff]
    %v2043 = vld [vmem:[#allocation4 + $0x39a0] sm:$0xff]
    %v2044 = vld [vmem:[#allocation4 + $0x39a8] sm:$0xff]
    %v2045 = vld [vmem:[#allocation4 + $0x39b0] sm:$0xff]
    %v2046 = vld [vmem:[#allocation4 + $0x39b8] sm:$0xff]
    %v2047 = vld [vmem:[#allocation4 + $0x39c0] sm:$0xff]
    %v2048 = vld [vmem:[#allocation4 + $0x39c8] sm:$0xff]
    %v2049 = vld [vmem:[#allocation4 + $0x39d0] sm:$0xff]
    %v2050 = vld [vmem:[#allocation4 + $0x39d8] sm:$0xff]
    %v2051 = vld [vmem:[#allocation4 + $0x39e0] sm:$0xff]
    %v2052 = vld [vmem:[#allocation4 + $0x39e8] sm:$0xff]
    %v2053 = vld [vmem:[#allocation4 + $0x39f0] sm:$0xff]
    %v2054 = vld [vmem:[#allocation4 + $0x39f8] sm:$0xff]
    %v2055 = vld [vmem:[#allocation4 + $0x3a00] sm:$0xff]
    %v2056 = vld [vmem:[#allocation4 + $0x3a08] sm:$0xff]
    %v2057 = vld [vmem:[#allocation4 + $0x3a10] sm:$0xff]
    %v2058 = vld [vmem:[#allocation4 + $0x3a18] sm:$0xff]
    %v2059 = vld [vmem:[#allocation4 + $0x3a20] sm:$0xff]
    %v2060 = vld [vmem:[#allocation4 + $0x3a28] sm:$0xff]
    %v2061 = vld [vmem:[#allocation4 + $0x3a30] sm:$0xff]
    %v2062 = vld [vmem:[#allocation4 + $0x3a38] sm:$0xff]
    %v2063 = vld [vmem:[#allocation4 + $0x3a40] sm:$0xff]
    %v2064 = vld [vmem:[#allocation4 + $0x3a48] sm:$0xff]
    %v2065 = vld [vmem:[#allocation4 + $0x3a50] sm:$0xff]
    %v2066 = vld [vmem:[#allocation4 + $0x3a58] sm:$0xff]
    %v2067 = vld [vmem:[#allocation4 + $0x3a60] sm:$0xff]
    %v2068 = vld [vmem:[#allocation4 + $0x3a68] sm:$0xff]
    %v2069 = vld [vmem:[#allocation4 + $0x3a70] sm:$0xff]
    %v2070 = vld [vmem:[#allocation4 + $0x3a78] sm:$0xff]
    %v2071 = vld [vmem:[#allocation4 + $0x3a80] sm:$0xff]
    %v2072 = vld [vmem:[#allocation4 + $0x3a88] sm:$0xff]
    %v2073 = vld [vmem:[#allocation4 + $0x3a90] sm:$0xff]
    %v2074 = vld [vmem:[#allocation4 + $0x3a98] sm:$0xff]
    %v2075 = vld [vmem:[#allocation4 + $0x3aa0] sm:$0xff]
    %v2076 = vld [vmem:[#allocation4 + $0x3aa8] sm:$0xff]
    %v2077 = vld [vmem:[#allocation4 + $0x3ab0] sm:$0xff]
    %v2078 = vld [vmem:[#allocation4 + $0x3ab8] sm:$0xff]
    %v2079 = vld [vmem:[#allocation4 + $0x3ac0] sm:$0xff]
    %v2080 = vld [vmem:[#allocation4 + $0x3ac8] sm:$0xff]
    %v2081 = vld [vmem:[#allocation4 + $0x3ad0] sm:$0xff]
    %v2082 = vld [vmem:[#allocation4 + $0x3ad8] sm:$0xff]
    %v2083 = vld [vmem:[#allocation4 + $0x3ae0] sm:$0xff]
    %v2084 = vld [vmem:[#allocation4 + $0x3ae8] sm:$0xff]
    %v2085 = vld [vmem:[#allocation4 + $0x3af0] sm:$0xff]
    %v2086 = vld [vmem:[#allocation4 + $0x3af8] sm:$0xff]
    %v2087 = vld [vmem:[#allocation4 + $0x3b00] sm:$0xff]
    %v2088 = vld [vmem:[#allocation4 + $0x3b08] sm:$0xff]
    %v2089 = vld [vmem:[#allocation4 + $0x3b10] sm:$0xff]
    %v2090 = vld [vmem:[#allocation4 + $0x3b18] sm:$0xff]
    %v2091 = vld [vmem:[#allocation4 + $0x3b20] sm:$0xff]
    %v2092 = vld [vmem:[#allocation4 + $0x3b28] sm:$0xff]
    %v2093 = vld [vmem:[#allocation4 + $0x3b30] sm:$0xff]
    %v2094 = vld [vmem:[#allocation4 + $0x3b38] sm:$0xff]
    %v2095 = vld [vmem:[#allocation4 + $0x3b40] sm:$0xff]
    %v2096 = vld [vmem:[#allocation4 + $0x3b48] sm:$0xff]
    %v2097 = vld [vmem:[#allocation4 + $0x3b50] sm:$0xff]
    %v2098 = vld [vmem:[#allocation4 + $0x3b58] sm:$0xff]
    %v2099 = vld [vmem:[#allocation4 + $0x3b60] sm:$0xff]
    %v2100 = vld [vmem:[#allocation4 + $0x3b68] sm:$0xff]
    %v2101 = vld [vmem:[#allocation4 + $0x3b70] sm:$0xff]
    %v2102 = vld [vmem:[#allocation4 + $0x3b78] sm:$0xff]
    %v2103 = vld [vmem:[#allocation4 + $0x3b80] sm:$0xff]
    %v2104 = vld [vmem:[#allocation4 + $0x3b88] sm:$0xff]
    %v2105 = vld [vmem:[#allocation4 + $0x3b90] sm:$0xff]
    %v2106 = vld [vmem:[#allocation4 + $0x3b98] sm:$0xff]
    %v2107 = vld [vmem:[#allocation4 + $0x3ba0] sm:$0xff]
    %v2108 = vld [vmem:[#allocation4 + $0x3ba8] sm:$0xff]
    %v2109 = vld [vmem:[#allocation4 + $0x3bb0] sm:$0xff]
    %v2110 = vld [vmem:[#allocation4 + $0x3bb8] sm:$0xff]
    %v2111 = vld [vmem:[#allocation4 + $0x3bc0] sm:$0xff]
    %v2112 = vld [vmem:[#allocation4 + $0x3bc8] sm:$0xff]
    %v2113 = vld [vmem:[#allocation4 + $0x3bd0] sm:$0xff]
    %v2114 = vld [vmem:[#allocation4 + $0x3bd8] sm:$0xff]
    %v2115 = vld [vmem:[#allocation4 + $0x3be0] sm:$0xff]
    %v2116 = vld [vmem:[#allocation4 + $0x3be8] sm:$0xff]
    %v2117 = vld [vmem:[#allocation4 + $0x3bf0] sm:$0xff]
    %v2118 = vld [vmem:[#allocation4 + $0x3bf8] sm:$0xff]
    %v2119 = vld [vmem:[#allocation4 + $0x3c00] sm:$0xff]
    %v2120 = vld [vmem:[#allocation4 + $0x3c08] sm:$0xff]
    %v2121 = vld [vmem:[#allocation4 + $0x3c10] sm:$0xff]
    %v2122 = vld [vmem:[#allocation4 + $0x3c18] sm:$0xff]
    %v2123 = vld [vmem:[#allocation4 + $0x3c20] sm:$0xff]
    %v2124 = vld [vmem:[#allocation4 + $0x3c28] sm:$0xff]
    %v2125 = vld [vmem:[#allocation4 + $0x3c30] sm:$0xff]
    %v2126 = vld [vmem:[#allocation4 + $0x3c38] sm:$0xff]
    %v2127 = vld [vmem:[#allocation4 + $0x3c40] sm:$0xff]
    %v2128 = vld [vmem:[#allocation4 + $0x3c48] sm:$0xff]
    %v2129 = vld [vmem:[#allocation4 + $0x3c50] sm:$0xff]
    %v2130 = vld [vmem:[#allocation4 + $0x3c58] sm:$0xff]
    %v2131 = vld [vmem:[#allocation4 + $0x3c60] sm:$0xff]
    %v2132 = vld [vmem:[#allocation4 + $0x3c68] sm:$0xff]
    %v2133 = vld [vmem:[#allocation4 + $0x3c70] sm:$0xff]
    %v2134 = vld [vmem:[#allocation4 + $0x3c78] sm:$0xff]
    %v2135 = vld [vmem:[#allocation4 + $0x3c80] sm:$0xff]
    %v2136 = vld [vmem:[#allocation4 + $0x3c88] sm:$0xff]
    %v2137 = vld [vmem:[#allocation4 + $0x3c90] sm:$0xff]
    %v2138 = vld [vmem:[#allocation4 + $0x3c98] sm:$0xff]
    %v2139 = vld [vmem:[#allocation4 + $0x3ca0] sm:$0xff]
    %v2140 = vld [vmem:[#allocation4 + $0x3ca8] sm:$0xff]
    %v2141 = vld [vmem:[#allocation4 + $0x3cb0] sm:$0xff]
    %v2142 = vld [vmem:[#allocation4 + $0x3cb8] sm:$0xff]
    %v2143 = vld [vmem:[#allocation4 + $0x3cc0] sm:$0xff]
    %v2144 = vld [vmem:[#allocation4 + $0x3cc8] sm:$0xff]
    %v2145 = vld [vmem:[#allocation4 + $0x3cd0] sm:$0xff]
    %v2146 = vld [vmem:[#allocation4 + $0x3cd8] sm:$0xff]
    %v2147 = vld [vmem:[#allocation4 + $0x3ce0] sm:$0xff]
    %v2148 = vld [vmem:[#allocation4 + $0x3ce8] sm:$0xff]
    %v2149 = vld [vmem:[#allocation4 + $0x3cf0] sm:$0xff]
    %v2150 = vld [vmem:[#allocation4 + $0x3cf8] sm:$0xff]
    %v2151 = vld [vmem:[#allocation4 + $0x3d00] sm:$0xff]
    %v2152 = vld [vmem:[#allocation4 + $0x3d08] sm:$0xff]
    %v2153 = vld [vmem:[#allocation4 + $0x3d10] sm:$0xff]
    %v2154 = vld [vmem:[#allocation4 + $0x3d18] sm:$0xff]
    %v2155 = vld [vmem:[#allocation4 + $0x3d20] sm:$0xff]
    %v2156 = vld [vmem:[#allocation4 + $0x3d28] sm:$0xff]
    %v2157 = vld [vmem:[#allocation4 + $0x3d30] sm:$0xff]
    %v2158 = vld [vmem:[#allocation4 + $0x3d38] sm:$0xff]
    %v2159 = vld [vmem:[#allocation4 + $0x3d40] sm:$0xff]
    %v2160 = vld [vmem:[#allocation4 + $0x3d48] sm:$0xff]
    %v2161 = vld [vmem:[#allocation4 + $0x3d50] sm:$0xff]
    %v2162 = vld [vmem:[#allocation4 + $0x3d58] sm:$0xff]
    %v2163 = vld [vmem:[#allocation4 + $0x3d60] sm:$0xff]
    %v2164 = vld [vmem:[#allocation4 + $0x3d68] sm:$0xff]
    %v2165 = vld [vmem:[#allocation4 + $0x3d70] sm:$0xff]
    %v2166 = vld [vmem:[#allocation4 + $0x3d78] sm:$0xff]
    %v2167 = vld [vmem:[#allocation4 + $0x3d80] sm:$0xff]
    %v2168 = vld [vmem:[#allocation4 + $0x3d88] sm:$0xff]
    %v2169 = vld [vmem:[#allocation4 + $0x3d90] sm:$0xff]
    %v2170 = vld [vmem:[#allocation4 + $0x3d98] sm:$0xff]
    %v2171 = vld [vmem:[#allocation4 + $0x3da0] sm:$0xff]
    %v2172 = vld [vmem:[#allocation4 + $0x3da8] sm:$0xff]
    %v2173 = vld [vmem:[#allocation4 + $0x3db0] sm:$0xff]
    %v2174 = vld [vmem:[#allocation4 + $0x3db8] sm:$0xff]
    %v2175 = vld [vmem:[#allocation4 + $0x3dc0] sm:$0xff]
    %v2176 = vld [vmem:[#allocation4 + $0x3dc8] sm:$0xff]
    %v2177 = vld [vmem:[#allocation4 + $0x3dd0] sm:$0xff]
    %v2178 = vld [vmem:[#allocation4 + $0x3dd8] sm:$0xff]
    %v2179 = vld [vmem:[#allocation4 + $0x3de0] sm:$0xff]
    %v2180 = vld [vmem:[#allocation4 + $0x3de8] sm:$0xff]
    %v2181 = vld [vmem:[#allocation4 + $0x3df0] sm:$0xff]
    %v2182 = vld [vmem:[#allocation4 + $0x3df8] sm:$0xff]
    %v2183 = vld [vmem:[#allocation4 + $0x3e00] sm:$0xff]
    %v2184 = vld [vmem:[#allocation4 + $0x3e08] sm:$0xff]
    %v2185 = vld [vmem:[#allocation4 + $0x3e10] sm:$0xff]
    %v2186 = vld [vmem:[#allocation4 + $0x3e18] sm:$0xff]
    %v2187 = vld [vmem:[#allocation4 + $0x3e20] sm:$0xff]
    %v2188 = vld [vmem:[#allocation4 + $0x3e28] sm:$0xff]
    %v2189 = vld [vmem:[#allocation4 + $0x3e30] sm:$0xff]
    %v2190 = vld [vmem:[#allocation4 + $0x3e38] sm:$0xff]
    %v2191 = vld [vmem:[#allocation4 + $0x3e40] sm:$0xff]
    %v2192 = vld [vmem:[#allocation4 + $0x3e48] sm:$0xff]
    %v2193 = vld [vmem:[#allocation4 + $0x3e50] sm:$0xff]
    %v2194 = vld [vmem:[#allocation4 + $0x3e58] sm:$0xff]
    %v2195 = vld [vmem:[#allocation4 + $0x3e60] sm:$0xff]
    %v2196 = vld [vmem:[#allocation4 + $0x3e68] sm:$0xff]
    %v2197 = vld [vmem:[#allocation4 + $0x3e70] sm:$0xff]
    %v2198 = vld [vmem:[#allocation4 + $0x3e78] sm:$0xff]
    %v2199 = vld [vmem:[#allocation4 + $0x3e80] sm:$0xff]
    %v2200 = vld [vmem:[#allocation4 + $0x3e88] sm:$0xff]
    %v2201 = vld [vmem:[#allocation4 + $0x3e90] sm:$0xff]
    %v2202 = vld [vmem:[#allocation4 + $0x3e98] sm:$0xff]
    %v2203 = vld [vmem:[#allocation4 + $0x3ea0] sm:$0xff]
    %v2204 = vld [vmem:[#allocation4 + $0x3ea8] sm:$0xff]
    %v2205 = vld [vmem:[#allocation4 + $0x3eb0] sm:$0xff]
    %v2206 = vld [vmem:[#allocation4 + $0x3eb8] sm:$0xff]
    %v2207 = vld [vmem:[#allocation4 + $0x3ec0] sm:$0xff]
    %v2208 = vld [vmem:[#allocation4 + $0x3ec8] sm:$0xff]
    %v2209 = vld [vmem:[#allocation4 + $0x3ed0] sm:$0xff]
    %v2210 = vld [vmem:[#allocation4 + $0x3ed8] sm:$0xff]
    %v2211 = vld [vmem:[#allocation4 + $0x3ee0] sm:$0xff]
    %v2212 = vld [vmem:[#allocation4 + $0x3ee8] sm:$0xff]
    %v2213 = vld [vmem:[#allocation4 + $0x3ef0] sm:$0xff]
    %v2214 = vld [vmem:[#allocation4 + $0x3ef8] sm:$0xff]
    %v2215 = vld [vmem:[#allocation4 + $0x3f00] sm:$0xff]
    %v2216 = vld [vmem:[#allocation4 + $0x3f08] sm:$0xff]
    %v2217 = vld [vmem:[#allocation4 + $0x3f10] sm:$0xff]
    %v2218 = vld [vmem:[#allocation4 + $0x3f18] sm:$0xff]
    %v2219 = vld [vmem:[#allocation4 + $0x3f20] sm:$0xff]
    %v2220 = vld [vmem:[#allocation4 + $0x3f28] sm:$0xff]
    %v2221 = vld [vmem:[#allocation4 + $0x3f30] sm:$0xff]
    %v2222 = vld [vmem:[#allocation4 + $0x3f38] sm:$0xff]
    %v2223 = vld [vmem:[#allocation4 + $0x3f40] sm:$0xff]
    %v2224 = vld [vmem:[#allocation4 + $0x3f48] sm:$0xff]
    %v2225 = vld [vmem:[#allocation4 + $0x3f50] sm:$0xff]
    %v2226 = vld [vmem:[#allocation4 + $0x3f58] sm:$0xff]
    %v2227 = vld [vmem:[#allocation4 + $0x3f60] sm:$0xff]
    %v2228 = vld [vmem:[#allocation4 + $0x3f68] sm:$0xff]
    %v2229 = vld [vmem:[#allocation4 + $0x3f70] sm:$0xff]
    %v2230 = vld [vmem:[#allocation4 + $0x3f78] sm:$0xff]
    %v2231 = vld [vmem:[#allocation4 + $0x3f80] sm:$0xff]
    %v2232 = vld [vmem:[#allocation4 + $0x3f88] sm:$0xff]
    %v2233 = vld [vmem:[#allocation4 + $0x3f90] sm:$0xff]
    %v2234 = vld [vmem:[#allocation4 + $0x3f98] sm:$0xff]
    %v2235 = vld [vmem:[#allocation4 + $0x3fa0] sm:$0xff]
    %v2236 = vld [vmem:[#allocation4 + $0x3fa8] sm:$0xff]
    %v2237 = vld [vmem:[#allocation4 + $0x3fb0] sm:$0xff]
    %v2238 = vld [vmem:[#allocation4 + $0x3fb8] sm:$0xff]
    %v2239 = vld [vmem:[#allocation4 + $0x3fc0] sm:$0xff]
    %v2240 = vld [vmem:[#allocation4 + $0x3fc8] sm:$0xff]
    %v2241 = vld [vmem:[#allocation4 + $0x3fd0] sm:$0xff]
    %v2242 = vld [vmem:[#allocation4 + $0x3fd8] sm:$0xff]
    %v2243 = vld [vmem:[#allocation4 + $0x3fe0] sm:$0xff]
    %v2244 = vld [vmem:[#allocation4 + $0x3fe8] sm:$0xff]
    %v2245 = vld [vmem:[#allocation4 + $0x3ff0] sm:$0xff]
    %v2246 = vld [vmem:[#allocation4 + $0x3ff8] sm:$0xff]
    %v2247 = vld [vmem:[#allocation4 + $0x4000] sm:$0xff]
    %v2248 = vld [vmem:[#allocation4 + $0x4008] sm:$0xff]
    %v2249 = vld [vmem:[#allocation4 + $0x4010] sm:$0xff]
    %v2250 = vld [vmem:[#allocation4 + $0x4018] sm:$0xff]
    %v2251 = vld [vmem:[#allocation4 + $0x4020] sm:$0xff]
    %v2252 = vld [vmem:[#allocation4 + $0x4028] sm:$0xff]
    %v2253 = vld [vmem:[#allocation4 + $0x4030] sm:$0xff]
    %v2254 = vld [vmem:[#allocation4 + $0x4038] sm:$0xff]
    %v2255 = vld [vmem:[#allocation4 + $0x4040] sm:$0xff]
    %v2256 = vld [vmem:[#allocation4 + $0x4048] sm:$0xff]
    %v2257 = vld [vmem:[#allocation4 + $0x4050] sm:$0xff]
    %v2258 = vld [vmem:[#allocation4 + $0x4058] sm:$0xff]
    %v2259 = vld [vmem:[#allocation4 + $0x4060] sm:$0xff]
    %v2260 = vld [vmem:[#allocation4 + $0x4068] sm:$0xff]
    %v2261 = vld [vmem:[#allocation4 + $0x4070] sm:$0xff]
    %v2262 = vld [vmem:[#allocation4 + $0x4078] sm:$0xff]
    %v2263 = vld [vmem:[#allocation4 + $0x4080] sm:$0xff]
    %v2264 = vld [vmem:[#allocation4 + $0x4088] sm:$0xff]
    %v2265 = vld [vmem:[#allocation4 + $0x4090] sm:$0xff]
    %v2266 = vld [vmem:[#allocation4 + $0x4098] sm:$0xff]
    %v2267 = vld [vmem:[#allocation4 + $0x40a0] sm:$0xff]
    %v2268 = vld [vmem:[#allocation4 + $0x40a8] sm:$0xff]
    %v2269 = vld [vmem:[#allocation4 + $0x40b0] sm:$0xff]
    %v2270 = vld [vmem:[#allocation4 + $0x40b8] sm:$0xff]
    %v2271 = vld [vmem:[#allocation4 + $0x40c0] sm:$0xff]
    %v2272 = vld [vmem:[#allocation4 + $0x40c8] sm:$0xff]
    %v2273 = vld [vmem:[#allocation4 + $0x40d0] sm:$0xff]
    %v2274 = vld [vmem:[#allocation4 + $0x40d8] sm:$0xff]
    %v2275 = vld [vmem:[#allocation4 + $0x40e0] sm:$0xff]
    %v2276 = vld [vmem:[#allocation4 + $0x40e8] sm:$0xff]
    %v2277 = vld [vmem:[#allocation4 + $0x40f0] sm:$0xff]
    %v2278 = vld [vmem:[#allocation4 + $0x40f8] sm:$0xff]
    %v2279 = vld [vmem:[#allocation4 + $0x4100] sm:$0xff]
    %v2280 = vld [vmem:[#allocation4 + $0x4108] sm:$0xff]
    %v2281 = vld [vmem:[#allocation4 + $0x4110] sm:$0xff]
    %v2282 = vld [vmem:[#allocation4 + $0x4118] sm:$0xff]
    %v2283 = vld [vmem:[#allocation4 + $0x4120] sm:$0xff]
    %v2284 = vld [vmem:[#allocation4 + $0x4128] sm:$0xff]
    %v2285 = vld [vmem:[#allocation4 + $0x4130] sm:$0xff]
    %v2286 = vld [vmem:[#allocation4 + $0x4138] sm:$0xff]
    %v2287 = vld [vmem:[#allocation4 + $0x4140] sm:$0xff]
    %v2288 = vld [vmem:[#allocation4 + $0x4148] sm:$0xff]
    %v2289 = vld [vmem:[#allocation4 + $0x4150] sm:$0xff]
    %v2290 = vld [vmem:[#allocation4 + $0x4158] sm:$0xff]
    %v2291 = vld [vmem:[#allocation4 + $0x4160] sm:$0xff]
    %v2292 = vld [vmem:[#allocation4 + $0x4168] sm:$0xff]
    %v2293 = vld [vmem:[#allocation4 + $0x4170] sm:$0xff]
    %v2294 = vld [vmem:[#allocation4 + $0x4178] sm:$0xff]
    %v2295 = vld [vmem:[#allocation4 + $0x4180] sm:$0xff]
    %v2296 = vld [vmem:[#allocation4 + $0x4188] sm:$0xff]
    %v2297 = vld [vmem:[#allocation4 + $0x4190] sm:$0xff]
    %v2298 = vld [vmem:[#allocation4 + $0x4198] sm:$0xff]
    %v2299 = vld [vmem:[#allocation4 + $0x41a0] sm:$0xff]
    %v2300 = vld [vmem:[#allocation4 + $0x41a8] sm:$0xff]
    %v2301 = vld [vmem:[#allocation4 + $0x41b0] sm:$0xff]
    %v2302 = vld [vmem:[#allocation4 + $0x41b8] sm:$0xff]
    %v2303 = vld [vmem:[#allocation4 + $0x41c0] sm:$0xff]
    %v2304 = vld [vmem:[#allocation4 + $0x41c8] sm:$0xff]
    %v2305 = vld [vmem:[#allocation4 + $0x41d0] sm:$0xff]
    %v2306 = vld [vmem:[#allocation4 + $0x41d8] sm:$0xff]
    %v2307 = vld [vmem:[#allocation4 + $0x41e0] sm:$0xff]
    %v2308 = vld [vmem:[#allocation4 + $0x41e8] sm:$0xff]
    %v2309 = vld [vmem:[#allocation4 + $0x41f0] sm:$0xff]
    %v2310 = vld [vmem:[#allocation4 + $0x41f8] sm:$0xff]
    %v2311 = vld [vmem:[#allocation4 + $0x4200] sm:$0xff]
    %v2312 = vld [vmem:[#allocation4 + $0x4208] sm:$0xff]
    %v2313 = vld [vmem:[#allocation4 + $0x4210] sm:$0xff]
    %v2314 = vld [vmem:[#allocation4 + $0x4218] sm:$0xff]
    %v2315 = vld [vmem:[#allocation4 + $0x4220] sm:$0xff]
    %v2316 = vld [vmem:[#allocation4 + $0x4228] sm:$0xff]
    %v2317 = vld [vmem:[#allocation4 + $0x4230] sm:$0xff]
    %v2318 = vld [vmem:[#allocation4 + $0x4238] sm:$0xff]
    %v2319 = vld [vmem:[#allocation4 + $0x4240] sm:$0xff]
    %v2320 = vld [vmem:[#allocation4 + $0x4248] sm:$0xff]
    %v2321 = vld [vmem:[#allocation4 + $0x4250] sm:$0xff]
    %v2322 = vld [vmem:[#allocation4 + $0x4258] sm:$0xff]
    %v2323 = vld [vmem:[#allocation4 + $0x4260] sm:$0xff]
    %v2324 = vld [vmem:[#allocation4 + $0x4268] sm:$0xff]
    %v2325 = vld [vmem:[#allocation4 + $0x4270] sm:$0xff]
    %v2326 = vld [vmem:[#allocation4 + $0x4278] sm:$0xff]
    %v2327 = vld [vmem:[#allocation4 + $0x4280] sm:$0xff]
    %v2328 = vld [vmem:[#allocation4 + $0x4288] sm:$0xff]
    %v2329 = vld [vmem:[#allocation4 + $0x4290] sm:$0xff]
    %v2330 = vld [vmem:[#allocation4 + $0x4298] sm:$0xff]
    %v2331 = vld [vmem:[#allocation4 + $0x42a0] sm:$0xff]
    %v2332 = vld [vmem:[#allocation4 + $0x42a8] sm:$0xff]
    %v2333 = vld [vmem:[#allocation4 + $0x42b0] sm:$0xff]
    %v2334 = vld [vmem:[#allocation4 + $0x42b8] sm:$0xff]
    %v2335 = vld [vmem:[#allocation4 + $0x42c0] sm:$0xff]
    %v2336 = vld [vmem:[#allocation4 + $0x42c8] sm:$0xff]
    %v2337 = vld [vmem:[#allocation4 + $0x42d0] sm:$0xff]
    %v2338 = vld [vmem:[#allocation4 + $0x42d8] sm:$0xff]
    %v2339 = vld [vmem:[#allocation4 + $0x42e0] sm:$0xff]
    %v2340 = vld [vmem:[#allocation4 + $0x42e8] sm:$0xff]
    %v2341 = vld [vmem:[#allocation4 + $0x42f0] sm:$0xff]
    %v2342 = vld [vmem:[#allocation4 + $0x42f8] sm:$0xff]
    %v2343 = vld [vmem:[#allocation4 + $0x4300] sm:$0xff]
    %v2344 = vld [vmem:[#allocation4 + $0x4308] sm:$0xff]
    %v2345 = vld [vmem:[#allocation4 + $0x4310] sm:$0xff]
    %v2346 = vld [vmem:[#allocation4 + $0x4318] sm:$0xff]
    %v2347 = vld [vmem:[#allocation4 + $0x4320] sm:$0xff]
    %v2348 = vld [vmem:[#allocation4 + $0x4328] sm:$0xff]
    %v2349 = vld [vmem:[#allocation4 + $0x4330] sm:$0xff]
    %v2350 = vld [vmem:[#allocation4 + $0x4338] sm:$0xff]
    %v2351 = vld [vmem:[#allocation4 + $0x4340] sm:$0xff]
    %v2352 = vld [vmem:[#allocation4 + $0x4348] sm:$0xff]
    %v2353 = vld [vmem:[#allocation4 + $0x4350] sm:$0xff]
    %v2354 = vld [vmem:[#allocation4 + $0x4358] sm:$0xff]
    %v2355 = vld [vmem:[#allocation4 + $0x4360] sm:$0xff]
    %v2356 = vld [vmem:[#allocation4 + $0x4368] sm:$0xff]
    %v2357 = vld [vmem:[#allocation4 + $0x4370] sm:$0xff]
    %v2358 = vld [vmem:[#allocation4 + $0x4378] sm:$0xff]
    %v2359 = vld [vmem:[#allocation4 + $0x4380] sm:$0xff]
    %v2360 = vld [vmem:[#allocation4 + $0x4388] sm:$0xff]
    %v2361 = vld [vmem:[#allocation4 + $0x4390] sm:$0xff]
    %v2362 = vld [vmem:[#allocation4 + $0x4398] sm:$0xff]
    %v2363 = vld [vmem:[#allocation4 + $0x43a0] sm:$0xff]
    %v2364 = vld [vmem:[#allocation4 + $0x43a8] sm:$0xff]
    %v2365 = vld [vmem:[#allocation4 + $0x43b0] sm:$0xff]
    %v2366 = vld [vmem:[#allocation4 + $0x43b8] sm:$0xff]
    %v2367 = vld [vmem:[#allocation4 + $0x43c0] sm:$0xff]
    %v2368 = vld [vmem:[#allocation4 + $0x43c8] sm:$0xff]
    %v2369 = vld [vmem:[#allocation4 + $0x43d0] sm:$0xff]
    %v2370 = vld [vmem:[#allocation4 + $0x43d8] sm:$0xff]
    %v2371 = vld [vmem:[#allocation4 + $0x43e0] sm:$0xff]
    %v2372 = vld [vmem:[#allocation4 + $0x43e8] sm:$0xff]
    %v2373 = vld [vmem:[#allocation4 + $0x43f0] sm:$0xff]
    %v2374 = vld [vmem:[#allocation4 + $0x43f8] sm:$0xff]
    %v2375 = vld [vmem:[#allocation4 + $0x4400] sm:$0xff]
    %v2376 = vld [vmem:[#allocation4 + $0x4408] sm:$0xff]
    %v2377 = vld [vmem:[#allocation4 + $0x4410] sm:$0xff]
    %v2378 = vld [vmem:[#allocation4 + $0x4418] sm:$0xff]
    %v2379 = vld [vmem:[#allocation4 + $0x4420] sm:$0xff]
    %v2380 = vld [vmem:[#allocation4 + $0x4428] sm:$0xff]
    %v2381 = vld [vmem:[#allocation4 + $0x4430] sm:$0xff]
    %v2382 = vld [vmem:[#allocation4 + $0x4438] sm:$0xff]
    %v2383 = vld [vmem:[#allocation4 + $0x4440] sm:$0xff]
    %v2384 = vld [vmem:[#allocation4 + $0x4448] sm:$0xff]
    %v2385 = vld [vmem:[#allocation4 + $0x4450] sm:$0xff]
    %v2386 = vld [vmem:[#allocation4 + $0x4458] sm:$0xff]
    %v2387 = vld [vmem:[#allocation4 + $0x4460] sm:$0xff]
    %v2388 = vld [vmem:[#allocation4 + $0x4468] sm:$0xff]
    %v2389 = vld [vmem:[#allocation4 + $0x4470] sm:$0xff]
    %v2390 = vld [vmem:[#allocation4 + $0x4478] sm:$0xff]
    %v2391 = vld [vmem:[#allocation4 + $0x4480] sm:$0xff]
    %v2392 = vld [vmem:[#allocation4 + $0x4488] sm:$0xff]
    %v2393 = vld [vmem:[#allocation4 + $0x4490] sm:$0xff]
    %v2394 = vld [vmem:[#allocation4 + $0x4498] sm:$0xff]
    %v2395 = vld [vmem:[#allocation4 + $0x44a0] sm:$0xff]
    %v2396 = vld [vmem:[#allocation4 + $0x44a8] sm:$0xff]
    %v2397 = vld [vmem:[#allocation4 + $0x44b0] sm:$0xff]
    %v2398 = vld [vmem:[#allocation4 + $0x44b8] sm:$0xff]
    %v2399 = vld [vmem:[#allocation4 + $0x44c0] sm:$0xff]
    %v2400 = vld [vmem:[#allocation4 + $0x44c8] sm:$0xff]
    %v2401 = vld [vmem:[#allocation4 + $0x44d0] sm:$0xff]
    %v2402 = vld [vmem:[#allocation4 + $0x44d8] sm:$0xff]
    %v2403 = vld [vmem:[#allocation4 + $0x44e0] sm:$0xff]
    %v2404 = vld [vmem:[#allocation4 + $0x44e8] sm:$0xff]
    %v2405 = vld [vmem:[#allocation4 + $0x44f0] sm:$0xff]
    %v2406 = vld [vmem:[#allocation4 + $0x44f8] sm:$0xff]
    %v2407 = vld [vmem:[#allocation4 + $0x4500] sm:$0xff]
    %v2408 = vld [vmem:[#allocation4 + $0x4508] sm:$0xff]
    %v2409 = vld [vmem:[#allocation4 + $0x4510] sm:$0xff]
    %v2410 = vld [vmem:[#allocation4 + $0x4518] sm:$0xff]
    %v2411 = vld [vmem:[#allocation4 + $0x4520] sm:$0xff]
    %v2412 = vld [vmem:[#allocation4 + $0x4528] sm:$0xff]
    %v2413 = vld [vmem:[#allocation4 + $0x4530] sm:$0xff]
    %v2414 = vld [vmem:[#allocation4 + $0x4538] sm:$0xff]
    %v2415 = vld [vmem:[#allocation4 + $0x4540] sm:$0xff]
    %v2416 = vld [vmem:[#allocation4 + $0x4548] sm:$0xff]
    %v2417 = vld [vmem:[#allocation4 + $0x4550] sm:$0xff]
    %v2418 = vld [vmem:[#allocation4 + $0x4558] sm:$0xff]
    %v2419 = vld [vmem:[#allocation4 + $0x4560] sm:$0xff]
    %v2420 = vld [vmem:[#allocation4 + $0x4568] sm:$0xff]
    %v2421 = vld [vmem:[#allocation4 + $0x4570] sm:$0xff]
    %v2422 = vld [vmem:[#allocation4 + $0x4578] sm:$0xff]
    %v2423 = vld [vmem:[#allocation4 + $0x4580] sm:$0xff]
    %v2424 = vld [vmem:[#allocation4 + $0x4588] sm:$0xff]
    %v2425 = vld [vmem:[#allocation4 + $0x4590] sm:$0xff]
    %v2426 = vld [vmem:[#allocation4 + $0x4598] sm:$0xff]
    %v2427 = vld [vmem:[#allocation4 + $0x45a0] sm:$0xff]
    %v2428 = vld [vmem:[#allocation4 + $0x45a8] sm:$0xff]
    %v2429 = vld [vmem:[#allocation4 + $0x45b0] sm:$0xff]
    %v2430 = vld [vmem:[#allocation4 + $0x45b8] sm:$0xff]
    %v2431 = vld [vmem:[#allocation4 + $0x45c0] sm:$0xff]
    %v2432 = vld [vmem:[#allocation4 + $0x45c8] sm:$0xff]
    %v2433 = vld [vmem:[#allocation4 + $0x45d0] sm:$0xff]
    %v2434 = vld [vmem:[#allocation4 + $0x45d8] sm:$0xff]
    %v2435 = vld [vmem:[#allocation4 + $0x45e0] sm:$0xff]
    %v2436 = vld [vmem:[#allocation4 + $0x45e8] sm:$0xff]
    %v2437 = vld [vmem:[#allocation4 + $0x45f0] sm:$0xff]
    %v2438 = vld [vmem:[#allocation4 + $0x45f8] sm:$0xff]
    %v2439 = vld [vmem:[#allocation4 + $0x4600] sm:$0xff]
    %v2440 = vld [vmem:[#allocation4 + $0x4608] sm:$0xff]
    %v2441 = vld [vmem:[#allocation4 + $0x4610] sm:$0xff]
    %v2442 = vld [vmem:[#allocation4 + $0x4618] sm:$0xff]
    %v2443 = vld [vmem:[#allocation4 + $0x4620] sm:$0xff]
    %v2444 = vld [vmem:[#allocation4 + $0x4628] sm:$0xff]
    %v2445 = vld [vmem:[#allocation4 + $0x4630] sm:$0xff]
    %v2446 = vld [vmem:[#allocation4 + $0x4638] sm:$0xff]
    %v2447 = vld [vmem:[#allocation4 + $0x4640] sm:$0xff]
    %v2448 = vld [vmem:[#allocation4 + $0x4648] sm:$0xff]
    %v2449 = vld [vmem:[#allocation4 + $0x4650] sm:$0xff]
    %v2450 = vld [vmem:[#allocation4 + $0x4658] sm:$0xff]
    %v2451 = vld [vmem:[#allocation4 + $0x4660] sm:$0xff]
    %v2452 = vld [vmem:[#allocation4 + $0x4668] sm:$0xff]
    %v2453 = vld [vmem:[#allocation4 + $0x4670] sm:$0xff]
    %v2454 = vld [vmem:[#allocation4 + $0x4678] sm:$0xff]
    %v2455 = vld [vmem:[#allocation4 + $0x4680] sm:$0xff]
    %v2456 = vld [vmem:[#allocation4 + $0x4688] sm:$0xff]
    %v2457 = vld [vmem:[#allocation4 + $0x4690] sm:$0xff]
    %v2458 = vld [vmem:[#allocation4 + $0x4698] sm:$0xff]
    %v2459 = vld [vmem:[#allocation4 + $0x46a0] sm:$0xff]
    %v2460 = vld [vmem:[#allocation4 + $0x46a8] sm:$0xff]
    %v2461 = vld [vmem:[#allocation4 + $0x46b0] sm:$0xff]
    %v2462 = vld [vmem:[#allocation4 + $0x46b8] sm:$0xff]
    %v2463 = vld [vmem:[#allocation4 + $0x46c0] sm:$0xff]
    %v2464 = vld [vmem:[#allocation4 + $0x46c8] sm:$0xff]
    %v2465 = vld [vmem:[#allocation4 + $0x46d0] sm:$0xff]
    %v2466 = vld [vmem:[#allocation4 + $0x46d8] sm:$0xff]
    %v2467 = vld [vmem:[#allocation4 + $0x46e0] sm:$0xff]
    %v2468 = vld [vmem:[#allocation4 + $0x46e8] sm:$0xff]
    %v2469 = vld [vmem:[#allocation4 + $0x46f0] sm:$0xff]
    %v2470 = vld [vmem:[#allocation4 + $0x46f8] sm:$0xff]
    %v2471 = vld [vmem:[#allocation4 + $0x4700] sm:$0xff]
    %v2472 = vld [vmem:[#allocation4 + $0x4708] sm:$0xff]
    %v2473 = vld [vmem:[#allocation4 + $0x4710] sm:$0xff]
    %v2474 = vld [vmem:[#allocation4 + $0x4718] sm:$0xff]
    %v2475 = vld [vmem:[#allocation4 + $0x4720] sm:$0xff]
    %v2476 = vld [vmem:[#allocation4 + $0x4728] sm:$0xff]
    %v2477 = vld [vmem:[#allocation4 + $0x4730] sm:$0xff]
    %v2478 = vld [vmem:[#allocation4 + $0x4738] sm:$0xff]
    %v2479 = vld [vmem:[#allocation4 + $0x4740] sm:$0xff]
    %v2480 = vld [vmem:[#allocation4 + $0x4748] sm:$0xff]
    %v2481 = vld [vmem:[#allocation4 + $0x4750] sm:$0xff]
    %v2482 = vld [vmem:[#allocation4 + $0x4758] sm:$0xff]
    %v2483 = vld [vmem:[#allocation4 + $0x4760] sm:$0xff]
    %v2484 = vld [vmem:[#allocation4 + $0x4768] sm:$0xff]
    %v2485 = vld [vmem:[#allocation4 + $0x4770] sm:$0xff]
    %v2486 = vld [vmem:[#allocation4 + $0x4778] sm:$0xff]
    %v2487 = vld [vmem:[#allocation4 + $0x4780] sm:$0xff]
    %v2488 = vld [vmem:[#allocation4 + $0x4788] sm:$0xff]
    %v2489 = vld [vmem:[#allocation4 + $0x4790] sm:$0xff]
    %v2490 = vld [vmem:[#allocation4 + $0x4798] sm:$0xff]
    %v2491 = vld [vmem:[#allocation4 + $0x47a0] sm:$0xff]
    %v2492 = vld [vmem:[#allocation4 + $0x47a8] sm:$0xff]
    %v2493 = vld [vmem:[#allocation4 + $0x47b0] sm:$0xff]
    %v2494 = vld [vmem:[#allocation4 + $0x47b8] sm:$0xff]
    %v2495 = vld [vmem:[#allocation4 + $0x47c0] sm:$0xff]
    %v2496 = vld [vmem:[#allocation4 + $0x47c8] sm:$0xff]
    %v2497 = vld [vmem:[#allocation4 + $0x47d0] sm:$0xff]
    %v2498 = vld [vmem:[#allocation4 + $0x47d8] sm:$0xff]
    %v2499 = vld [vmem:[#allocation4 + $0x47e0] sm:$0xff]
    %v2500 = vld [vmem:[#allocation4 + $0x47e8] sm:$0xff]
    %v2501 = vld [vmem:[#allocation4 + $0x47f0] sm:$0xff]
    %v2502 = vld [vmem:[#allocation4 + $0x47f8] sm:$0xff]
    %v2503 = vld [vmem:[#allocation4 + $0x4800] sm:$0xff]
    %v2504 = vld [vmem:[#allocation4 + $0x4808] sm:$0xff]
    %v2505 = vld [vmem:[#allocation4 + $0x4810] sm:$0xff]
    %v2506 = vld [vmem:[#allocation4 + $0x4818] sm:$0xff]
    %v2507 = vld [vmem:[#allocation4 + $0x4820] sm:$0xff]
    %v2508 = vld [vmem:[#allocation4 + $0x4828] sm:$0xff]
    %v2509 = vld [vmem:[#allocation4 + $0x4830] sm:$0xff]
    %v2510 = vld [vmem:[#allocation4 + $0x4838] sm:$0xff]
    %v2511 = vld [vmem:[#allocation4 + $0x4840] sm:$0xff]
    %v2512 = vld [vmem:[#allocation4 + $0x4848] sm:$0xff]
    %v2513 = vld [vmem:[#allocation4 + $0x4850] sm:$0xff]
    %v2514 = vld [vmem:[#allocation4 + $0x4858] sm:$0xff]
    %v2515 = vld [vmem:[#allocation4 + $0x4860] sm:$0xff]
    %v2516 = vld [vmem:[#allocation4 + $0x4868] sm:$0xff]
    %v2517 = vld [vmem:[#allocation4 + $0x4870] sm:$0xff]
    %v2518 = vld [vmem:[#allocation4 + $0x4878] sm:$0xff]
    %v2519 = vld [vmem:[#allocation4 + $0x4880] sm:$0xff]
    %v2520 = vld [vmem:[#allocation4 + $0x4888] sm:$0xff]
    %v2521 = vld [vmem:[#allocation4 + $0x4890] sm:$0xff]
    %v2522 = vld [vmem:[#allocation4 + $0x4898] sm:$0xff]
    %v2523 = vld [vmem:[#allocation4 + $0x48a0] sm:$0xff]
    %v2524 = vld [vmem:[#allocation4 + $0x48a8] sm:$0xff]
    %v2525 = vld [vmem:[#allocation4 + $0x48b0] sm:$0xff]
    %v2526 = vld [vmem:[#allocation4 + $0x48b8] sm:$0xff]
    %v2527 = vld [vmem:[#allocation4 + $0x48c0] sm:$0xff]
    %v2528 = vld [vmem:[#allocation4 + $0x48c8] sm:$0xff]
    %v2529 = vld [vmem:[#allocation4 + $0x48d0] sm:$0xff]
    %v2530 = vld [vmem:[#allocation4 + $0x48d8] sm:$0xff]
    %v2531 = vld [vmem:[#allocation4 + $0x48e0] sm:$0xff]
    %v2532 = vld [vmem:[#allocation4 + $0x48e8] sm:$0xff]
    %v2533 = vld [vmem:[#allocation4 + $0x48f0] sm:$0xff]
    %v2534 = vld [vmem:[#allocation4 + $0x48f8] sm:$0xff]
    %v2535 = vld [vmem:[#allocation4 + $0x4900] sm:$0xff]
    %v2536 = vld [vmem:[#allocation4 + $0x4908] sm:$0xff]
    %v2537 = vld [vmem:[#allocation4 + $0x4910] sm:$0xff]
    %v2538 = vld [vmem:[#allocation4 + $0x4918] sm:$0xff]
    %v2539 = vld [vmem:[#allocation4 + $0x4920] sm:$0xff]
    %v2540 = vld [vmem:[#allocation4 + $0x4928] sm:$0xff]
    %v2541 = vld [vmem:[#allocation4 + $0x4930] sm:$0xff]
    %v2542 = vld [vmem:[#allocation4 + $0x4938] sm:$0xff]
    %v2543 = vld [vmem:[#allocation4 + $0x4940] sm:$0xff]
    %v2544 = vld [vmem:[#allocation4 + $0x4948] sm:$0xff]
    %v2545 = vld [vmem:[#allocation4 + $0x4950] sm:$0xff]
    %v2546 = vld [vmem:[#allocation4 + $0x4958] sm:$0xff]
    %v2547 = vld [vmem:[#allocation4 + $0x4960] sm:$0xff]
    %v2548 = vld [vmem:[#allocation4 + $0x4968] sm:$0xff]
    %v2549 = vld [vmem:[#allocation4 + $0x4970] sm:$0xff]
    %v2550 = vld [vmem:[#allocation4 + $0x4978] sm:$0xff]
    %v2551 = vld [vmem:[#allocation4 + $0x4980] sm:$0xff]
    %v2552 = vld [vmem:[#allocation4 + $0x4988] sm:$0xff]
    %v2553 = vld [vmem:[#allocation4 + $0x4990] sm:$0xff]
    %v2554 = vld [vmem:[#allocation4 + $0x4998] sm:$0xff]
    %v2555 = vld [vmem:[#allocation4 + $0x49a0] sm:$0xff]
    %v2556 = vld [vmem:[#allocation4 + $0x49a8] sm:$0xff]
    %v2557 = vld [vmem:[#allocation4 + $0x49b0] sm:$0xff]
    %v2558 = vld [vmem:[#allocation4 + $0x49b8] sm:$0xff]
    %v2559 = vld [vmem:[#allocation4 + $0x49c0] sm:$0xff]
    %v2560 = vld [vmem:[#allocation4 + $0x49c8] sm:$0xff]
    %v2561 = vld [vmem:[#allocation4 + $0x49d0] sm:$0xff]
    %v2562 = vld [vmem:[#allocation4 + $0x49d8] sm:$0xff]
    %v2563 = vld [vmem:[#allocation4 + $0x49e0] sm:$0xff]
    %v2564 = vld [vmem:[#allocation4 + $0x49e8] sm:$0xff]
    %v2565 = vld [vmem:[#allocation4 + $0x49f0] sm:$0xff]
    %v2566 = vld [vmem:[#allocation4 + $0x49f8] sm:$0xff]
    %v2567 = vld [vmem:[#allocation4 + $0x4a00] sm:$0xff]
    %v2568 = vld [vmem:[#allocation4 + $0x4a08] sm:$0xff]
    %v2569 = vld [vmem:[#allocation4 + $0x4a10] sm:$0xff]
    %v2570 = vld [vmem:[#allocation4 + $0x4a18] sm:$0xff]
    %v2571 = vld [vmem:[#allocation4 + $0x4a20] sm:$0xff]
    %v2572 = vld [vmem:[#allocation4 + $0x4a28] sm:$0xff]
    %v2573 = vld [vmem:[#allocation4 + $0x4a30] sm:$0xff]
    %v2574 = vld [vmem:[#allocation4 + $0x4a38] sm:$0xff]
    %v2575 = vld [vmem:[#allocation4 + $0x4a40] sm:$0xff]
    %v2576 = vld [vmem:[#allocation4 + $0x4a48] sm:$0xff]
    %v2577 = vld [vmem:[#allocation4 + $0x4a50] sm:$0xff]
    %v2578 = vld [vmem:[#allocation4 + $0x4a58] sm:$0xff]
    %v2579 = vld [vmem:[#allocation4 + $0x4a60] sm:$0xff]
    %v2580 = vld [vmem:[#allocation4 + $0x4a68] sm:$0xff]
    %v2581 = vld [vmem:[#allocation4 + $0x4a70] sm:$0xff]
    %v2582 = vld [vmem:[#allocation4 + $0x4a78] sm:$0xff]
    %v2583 = vld [vmem:[#allocation4 + $0x4a80] sm:$0xff]
    %v2584 = vld [vmem:[#allocation4 + $0x4a88] sm:$0xff]
    %v2585 = vld [vmem:[#allocation4 + $0x4a90] sm:$0xff]
    %v2586 = vld [vmem:[#allocation4 + $0x4a98] sm:$0xff]
    %v2587 = vld [vmem:[#allocation4 + $0x4aa0] sm:$0xff]
    %v2588 = vld [vmem:[#allocation4 + $0x4aa8] sm:$0xff]
    %v2589 = vld [vmem:[#allocation4 + $0x4ab0] sm:$0xff]
    %v2590 = vld [vmem:[#allocation4 + $0x4ab8] sm:$0xff]
    %v2591 = vld [vmem:[#allocation4 + $0x4ac0] sm:$0xff]
    %v2592 = vld [vmem:[#allocation4 + $0x4ac8] sm:$0xff]
    %v2593 = vld [vmem:[#allocation4 + $0x4ad0] sm:$0xff]
    %v2594 = vld [vmem:[#allocation4 + $0x4ad8] sm:$0xff]
    %v2595 = vld [vmem:[#allocation4 + $0x4ae0] sm:$0xff]
    %v2596 = vld [vmem:[#allocation4 + $0x4ae8] sm:$0xff]
    %v2597 = vld [vmem:[#allocation4 + $0x4af0] sm:$0xff]
    %v2598 = vld [vmem:[#allocation4 + $0x4af8] sm:$0xff]
    %v2599 = vld [vmem:[#allocation4 + $0x4b00] sm:$0xff]
    %v2600 = vld [vmem:[#allocation4 + $0x4b08] sm:$0xff]
    %v2601 = vld [vmem:[#allocation4 + $0x4b10] sm:$0xff]
    %v2602 = vld [vmem:[#allocation4 + $0x4b18] sm:$0xff]
    %v2603 = vld [vmem:[#allocation4 + $0x4b20] sm:$0xff]
    %v2604 = vld [vmem:[#allocation4 + $0x4b28] sm:$0xff]
    %v2605 = vld [vmem:[#allocation4 + $0x4b30] sm:$0xff]
    %v2606 = vld [vmem:[#allocation4 + $0x4b38] sm:$0xff]
    %v2607 = vld [vmem:[#allocation4 + $0x4b40] sm:$0xff]
    %v2608 = vld [vmem:[#allocation4 + $0x4b48] sm:$0xff]
    %v2609 = vld [vmem:[#allocation4 + $0x4b50] sm:$0xff]
    %v2610 = vld [vmem:[#allocation4 + $0x4b58] sm:$0xff]
    %v2611 = vld [vmem:[#allocation4 + $0x4b60] sm:$0xff]
    %v2612 = vld [vmem:[#allocation4 + $0x4b68] sm:$0xff]
    %v2613 = vld [vmem:[#allocation4 + $0x4b70] sm:$0xff]
    %v2614 = vld [vmem:[#allocation4 + $0x4b78] sm:$0xff]
    %v2615 = vld [vmem:[#allocation4 + $0x4b80] sm:$0xff]
    %v2616 = vld [vmem:[#allocation4 + $0x4b88] sm:$0xff]
    %v2617 = vld [vmem:[#allocation4 + $0x4b90] sm:$0xff]
    %v2618 = vld [vmem:[#allocation4 + $0x4b98] sm:$0xff]
    %v2619 = vld [vmem:[#allocation4 + $0x4ba0] sm:$0xff]
    %v2620 = vld [vmem:[#allocation4 + $0x4ba8] sm:$0xff]
    %v2621 = vld [vmem:[#allocation4 + $0x4bb0] sm:$0xff]
    %v2622 = vld [vmem:[#allocation4 + $0x4bb8] sm:$0xff]
    %v2623 = vld [vmem:[#allocation4 + $0x4bc0] sm:$0xff]
    %v2624 = vld [vmem:[#allocation4 + $0x4bc8] sm:$0xff]
    %v2625 = vld [vmem:[#allocation4 + $0x4bd0] sm:$0xff]
    %v2626 = vld [vmem:[#allocation4 + $0x4bd8] sm:$0xff]
    %v2627 = vld [vmem:[#allocation4 + $0x4be0] sm:$0xff]
    %v2628 = vld [vmem:[#allocation4 + $0x4be8] sm:$0xff]
    %v2629 = vld [vmem:[#allocation4 + $0x4bf0] sm:$0xff]
    %v2630 = vld [vmem:[#allocation4 + $0x4bf8] sm:$0xff]
    %v2631 = vld [vmem:[#allocation4 + $0x4c00] sm:$0xff]
    %v2632 = vld [vmem:[#allocation4 + $0x4c08] sm:$0xff]
    %v2633 = vld [vmem:[#allocation4 + $0x4c10] sm:$0xff]
    %v2634 = vld [vmem:[#allocation4 + $0x4c18] sm:$0xff]
    %v2635 = vld [vmem:[#allocation4 + $0x4c20] sm:$0xff]
    %v2636 = vld [vmem:[#allocation4 + $0x4c28] sm:$0xff]
    %v2637 = vld [vmem:[#allocation4 + $0x4c30] sm:$0xff]
    %v2638 = vld [vmem:[#allocation4 + $0x4c38] sm:$0xff]
    %v2639 = vld [vmem:[#allocation4 + $0x4c40] sm:$0xff]
    %v2640 = vld [vmem:[#allocation4 + $0x4c48] sm:$0xff]
    %v2641 = vld [vmem:[#allocation4 + $0x4c50] sm:$0xff]
    %v2642 = vld [vmem:[#allocation4 + $0x4c58] sm:$0xff]
    %v2643 = vld [vmem:[#allocation4 + $0x4c60] sm:$0xff]
    %v2644 = vld [vmem:[#allocation4 + $0x4c68] sm:$0xff]
    %v2645 = vld [vmem:[#allocation4 + $0x4c70] sm:$0xff]
    %v2646 = vld [vmem:[#allocation4 + $0x4c78] sm:$0xff]
    %v2647 = vld [vmem:[#allocation4 + $0x4c80] sm:$0xff]
    %v2648 = vld [vmem:[#allocation4 + $0x4c88] sm:$0xff]
    %v2649 = vld [vmem:[#allocation4 + $0x4c90] sm:$0xff]
    %v2650 = vld [vmem:[#allocation4 + $0x4c98] sm:$0xff]
    %v2651 = vld [vmem:[#allocation4 + $0x4ca0] sm:$0xff]
    %v2652 = vld [vmem:[#allocation4 + $0x4ca8] sm:$0xff]
    %v2653 = vld [vmem:[#allocation4 + $0x4cb0] sm:$0xff]
    %v2654 = vld [vmem:[#allocation4 + $0x4cb8] sm:$0xff]
    %v2655 = vld [vmem:[#allocation4 + $0x4cc0] sm:$0xff]
    %v2656 = vld [vmem:[#allocation4 + $0x4cc8] sm:$0xff]
    %v2657 = vld [vmem:[#allocation4 + $0x4cd0] sm:$0xff]
    %v2658 = vld [vmem:[#allocation4 + $0x4cd8] sm:$0xff]
    %v2659 = vld [vmem:[#allocation4 + $0x4ce0] sm:$0xff]
    %v2660 = vld [vmem:[#allocation4 + $0x4ce8] sm:$0xff]
    %v2661 = vld [vmem:[#allocation4 + $0x4cf0] sm:$0xff]
    %v2662 = vld [vmem:[#allocation4 + $0x4cf8] sm:$0xff]
    %v2663 = vld [vmem:[#allocation4 + $0x4d00] sm:$0xff]
    %v2664 = vld [vmem:[#allocation4 + $0x4d08] sm:$0xff]
    %v2665 = vld [vmem:[#allocation4 + $0x4d10] sm:$0xff]
    %v2666 = vld [vmem:[#allocation4 + $0x4d18] sm:$0xff]
    %v2667 = vld [vmem:[#allocation4 + $0x4d20] sm:$0xff]
    %v2668 = vld [vmem:[#allocation4 + $0x4d28] sm:$0xff]
    %v2669 = vld [vmem:[#allocation4 + $0x4d30] sm:$0xff]
    %v2670 = vld [vmem:[#allocation4 + $0x4d38] sm:$0xff]
    %v2671 = vld [vmem:[#allocation4 + $0x4d40] sm:$0xff]
    %v2672 = vld [vmem:[#allocation4 + $0x4d48] sm:$0xff]
    %v2673 = vld [vmem:[#allocation4 + $0x4d50] sm:$0xff]
    %v2674 = vld [vmem:[#allocation4 + $0x4d58] sm:$0xff]
    %v2675 = vld [vmem:[#allocation4 + $0x4d60] sm:$0xff]
    %v2676 = vld [vmem:[#allocation4 + $0x4d68] sm:$0xff]
    %v2677 = vld [vmem:[#allocation4 + $0x4d70] sm:$0xff]
    %v2678 = vld [vmem:[#allocation4 + $0x4d78] sm:$0xff]
    %v2679 = vld [vmem:[#allocation4 + $0x4d80] sm:$0xff]
    %v2680 = vld [vmem:[#allocation4 + $0x4d88] sm:$0xff]
    %v2681 = vld [vmem:[#allocation4 + $0x4d90] sm:$0xff]
    %v2682 = vld [vmem:[#allocation4 + $0x4d98] sm:$0xff]
    %v2683 = vld [vmem:[#allocation4 + $0x4da0] sm:$0xff]
    %v2684 = vld [vmem:[#allocation4 + $0x4da8] sm:$0xff]
    %v2685 = vld [vmem:[#allocation4 + $0x4db0] sm:$0xff]
    %v2686 = vld [vmem:[#allocation4 + $0x4db8] sm:$0xff]
    %v2687 = vld [vmem:[#allocation4 + $0x4dc0] sm:$0xff]
    %v2688 = vld [vmem:[#allocation4 + $0x4dc8] sm:$0xff]
    %v2689 = vld [vmem:[#allocation4 + $0x4dd0] sm:$0xff]
    %v2690 = vld [vmem:[#allocation4 + $0x4dd8] sm:$0xff]
    %v2691 = vld [vmem:[#allocation4 + $0x4de0] sm:$0xff]
    %v2692 = vld [vmem:[#allocation4 + $0x4de8] sm:$0xff]
    %v2693 = vld [vmem:[#allocation4 + $0x4df0] sm:$0xff]
    %v2694 = vld [vmem:[#allocation4 + $0x4df8] sm:$0xff]
    %v2695 = vld [vmem:[#allocation4 + $0x4e00] sm:$0xff]
    %v2696 = vld [vmem:[#allocation4 + $0x4e08] sm:$0xff]
    %v2697 = vld [vmem:[#allocation4 + $0x4e10] sm:$0xff]
    %v2698 = vld [vmem:[#allocation4 + $0x4e18] sm:$0xff]
    %v2699 = vld [vmem:[#allocation4 + $0x4e20] sm:$0xff]
    %v2700 = vld [vmem:[#allocation4 + $0x4e28] sm:$0xff]
    %v2701 = vld [vmem:[#allocation4 + $0x4e30] sm:$0xff]
    %v2702 = vld [vmem:[#allocation4 + $0x4e38] sm:$0xff]
    %v2703 = vld [vmem:[#allocation4 + $0x4e40] sm:$0xff]
    %v2704 = vld [vmem:[#allocation4 + $0x4e48] sm:$0xff]
    %v2705 = vld [vmem:[#allocation4 + $0x4e50] sm:$0xff]
    %v2706 = vld [vmem:[#allocation4 + $0x4e58] sm:$0xff]
    %v2707 = vld [vmem:[#allocation4 + $0x4e60] sm:$0xff]
    %v2708 = vld [vmem:[#allocation4 + $0x4e68] sm:$0xff]
    %v2709 = vld [vmem:[#allocation4 + $0x4e70] sm:$0xff]
    %v2710 = vld [vmem:[#allocation4 + $0x4e78] sm:$0xff]
    %v2711 = vld [vmem:[#allocation4 + $0x4e80] sm:$0xff]
    %v2712 = vld [vmem:[#allocation4 + $0x4e88] sm:$0xff]
    %v2713 = vld [vmem:[#allocation4 + $0x4e90] sm:$0xff]
    %v2714 = vld [vmem:[#allocation4 + $0x4e98] sm:$0xff]
    %v2715 = vld [vmem:[#allocation4 + $0x4ea0] sm:$0xff]
    %v2716 = vld [vmem:[#allocation4 + $0x4ea8] sm:$0xff]
    %v2717 = vld [vmem:[#allocation4 + $0x4eb0] sm:$0xff]
    %v2718 = vld [vmem:[#allocation4 + $0x4eb8] sm:$0xff]
    %v2719 = vld [vmem:[#allocation4 + $0x4ec0] sm:$0xff]
    %v2720 = vld [vmem:[#allocation4 + $0x4ec8] sm:$0xff]
    %v2721 = vld [vmem:[#allocation4 + $0x4ed0] sm:$0xff]
    %v2722 = vld [vmem:[#allocation4 + $0x4ed8] sm:$0xff]
    %v2723 = vld [vmem:[#allocation4 + $0x4ee0] sm:$0xff]
    %v2724 = vld [vmem:[#allocation4 + $0x4ee8] sm:$0xff]
    %v2725 = vld [vmem:[#allocation4 + $0x4ef0] sm:$0xff]
    %v2726 = vld [vmem:[#allocation4 + $0x4ef8] sm:$0xff]
    %v2727 = vld [vmem:[#allocation4 + $0x4f00] sm:$0xff]
    %v2728 = vld [vmem:[#allocation4 + $0x4f08] sm:$0xff]
    %v2729 = vld [vmem:[#allocation4 + $0x4f10] sm:$0xff]
    %v2730 = vld [vmem:[#allocation4 + $0x4f18] sm:$0xff]
    %v2731 = vld [vmem:[#allocation4 + $0x4f20] sm:$0xff]
    %v2732 = vld [vmem:[#allocation4 + $0x4f28] sm:$0xff]
    %v2733 = vld [vmem:[#allocation4 + $0x4f30] sm:$0xff]
    %v2734 = vld [vmem:[#allocation4 + $0x4f38] sm:$0xff]
    %v2735 = vld [vmem:[#allocation4 + $0x4f40] sm:$0xff]
    %v2736 = vld [vmem:[#allocation4 + $0x4f48] sm:$0xff]
    %v2737 = vld [vmem:[#allocation4 + $0x4f50] sm:$0xff]
    %v2738 = vld [vmem:[#allocation4 + $0x4f58] sm:$0xff]
    %v2739 = vld [vmem:[#allocation4 + $0x4f60] sm:$0xff]
    %v2740 = vld [vmem:[#allocation4 + $0x4f68] sm:$0xff]
    %v2741 = vld [vmem:[#allocation4 + $0x4f70] sm:$0xff]
    %v2742 = vld [vmem:[#allocation4 + $0x4f78] sm:$0xff]
    %v2743 = vld [vmem:[#allocation4 + $0x4f80] sm:$0xff]
    %v2744 = vld [vmem:[#allocation4 + $0x4f88] sm:$0xff]
    %v2745 = vld [vmem:[#allocation4 + $0x4f90] sm:$0xff]
    %v2746 = vld [vmem:[#allocation4 + $0x4f98] sm:$0xff]
    %v2747 = vld [vmem:[#allocation4 + $0x4fa0] sm:$0xff]
    %v2748 = vld [vmem:[#allocation4 + $0x4fa8] sm:$0xff]
    %v2749 = vld [vmem:[#allocation4 + $0x4fb0] sm:$0xff]
    %v2750 = vld [vmem:[#allocation4 + $0x4fb8] sm:$0xff]
    %v2751 = vld [vmem:[#allocation4 + $0x4fc0] sm:$0xff]
    %v2752 = vld [vmem:[#allocation4 + $0x4fc8] sm:$0xff]
    %v2753 = vld [vmem:[#allocation4 + $0x4fd0] sm:$0xff]
    %v2754 = vld [vmem:[#allocation4 + $0x4fd8] sm:$0xff]
    %v2755 = vld [vmem:[#allocation4 + $0x4fe0] sm:$0xff]
    %v2756 = vld [vmem:[#allocation4 + $0x4fe8] sm:$0xff]
    %v2757 = vld [vmem:[#allocation4 + $0x4ff0] sm:$0xff]
    %v2758 = vld [vmem:[#allocation4 + $0x4ff8] sm:$0xff]
    %v2759 = vld [vmem:[#allocation4 + $0x5000] sm:$0xff]
    %v2760 = vld [vmem:[#allocation4 + $0x5008] sm:$0xff]
    %v2761 = vld [vmem:[#allocation4 + $0x5010] sm:$0xff]
    %v2762 = vld [vmem:[#allocation4 + $0x5018] sm:$0xff]
    %v2763 = vld [vmem:[#allocation4 + $0x5020] sm:$0xff]
    %v2764 = vld [vmem:[#allocation4 + $0x5028] sm:$0xff]
    %v2765 = vld [vmem:[#allocation4 + $0x5030] sm:$0xff]
    %v2766 = vld [vmem:[#allocation4 + $0x5038] sm:$0xff]
    %v2767 = vld [vmem:[#allocation4 + $0x5040] sm:$0xff]
    %v2768 = vld [vmem:[#allocation4 + $0x5048] sm:$0xff]
    %v2769 = vld [vmem:[#allocation4 + $0x5050] sm:$0xff]
    %v2770 = vld [vmem:[#allocation4 + $0x5058] sm:$0xff]
    %v2771 = vld [vmem:[#allocation4 + $0x5060] sm:$0xff]
    %v2772 = vld [vmem:[#allocation4 + $0x5068] sm:$0xff]
    %v2773 = vld [vmem:[#allocation4 + $0x5070] sm:$0xff]
    %v2774 = vld [vmem:[#allocation4 + $0x5078] sm:$0xff]
    %v2775 = vld [vmem:[#allocation4 + $0x5080] sm:$0xff]
    %v2776 = vld [vmem:[#allocation4 + $0x5088] sm:$0xff]
    %v2777 = vld [vmem:[#allocation4 + $0x5090] sm:$0xff]
    %v2778 = vld [vmem:[#allocation4 + $0x5098] sm:$0xff]
    %v2779 = vld [vmem:[#allocation4 + $0x50a0] sm:$0xff]
    %v2780 = vld [vmem:[#allocation4 + $0x50a8] sm:$0xff]
    %v2781 = vld [vmem:[#allocation4 + $0x50b0] sm:$0xff]
    %v2782 = vld [vmem:[#allocation4 + $0x50b8] sm:$0xff]
    %v2783 = vld [vmem:[#allocation4 + $0x50c0] sm:$0xff]
    %v2784 = vld [vmem:[#allocation4 + $0x50c8] sm:$0xff]
    %v2785 = vld [vmem:[#allocation4 + $0x50d0] sm:$0xff]
    %v2786 = vld [vmem:[#allocation4 + $0x50d8] sm:$0xff]
    %v2787 = vld [vmem:[#allocation4 + $0x50e0] sm:$0xff]
    %v2788 = vld [vmem:[#allocation4 + $0x50e8] sm:$0xff]
    %v2789 = vld [vmem:[#allocation4 + $0x50f0] sm:$0xff]
    %v2790 = vld [vmem:[#allocation4 + $0x50f8] sm:$0xff]
    %v2791 = vld [vmem:[#allocation4 + $0x5100] sm:$0xff]
    %v2792 = vld [vmem:[#allocation4 + $0x5108] sm:$0xff]
    %v2793 = vld [vmem:[#allocation4 + $0x5110] sm:$0xff]
    %v2794 = vld [vmem:[#allocation4 + $0x5118] sm:$0xff]
    %v2795 = vld [vmem:[#allocation4 + $0x5120] sm:$0xff]
    %v2796 = vld [vmem:[#allocation4 + $0x5128] sm:$0xff]
    %v2797 = vld [vmem:[#allocation4 + $0x5130] sm:$0xff]
    %v2798 = vld [vmem:[#allocation4 + $0x5138] sm:$0xff]
    %v2799 = vld [vmem:[#allocation4 + $0x5140] sm:$0xff]
    %v2800 = vld [vmem:[#allocation4 + $0x5148] sm:$0xff]
    %v2801 = vld [vmem:[#allocation4 + $0x5150] sm:$0xff]
    %v2802 = vld [vmem:[#allocation4 + $0x5158] sm:$0xff]
    %v2803 = vld [vmem:[#allocation4 + $0x5160] sm:$0xff]
    %v2804 = vld [vmem:[#allocation4 + $0x5168] sm:$0xff]
    %v2805 = vld [vmem:[#allocation4 + $0x5170] sm:$0xff]
    %v2806 = vld [vmem:[#allocation4 + $0x5178] sm:$0xff]
    %v2807 = vld [vmem:[#allocation4 + $0x5180] sm:$0xff]
    %v2808 = vld [vmem:[#allocation4 + $0x5188] sm:$0xff]
    %v2809 = vld [vmem:[#allocation4 + $0x5190] sm:$0xff]
    %v2810 = vld [vmem:[#allocation4 + $0x5198] sm:$0xff]
    %v2811 = vld [vmem:[#allocation4 + $0x51a0] sm:$0xff]
    %v2812 = vld [vmem:[#allocation4 + $0x51a8] sm:$0xff]
    %v2813 = vld [vmem:[#allocation4 + $0x51b0] sm:$0xff]
    %v2814 = vld [vmem:[#allocation4 + $0x51b8] sm:$0xff]
    %v2815 = vld [vmem:[#allocation4 + $0x51c0] sm:$0xff]
    %v2816 = vld [vmem:[#allocation4 + $0x51c8] sm:$0xff]
    %v2817 = vld [vmem:[#allocation4 + $0x51d0] sm:$0xff]
    %v2818 = vld [vmem:[#allocation4 + $0x51d8] sm:$0xff]
    %v2819 = vld [vmem:[#allocation4 + $0x51e0] sm:$0xff]
    %v2820 = vld [vmem:[#allocation4 + $0x51e8] sm:$0xff]
    %v2821 = vld [vmem:[#allocation4 + $0x51f0] sm:$0xff]
    %v2822 = vld [vmem:[#allocation4 + $0x51f8] sm:$0xff]
    %v2823 = vld [vmem:[#allocation4 + $0x5200] sm:$0xff]
    %v2824 = vld [vmem:[#allocation4 + $0x5208] sm:$0xff]
    %v2825 = vld [vmem:[#allocation4 + $0x5210] sm:$0xff]
    %v2826 = vld [vmem:[#allocation4 + $0x5218] sm:$0xff]
    %v2827 = vld [vmem:[#allocation4 + $0x5220] sm:$0xff]
    %v2828 = vld [vmem:[#allocation4 + $0x5228] sm:$0xff]
    %v2829 = vld [vmem:[#allocation4 + $0x5230] sm:$0xff]
    %v2830 = vld [vmem:[#allocation4 + $0x5238] sm:$0xff]
    %v2831 = vld [vmem:[#allocation4 + $0x5240] sm:$0xff]
    %v2832 = vld [vmem:[#allocation4 + $0x5248] sm:$0xff]
    %v2833 = vld [vmem:[#allocation4 + $0x5250] sm:$0xff]
    %v2834 = vld [vmem:[#allocation4 + $0x5258] sm:$0xff]
    %v2835 = vld [vmem:[#allocation4 + $0x5260] sm:$0xff]
    %v2836 = vld [vmem:[#allocation4 + $0x5268] sm:$0xff]
    %v2837 = vld [vmem:[#allocation4 + $0x5270] sm:$0xff]
    %v2838 = vld [vmem:[#allocation4 + $0x5278] sm:$0xff]
    %v2839 = vld [vmem:[#allocation4 + $0x5280] sm:$0xff]
    %v2840 = vld [vmem:[#allocation4 + $0x5288] sm:$0xff]
    %v2841 = vld [vmem:[#allocation4 + $0x5290] sm:$0xff]
    %v2842 = vld [vmem:[#allocation4 + $0x5298] sm:$0xff]
    %v2843 = vld [vmem:[#allocation4 + $0x52a0] sm:$0xff]
    %v2844 = vld [vmem:[#allocation4 + $0x52a8] sm:$0xff]
    %v2845 = vld [vmem:[#allocation4 + $0x52b0] sm:$0xff]
    %v2846 = vld [vmem:[#allocation4 + $0x52b8] sm:$0xff]
    %v2847 = vld [vmem:[#allocation4 + $0x52c0] sm:$0xff]
    %v2848 = vld [vmem:[#allocation4 + $0x52c8] sm:$0xff]
    %v2849 = vld [vmem:[#allocation4 + $0x52d0] sm:$0xff]
    %v2850 = vld [vmem:[#allocation4 + $0x52d8] sm:$0xff]
    %v2851 = vld [vmem:[#allocation4 + $0x52e0] sm:$0xff]
    %v2852 = vld [vmem:[#allocation4 + $0x52e8] sm:$0xff]
    %v2853 = vld [vmem:[#allocation4 + $0x52f0] sm:$0xff]
    %v2854 = vld [vmem:[#allocation4 + $0x52f8] sm:$0xff]
    %v2855 = vld [vmem:[#allocation4 + $0x5300] sm:$0xff]
    %v2856 = vld [vmem:[#allocation4 + $0x5308] sm:$0xff]
    %v2857 = vld [vmem:[#allocation4 + $0x5310] sm:$0xff]
    %v2858 = vld [vmem:[#allocation4 + $0x5318] sm:$0xff]
    %v2859 = vld [vmem:[#allocation4 + $0x5320] sm:$0xff]
    %v2860 = vld [vmem:[#allocation4 + $0x5328] sm:$0xff]
    %v2861 = vld [vmem:[#allocation4 + $0x5330] sm:$0xff]
    %v2862 = vld [vmem:[#allocation4 + $0x5338] sm:$0xff]
    %v2863 = vld [vmem:[#allocation4 + $0x5340] sm:$0xff]
    %v2864 = vld [vmem:[#allocation4 + $0x5348] sm:$0xff]
    %v2865 = vld [vmem:[#allocation4 + $0x5350] sm:$0xff]
    %v2866 = vld [vmem:[#allocation4 + $0x5358] sm:$0xff]
    %v2867 = vld [vmem:[#allocation4 + $0x5360] sm:$0xff]
    %v2868 = vld [vmem:[#allocation4 + $0x5368] sm:$0xff]
    %v2869 = vld [vmem:[#allocation4 + $0x5370] sm:$0xff]
    %v2870 = vld [vmem:[#allocation4 + $0x5378] sm:$0xff]
    %v2871 = vld [vmem:[#allocation4 + $0x5380] sm:$0xff]
    %v2872 = vld [vmem:[#allocation4 + $0x5388] sm:$0xff]
    %v2873 = vld [vmem:[#allocation4 + $0x5390] sm:$0xff]
    %v2874 = vld [vmem:[#allocation4 + $0x5398] sm:$0xff]
    %v2875 = vld [vmem:[#allocation4 + $0x53a0] sm:$0xff]
    %v2876 = vld [vmem:[#allocation4 + $0x53a8] sm:$0xff]
    %v2877 = vld [vmem:[#allocation4 + $0x53b0] sm:$0xff]
    %v2878 = vld [vmem:[#allocation4 + $0x53b8] sm:$0xff]
    %v2879 = vld [vmem:[#allocation4 + $0x53c0] sm:$0xff]
    %v2880 = vld [vmem:[#allocation4 + $0x53c8] sm:$0xff]
    %v2881 = vld [vmem:[#allocation4 + $0x53d0] sm:$0xff]
    %v2882 = vld [vmem:[#allocation4 + $0x53d8] sm:$0xff]
    %v2883 = vld [vmem:[#allocation4 + $0x53e0] sm:$0xff]
    %v2884 = vld [vmem:[#allocation4 + $0x53e8] sm:$0xff]
    %v2885 = vld [vmem:[#allocation4 + $0x53f0] sm:$0xff]
    %v2886 = vld [vmem:[#allocation4 + $0x53f8] sm:$0xff]
    %v2887 = vld [vmem:[#allocation4 + $0x5400] sm:$0xff]
    %v2888 = vld [vmem:[#allocation4 + $0x5408] sm:$0xff]
    %v2889 = vld [vmem:[#allocation4 + $0x5410] sm:$0xff]
    %v2890 = vld [vmem:[#allocation4 + $0x5418] sm:$0xff]
    %v2891 = vld [vmem:[#allocation4 + $0x5420] sm:$0xff]
    %v2892 = vld [vmem:[#allocation4 + $0x5428] sm:$0xff]
    %v2893 = vld [vmem:[#allocation4 + $0x5430] sm:$0xff]
    %v2894 = vld [vmem:[#allocation4 + $0x5438] sm:$0xff]
    %v2895 = vld [vmem:[#allocation4 + $0x5440] sm:$0xff]
    %v2896 = vld [vmem:[#allocation4 + $0x5448] sm:$0xff]
    %v2897 = vld [vmem:[#allocation4 + $0x5450] sm:$0xff]
    %v2898 = vld [vmem:[#allocation4 + $0x5458] sm:$0xff]
    %v2899 = vld [vmem:[#allocation4 + $0x5460] sm:$0xff]
    %v2900 = vld [vmem:[#allocation4 + $0x5468] sm:$0xff]
    %v2901 = vld [vmem:[#allocation4 + $0x5470] sm:$0xff]
    %v2902 = vld [vmem:[#allocation4 + $0x5478] sm:$0xff]
    %v2903 = vld [vmem:[#allocation4 + $0x5480] sm:$0xff]
    %v2904 = vld [vmem:[#allocation4 + $0x5488] sm:$0xff]
    %v2905 = vld [vmem:[#allocation4 + $0x5490] sm:$0xff]
    %v2906 = vld [vmem:[#allocation4 + $0x5498] sm:$0xff]
    %v2907 = vld [vmem:[#allocation4 + $0x54a0] sm:$0xff]
    %v2908 = vld [vmem:[#allocation4 + $0x54a8] sm:$0xff]
    %v2909 = vld [vmem:[#allocation4 + $0x54b0] sm:$0xff]
    %v2910 = vld [vmem:[#allocation4 + $0x54b8] sm:$0xff]
    %v2911 = vld [vmem:[#allocation4 + $0x54c0] sm:$0xff]
    %v2912 = vld [vmem:[#allocation4 + $0x54c8] sm:$0xff]
    %v2913 = vld [vmem:[#allocation4 + $0x54d0] sm:$0xff]
    %v2914 = vld [vmem:[#allocation4 + $0x54d8] sm:$0xff]
    %v2915 = vld [vmem:[#allocation4 + $0x54e0] sm:$0xff]
    %v2916 = vld [vmem:[#allocation4 + $0x54e8] sm:$0xff]
    %v2917 = vld [vmem:[#allocation4 + $0x54f0] sm:$0xff]
    %v2918 = vld [vmem:[#allocation4 + $0x54f8] sm:$0xff]
    %v2919 = vld [vmem:[#allocation4 + $0x5500] sm:$0xff]
    %v2920 = vld [vmem:[#allocation4 + $0x5508] sm:$0xff]
    %v2921 = vld [vmem:[#allocation4 + $0x5510] sm:$0xff]
    %v2922 = vld [vmem:[#allocation4 + $0x5518] sm:$0xff]
    %v2923 = vld [vmem:[#allocation4 + $0x5520] sm:$0xff]
    %v2924 = vld [vmem:[#allocation4 + $0x5528] sm:$0xff]
    %v2925 = vld [vmem:[#allocation4 + $0x5530] sm:$0xff]
    %v2926 = vld [vmem:[#allocation4 + $0x5538] sm:$0xff]
    %v2927 = vld [vmem:[#allocation4 + $0x5540] sm:$0xff]
    %v2928 = vld [vmem:[#allocation4 + $0x5548] sm:$0xff]
    %v2929 = vld [vmem:[#allocation4 + $0x5550] sm:$0xff]
    %v2930 = vld [vmem:[#allocation4 + $0x5558] sm:$0xff]
    %v2931 = vld [vmem:[#allocation4 + $0x5560] sm:$0xff]
    %v2932 = vld [vmem:[#allocation4 + $0x5568] sm:$0xff]
    %v2933 = vld [vmem:[#allocation4 + $0x5570] sm:$0xff]
    %v2934 = vld [vmem:[#allocation4 + $0x5578] sm:$0xff]
    %v2935 = vld [vmem:[#allocation4 + $0x5580] sm:$0xff]
    %v2936 = vld [vmem:[#allocation4 + $0x5588] sm:$0xff]
    %v2937 = vld [vmem:[#allocation4 + $0x5590] sm:$0xff]
    %v2938 = vld [vmem:[#allocation4 + $0x5598] sm:$0xff]
    %v2939 = vld [vmem:[#allocation4 + $0x55a0] sm:$0xff]
    %v2940 = vld [vmem:[#allocation4 + $0x55a8] sm:$0xff]
    %v2941 = vld [vmem:[#allocation4 + $0x55b0] sm:$0xff]
    %v2942 = vld [vmem:[#allocation4 + $0x55b8] sm:$0xff]
    %v2943 = vld [vmem:[#allocation4 + $0x55c0] sm:$0xff]
    %v2944 = vld [vmem:[#allocation4 + $0x55c8] sm:$0xff]
    %v2945 = vld [vmem:[#allocation4 + $0x55d0] sm:$0xff]
    %v2946 = vld [vmem:[#allocation4 + $0x55d8] sm:$0xff]
    %v2947 = vld [vmem:[#allocation4 + $0x55e0] sm:$0xff]
    %v2948 = vld [vmem:[#allocation4 + $0x55e8] sm:$0xff]
    %v2949 = vld [vmem:[#allocation4 + $0x55f0] sm:$0xff]
    %v2950 = vld [vmem:[#allocation4 + $0x55f8] sm:$0xff]
    %v2951 = vld [vmem:[#allocation4 + $0x5600] sm:$0xff]
    %v2952 = vld [vmem:[#allocation4 + $0x5608] sm:$0xff]
    %v2953 = vld [vmem:[#allocation4 + $0x5610] sm:$0xff]
    %v2954 = vld [vmem:[#allocation4 + $0x5618] sm:$0xff]
    %v2955 = vld [vmem:[#allocation4 + $0x5620] sm:$0xff]
    %v2956 = vld [vmem:[#allocation4 + $0x5628] sm:$0xff]
    %v2957 = vld [vmem:[#allocation4 + $0x5630] sm:$0xff]
    %v2958 = vld [vmem:[#allocation4 + $0x5638] sm:$0xff]
    %v2959 = vld [vmem:[#allocation4 + $0x5640] sm:$0xff]
    %v2960 = vld [vmem:[#allocation4 + $0x5648] sm:$0xff]
    %v2961 = vld [vmem:[#allocation4 + $0x5650] sm:$0xff]
    %v2962 = vld [vmem:[#allocation4 + $0x5658] sm:$0xff]
    %v2963 = vld [vmem:[#allocation4 + $0x5660] sm:$0xff]
    %v2964 = vld [vmem:[#allocation4 + $0x5668] sm:$0xff]
    %v2965 = vld [vmem:[#allocation4 + $0x5670] sm:$0xff]
    %v2966 = vld [vmem:[#allocation4 + $0x5678] sm:$0xff]
    %v2967 = vld [vmem:[#allocation4 + $0x5680] sm:$0xff]
    %v2968 = vld [vmem:[#allocation4 + $0x5688] sm:$0xff]
    %v2969 = vld [vmem:[#allocation4 + $0x5690] sm:$0xff]
    %v2970 = vld [vmem:[#allocation4 + $0x5698] sm:$0xff]
    %v2971 = vld [vmem:[#allocation4 + $0x56a0] sm:$0xff]
    %v2972 = vld [vmem:[#allocation4 + $0x56a8] sm:$0xff]
    %v2973 = vld [vmem:[#allocation4 + $0x56b0] sm:$0xff]
    %v2974 = vld [vmem:[#allocation4 + $0x56b8] sm:$0xff]
    %v2975 = vld [vmem:[#allocation4 + $0x56c0] sm:$0xff]
    %v2976 = vld [vmem:[#allocation4 + $0x56c8] sm:$0xff]
    %v2977 = vld [vmem:[#allocation4 + $0x56d0] sm:$0xff]
    %v2978 = vld [vmem:[#allocation4 + $0x56d8] sm:$0xff]
    %v2979 = vld [vmem:[#allocation4 + $0x56e0] sm:$0xff]
    %v2980 = vld [vmem:[#allocation4 + $0x56e8] sm:$0xff]
    %v2981 = vld [vmem:[#allocation4 + $0x56f0] sm:$0xff]
    %v2982 = vld [vmem:[#allocation4 + $0x56f8] sm:$0xff]
    %v2983 = vld [vmem:[#allocation4 + $0x5700] sm:$0xff]
    %v2984 = vld [vmem:[#allocation4 + $0x5708] sm:$0xff]
    %v2985 = vld [vmem:[#allocation4 + $0x5710] sm:$0xff]
    %v2986 = vld [vmem:[#allocation4 + $0x5718] sm:$0xff]
    %v2987 = vld [vmem:[#allocation4 + $0x5720] sm:$0xff]
    %v2988 = vld [vmem:[#allocation4 + $0x5728] sm:$0xff]
    %v2989 = vld [vmem:[#allocation4 + $0x5730] sm:$0xff]
    %v2990 = vld [vmem:[#allocation4 + $0x5738] sm:$0xff]
    %v2991 = vld [vmem:[#allocation4 + $0x5740] sm:$0xff]
    %v2992 = vld [vmem:[#allocation4 + $0x5748] sm:$0xff]
    %v2993 = vld [vmem:[#allocation4 + $0x5750] sm:$0xff]
    %v2994 = vld [vmem:[#allocation4 + $0x5758] sm:$0xff]
    %v2995 = vld [vmem:[#allocation4 + $0x5760] sm:$0xff]
    %v2996 = vld [vmem:[#allocation4 + $0x5768] sm:$0xff]
    %v2997 = vld [vmem:[#allocation4 + $0x5770] sm:$0xff]
    %v2998 = vld [vmem:[#allocation4 + $0x5778] sm:$0xff]
    %v2999 = vld [vmem:[#allocation4 + $0x5780] sm:$0xff]
    %v3000 = vld [vmem:[#allocation4 + $0x5788] sm:$0xff]
    %v3001 = vld [vmem:[#allocation4 + $0x5790] sm:$0xff]
    %v3002 = vld [vmem:[#allocation4 + $0x5798] sm:$0xff]
    %v3003 = vld [vmem:[#allocation4 + $0x57a0] sm:$0xff]
    %v3004 = vld [vmem:[#allocation4 + $0x57a8] sm:$0xff]
    %v3005 = vld [vmem:[#allocation4 + $0x57b0] sm:$0xff]
    %v3006 = vld [vmem:[#allocation4 + $0x57b8] sm:$0xff]
    %v3007 = vld [vmem:[#allocation4 + $0x57c0] sm:$0xff]
    %v3008 = vld [vmem:[#allocation4 + $0x57c8] sm:$0xff]
    %v3009 = vld [vmem:[#allocation4 + $0x57d0] sm:$0xff]
    %v3010 = vld [vmem:[#allocation4 + $0x57d8] sm:$0xff]
    %v3011 = vld [vmem:[#allocation4 + $0x57e0] sm:$0xff]
    %v3012 = vld [vmem:[#allocation4 + $0x57e8] sm:$0xff]
    %v3013 = vld [vmem:[#allocation4 + $0x57f0] sm:$0xff]
    %v3014 = vld [vmem:[#allocation4 + $0x57f8] sm:$0xff]
    %v3015 = vld [vmem:[#allocation4 + $0x5800] sm:$0xff]
    %v3016 = vld [vmem:[#allocation4 + $0x5808] sm:$0xff]
    %v3017 = vld [vmem:[#allocation4 + $0x5810] sm:$0xff]
    %v3018 = vld [vmem:[#allocation4 + $0x5818] sm:$0xff]
    %v3019 = vld [vmem:[#allocation4 + $0x5820] sm:$0xff]
    %v3020 = vld [vmem:[#allocation4 + $0x5828] sm:$0xff]
    %v3021 = vld [vmem:[#allocation4 + $0x5830] sm:$0xff]
    %v3022 = vld [vmem:[#allocation4 + $0x5838] sm:$0xff]
    %v3023 = vld [vmem:[#allocation4 + $0x5840] sm:$0xff]
    %v3024 = vld [vmem:[#allocation4 + $0x5848] sm:$0xff]
    %v3025 = vld [vmem:[#allocation4 + $0x5850] sm:$0xff]
    %v3026 = vld [vmem:[#allocation4 + $0x5858] sm:$0xff]
    %v3027 = vld [vmem:[#allocation4 + $0x5860] sm:$0xff]
    %v3028 = vld [vmem:[#allocation4 + $0x5868] sm:$0xff]
    %v3029 = vld [vmem:[#allocation4 + $0x5870] sm:$0xff]
    %v3030 = vld [vmem:[#allocation4 + $0x5878] sm:$0xff]
    %v3031 = vld [vmem:[#allocation4 + $0x5880] sm:$0xff]
    %v3032 = vld [vmem:[#allocation4 + $0x5888] sm:$0xff]
    %v3033 = vld [vmem:[#allocation4 + $0x5890] sm:$0xff]
    %v3034 = vld [vmem:[#allocation4 + $0x5898] sm:$0xff]
    %v3035 = vld [vmem:[#allocation4 + $0x58a0] sm:$0xff]
    %v3036 = vld [vmem:[#allocation4 + $0x58a8] sm:$0xff]
    %v3037 = vld [vmem:[#allocation4 + $0x58b0] sm:$0xff]
    %v3038 = vld [vmem:[#allocation4 + $0x58b8] sm:$0xff]
    %v3039 = vld [vmem:[#allocation4 + $0x58c0] sm:$0xff]
    %v3040 = vld [vmem:[#allocation4 + $0x58c8] sm:$0xff]
    %v3041 = vld [vmem:[#allocation4 + $0x58d0] sm:$0xff]
    %v3042 = vld [vmem:[#allocation4 + $0x58d8] sm:$0xff]
    %v3043 = vld [vmem:[#allocation4 + $0x58e0] sm:$0xff]
    %v3044 = vld [vmem:[#allocation4 + $0x58e8] sm:$0xff]
    %v3045 = vld [vmem:[#allocation4 + $0x58f0] sm:$0xff]
    %v3046 = vld [vmem:[#allocation4 + $0x58f8] sm:$0xff]
    %v3047 = vld [vmem:[#allocation4 + $0x5900] sm:$0xff]
    %v3048 = vld [vmem:[#allocation4 + $0x5908] sm:$0xff]
    %v3049 = vld [vmem:[#allocation4 + $0x5910] sm:$0xff]
    %v3050 = vld [vmem:[#allocation4 + $0x5918] sm:$0xff]
    %v3051 = vld [vmem:[#allocation4 + $0x5920] sm:$0xff]
    %v3052 = vld [vmem:[#allocation4 + $0x5928] sm:$0xff]
    %v3053 = vld [vmem:[#allocation4 + $0x5930] sm:$0xff]
    %v3054 = vld [vmem:[#allocation4 + $0x5938] sm:$0xff]
    %v3055 = vld [vmem:[#allocation4 + $0x5940] sm:$0xff]
    %v3056 = vld [vmem:[#allocation4 + $0x5948] sm:$0xff]
    %v3057 = vld [vmem:[#allocation4 + $0x5950] sm:$0xff]
    %v3058 = vld [vmem:[#allocation4 + $0x5958] sm:$0xff]
    %v3059 = vld [vmem:[#allocation4 + $0x5960] sm:$0xff]
    %v3060 = vld [vmem:[#allocation4 + $0x5968] sm:$0xff]
    %v3061 = vld [vmem:[#allocation4 + $0x5970] sm:$0xff]
    %v3062 = vld [vmem:[#allocation4 + $0x5978] sm:$0xff]
    %v3063 = vld [vmem:[#allocation4 + $0x5980] sm:$0xff]
    %v3064 = vld [vmem:[#allocation4 + $0x5988] sm:$0xff]
    %v3065 = vld [vmem:[#allocation4 + $0x5990] sm:$0xff]
    %v3066 = vld [vmem:[#allocation4 + $0x5998] sm:$0xff]
    %v3067 = vld [vmem:[#allocation4 + $0x59a0] sm:$0xff]
    %v3068 = vld [vmem:[#allocation4 + $0x59a8] sm:$0xff]
    %v3069 = vld [vmem:[#allocation4 + $0x59b0] sm:$0xff]
    %v3070 = vld [vmem:[#allocation4 + $0x59b8] sm:$0xff]
    %v3071 = vld [vmem:[#allocation4 + $0x59c0] sm:$0xff]
    %v3072 = vld [vmem:[#allocation4 + $0x59c8] sm:$0xff]
    %v3073 = vld [vmem:[#allocation4 + $0x59d0] sm:$0xff]
    %v3074 = vld [vmem:[#allocation4 + $0x59d8] sm:$0xff]
    %v3075 = vld [vmem:[#allocation4 + $0x59e0] sm:$0xff]
    %v3076 = vld [vmem:[#allocation4 + $0x59e8] sm:$0xff]
    %v3077 = vld [vmem:[#allocation4 + $0x59f0] sm:$0xff]
    %v3078 = vld [vmem:[#allocation4 + $0x59f8] sm:$0xff]
    %v3079 = vld [vmem:[#allocation4 + $0x5a00] sm:$0xff]
    %v3080 = vld [vmem:[#allocation4 + $0x5a08] sm:$0xff]
    %v3081 = vld [vmem:[#allocation4 + $0x5a10] sm:$0xff]
    %v3082 = vld [vmem:[#allocation4 + $0x5a18] sm:$0xff]
    %v3083 = vld [vmem:[#allocation4 + $0x5a20] sm:$0xff]
    %v3084 = vld [vmem:[#allocation4 + $0x5a28] sm:$0xff]
    %v3085 = vld [vmem:[#allocation4 + $0x5a30] sm:$0xff]
    %v3086 = vld [vmem:[#allocation4 + $0x5a38] sm:$0xff]
    %v3087 = vld [vmem:[#allocation4 + $0x5a40] sm:$0xff]
    %v3088 = vld [vmem:[#allocation4 + $0x5a48] sm:$0xff]
    %v3089 = vld [vmem:[#allocation4 + $0x5a50] sm:$0xff]
    %v3090 = vld [vmem:[#allocation4 + $0x5a58] sm:$0xff]
    %v3091 = vld [vmem:[#allocation4 + $0x5a60] sm:$0xff]
    %v3092 = vld [vmem:[#allocation4 + $0x5a68] sm:$0xff]
    %v3093 = vld [vmem:[#allocation4 + $0x5a70] sm:$0xff]
    %v3094 = vld [vmem:[#allocation4 + $0x5a78] sm:$0xff]
    %v3095 = vld [vmem:[#allocation4 + $0x5a80] sm:$0xff]
    %v3096 = vld [vmem:[#allocation4 + $0x5a88] sm:$0xff]
    %v3097 = vld [vmem:[#allocation4 + $0x5a90] sm:$0xff]
    %v3098 = vld [vmem:[#allocation4 + $0x5a98] sm:$0xff]
    %v3099 = vld [vmem:[#allocation4 + $0x5aa0] sm:$0xff]
    %v3100 = vld [vmem:[#allocation4 + $0x5aa8] sm:$0xff]
    %v3101 = vld [vmem:[#allocation4 + $0x5ab0] sm:$0xff]
    %v3102 = vld [vmem:[#allocation4 + $0x5ab8] sm:$0xff]
    %v3103 = vld [vmem:[#allocation4 + $0x5ac0] sm:$0xff]
    %v3104 = vld [vmem:[#allocation4 + $0x5ac8] sm:$0xff]
    %v3105 = vld [vmem:[#allocation4 + $0x5ad0] sm:$0xff]
    %v3106 = vld [vmem:[#allocation4 + $0x5ad8] sm:$0xff]
    %v3107 = vld [vmem:[#allocation4 + $0x5ae0] sm:$0xff]
    %v3108 = vld [vmem:[#allocation4 + $0x5ae8] sm:$0xff]
    %v3109 = vld [vmem:[#allocation4 + $0x5af0] sm:$0xff]
    %v3110 = vld [vmem:[#allocation4 + $0x5af8] sm:$0xff]
    %v3111 = vld [vmem:[#allocation4 + $0x5b00] sm:$0xff]
    %v3112 = vld [vmem:[#allocation4 + $0x5b08] sm:$0xff]
    %v3113 = vld [vmem:[#allocation4 + $0x5b10] sm:$0xff]
    %v3114 = vld [vmem:[#allocation4 + $0x5b18] sm:$0xff]
    %v3115 = vld [vmem:[#allocation4 + $0x5b20] sm:$0xff]
    %v3116 = vld [vmem:[#allocation4 + $0x5b28] sm:$0xff]
    %v3117 = vld [vmem:[#allocation4 + $0x5b30] sm:$0xff]
    %v3118 = vld [vmem:[#allocation4 + $0x5b38] sm:$0xff]
    %v3119 = vld [vmem:[#allocation4 + $0x5b40] sm:$0xff]
    %v3120 = vld [vmem:[#allocation4 + $0x5b48] sm:$0xff]
    %v3121 = vld [vmem:[#allocation4 + $0x5b50] sm:$0xff]
    %v3122 = vld [vmem:[#allocation4 + $0x5b58] sm:$0xff]
    %v3123 = vld [vmem:[#allocation4 + $0x5b60] sm:$0xff]
    %v3124 = vld [vmem:[#allocation4 + $0x5b68] sm:$0xff]
    %v3125 = vld [vmem:[#allocation4 + $0x5b70] sm:$0xff]
    %v3126 = vld [vmem:[#allocation4 + $0x5b78] sm:$0xff]
    %v3127 = vld [vmem:[#allocation4 + $0x5b80] sm:$0xff]
    %v3128 = vld [vmem:[#allocation4 + $0x5b88] sm:$0xff]
    %v3129 = vld [vmem:[#allocation4 + $0x5b90] sm:$0xff]
    %v3130 = vld [vmem:[#allocation4 + $0x5b98] sm:$0xff]
    %v3131 = vld [vmem:[#allocation4 + $0x5ba0] sm:$0xff]
    %v3132 = vld [vmem:[#allocation4 + $0x5ba8] sm:$0xff]
    %v3133 = vld [vmem:[#allocation4 + $0x5bb0] sm:$0xff]
    %v3134 = vld [vmem:[#allocation4 + $0x5bb8] sm:$0xff]
    %v3135 = vld [vmem:[#allocation4 + $0x5bc0] sm:$0xff]
    %v3136 = vld [vmem:[#allocation4 + $0x5bc8] sm:$0xff]
    %v3137 = vld [vmem:[#allocation4 + $0x5bd0] sm:$0xff]
    %v3138 = vld [vmem:[#allocation4 + $0x5bd8] sm:$0xff]
    %v3139 = vld [vmem:[#allocation4 + $0x5be0] sm:$0xff]
    %v3140 = vld [vmem:[#allocation4 + $0x5be8] sm:$0xff]
    %v3141 = vld [vmem:[#allocation4 + $0x5bf0] sm:$0xff]
    %v3142 = vld [vmem:[#allocation4 + $0x5bf8] sm:$0xff]
    %v3143 = vld [vmem:[#allocation4 + $0x5c00] sm:$0xff]
    %v3144 = vld [vmem:[#allocation4 + $0x5c08] sm:$0xff]
    %v3145 = vld [vmem:[#allocation4 + $0x5c10] sm:$0xff]
    %v3146 = vld [vmem:[#allocation4 + $0x5c18] sm:$0xff]
    %v3147 = vld [vmem:[#allocation4 + $0x5c20] sm:$0xff]
    %v3148 = vld [vmem:[#allocation4 + $0x5c28] sm:$0xff]
    %v3149 = vld [vmem:[#allocation4 + $0x5c30] sm:$0xff]
    %v3150 = vld [vmem:[#allocation4 + $0x5c38] sm:$0xff]
    %v3151 = vld [vmem:[#allocation4 + $0x5c40] sm:$0xff]
    %v3152 = vld [vmem:[#allocation4 + $0x5c48] sm:$0xff]
    %v3153 = vld [vmem:[#allocation4 + $0x5c50] sm:$0xff]
    %v3154 = vld [vmem:[#allocation4 + $0x5c58] sm:$0xff]
    %v3155 = vld [vmem:[#allocation4 + $0x5c60] sm:$0xff]
    %v3156 = vld [vmem:[#allocation4 + $0x5c68] sm:$0xff]
    %v3157 = vld [vmem:[#allocation4 + $0x5c70] sm:$0xff]
    %v3158 = vld [vmem:[#allocation4 + $0x5c78] sm:$0xff]
    %v3159 = vld [vmem:[#allocation4 + $0x5c80] sm:$0xff]
    %v3160 = vld [vmem:[#allocation4 + $0x5c88] sm:$0xff]
    %v3161 = vld [vmem:[#allocation4 + $0x5c90] sm:$0xff]
    %v3162 = vld [vmem:[#allocation4 + $0x5c98] sm:$0xff]
    %v3163 = vld [vmem:[#allocation4 + $0x5ca0] sm:$0xff]
    %v3164 = vld [vmem:[#allocation4 + $0x5ca8] sm:$0xff]
    %v3165 = vld [vmem:[#allocation4 + $0x5cb0] sm:$0xff]
    %v3166 = vld [vmem:[#allocation4 + $0x5cb8] sm:$0xff]
    %v3167 = vld [vmem:[#allocation4 + $0x5cc0] sm:$0xff]
    %v3168 = vld [vmem:[#allocation4 + $0x5cc8] sm:$0xff]
    %v3169 = vld [vmem:[#allocation4 + $0x5cd0] sm:$0xff]
    %v3170 = vld [vmem:[#allocation4 + $0x5cd8] sm:$0xff]
    %v3171 = vld [vmem:[#allocation4 + $0x5ce0] sm:$0xff]
    %v3172 = vld [vmem:[#allocation4 + $0x5ce8] sm:$0xff]
    %v3173 = vld [vmem:[#allocation4 + $0x5cf0] sm:$0xff]
    %v3174 = vld [vmem:[#allocation4 + $0x5cf8] sm:$0xff]
    %v3175 = vld [vmem:[#allocation4 + $0x5d00] sm:$0xff]
    %v3176 = vld [vmem:[#allocation4 + $0x5d08] sm:$0xff]
    %v3177 = vld [vmem:[#allocation4 + $0x5d10] sm:$0xff]
    %v3178 = vld [vmem:[#allocation4 + $0x5d18] sm:$0xff]
    %v3179 = vld [vmem:[#allocation4 + $0x5d20] sm:$0xff]
    %v3180 = vld [vmem:[#allocation4 + $0x5d28] sm:$0xff]
    %v3181 = vld [vmem:[#allocation4 + $0x5d30] sm:$0xff]
    %v3182 = vld [vmem:[#allocation4 + $0x5d38] sm:$0xff]
    %v3183 = vld [vmem:[#allocation4 + $0x5d40] sm:$0xff]
    %v3184 = vld [vmem:[#allocation4 + $0x5d48] sm:$0xff]
    %v3185 = vld [vmem:[#allocation4 + $0x5d50] sm:$0xff]
    %v3186 = vld [vmem:[#allocation4 + $0x5d58] sm:$0xff]
    %v3187 = vld [vmem:[#allocation4 + $0x5d60] sm:$0xff]
    %v3188 = vld [vmem:[#allocation4 + $0x5d68] sm:$0xff]
    %v3189 = vld [vmem:[#allocation4 + $0x5d70] sm:$0xff]
    %v3190 = vld [vmem:[#allocation4 + $0x5d78] sm:$0xff]
    %v3191 = vld [vmem:[#allocation4 + $0x5d80] sm:$0xff]
    %v3192 = vld [vmem:[#allocation4 + $0x5d88] sm:$0xff]
    %v3193 = vld [vmem:[#allocation4 + $0x5d90] sm:$0xff]
    %v3194 = vld [vmem:[#allocation4 + $0x5d98] sm:$0xff]
    %v3195 = vld [vmem:[#allocation4 + $0x5da0] sm:$0xff]
    %v3196 = vld [vmem:[#allocation4 + $0x5da8] sm:$0xff]
    %v3197 = vld [vmem:[#allocation4 + $0x5db0] sm:$0xff]
    %v3198 = vld [vmem:[#allocation4 + $0x5db8] sm:$0xff]
    %v3199 = vld [vmem:[#allocation4 + $0x5dc0] sm:$0xff]
    %v3200 = vld [vmem:[#allocation4 + $0x5dc8] sm:$0xff]
    %v3201 = vld [vmem:[#allocation4 + $0x5dd0] sm:$0xff]
    %v3202 = vld [vmem:[#allocation4 + $0x5dd8] sm:$0xff]
    %v3203 = vld [vmem:[#allocation4 + $0x5de0] sm:$0xff]
    %v3204 = vld [vmem:[#allocation4 + $0x5de8] sm:$0xff]
    %v3205 = vld [vmem:[#allocation4 + $0x5df0] sm:$0xff]
    %v3206 = vld [vmem:[#allocation4 + $0x5df8] sm:$0xff]
    %v3207 = vld [vmem:[#allocation4 + $0x5e00] sm:$0xff]
    %v3208 = vld [vmem:[#allocation4 + $0x5e08] sm:$0xff]
    %v3209 = vld [vmem:[#allocation4 + $0x5e10] sm:$0xff]
    %v3210 = vld [vmem:[#allocation4 + $0x5e18] sm:$0xff]
    %v3211 = vld [vmem:[#allocation4 + $0x5e20] sm:$0xff]
    %v3212 = vld [vmem:[#allocation4 + $0x5e28] sm:$0xff]
    %v3213 = vld [vmem:[#allocation4 + $0x5e30] sm:$0xff]
    %v3214 = vld [vmem:[#allocation4 + $0x5e38] sm:$0xff]
    %v3215 = vld [vmem:[#allocation4 + $0x5e40] sm:$0xff]
    %v3216 = vld [vmem:[#allocation4 + $0x5e48] sm:$0xff]
    %v3217 = vld [vmem:[#allocation4 + $0x5e50] sm:$0xff]
    %v3218 = vld [vmem:[#allocation4 + $0x5e58] sm:$0xff]
    %v3219 = vld [vmem:[#allocation4 + $0x5e60] sm:$0xff]
    %v3220 = vld [vmem:[#allocation4 + $0x5e68] sm:$0xff]
    %v3221 = vld [vmem:[#allocation4 + $0x5e70] sm:$0xff]
    %v3222 = vld [vmem:[#allocation4 + $0x5e78] sm:$0xff]
    %v3223 = vld [vmem:[#allocation4 + $0x5e80] sm:$0xff]
    %v3224 = vld [vmem:[#allocation4 + $0x5e88] sm:$0xff]
    %v3225 = vld [vmem:[#allocation4 + $0x5e90] sm:$0xff]
    %v3226 = vld [vmem:[#allocation4 + $0x5e98] sm:$0xff]
    %v3227 = vld [vmem:[#allocation4 + $0x5ea0] sm:$0xff]
    %v3228 = vld [vmem:[#allocation4 + $0x5ea8] sm:$0xff]
    %v3229 = vld [vmem:[#allocation4 + $0x5eb0] sm:$0xff]
    %v3230 = vld [vmem:[#allocation4 + $0x5eb8] sm:$0xff]
    %v3231 = vld [vmem:[#allocation4 + $0x5ec0] sm:$0xff]
    %v3232 = vld [vmem:[#allocation4 + $0x5ec8] sm:$0xff]
    %v3233 = vld [vmem:[#allocation4 + $0x5ed0] sm:$0xff]
    %v3234 = vld [vmem:[#allocation4 + $0x5ed8] sm:$0xff]
    %v3235 = vld [vmem:[#allocation4 + $0x5ee0] sm:$0xff]
    %v3236 = vld [vmem:[#allocation4 + $0x5ee8] sm:$0xff]
    %v3237 = vld [vmem:[#allocation4 + $0x5ef0] sm:$0xff]
    %v3238 = vld [vmem:[#allocation4 + $0x5ef8] sm:$0xff]
    %v3239 = vld [vmem:[#allocation4 + $0x5f00] sm:$0xff]
    %v3240 = vld [vmem:[#allocation4 + $0x5f08] sm:$0xff]
    %v3241 = vld [vmem:[#allocation4 + $0x5f10] sm:$0xff]
    %v3242 = vld [vmem:[#allocation4 + $0x5f18] sm:$0xff]
    %v3243 = vld [vmem:[#allocation4 + $0x5f20] sm:$0xff]
    %v3244 = vld [vmem:[#allocation4 + $0x5f28] sm:$0xff]
    %v3245 = vld [vmem:[#allocation4 + $0x5f30] sm:$0xff]
    %v3246 = vld [vmem:[#allocation4 + $0x5f38] sm:$0xff]
    %v3247 = vld [vmem:[#allocation4 + $0x5f40] sm:$0xff]
    %v3248 = vld [vmem:[#allocation4 + $0x5f48] sm:$0xff]
    %v3249 = vld [vmem:[#allocation4 + $0x5f50] sm:$0xff]
    %v3250 = vld [vmem:[#allocation4 + $0x5f58] sm:$0xff]
    %v3251 = vld [vmem:[#allocation4 + $0x5f60] sm:$0xff]
    %v3252 = vld [vmem:[#allocation4 + $0x5f68] sm:$0xff]
    %v3253 = vld [vmem:[#allocation4 + $0x5f70] sm:$0xff]
    %v3254 = vld [vmem:[#allocation4 + $0x5f78] sm:$0xff]
    %v3255 = vld [vmem:[#allocation4 + $0x5f80] sm:$0xff]
    %v3256 = vld [vmem:[#allocation4 + $0x5f88] sm:$0xff]
    %v3257 = vld [vmem:[#allocation4 + $0x5f90] sm:$0xff]
    %v3258 = vld [vmem:[#allocation4 + $0x5f98] sm:$0xff]
    %v3259 = vld [vmem:[#allocation4 + $0x5fa0] sm:$0xff]
    %v3260 = vld [vmem:[#allocation4 + $0x5fa8] sm:$0xff]
    %v3261 = vld [vmem:[#allocation4 + $0x5fb0] sm:$0xff]
    %v3262 = vld [vmem:[#allocation4 + $0x5fb8] sm:$0xff]
    %v3263 = vld [vmem:[#allocation4 + $0x5fc0] sm:$0xff]
    %v3264 = vld [vmem:[#allocation4 + $0x5fc8] sm:$0xff]
    %v3265 = vld [vmem:[#allocation4 + $0x5fd0] sm:$0xff]
    %v3266 = vld [vmem:[#allocation4 + $0x5fd8] sm:$0xff]
    %v3267 = vld [vmem:[#allocation4 + $0x5fe0] sm:$0xff]
    %v3268 = vld [vmem:[#allocation4 + $0x5fe8] sm:$0xff]
    %v3269 = vld [vmem:[#allocation4 + $0x5ff0] sm:$0xff]
    %v3270 = vld [vmem:[#allocation4 + $0x5ff8] sm:$0xff]
    %v3271 = vld [vmem:[#allocation4 + $0x6000] sm:$0xff]
    %v3272 = vld [vmem:[#allocation4 + $0x6008] sm:$0xff]
    %v3273 = vld [vmem:[#allocation4 + $0x6010] sm:$0xff]
    %v3274 = vld [vmem:[#allocation4 + $0x6018] sm:$0xff]
    %v3275 = vld [vmem:[#allocation4 + $0x6020] sm:$0xff]
    %v3276 = vld [vmem:[#allocation4 + $0x6028] sm:$0xff]
    %v3277 = vld [vmem:[#allocation4 + $0x6030] sm:$0xff]
    %v3278 = vld [vmem:[#allocation4 + $0x6038] sm:$0xff]
    %v3279 = vld [vmem:[#allocation4 + $0x6040] sm:$0xff]
    %v3280 = vld [vmem:[#allocation4 + $0x6048] sm:$0xff]
    %v3281 = vld [vmem:[#allocation4 + $0x6050] sm:$0xff]
    %v3282 = vld [vmem:[#allocation4 + $0x6058] sm:$0xff]
    %v3283 = vld [vmem:[#allocation4 + $0x6060] sm:$0xff]
    %v3284 = vld [vmem:[#allocation4 + $0x6068] sm:$0xff]
    %v3285 = vld [vmem:[#allocation4 + $0x6070] sm:$0xff]
    %v3286 = vld [vmem:[#allocation4 + $0x6078] sm:$0xff]
    %v3287 = vld [vmem:[#allocation4 + $0x6080] sm:$0xff]
    %v3288 = vld [vmem:[#allocation4 + $0x6088] sm:$0xff]
    %v3289 = vld [vmem:[#allocation4 + $0x6090] sm:$0xff]
    %v3290 = vld [vmem:[#allocation4 + $0x6098] sm:$0xff]
    %v3291 = vld [vmem:[#allocation4 + $0x60a0] sm:$0xff]
    %v3292 = vld [vmem:[#allocation4 + $0x60a8] sm:$0xff]
    %v3293 = vld [vmem:[#allocation4 + $0x60b0] sm:$0xff]
    %v3294 = vld [vmem:[#allocation4 + $0x60b8] sm:$0xff]
    %v3295 = vld [vmem:[#allocation4 + $0x60c0] sm:$0xff]
    %v3296 = vld [vmem:[#allocation4 + $0x60c8] sm:$0xff]
    %v3297 = vld [vmem:[#allocation4 + $0x60d0] sm:$0xff]
    %v3298 = vld [vmem:[#allocation4 + $0x60d8] sm:$0xff]
    %v3299 = vld [vmem:[#allocation4 + $0x60e0] sm:$0xff]
    %v3300 = vld [vmem:[#allocation4 + $0x60e8] sm:$0xff]
    %v3301 = vld [vmem:[#allocation4 + $0x60f0] sm:$0xff]
    %v3302 = vld [vmem:[#allocation4 + $0x60f8] sm:$0xff]
    %v3303 = vld [vmem:[#allocation4 + $0x6100] sm:$0xff]
    %v3304 = vld [vmem:[#allocation4 + $0x6108] sm:$0xff]
    %v3305 = vld [vmem:[#allocation4 + $0x6110] sm:$0xff]
    %v3306 = vld [vmem:[#allocation4 + $0x6118] sm:$0xff]
    %v3307 = vld [vmem:[#allocation4 + $0x6120] sm:$0xff]
    %v3308 = vld [vmem:[#allocation4 + $0x6128] sm:$0xff]
    %v3309 = vld [vmem:[#allocation4 + $0x6130] sm:$0xff]
    %v3310 = vld [vmem:[#allocation4 + $0x6138] sm:$0xff]
    %v3311 = vld [vmem:[#allocation4 + $0x6140] sm:$0xff]
    %v3312 = vld [vmem:[#allocation4 + $0x6148] sm:$0xff]
    %v3313 = vld [vmem:[#allocation4 + $0x6150] sm:$0xff]
    %v3314 = vld [vmem:[#allocation4 + $0x6158] sm:$0xff]
    %v3315 = vld [vmem:[#allocation4 + $0x6160] sm:$0xff]
    %v3316 = vld [vmem:[#allocation4 + $0x6168] sm:$0xff]
    %v3317 = vld [vmem:[#allocation4 + $0x6170] sm:$0xff]
    %v3318 = vld [vmem:[#allocation4 + $0x6178] sm:$0xff]
    %v3319 = vld [vmem:[#allocation4 + $0x6180] sm:$0xff]
    %v3320 = vld [vmem:[#allocation4 + $0x6188] sm:$0xff]
    %v3321 = vld [vmem:[#allocation4 + $0x6190] sm:$0xff]
    %v3322 = vld [vmem:[#allocation4 + $0x6198] sm:$0xff]
    %v3323 = vld [vmem:[#allocation4 + $0x61a0] sm:$0xff]
    %v3324 = vld [vmem:[#allocation4 + $0x61a8] sm:$0xff]
    %v3325 = vld [vmem:[#allocation4 + $0x61b0] sm:$0xff]
    %v3326 = vld [vmem:[#allocation4 + $0x61b8] sm:$0xff]
    %v3327 = vld [vmem:[#allocation4 + $0x61c0] sm:$0xff]
    %v3328 = vld [vmem:[#allocation4 + $0x61c8] sm:$0xff]
    %v3329 = vld [vmem:[#allocation4 + $0x61d0] sm:$0xff]
    %v3330 = vld [vmem:[#allocation4 + $0x61d8] sm:$0xff]
    %v3331 = vld [vmem:[#allocation4 + $0x61e0] sm:$0xff]
    %v3332 = vld [vmem:[#allocation4 + $0x61e8] sm:$0xff]
    %v3333 = vld [vmem:[#allocation4 + $0x61f0] sm:$0xff]
    %v3334 = vld [vmem:[#allocation4 + $0x61f8] sm:$0xff]
    %v3335 = vld [vmem:[#allocation4 + $0x6200] sm:$0xff]
    %v3336 = vld [vmem:[#allocation4 + $0x6208] sm:$0xff]
    %v3337 = vld [vmem:[#allocation4 + $0x6210] sm:$0xff]
    %v3338 = vld [vmem:[#allocation4 + $0x6218] sm:$0xff]
    %v3339 = vld [vmem:[#allocation4 + $0x6220] sm:$0xff]
    %v3340 = vld [vmem:[#allocation4 + $0x6228] sm:$0xff]
    %v3341 = vld [vmem:[#allocation4 + $0x6230] sm:$0xff]
    %v3342 = vld [vmem:[#allocation4 + $0x6238] sm:$0xff]
    %v3343 = vld [vmem:[#allocation4 + $0x6240] sm:$0xff]
    %v3344 = vld [vmem:[#allocation4 + $0x6248] sm:$0xff]
    %v3345 = vld [vmem:[#allocation4 + $0x6250] sm:$0xff]
    %v3346 = vld [vmem:[#allocation4 + $0x6258] sm:$0xff]
    %v3347 = vld [vmem:[#allocation4 + $0x6260] sm:$0xff]
    %v3348 = vld [vmem:[#allocation4 + $0x6268] sm:$0xff]
    %v3349 = vld [vmem:[#allocation4 + $0x6270] sm:$0xff]
    %v3350 = vld [vmem:[#allocation4 + $0x6278] sm:$0xff]
    %v3351 = vld [vmem:[#allocation4 + $0x6280] sm:$0xff]
    %v3352 = vld [vmem:[#allocation4 + $0x6288] sm:$0xff]
    %v3353 = vld [vmem:[#allocation4 + $0x6290] sm:$0xff]
    %v3354 = vld [vmem:[#allocation4 + $0x6298] sm:$0xff]
    %v3355 = vld [vmem:[#allocation4 + $0x62a0] sm:$0xff]
    %v3356 = vld [vmem:[#allocation4 + $0x62a8] sm:$0xff]
    %v3357 = vld [vmem:[#allocation4 + $0x62b0] sm:$0xff]
    %v3358 = vld [vmem:[#allocation4 + $0x62b8] sm:$0xff]
    %v3359 = vld [vmem:[#allocation4 + $0x62c0] sm:$0xff]
    %v3360 = vld [vmem:[#allocation4 + $0x62c8] sm:$0xff]
    %v3361 = vld [vmem:[#allocation4 + $0x62d0] sm:$0xff]
    %v3362 = vld [vmem:[#allocation4 + $0x62d8] sm:$0xff]
    %v3363 = vld [vmem:[#allocation4 + $0x62e0] sm:$0xff]
    %v3364 = vld [vmem:[#allocation4 + $0x62e8] sm:$0xff]
    %v3365 = vld [vmem:[#allocation4 + $0x62f0] sm:$0xff]
    %v3366 = vld [vmem:[#allocation4 + $0x62f8] sm:$0xff]
    %v3367 = vld [vmem:[#allocation4 + $0x6300] sm:$0xff]
    %v3368 = vld [vmem:[#allocation4 + $0x6308] sm:$0xff]
    %v3369 = vld [vmem:[#allocation4 + $0x6310] sm:$0xff]
    %v3370 = vld [vmem:[#allocation4 + $0x6318] sm:$0xff]
    %v3371 = vld [vmem:[#allocation4 + $0x6320] sm:$0xff]
    %v3372 = vld [vmem:[#allocation4 + $0x6328] sm:$0xff]
    %v3373 = vld [vmem:[#allocation4 + $0x6330] sm:$0xff]
    %v3374 = vld [vmem:[#allocation4 + $0x6338] sm:$0xff]
    %v3375 = vld [vmem:[#allocation4 + $0x6340] sm:$0xff]
    %v3376 = vld [vmem:[#allocation4 + $0x6348] sm:$0xff]
    %v3377 = vld [vmem:[#allocation4 + $0x6350] sm:$0xff]
    %v3378 = vld [vmem:[#allocation4 + $0x6358] sm:$0xff]
    %v3379 = vld [vmem:[#allocation4 + $0x6360] sm:$0xff]
    %v3380 = vld [vmem:[#allocation4 + $0x6368] sm:$0xff]
    %v3381 = vld [vmem:[#allocation4 + $0x6370] sm:$0xff]
    %v3382 = vld [vmem:[#allocation4 + $0x6378] sm:$0xff]
    %v3383 = vld [vmem:[#allocation4 + $0x6380] sm:$0xff]
    %v3384 = vld [vmem:[#allocation4 + $0x6388] sm:$0xff]
    %v3385 = vld [vmem:[#allocation4 + $0x6390] sm:$0xff]
    %v3386 = vld [vmem:[#allocation4 + $0x6398] sm:$0xff]
    %v3387 = vld [vmem:[#allocation4 + $0x63a0] sm:$0xff]
    %v3388 = vld [vmem:[#allocation4 + $0x63a8] sm:$0xff]
    %v3389 = vld [vmem:[#allocation4 + $0x63b0] sm:$0xff]
    %v3390 = vld [vmem:[#allocation4 + $0x63b8] sm:$0xff]
    %v3391 = vld [vmem:[#allocation4 + $0x63c0] sm:$0xff]
    %v3392 = vld [vmem:[#allocation4 + $0x63c8] sm:$0xff]
    %v3393 = vld [vmem:[#allocation4 + $0x63d0] sm:$0xff]
    %v3394 = vld [vmem:[#allocation4 + $0x63d8] sm:$0xff]
    %v3395 = vld [vmem:[#allocation4 + $0x63e0] sm:$0xff]
    %v3396 = vld [vmem:[#allocation4 + $0x63e8] sm:$0xff]
    %v3397 = vld [vmem:[#allocation4 + $0x63f0] sm:$0xff]
    %v3398 = vld [vmem:[#allocation4 + $0x63f8] sm:$0xff]
    %v3399 = vld [vmem:[#allocation4 + $0x6400] sm:$0xff]
    %v3400 = vld [vmem:[#allocation4 + $0x6408] sm:$0xff]
    %v3401 = vld [vmem:[#allocation4 + $0x6410] sm:$0xff]
    %v3402 = vld [vmem:[#allocation4 + $0x6418] sm:$0xff]
    %v3403 = vld [vmem:[#allocation4 + $0x6420] sm:$0xff]
    %v3404 = vld [vmem:[#allocation4 + $0x6428] sm:$0xff]
    %v3405 = vld [vmem:[#allocation4 + $0x6430] sm:$0xff]
    %v3406 = vld [vmem:[#allocation4 + $0x6438] sm:$0xff]
    %v3407 = vld [vmem:[#allocation4 + $0x6440] sm:$0xff]
    %v3408 = vld [vmem:[#allocation4 + $0x6448] sm:$0xff]
    %v3409 = vld [vmem:[#allocation4 + $0x6450] sm:$0xff]
    %v3410 = vld [vmem:[#allocation4 + $0x6458] sm:$0xff]
    %v3411 = vld [vmem:[#allocation4 + $0x6460] sm:$0xff]
    %v3412 = vld [vmem:[#allocation4 + $0x6468] sm:$0xff]
    %v3413 = vld [vmem:[#allocation4 + $0x6470] sm:$0xff]
    %v3414 = vld [vmem:[#allocation4 + $0x6478] sm:$0xff]
    %v3415 = vld [vmem:[#allocation4 + $0x6480] sm:$0xff]
    %v3416 = vld [vmem:[#allocation4 + $0x6488] sm:$0xff]
    %v3417 = vld [vmem:[#allocation4 + $0x6490] sm:$0xff]
    %v3418 = vld [vmem:[#allocation4 + $0x6498] sm:$0xff]
    %v3419 = vld [vmem:[#allocation4 + $0x64a0] sm:$0xff]
    %v3420 = vld [vmem:[#allocation4 + $0x64a8] sm:$0xff]
    %v3421 = vld [vmem:[#allocation4 + $0x64b0] sm:$0xff]
    %v3422 = vld [vmem:[#allocation4 + $0x64b8] sm:$0xff]
    %v3423 = vld [vmem:[#allocation4 + $0x64c0] sm:$0xff]
    %v3424 = vld [vmem:[#allocation4 + $0x64c8] sm:$0xff]
    %v3425 = vld [vmem:[#allocation4 + $0x64d0] sm:$0xff]
    %v3426 = vld [vmem:[#allocation4 + $0x64d8] sm:$0xff]
    %v3427 = vld [vmem:[#allocation4 + $0x64e0] sm:$0xff]
    %v3428 = vld [vmem:[#allocation4 + $0x64e8] sm:$0xff]
    %v3429 = vld [vmem:[#allocation4 + $0x64f0] sm:$0xff]
    %v3430 = vld [vmem:[#allocation4 + $0x64f8] sm:$0xff]
    %v3431 = vld [vmem:[#allocation4 + $0x6500] sm:$0xff]
    %v3432 = vld [vmem:[#allocation4 + $0x6508] sm:$0xff]
    %v3433 = vld [vmem:[#allocation4 + $0x6510] sm:$0xff]
    %v3434 = vld [vmem:[#allocation4 + $0x6518] sm:$0xff]
    %v3435 = vld [vmem:[#allocation4 + $0x6520] sm:$0xff]
    %v3436 = vld [vmem:[#allocation4 + $0x6528] sm:$0xff]
    %v3437 = vld [vmem:[#allocation4 + $0x6530] sm:$0xff]
    %v3438 = vld [vmem:[#allocation4 + $0x6538] sm:$0xff]
    %v3439 = vld [vmem:[#allocation4 + $0x6540] sm:$0xff]
    %v3440 = vld [vmem:[#allocation4 + $0x6548] sm:$0xff]
    %v3441 = vld [vmem:[#allocation4 + $0x6550] sm:$0xff]
    %v3442 = vld [vmem:[#allocation4 + $0x6558] sm:$0xff]
    %v3443 = vld [vmem:[#allocation4 + $0x6560] sm:$0xff]
    %v3444 = vld [vmem:[#allocation4 + $0x6568] sm:$0xff]
    %v3445 = vld [vmem:[#allocation4 + $0x6570] sm:$0xff]
    %v3446 = vld [vmem:[#allocation4 + $0x6578] sm:$0xff]
    %v3447 = vld [vmem:[#allocation4 + $0x6580] sm:$0xff]
    %v3448 = vld [vmem:[#allocation4 + $0x6588] sm:$0xff]
    %v3449 = vld [vmem:[#allocation4 + $0x6590] sm:$0xff]
    %v3450 = vld [vmem:[#allocation4 + $0x6598] sm:$0xff]
    %v3451 = vld [vmem:[#allocation4 + $0x65a0] sm:$0xff]
    %v3452 = vld [vmem:[#allocation4 + $0x65a8] sm:$0xff]
    %v3453 = vld [vmem:[#allocation4 + $0x65b0] sm:$0xff]
    %v3454 = vld [vmem:[#allocation4 + $0x65b8] sm:$0xff]
    %v3455 = vld [vmem:[#allocation4 + $0x65c0] sm:$0xff]
    %v3456 = vld [vmem:[#allocation4 + $0x65c8] sm:$0xff]
    %v3457 = vld [vmem:[#allocation4 + $0x65d0] sm:$0xff]
    %v3458 = vld [vmem:[#allocation4 + $0x65d8] sm:$0xff]
    %v3459 = vld [vmem:[#allocation4 + $0x65e0] sm:$0xff]
    %v3460 = vld [vmem:[#allocation4 + $0x65e8] sm:$0xff]
    %v3461 = vld [vmem:[#allocation4 + $0x65f0] sm:$0xff]
    %v3462 = vld [vmem:[#allocation4 + $0x65f8] sm:$0xff]
    %v3463 = vld [vmem:[#allocation4 + $0x6600] sm:$0xff]
    %v3464 = vld [vmem:[#allocation4 + $0x6608] sm:$0xff]
    %v3465 = vld [vmem:[#allocation4 + $0x6610] sm:$0xff]
    %v3466 = vld [vmem:[#allocation4 + $0x6618] sm:$0xff]
    %v3467 = vld [vmem:[#allocation4 + $0x6620] sm:$0xff]
    %v3468 = vld [vmem:[#allocation4 + $0x6628] sm:$0xff]
    %v3469 = vld [vmem:[#allocation4 + $0x6630] sm:$0xff]
    %v3470 = vld [vmem:[#allocation4 + $0x6638] sm:$0xff]
    %v3471 = vld [vmem:[#allocation4 + $0x6640] sm:$0xff]
    %v3472 = vld [vmem:[#allocation4 + $0x6648] sm:$0xff]
    %v3473 = vld [vmem:[#allocation4 + $0x6650] sm:$0xff]
    %v3474 = vld [vmem:[#allocation4 + $0x6658] sm:$0xff]
    %v3475 = vld [vmem:[#allocation4 + $0x6660] sm:$0xff]
    %v3476 = vld [vmem:[#allocation4 + $0x6668] sm:$0xff]
    %v3477 = vld [vmem:[#allocation4 + $0x6670] sm:$0xff]
    %v3478 = vld [vmem:[#allocation4 + $0x6678] sm:$0xff]
    %v3479 = vld [vmem:[#allocation4 + $0x6680] sm:$0xff]
    %v3480 = vld [vmem:[#allocation4 + $0x6688] sm:$0xff]
    %v3481 = vld [vmem:[#allocation4 + $0x6690] sm:$0xff]
    %v3482 = vld [vmem:[#allocation4 + $0x6698] sm:$0xff]
    %v3483 = vld [vmem:[#allocation4 + $0x66a0] sm:$0xff]
    %v3484 = vld [vmem:[#allocation4 + $0x66a8] sm:$0xff]
    %v3485 = vld [vmem:[#allocation4 + $0x66b0] sm:$0xff]
    %v3486 = vld [vmem:[#allocation4 + $0x66b8] sm:$0xff]
    %v3487 = vld [vmem:[#allocation4 + $0x66c0] sm:$0xff]
    %v3488 = vld [vmem:[#allocation4 + $0x66c8] sm:$0xff]
    %v3489 = vld [vmem:[#allocation4 + $0x66d0] sm:$0xff]
    %v3490 = vld [vmem:[#allocation4 + $0x66d8] sm:$0xff]
    %v3491 = vld [vmem:[#allocation4 + $0x66e0] sm:$0xff]
    %v3492 = vld [vmem:[#allocation4 + $0x66e8] sm:$0xff]
    %v3493 = vld [vmem:[#allocation4 + $0x66f0] sm:$0xff]
    %v3494 = vld [vmem:[#allocation4 + $0x66f8] sm:$0xff]
    %v3495 = vld [vmem:[#allocation4 + $0x6700] sm:$0xff]
    %v3496 = vld [vmem:[#allocation4 + $0x6708] sm:$0xff]
    %v3497 = vld [vmem:[#allocation4 + $0x6710] sm:$0xff]
    %v3498 = vld [vmem:[#allocation4 + $0x6718] sm:$0xff]
    %v3499 = vld [vmem:[#allocation4 + $0x6720] sm:$0xff]
    %v3500 = vld [vmem:[#allocation4 + $0x6728] sm:$0xff]
    %v3501 = vld [vmem:[#allocation4 + $0x6730] sm:$0xff]
    %v3502 = vld [vmem:[#allocation4 + $0x6738] sm:$0xff]
    %v3503 = vld [vmem:[#allocation4 + $0x6740] sm:$0xff]
    %v3504 = vld [vmem:[#allocation4 + $0x6748] sm:$0xff]
    %v3505 = vld [vmem:[#allocation4 + $0x6750] sm:$0xff]
    %v3506 = vld [vmem:[#allocation4 + $0x6758] sm:$0xff]
    %v3507 = vld [vmem:[#allocation4 + $0x6760] sm:$0xff]
    %v3508 = vld [vmem:[#allocation4 + $0x6768] sm:$0xff]
    %v3509 = vld [vmem:[#allocation4 + $0x6770] sm:$0xff]
    %v3510 = vld [vmem:[#allocation4 + $0x6778] sm:$0xff]
    %v3511 = vld [vmem:[#allocation4 + $0x6780] sm:$0xff]
    %v3512 = vld [vmem:[#allocation4 + $0x6788] sm:$0xff]
    %v3513 = vld [vmem:[#allocation4 + $0x6790] sm:$0xff]
    %v3514 = vld [vmem:[#allocation4 + $0x6798] sm:$0xff]
    %v3515 = vld [vmem:[#allocation4 + $0x67a0] sm:$0xff]
    %v3516 = vld [vmem:[#allocation4 + $0x67a8] sm:$0xff]
    %v3517 = vld [vmem:[#allocation4 + $0x67b0] sm:$0xff]
    %v3518 = vld [vmem:[#allocation4 + $0x67b8] sm:$0xff]
    %v3519 = vld [vmem:[#allocation4 + $0x67c0] sm:$0xff]
    %v3520 = vld [vmem:[#allocation4 + $0x67c8] sm:$0xff]
    %v3521 = vld [vmem:[#allocation4 + $0x67d0] sm:$0xff]
    %v3522 = vld [vmem:[#allocation4 + $0x67d8] sm:$0xff]
    %v3523 = vld [vmem:[#allocation4 + $0x67e0] sm:$0xff]
    %v3524 = vld [vmem:[#allocation4 + $0x67e8] sm:$0xff]
    %v3525 = vld [vmem:[#allocation4 + $0x67f0] sm:$0xff]
    %v3526 = vld [vmem:[#allocation4 + $0x67f8] sm:$0xff]
    %v3527 = vld [vmem:[#allocation4 + $0x6800] sm:$0xff]
    %v3528 = vld [vmem:[#allocation4 + $0x6808] sm:$0xff]
    %v3529 = vld [vmem:[#allocation4 + $0x6810] sm:$0xff]
    %v3530 = vld [vmem:[#allocation4 + $0x6818] sm:$0xff]
    %v3531 = vld [vmem:[#allocation4 + $0x6820] sm:$0xff]
    %v3532 = vld [vmem:[#allocation4 + $0x6828] sm:$0xff]
    %v3533 = vld [vmem:[#allocation4 + $0x6830] sm:$0xff]
    %v3534 = vld [vmem:[#allocation4 + $0x6838] sm:$0xff]
    %v3535 = vld [vmem:[#allocation4 + $0x6840] sm:$0xff]
    %v3536 = vld [vmem:[#allocation4 + $0x6848] sm:$0xff]
    %v3537 = vld [vmem:[#allocation4 + $0x6850] sm:$0xff]
    %v3538 = vld [vmem:[#allocation4 + $0x6858] sm:$0xff]
    %v3539 = vld [vmem:[#allocation4 + $0x6860] sm:$0xff]
    %v3540 = vld [vmem:[#allocation4 + $0x6868] sm:$0xff]
    %v3541 = vld [vmem:[#allocation4 + $0x6870] sm:$0xff]
    %v3542 = vld [vmem:[#allocation4 + $0x6878] sm:$0xff]
    %v3543 = vld [vmem:[#allocation4 + $0x6880] sm:$0xff]
    %v3544 = vld [vmem:[#allocation4 + $0x6888] sm:$0xff]
    %v3545 = vld [vmem:[#allocation4 + $0x6890] sm:$0xff]
    %v3546 = vld [vmem:[#allocation4 + $0x6898] sm:$0xff]
    %v3547 = vld [vmem:[#allocation4 + $0x68a0] sm:$0xff]
    %v3548 = vld [vmem:[#allocation4 + $0x68a8] sm:$0xff]
    %v3549 = vld [vmem:[#allocation4 + $0x68b0] sm:$0xff]
    %v3550 = vld [vmem:[#allocation4 + $0x68b8] sm:$0xff]
    %v3551 = vld [vmem:[#allocation4 + $0x68c0] sm:$0xff]
    %v3552 = vld [vmem:[#allocation4 + $0x68c8] sm:$0xff]
    %v3553 = vld [vmem:[#allocation4 + $0x68d0] sm:$0xff]
    %v3554 = vld [vmem:[#allocation4 + $0x68d8] sm:$0xff]
    %v3555 = vld [vmem:[#allocation4 + $0x68e0] sm:$0xff]
    %v3556 = vld [vmem:[#allocation4 + $0x68e8] sm:$0xff]
    %v3557 = vld [vmem:[#allocation4 + $0x68f0] sm:$0xff]
    %v3558 = vld [vmem:[#allocation4 + $0x68f8] sm:$0xff]
    %v3559 = vld [vmem:[#allocation4 + $0x6900] sm:$0xff]
    %v3560 = vld [vmem:[#allocation4 + $0x6908] sm:$0xff]
    %v3561 = vld [vmem:[#allocation4 + $0x6910] sm:$0xff]
    %v3562 = vld [vmem:[#allocation4 + $0x6918] sm:$0xff]
    %v3563 = vld [vmem:[#allocation4 + $0x6920] sm:$0xff]
    %v3564 = vld [vmem:[#allocation4 + $0x6928] sm:$0xff]
    %v3565 = vld [vmem:[#allocation4 + $0x6930] sm:$0xff]
    %v3566 = vld [vmem:[#allocation4 + $0x6938] sm:$0xff]
    %v3567 = vld [vmem:[#allocation4 + $0x6940] sm:$0xff]
    %v3568 = vld [vmem:[#allocation4 + $0x6948] sm:$0xff]
    %v3569 = vld [vmem:[#allocation4 + $0x6950] sm:$0xff]
    %v3570 = vld [vmem:[#allocation4 + $0x6958] sm:$0xff]
    %v3571 = vld [vmem:[#allocation4 + $0x6960] sm:$0xff]
    %v3572 = vld [vmem:[#allocation4 + $0x6968] sm:$0xff]
    %v3573 = vld [vmem:[#allocation4 + $0x6970] sm:$0xff]
    %v3574 = vld [vmem:[#allocation4 + $0x6978] sm:$0xff]
    %v3575 = vld [vmem:[#allocation4 + $0x6980] sm:$0xff]
    %v3576 = vld [vmem:[#allocation4 + $0x6988] sm:$0xff]
    %v3577 = vld [vmem:[#allocation4 + $0x6990] sm:$0xff]
    %v3578 = vld [vmem:[#allocation4 + $0x6998] sm:$0xff]
    %v3579 = vld [vmem:[#allocation4 + $0x69a0] sm:$0xff]
    %v3580 = vld [vmem:[#allocation4 + $0x69a8] sm:$0xff]
    %v3581 = vld [vmem:[#allocation4 + $0x69b0] sm:$0xff]
    %v3582 = vld [vmem:[#allocation4 + $0x69b8] sm:$0xff]
    %v3583 = vld [vmem:[#allocation4 + $0x69c0] sm:$0xff]
    %v3584 = vld [vmem:[#allocation4 + $0x69c8] sm:$0xff]
    %v3585 = vld [vmem:[#allocation4 + $0x69d0] sm:$0xff]
    %v3586 = vld [vmem:[#allocation4 + $0x69d8] sm:$0xff]
    %v3587 = vld [vmem:[#allocation4 + $0x69e0] sm:$0xff]
    %v3588 = vld [vmem:[#allocation4 + $0x69e8] sm:$0xff]
    %v3589 = vld [vmem:[#allocation4 + $0x69f0] sm:$0xff]
    %v3590 = vld [vmem:[#allocation4 + $0x69f8] sm:$0xff]
    %v3591 = vld [vmem:[#allocation4 + $0x6a00] sm:$0xff]
    %v3592 = vld [vmem:[#allocation4 + $0x6a08] sm:$0xff]
    %v3593 = vld [vmem:[#allocation4 + $0x6a10] sm:$0xff]
    %v3594 = vld [vmem:[#allocation4 + $0x6a18] sm:$0xff]
    %v3595 = vld [vmem:[#allocation4 + $0x6a20] sm:$0xff]
    %v3596 = vld [vmem:[#allocation4 + $0x6a28] sm:$0xff]
    %v3597 = vld [vmem:[#allocation4 + $0x6a30] sm:$0xff]
    %v3598 = vld [vmem:[#allocation4 + $0x6a38] sm:$0xff]
    %v3599 = vld [vmem:[#allocation4 + $0x6a40] sm:$0xff]
    %v3600 = vld [vmem:[#allocation4 + $0x6a48] sm:$0xff]
    %v3601 = vld [vmem:[#allocation4 + $0x6a50] sm:$0xff]
    %v3602 = vld [vmem:[#allocation4 + $0x6a58] sm:$0xff]
    %v3603 = vld [vmem:[#allocation4 + $0x6a60] sm:$0xff]
    %v3604 = vld [vmem:[#allocation4 + $0x6a68] sm:$0xff]
    %v3605 = vld [vmem:[#allocation4 + $0x6a70] sm:$0xff]
    %v3606 = vld [vmem:[#allocation4 + $0x6a78] sm:$0xff]
    %v3607 = vld [vmem:[#allocation4 + $0x6a80] sm:$0xff]
    %v3608 = vld [vmem:[#allocation4 + $0x6a88] sm:$0xff]
    %v3609 = vld [vmem:[#allocation4 + $0x6a90] sm:$0xff]
    %v3610 = vld [vmem:[#allocation4 + $0x6a98] sm:$0xff]
    %v3611 = vld [vmem:[#allocation4 + $0x6aa0] sm:$0xff]
    %v3612 = vld [vmem:[#allocation4 + $0x6aa8] sm:$0xff]
    %v3613 = vld [vmem:[#allocation4 + $0x6ab0] sm:$0xff]
    %v3614 = vld [vmem:[#allocation4 + $0x6ab8] sm:$0xff]
    %v3615 = vld [vmem:[#allocation4 + $0x6ac0] sm:$0xff]
    %v3616 = vld [vmem:[#allocation4 + $0x6ac8] sm:$0xff]
    %v3617 = vld [vmem:[#allocation4 + $0x6ad0] sm:$0xff]
    %v3618 = vld [vmem:[#allocation4 + $0x6ad8] sm:$0xff]
    %v3619 = vld [vmem:[#allocation4 + $0x6ae0] sm:$0xff]
    %v3620 = vld [vmem:[#allocation4 + $0x6ae8] sm:$0xff]
    %v3621 = vld [vmem:[#allocation4 + $0x6af0] sm:$0xff]
    %v3622 = vld [vmem:[#allocation4 + $0x6af8] sm:$0xff]
    %v3623 = vld [vmem:[#allocation4 + $0x6b00] sm:$0xff]
    %v3624 = vld [vmem:[#allocation4 + $0x6b08] sm:$0xff]
    %v3625 = vld [vmem:[#allocation4 + $0x6b10] sm:$0xff]
    %v3626 = vld [vmem:[#allocation4 + $0x6b18] sm:$0xff]
    %v3627 = vld [vmem:[#allocation4 + $0x6b20] sm:$0xff]
    %v3628 = vld [vmem:[#allocation4 + $0x6b28] sm:$0xff]
    %v3629 = vld [vmem:[#allocation4 + $0x6b30] sm:$0xff]
    %v3630 = vld [vmem:[#allocation4 + $0x6b38] sm:$0xff]
    %v3631 = vld [vmem:[#allocation4 + $0x6b40] sm:$0xff]
    %v3632 = vld [vmem:[#allocation4 + $0x6b48] sm:$0xff]
    %v3633 = vld [vmem:[#allocation4 + $0x6b50] sm:$0xff]
    %v3634 = vld [vmem:[#allocation4 + $0x6b58] sm:$0xff]
    %v3635 = vld [vmem:[#allocation4 + $0x6b60] sm:$0xff]
    %v3636 = vld [vmem:[#allocation4 + $0x6b68] sm:$0xff]
    %v3637 = vld [vmem:[#allocation4 + $0x6b70] sm:$0xff]
    %v3638 = vld [vmem:[#allocation4 + $0x6b78] sm:$0xff]
    %v3639 = vld [vmem:[#allocation4 + $0x6b80] sm:$0xff]
    %v3640 = vld [vmem:[#allocation4 + $0x6b88] sm:$0xff]
    %v3641 = vld [vmem:[#allocation4 + $0x6b90] sm:$0xff]
    %v3642 = vld [vmem:[#allocation4 + $0x6b98] sm:$0xff]
    %v3643 = vld [vmem:[#allocation4 + $0x6ba0] sm:$0xff]
    %v3644 = vld [vmem:[#allocation4 + $0x6ba8] sm:$0xff]
    %v3645 = vld [vmem:[#allocation4 + $0x6bb0] sm:$0xff]
    %v3646 = vld [vmem:[#allocation4 + $0x6bb8] sm:$0xff]
    %v3647 = vld [vmem:[#allocation4 + $0x6bc0] sm:$0xff]
    %v3648 = vld [vmem:[#allocation4 + $0x6bc8] sm:$0xff]
    %v3649 = vld [vmem:[#allocation4 + $0x6bd0] sm:$0xff]
    %v3650 = vld [vmem:[#allocation4 + $0x6bd8] sm:$0xff]
    %v3651 = vld [vmem:[#allocation4 + $0x6be0] sm:$0xff]
    %v3652 = vld [vmem:[#allocation4 + $0x6be8] sm:$0xff]
    %v3653 = vld [vmem:[#allocation4 + $0x6bf0] sm:$0xff]
    %v3654 = vld [vmem:[#allocation4 + $0x6bf8] sm:$0xff]
    %v3655 = vld [vmem:[#allocation4 + $0x6c00] sm:$0xff]
    %v3656 = vld [vmem:[#allocation4 + $0x6c08] sm:$0xff]
    %v3657 = vld [vmem:[#allocation4 + $0x6c10] sm:$0xff]
    %v3658 = vld [vmem:[#allocation4 + $0x6c18] sm:$0xff]
    %v3659 = vld [vmem:[#allocation4 + $0x6c20] sm:$0xff]
    %v3660 = vld [vmem:[#allocation4 + $0x6c28] sm:$0xff]
    %v3661 = vld [vmem:[#allocation4 + $0x6c30] sm:$0xff]
    %v3662 = vld [vmem:[#allocation4 + $0x6c38] sm:$0xff]
    %v3663 = vld [vmem:[#allocation4 + $0x6c40] sm:$0xff]
    %v3664 = vld [vmem:[#allocation4 + $0x6c48] sm:$0xff]
    %v3665 = vld [vmem:[#allocation4 + $0x6c50] sm:$0xff]
    %v3666 = vld [vmem:[#allocation4 + $0x6c58] sm:$0xff]
    %v3667 = vld [vmem:[#allocation4 + $0x6c60] sm:$0xff]
    %v3668 = vld [vmem:[#allocation4 + $0x6c68] sm:$0xff]
    %v3669 = vld [vmem:[#allocation4 + $0x6c70] sm:$0xff]
    %v3670 = vld [vmem:[#allocation4 + $0x6c78] sm:$0xff]
    %v3671 = vld [vmem:[#allocation4 + $0x6c80] sm:$0xff]
    %v3672 = vld [vmem:[#allocation4 + $0x6c88] sm:$0xff]
    %v3673 = vld [vmem:[#allocation4 + $0x6c90] sm:$0xff]
    %v3674 = vld [vmem:[#allocation4 + $0x6c98] sm:$0xff]
    %v3675 = vld [vmem:[#allocation4 + $0x6ca0] sm:$0xff]
    %v3676 = vld [vmem:[#allocation4 + $0x6ca8] sm:$0xff]
    %v3677 = vld [vmem:[#allocation4 + $0x6cb0] sm:$0xff]
    %v3678 = vld [vmem:[#allocation4 + $0x6cb8] sm:$0xff]
    %v3679 = vld [vmem:[#allocation4 + $0x6cc0] sm:$0xff]
    %v3680 = vld [vmem:[#allocation4 + $0x6cc8] sm:$0xff]
    %v3681 = vld [vmem:[#allocation4 + $0x6cd0] sm:$0xff]
    %v3682 = vld [vmem:[#allocation4 + $0x6cd8] sm:$0xff]
    %v3683 = vld [vmem:[#allocation4 + $0x6ce0] sm:$0xff]
    %v3684 = vld [vmem:[#allocation4 + $0x6ce8] sm:$0xff]
    %v3685 = vld [vmem:[#allocation4 + $0x6cf0] sm:$0xff]
    %v3686 = vld [vmem:[#allocation4 + $0x6cf8] sm:$0xff]
    %v3687 = vld [vmem:[#allocation4 + $0x6d00] sm:$0xff]
    %v3688 = vld [vmem:[#allocation4 + $0x6d08] sm:$0xff]
    %v3689 = vld [vmem:[#allocation4 + $0x6d10] sm:$0xff]
    %v3690 = vld [vmem:[#allocation4 + $0x6d18] sm:$0xff]
    %v3691 = vld [vmem:[#allocation4 + $0x6d20] sm:$0xff]
    %v3692 = vld [vmem:[#allocation4 + $0x6d28] sm:$0xff]
    %v3693 = vld [vmem:[#allocation4 + $0x6d30] sm:$0xff]
    %v3694 = vld [vmem:[#allocation4 + $0x6d38] sm:$0xff]
    %v3695 = vld [vmem:[#allocation4 + $0x6d40] sm:$0xff]
    %v3696 = vld [vmem:[#allocation4 + $0x6d48] sm:$0xff]
    %v3697 = vld [vmem:[#allocation4 + $0x6d50] sm:$0xff]
    %v3698 = vld [vmem:[#allocation4 + $0x6d58] sm:$0xff]
    %v3699 = vld [vmem:[#allocation4 + $0x6d60] sm:$0xff]
    %v3700 = vld [vmem:[#allocation4 + $0x6d68] sm:$0xff]
    %v3701 = vld [vmem:[#allocation4 + $0x6d70] sm:$0xff]
    %v3702 = vld [vmem:[#allocation4 + $0x6d78] sm:$0xff]
    %v3703 = vld [vmem:[#allocation4 + $0x6d80] sm:$0xff]
    %v3704 = vld [vmem:[#allocation4 + $0x6d88] sm:$0xff]
    %v3705 = vld [vmem:[#allocation4 + $0x6d90] sm:$0xff]
    %v3706 = vld [vmem:[#allocation4 + $0x6d98] sm:$0xff]
    %v3707 = vld [vmem:[#allocation4 + $0x6da0] sm:$0xff]
    %v3708 = vld [vmem:[#allocation4 + $0x6da8] sm:$0xff]
    %v3709 = vld [vmem:[#allocation4 + $0x6db0] sm:$0xff]
    %v3710 = vld [vmem:[#allocation4 + $0x6db8] sm:$0xff]
    %v3711 = vld [vmem:[#allocation4 + $0x6dc0] sm:$0xff]
    %v3712 = vld [vmem:[#allocation4 + $0x6dc8] sm:$0xff]
    %v3713 = vld [vmem:[#allocation4 + $0x6dd0] sm:$0xff]
    %v3714 = vld [vmem:[#allocation4 + $0x6dd8] sm:$0xff]
    %v3715 = vld [vmem:[#allocation4 + $0x6de0] sm:$0xff]
    %v3716 = vld [vmem:[#allocation4 + $0x6de8] sm:$0xff]
    %v3717 = vld [vmem:[#allocation4 + $0x6df0] sm:$0xff]
    %v3718 = vld [vmem:[#allocation4 + $0x6df8] sm:$0xff]
    %v3719 = vld [vmem:[#allocation4 + $0x6e00] sm:$0xff]
    %v3720 = vld [vmem:[#allocation4 + $0x6e08] sm:$0xff]
    %v3721 = vld [vmem:[#allocation4 + $0x6e10] sm:$0xff]
    %v3722 = vld [vmem:[#allocation4 + $0x6e18] sm:$0xff]
    %v3723 = vld [vmem:[#allocation4 + $0x6e20] sm:$0xff]
    %v3724 = vld [vmem:[#allocation4 + $0x6e28] sm:$0xff]
    %v3725 = vld [vmem:[#allocation4 + $0x6e30] sm:$0xff]
    %v3726 = vld [vmem:[#allocation4 + $0x6e38] sm:$0xff]
    %v3727 = vld [vmem:[#allocation4 + $0x6e40] sm:$0xff]
    %v3728 = vld [vmem:[#allocation4 + $0x6e48] sm:$0xff]
    %v3729 = vld [vmem:[#allocation4 + $0x6e50] sm:$0xff]
    %v3730 = vld [vmem:[#allocation4 + $0x6e58] sm:$0xff]
    %v3731 = vld [vmem:[#allocation4 + $0x6e60] sm:$0xff]
    %v3732 = vld [vmem:[#allocation4 + $0x6e68] sm:$0xff]
    %v3733 = vld [vmem:[#allocation4 + $0x6e70] sm:$0xff]
    %v3734 = vld [vmem:[#allocation4 + $0x6e78] sm:$0xff]
    %v3735 = vld [vmem:[#allocation4 + $0x6e80] sm:$0xff]
    %v3736 = vld [vmem:[#allocation4 + $0x6e88] sm:$0xff]
    %v3737 = vld [vmem:[#allocation4 + $0x6e90] sm:$0xff]
    %v3738 = vld [vmem:[#allocation4 + $0x6e98] sm:$0xff]
    %v3739 = vld [vmem:[#allocation4 + $0x6ea0] sm:$0xff]
    %v3740 = vld [vmem:[#allocation4 + $0x6ea8] sm:$0xff]
    %v3741 = vld [vmem:[#allocation4 + $0x6eb0] sm:$0xff]
    %v3742 = vld [vmem:[#allocation4 + $0x6eb8] sm:$0xff]
    %v3743 = vld [vmem:[#allocation4 + $0x6ec0] sm:$0xff]
    %v3744 = vld [vmem:[#allocation4 + $0x6ec8] sm:$0xff]
    %v3745 = vld [vmem:[#allocation4 + $0x6ed0] sm:$0xff]
    %v3746 = vld [vmem:[#allocation4 + $0x6ed8] sm:$0xff]
    %v3747 = vld [vmem:[#allocation4 + $0x6ee0] sm:$0xff]
    %v3748 = vld [vmem:[#allocation4 + $0x6ee8] sm:$0xff]
    %v3749 = vld [vmem:[#allocation4 + $0x6ef0] sm:$0xff]
    %v3750 = vld [vmem:[#allocation4 + $0x6ef8] sm:$0xff]
    %v3751 = vld [vmem:[#allocation4 + $0x6f00] sm:$0xff]
    %v3752 = vld [vmem:[#allocation4 + $0x6f08] sm:$0xff]
    %v3753 = vld [vmem:[#allocation4 + $0x6f10] sm:$0xff]
    %v3754 = vld [vmem:[#allocation4 + $0x6f18] sm:$0xff]
    %v3755 = vld [vmem:[#allocation4 + $0x6f20] sm:$0xff]
    %v3756 = vld [vmem:[#allocation4 + $0x6f28] sm:$0xff]
    %v3757 = vld [vmem:[#allocation4 + $0x6f30] sm:$0xff]
    %v3758 = vld [vmem:[#allocation4 + $0x6f38] sm:$0xff]
    %v3759 = vld [vmem:[#allocation4 + $0x6f40] sm:$0xff]
    %v3760 = vld [vmem:[#allocation4 + $0x6f48] sm:$0xff]
    %v3761 = vld [vmem:[#allocation4 + $0x6f50] sm:$0xff]
    %v3762 = vld [vmem:[#allocation4 + $0x6f58] sm:$0xff]
    %v3763 = vld [vmem:[#allocation4 + $0x6f60] sm:$0xff]
    %v3764 = vld [vmem:[#allocation4 + $0x6f68] sm:$0xff]
    %v3765 = vld [vmem:[#allocation4 + $0x6f70] sm:$0xff]
    %v3766 = vld [vmem:[#allocation4 + $0x6f78] sm:$0xff]
    %v3767 = vld [vmem:[#allocation4 + $0x6f80] sm:$0xff]
    %v3768 = vld [vmem:[#allocation4 + $0x6f88] sm:$0xff]
    %v3769 = vld [vmem:[#allocation4 + $0x6f90] sm:$0xff]
    %v3770 = vld [vmem:[#allocation4 + $0x6f98] sm:$0xff]
    %v3771 = vld [vmem:[#allocation4 + $0x6fa0] sm:$0xff]
    %v3772 = vld [vmem:[#allocation4 + $0x6fa8] sm:$0xff]
    %v3773 = vld [vmem:[#allocation4 + $0x6fb0] sm:$0xff]
    %v3774 = vld [vmem:[#allocation4 + $0x6fb8] sm:$0xff]
    %v3775 = vld [vmem:[#allocation4 + $0x6fc0] sm:$0xff]
    %v3776 = vld [vmem:[#allocation4 + $0x6fc8] sm:$0xff]
    %v3777 = vld [vmem:[#allocation4 + $0x6fd0] sm:$0xff]
    %v3778 = vld [vmem:[#allocation4 + $0x6fd8] sm:$0xff]
    %v3779 = vld [vmem:[#allocation4 + $0x6fe0] sm:$0xff]
    %v3780 = vld [vmem:[#allocation4 + $0x6fe8] sm:$0xff]
    %v3781 = vld [vmem:[#allocation4 + $0x6ff0] sm:$0xff]
    %v3782 = vld [vmem:[#allocation4 + $0x6ff8] sm:$0xff]
    %v3783 = vld [vmem:[#allocation4 + $0x7000] sm:$0xff]
    %v3784 = vld [vmem:[#allocation4 + $0x7008] sm:$0xff]
    %v3785 = vld [vmem:[#allocation4 + $0x7010] sm:$0xff]
    %v3786 = vld [vmem:[#allocation4 + $0x7018] sm:$0xff]
    %v3787 = vld [vmem:[#allocation4 + $0x7020] sm:$0xff]
    %v3788 = vld [vmem:[#allocation4 + $0x7028] sm:$0xff]
    %v3789 = vld [vmem:[#allocation4 + $0x7030] sm:$0xff]
    %v3790 = vld [vmem:[#allocation4 + $0x7038] sm:$0xff]
    %v3791 = vld [vmem:[#allocation4 + $0x7040] sm:$0xff]
    %v3792 = vld [vmem:[#allocation4 + $0x7048] sm:$0xff]
    %v3793 = vld [vmem:[#allocation4 + $0x7050] sm:$0xff]
    %v3794 = vld [vmem:[#allocation4 + $0x7058] sm:$0xff]
    %v3795 = vld [vmem:[#allocation4 + $0x7060] sm:$0xff]
    %v3796 = vld [vmem:[#allocation4 + $0x7068] sm:$0xff]
    %v3797 = vld [vmem:[#allocation4 + $0x7070] sm:$0xff]
    %v3798 = vld [vmem:[#allocation4 + $0x7078] sm:$0xff]
    %v3799 = vld [vmem:[#allocation4 + $0x7080] sm:$0xff]
    %v3800 = vld [vmem:[#allocation4 + $0x7088] sm:$0xff]
    %v3801 = vld [vmem:[#allocation4 + $0x7090] sm:$0xff]
    %v3802 = vld [vmem:[#allocation4 + $0x7098] sm:$0xff]
    %v3803 = vld [vmem:[#allocation4 + $0x70a0] sm:$0xff]
    %v3804 = vld [vmem:[#allocation4 + $0x70a8] sm:$0xff]
    %v3805 = vld [vmem:[#allocation4 + $0x70b0] sm:$0xff]
    %v3806 = vld [vmem:[#allocation4 + $0x70b8] sm:$0xff]
    %v3807 = vld [vmem:[#allocation4 + $0x70c0] sm:$0xff]
    %v3808 = vld [vmem:[#allocation4 + $0x70c8] sm:$0xff]
    %v3809 = vld [vmem:[#allocation4 + $0x70d0] sm:$0xff]
    %v3810 = vld [vmem:[#allocation4 + $0x70d8] sm:$0xff]
    %v3811 = vld [vmem:[#allocation4 + $0x70e0] sm:$0xff]
    %v3812 = vld [vmem:[#allocation4 + $0x70e8] sm:$0xff]
    %v3813 = vld [vmem:[#allocation4 + $0x70f0] sm:$0xff]
    %v3814 = vld [vmem:[#allocation4 + $0x70f8] sm:$0xff]
    %v3815 = vld [vmem:[#allocation4 + $0x7100] sm:$0xff]
    %v3816 = vld [vmem:[#allocation4 + $0x7108] sm:$0xff]
    %v3817 = vld [vmem:[#allocation4 + $0x7110] sm:$0xff]
    %v3818 = vld [vmem:[#allocation4 + $0x7118] sm:$0xff]
    %v3819 = vld [vmem:[#allocation4 + $0x7120] sm:$0xff]
    %v3820 = vld [vmem:[#allocation4 + $0x7128] sm:$0xff]
    %v3821 = vld [vmem:[#allocation4 + $0x7130] sm:$0xff]
    %v3822 = vld [vmem:[#allocation4 + $0x7138] sm:$0xff]
    %v3823 = vld [vmem:[#allocation4 + $0x7140] sm:$0xff]
    %v3824 = vld [vmem:[#allocation4 + $0x7148] sm:$0xff]
    %v3825 = vld [vmem:[#allocation4 + $0x7150] sm:$0xff]
    %v3826 = vld [vmem:[#allocation4 + $0x7158] sm:$0xff]
    %v3827 = vld [vmem:[#allocation4 + $0x7160] sm:$0xff]
    %v3828 = vld [vmem:[#allocation4 + $0x7168] sm:$0xff]
    %v3829 = vld [vmem:[#allocation4 + $0x7170] sm:$0xff]
    %v3830 = vld [vmem:[#allocation4 + $0x7178] sm:$0xff]
    %v3831 = vld [vmem:[#allocation4 + $0x7180] sm:$0xff]
    %v3832 = vld [vmem:[#allocation4 + $0x7188] sm:$0xff]
    %v3833 = vld [vmem:[#allocation4 + $0x7190] sm:$0xff]
    %v3834 = vld [vmem:[#allocation4 + $0x7198] sm:$0xff]
    %v3835 = vld [vmem:[#allocation4 + $0x71a0] sm:$0xff]
    %v3836 = vld [vmem:[#allocation4 + $0x71a8] sm:$0xff]
    %v3837 = vld [vmem:[#allocation4 + $0x71b0] sm:$0xff]
    %v3838 = vld [vmem:[#allocation4 + $0x71b8] sm:$0xff]
    %v3839 = vld [vmem:[#allocation4 + $0x71c0] sm:$0xff]
    %v3840 = vld [vmem:[#allocation4 + $0x71c8] sm:$0xff]
    %v3841 = vld [vmem:[#allocation4 + $0x71d0] sm:$0xff]
    %v3842 = vld [vmem:[#allocation4 + $0x71d8] sm:$0xff]
    %v3843 = vld [vmem:[#allocation4 + $0x71e0] sm:$0xff]
    %v3844 = vld [vmem:[#allocation4 + $0x71e8] sm:$0xff]
    %v3845 = vld [vmem:[#allocation4 + $0x71f0] sm:$0xff]
    %v3846 = vld [vmem:[#allocation4 + $0x71f8] sm:$0xff]
    %v3847 = vld [vmem:[#allocation4 + $0x7200] sm:$0xff]
    %v3848 = vld [vmem:[#allocation4 + $0x7208] sm:$0xff]
    %v3849 = vld [vmem:[#allocation4 + $0x7210] sm:$0xff]
    %v3850 = vld [vmem:[#allocation4 + $0x7218] sm:$0xff]
    %v3851 = vld [vmem:[#allocation4 + $0x7220] sm:$0xff]
    %v3852 = vld [vmem:[#allocation4 + $0x7228] sm:$0xff]
    %v3853 = vld [vmem:[#allocation4 + $0x7230] sm:$0xff]
    %v3854 = vld [vmem:[#allocation4 + $0x7238] sm:$0xff]
    %v3855 = vld [vmem:[#allocation4 + $0x7240] sm:$0xff]
    %v3856 = vld [vmem:[#allocation4 + $0x7248] sm:$0xff]
    %v3857 = vld [vmem:[#allocation4 + $0x7250] sm:$0xff]
    %v3858 = vld [vmem:[#allocation4 + $0x7258] sm:$0xff]
    %v3859 = vld [vmem:[#allocation4 + $0x7260] sm:$0xff]
    %v3860 = vld [vmem:[#allocation4 + $0x7268] sm:$0xff]
    %v3861 = vld [vmem:[#allocation4 + $0x7270] sm:$0xff]
    %v3862 = vld [vmem:[#allocation4 + $0x7278] sm:$0xff]
    %v3863 = vld [vmem:[#allocation4 + $0x7280] sm:$0xff]
    %v3864 = vld [vmem:[#allocation4 + $0x7288] sm:$0xff]
    %v3865 = vld [vmem:[#allocation4 + $0x7290] sm:$0xff]
    %v3866 = vld [vmem:[#allocation4 + $0x7298] sm:$0xff]
    %v3867 = vld [vmem:[#allocation4 + $0x72a0] sm:$0xff]
    %v3868 = vld [vmem:[#allocation4 + $0x72a8] sm:$0xff]
    %v3869 = vld [vmem:[#allocation4 + $0x72b0] sm:$0xff]
    %v3870 = vld [vmem:[#allocation4 + $0x72b8] sm:$0xff]
    %v3871 = vld [vmem:[#allocation4 + $0x72c0] sm:$0xff]
    %v3872 = vld [vmem:[#allocation4 + $0x72c8] sm:$0xff]
    %v3873 = vld [vmem:[#allocation4 + $0x72d0] sm:$0xff]
    %v3874 = vld [vmem:[#allocation4 + $0x72d8] sm:$0xff]
    %v3875 = vld [vmem:[#allocation4 + $0x72e0] sm:$0xff]
    %v3876 = vld [vmem:[#allocation4 + $0x72e8] sm:$0xff]
    %v3877 = vld [vmem:[#allocation4 + $0x72f0] sm:$0xff]
    %v3878 = vld [vmem:[#allocation4 + $0x72f8] sm:$0xff]
    %v3879 = vld [vmem:[#allocation4 + $0x7300] sm:$0xff]
    %v3880 = vld [vmem:[#allocation4 + $0x7308] sm:$0xff]
    %v3881 = vld [vmem:[#allocation4 + $0x7310] sm:$0xff]
    %v3882 = vld [vmem:[#allocation4 + $0x7318] sm:$0xff]
    %v3883 = vld [vmem:[#allocation4 + $0x7320] sm:$0xff]
    %v3884 = vld [vmem:[#allocation4 + $0x7328] sm:$0xff]
    %v3885 = vld [vmem:[#allocation4 + $0x7330] sm:$0xff]
    %v3886 = vld [vmem:[#allocation4 + $0x7338] sm:$0xff]
    %v3887 = vld [vmem:[#allocation4 + $0x7340] sm:$0xff]
    %v3888 = vld [vmem:[#allocation4 + $0x7348] sm:$0xff]
    %v3889 = vld [vmem:[#allocation4 + $0x7350] sm:$0xff]
    %v3890 = vld [vmem:[#allocation4 + $0x7358] sm:$0xff]
    %v3891 = vld [vmem:[#allocation4 + $0x7360] sm:$0xff]
    %v3892 = vld [vmem:[#allocation4 + $0x7368] sm:$0xff]
    %v3893 = vld [vmem:[#allocation4 + $0x7370] sm:$0xff]
    %v3894 = vld [vmem:[#allocation4 + $0x7378] sm:$0xff]
    %v3895 = vld [vmem:[#allocation4 + $0x7380] sm:$0xff]
    %v3896 = vld [vmem:[#allocation4 + $0x7388] sm:$0xff]
    %v3897 = vld [vmem:[#allocation4 + $0x7390] sm:$0xff]
    %v3898 = vld [vmem:[#allocation4 + $0x7398] sm:$0xff]
    %v3899 = vld [vmem:[#allocation4 + $0x73a0] sm:$0xff]
    %v3900 = vld [vmem:[#allocation4 + $0x73a8] sm:$0xff]
    %v3901 = vld [vmem:[#allocation4 + $0x73b0] sm:$0xff]
    %v3902 = vld [vmem:[#allocation4 + $0x73b8] sm:$0xff]
    %v3903 = vld [vmem:[#allocation4 + $0x73c0] sm:$0xff]
    %v3904 = vld [vmem:[#allocation4 + $0x73c8] sm:$0xff]
    %v3905 = vld [vmem:[#allocation4 + $0x73d0] sm:$0xff]
    %v3906 = vld [vmem:[#allocation4 + $0x73d8] sm:$0xff]
    %v3907 = vld [vmem:[#allocation4 + $0x73e0] sm:$0xff]
    %v3908 = vld [vmem:[#allocation4 + $0x73e8] sm:$0xff]
    %v3909 = vld [vmem:[#allocation4 + $0x73f0] sm:$0xff]
    %v3910 = vld [vmem:[#allocation4 + $0x73f8] sm:$0xff]
    %v3911 = vld [vmem:[#allocation4 + $0x7400] sm:$0xff]
    %v3912 = vld [vmem:[#allocation4 + $0x7408] sm:$0xff]
    %v3913 = vld [vmem:[#allocation4 + $0x7410] sm:$0xff]
    %v3914 = vld [vmem:[#allocation4 + $0x7418] sm:$0xff]
    %v3915 = vld [vmem:[#allocation4 + $0x7420] sm:$0xff]
    %v3916 = vld [vmem:[#allocation4 + $0x7428] sm:$0xff]
    %v3917 = vld [vmem:[#allocation4 + $0x7430] sm:$0xff]
    %v3918 = vld [vmem:[#allocation4 + $0x7438] sm:$0xff]
    %v3919 = vld [vmem:[#allocation4 + $0x7440] sm:$0xff]
    %v3920 = vld [vmem:[#allocation4 + $0x7448] sm:$0xff]
    %v3921 = vld [vmem:[#allocation4 + $0x7450] sm:$0xff]
    %v3922 = vld [vmem:[#allocation4 + $0x7458] sm:$0xff]
    %v3923 = vld [vmem:[#allocation4 + $0x7460] sm:$0xff]
    %v3924 = vld [vmem:[#allocation4 + $0x7468] sm:$0xff]
    %v3925 = vld [vmem:[#allocation4 + $0x7470] sm:$0xff]
    %v3926 = vld [vmem:[#allocation4 + $0x7478] sm:$0xff]
    %v3927 = vld [vmem:[#allocation4 + $0x7480] sm:$0xff]
    %v3928 = vld [vmem:[#allocation4 + $0x7488] sm:$0xff]
    %v3929 = vld [vmem:[#allocation4 + $0x7490] sm:$0xff]
    %v3930 = vld [vmem:[#allocation4 + $0x7498] sm:$0xff]
    %v3931 = vld [vmem:[#allocation4 + $0x74a0] sm:$0xff]
    %v3932 = vld [vmem:[#allocation4 + $0x74a8] sm:$0xff]
    %v3933 = vld [vmem:[#allocation4 + $0x74b0] sm:$0xff]
    %v3934 = vld [vmem:[#allocation4 + $0x74b8] sm:$0xff]
    %v3935 = vld [vmem:[#allocation4 + $0x74c0] sm:$0xff]
    %v3936 = vld [vmem:[#allocation4 + $0x74c8] sm:$0xff]
    %v3937 = vld [vmem:[#allocation4 + $0x74d0] sm:$0xff]
    %v3938 = vld [vmem:[#allocation4 + $0x74d8] sm:$0xff]
    %v3939 = vld [vmem:[#allocation4 + $0x74e0] sm:$0xff]
    %v3940 = vld [vmem:[#allocation4 + $0x74e8] sm:$0xff]
    %v3941 = vld [vmem:[#allocation4 + $0x74f0] sm:$0xff]
    %v3942 = vld [vmem:[#allocation4 + $0x74f8] sm:$0xff]
    %v3943 = vld [vmem:[#allocation4 + $0x7500] sm:$0xff]
    %v3944 = vld [vmem:[#allocation4 + $0x7508] sm:$0xff]
    %v3945 = vld [vmem:[#allocation4 + $0x7510] sm:$0xff]
    %v3946 = vld [vmem:[#allocation4 + $0x7518] sm:$0xff]
    %v3947 = vld [vmem:[#allocation4 + $0x7520] sm:$0xff]
    %v3948 = vld [vmem:[#allocation4 + $0x7528] sm:$0xff]
    %v3949 = vld [vmem:[#allocation4 + $0x7530] sm:$0xff]
    %v3950 = vld [vmem:[#allocation4 + $0x7538] sm:$0xff]
    %v3951 = vld [vmem:[#allocation4 + $0x7540] sm:$0xff]
    %v3952 = vld [vmem:[#allocation4 + $0x7548] sm:$0xff]
    %v3953 = vld [vmem:[#allocation4 + $0x7550] sm:$0xff]
    %v3954 = vld [vmem:[#allocation4 + $0x7558] sm:$0xff]
    %v3955 = vld [vmem:[#allocation4 + $0x7560] sm:$0xff]
    %v3956 = vld [vmem:[#allocation4 + $0x7568] sm:$0xff]
    %v3957 = vld [vmem:[#allocation4 + $0x7570] sm:$0xff]
    %v3958 = vld [vmem:[#allocation4 + $0x7578] sm:$0xff]
    %v3959 = vld [vmem:[#allocation4 + $0x7580] sm:$0xff]
    %v3960 = vld [vmem:[#allocation4 + $0x7588] sm:$0xff]
    %v3961 = vld [vmem:[#allocation4 + $0x7590] sm:$0xff]
    %v3962 = vld [vmem:[#allocation4 + $0x7598] sm:$0xff]
    %v3963 = vld [vmem:[#allocation4 + $0x75a0] sm:$0xff]
    %v3964 = vld [vmem:[#allocation4 + $0x75a8] sm:$0xff]
    %v3965 = vld [vmem:[#allocation4 + $0x75b0] sm:$0xff]
    %v3966 = vld [vmem:[#allocation4 + $0x75b8] sm:$0xff]
    %v3967 = vld [vmem:[#allocation4 + $0x75c0] sm:$0xff]
    %v3968 = vld [vmem:[#allocation4 + $0x75c8] sm:$0xff]
    %v3969 = vld [vmem:[#allocation4 + $0x75d0] sm:$0xff]
    %v3970 = vld [vmem:[#allocation4 + $0x75d8] sm:$0xff]
    %v3971 = vld [vmem:[#allocation4 + $0x75e0] sm:$0xff]
    %v3972 = vld [vmem:[#allocation4 + $0x75e8] sm:$0xff]
    %v3973 = vld [vmem:[#allocation4 + $0x75f0] sm:$0xff]
    %v3974 = vld [vmem:[#allocation4 + $0x75f8] sm:$0xff]
    %v3975 = vld [vmem:[#allocation4 + $0x7600] sm:$0xff]
    %v3976 = vld [vmem:[#allocation4 + $0x7608] sm:$0xff]
    %v3977 = vld [vmem:[#allocation4 + $0x7610] sm:$0xff]
    %v3978 = vld [vmem:[#allocation4 + $0x7618] sm:$0xff]
    %v3979 = vld [vmem:[#allocation4 + $0x7620] sm:$0xff]
    %v3980 = vld [vmem:[#allocation4 + $0x7628] sm:$0xff]
    %v3981 = vld [vmem:[#allocation4 + $0x7630] sm:$0xff]
    %v3982 = vld [vmem:[#allocation4 + $0x7638] sm:$0xff]
    %v3983 = vld [vmem:[#allocation4 + $0x7640] sm:$0xff]
    %v3984 = vld [vmem:[#allocation4 + $0x7648] sm:$0xff]
    %v3985 = vld [vmem:[#allocation4 + $0x7650] sm:$0xff]
    %v3986 = vld [vmem:[#allocation4 + $0x7658] sm:$0xff]
    %v3987 = vld [vmem:[#allocation4 + $0x7660] sm:$0xff]
    %v3988 = vld [vmem:[#allocation4 + $0x7668] sm:$0xff]
    %v3989 = vld [vmem:[#allocation4 + $0x7670] sm:$0xff]
    %v3990 = vld [vmem:[#allocation4 + $0x7678] sm:$0xff]
    %v3991 = vld [vmem:[#allocation4 + $0x7680] sm:$0xff]
    %v3992 = vld [vmem:[#allocation4 + $0x7688] sm:$0xff]
    %v3993 = vld [vmem:[#allocation4 + $0x7690] sm:$0xff]
    %v3994 = vld [vmem:[#allocation4 + $0x7698] sm:$0xff]
    %v3995 = vld [vmem:[#allocation4 + $0x76a0] sm:$0xff]
    %v3996 = vld [vmem:[#allocation4 + $0x76a8] sm:$0xff]
    %v3997 = vld [vmem:[#allocation4 + $0x76b0] sm:$0xff]
    %v3998 = vld [vmem:[#allocation4 + $0x76b8] sm:$0xff]
    %v3999 = vld [vmem:[#allocation4 + $0x76c0] sm:$0xff]
    %v4000 = vld [vmem:[#allocation4 + $0x76c8] sm:$0xff]
    %v4001 = vld [vmem:[#allocation4 + $0x76d0] sm:$0xff]
    %v4002 = vld [vmem:[#allocation4 + $0x76d8] sm:$0xff]
    %v4003 = vld [vmem:[#allocation4 + $0x76e0] sm:$0xff]
    %v4004 = vld [vmem:[#allocation4 + $0x76e8] sm:$0xff]
    %v4005 = vld [vmem:[#allocation4 + $0x76f0] sm:$0xff]
    %v4006 = vld [vmem:[#allocation4 + $0x76f8] sm:$0xff]
    %v4007 = vld [vmem:[#allocation4 + $0x7700] sm:$0xff]
    %v4008 = vld [vmem:[#allocation4 + $0x7708] sm:$0xff]
    %v4009 = vld [vmem:[#allocation4 + $0x7710] sm:$0xff]
    %v4010 = vld [vmem:[#allocation4 + $0x7718] sm:$0xff]
    %v4011 = vld [vmem:[#allocation4 + $0x7720] sm:$0xff]
    %v4012 = vld [vmem:[#allocation4 + $0x7728] sm:$0xff]
    %v4013 = vld [vmem:[#allocation4 + $0x7730] sm:$0xff]
    %v4014 = vld [vmem:[#allocation4 + $0x7738] sm:$0xff]
    %v4015 = vld [vmem:[#allocation4 + $0x7740] sm:$0xff]
    %v4016 = vld [vmem:[#allocation4 + $0x7748] sm:$0xff]
    %v4017 = vld [vmem:[#allocation4 + $0x7750] sm:$0xff]
    %v4018 = vld [vmem:[#allocation4 + $0x7758] sm:$0xff]
    %v4019 = vld [vmem:[#allocation4 + $0x7760] sm:$0xff]
    %v4020 = vld [vmem:[#allocation4 + $0x7768] sm:$0xff]
    %v4021 = vld [vmem:[#allocation4 + $0x7770] sm:$0xff]
    %v4022 = vld [vmem:[#allocation4 + $0x7778] sm:$0xff]
    %v4023 = vld [vmem:[#allocation4 + $0x7780] sm:$0xff]
    %v4024 = vld [vmem:[#allocation4 + $0x7788] sm:$0xff]
    %v4025 = vld [vmem:[#allocation4 + $0x7790] sm:$0xff]
    %v4026 = vld [vmem:[#allocation4 + $0x7798] sm:$0xff]
    %v4027 = vld [vmem:[#allocation4 + $0x77a0] sm:$0xff]
    %v4028 = vld [vmem:[#allocation4 + $0x77a8] sm:$0xff]
    %v4029 = vld [vmem:[#allocation4 + $0x77b0] sm:$0xff]
    %v4030 = vld [vmem:[#allocation4 + $0x77b8] sm:$0xff]
    %v4031 = vld [vmem:[#allocation4 + $0x77c0] sm:$0xff]
    %v4032 = vld [vmem:[#allocation4 + $0x77c8] sm:$0xff]
    %v4033 = vld [vmem:[#allocation4 + $0x77d0] sm:$0xff]
    %v4034 = vld [vmem:[#allocation4 + $0x77d8] sm:$0xff]
    %v4035 = vld [vmem:[#allocation4 + $0x77e0] sm:$0xff]
    %v4036 = vld [vmem:[#allocation4 + $0x77e8] sm:$0xff]
    %v4037 = vld [vmem:[#allocation4 + $0x77f0] sm:$0xff]
    %v4038 = vld [vmem:[#allocation4 + $0x77f8] sm:$0xff]
    %v4039 = vld [vmem:[#allocation4 + $0x7800] sm:$0xff]
    %v4040 = vld [vmem:[#allocation4 + $0x7808] sm:$0xff]
    %v4041 = vld [vmem:[#allocation4 + $0x7810] sm:$0xff]
    %v4042 = vld [vmem:[#allocation4 + $0x7818] sm:$0xff]
    %v4043 = vld [vmem:[#allocation4 + $0x7820] sm:$0xff]
    %v4044 = vld [vmem:[#allocation4 + $0x7828] sm:$0xff]
    %v4045 = vld [vmem:[#allocation4 + $0x7830] sm:$0xff]
    %v4046 = vld [vmem:[#allocation4 + $0x7838] sm:$0xff]
    %v4047 = vld [vmem:[#allocation4 + $0x7840] sm:$0xff]
    %v4048 = vld [vmem:[#allocation4 + $0x7848] sm:$0xff]
    %v4049 = vld [vmem:[#allocation4 + $0x7850] sm:$0xff]
    %v4050 = vld [vmem:[#allocation4 + $0x7858] sm:$0xff]
    %v4051 = vld [vmem:[#allocation4 + $0x7860] sm:$0xff]
    %v4052 = vld [vmem:[#allocation4 + $0x7868] sm:$0xff]
    %v4053 = vld [vmem:[#allocation4 + $0x7870] sm:$0xff]
    %v4054 = vld [vmem:[#allocation4 + $0x7878] sm:$0xff]
    %v4055 = vld [vmem:[#allocation4 + $0x7880] sm:$0xff]
    %v4056 = vld [vmem:[#allocation4 + $0x7888] sm:$0xff]
    %v4057 = vld [vmem:[#allocation4 + $0x7890] sm:$0xff]
    %v4058 = vld [vmem:[#allocation4 + $0x7898] sm:$0xff]
    %v4059 = vld [vmem:[#allocation4 + $0x78a0] sm:$0xff]
    %v4060 = vld [vmem:[#allocation4 + $0x78a8] sm:$0xff]
    %v4061 = vld [vmem:[#allocation4 + $0x78b0] sm:$0xff]
    %v4062 = vld [vmem:[#allocation4 + $0x78b8] sm:$0xff]
    %v4063 = vld [vmem:[#allocation4 + $0x78c0] sm:$0xff]
    %v4064 = vld [vmem:[#allocation4 + $0x78c8] sm:$0xff]
    %v4065 = vld [vmem:[#allocation4 + $0x78d0] sm:$0xff]
    %v4066 = vld [vmem:[#allocation4 + $0x78d8] sm:$0xff]
    %v4067 = vld [vmem:[#allocation4 + $0x78e0] sm:$0xff]
    %v4068 = vld [vmem:[#allocation4 + $0x78e8] sm:$0xff]
    %v4069 = vld [vmem:[#allocation4 + $0x78f0] sm:$0xff]
    %v4070 = vld [vmem:[#allocation4 + $0x78f8] sm:$0xff]
    %v4071 = vld [vmem:[#allocation4 + $0x7900] sm:$0xff]
    %v4072 = vld [vmem:[#allocation4 + $0x7908] sm:$0xff]
    %v4073 = vld [vmem:[#allocation4 + $0x7910] sm:$0xff]
    %v4074 = vld [vmem:[#allocation4 + $0x7918] sm:$0xff]
    %v4075 = vld [vmem:[#allocation4 + $0x7920] sm:$0xff]
    %v4076 = vld [vmem:[#allocation4 + $0x7928] sm:$0xff]
    %v4077 = vld [vmem:[#allocation4 + $0x7930] sm:$0xff]
    %v4078 = vld [vmem:[#allocation4 + $0x7938] sm:$0xff]
    %v4079 = vld [vmem:[#allocation4 + $0x7940] sm:$0xff]
    %v4080 = vld [vmem:[#allocation4 + $0x7948] sm:$0xff]
    %v4081 = vld [vmem:[#allocation4 + $0x7950] sm:$0xff]
    %v4082 = vld [vmem:[#allocation4 + $0x7958] sm:$0xff]
    %v4083 = vld [vmem:[#allocation4 + $0x7960] sm:$0xff]
    %v4084 = vld [vmem:[#allocation4 + $0x7968] sm:$0xff]
    %v4085 = vld [vmem:[#allocation4 + $0x7970] sm:$0xff]
    %v4086 = vld [vmem:[#allocation4 + $0x7978] sm:$0xff]
    %v4087 = vld [vmem:[#allocation4 + $0x7980] sm:$0xff]
    %v4088 = vld [vmem:[#allocation4 + $0x7988] sm:$0xff]
    %v4089 = vld [vmem:[#allocation4 + $0x7990] sm:$0xff]
    %v4090 = vld [vmem:[#allocation4 + $0x7998] sm:$0xff]
    %v4091 = vld [vmem:[#allocation4 + $0x79a0] sm:$0xff]
    %v4092 = vld [vmem:[#allocation4 + $0x79a8] sm:$0xff]
    %v4093 = vld [vmem:[#allocation4 + $0x79b0] sm:$0xff]
    %v4094 = vld [vmem:[#allocation4 + $0x79b8] sm:$0xff]
    %v4095 = vld [vmem:[#allocation4 + $0x79c0] sm:$0xff]
    %v4096 = vld [vmem:[#allocation4 + $0x79c8] sm:$0xff]
    %v4097 = vld [vmem:[#allocation4 + $0x79d0] sm:$0xff]
    %v4098 = vld [vmem:[#allocation4 + $0x79d8] sm:$0xff]
    %v4099 = vld [vmem:[#allocation4 + $0x79e0] sm:$0xff]
    %v4100 = vld [vmem:[#allocation4 + $0x79e8] sm:$0xff]
    %v4101 = vld [vmem:[#allocation4 + $0x79f0] sm:$0xff]
    %v4102 = vld [vmem:[#allocation4 + $0x79f8] sm:$0xff]
    %v4103 = vld [vmem:[#allocation4 + $0x7a00] sm:$0xff]
    %v4104 = vld [vmem:[#allocation4 + $0x7a08] sm:$0xff]
    %v4105 = vld [vmem:[#allocation4 + $0x7a10] sm:$0xff]
    %v4106 = vld [vmem:[#allocation4 + $0x7a18] sm:$0xff]
    %v4107 = vld [vmem:[#allocation4 + $0x7a20] sm:$0xff]
    %v4108 = vld [vmem:[#allocation4 + $0x7a28] sm:$0xff]
    %v4109 = vld [vmem:[#allocation4 + $0x7a30] sm:$0xff]
    %v4110 = vld [vmem:[#allocation4 + $0x7a38] sm:$0xff]
    %v4111 = vld [vmem:[#allocation4 + $0x7a40] sm:$0xff]
    %v4112 = vld [vmem:[#allocation4 + $0x7a48] sm:$0xff]
    %v4113 = vld [vmem:[#allocation4 + $0x7a50] sm:$0xff]
    %v4114 = vld [vmem:[#allocation4 + $0x7a58] sm:$0xff]
    %v4115 = vld [vmem:[#allocation4 + $0x7a60] sm:$0xff]
    %v4116 = vld [vmem:[#allocation4 + $0x7a68] sm:$0xff]
    %v4117 = vld [vmem:[#allocation4 + $0x7a70] sm:$0xff]
    %v4118 = vld [vmem:[#allocation4 + $0x7a78] sm:$0xff]
    %v4119 = vld [vmem:[#allocation4 + $0x7a80] sm:$0xff]
    %v4120 = vld [vmem:[#allocation4 + $0x7a88] sm:$0xff]
    %v4121 = vld [vmem:[#allocation4 + $0x7a90] sm:$0xff]
    %v4122 = vld [vmem:[#allocation4 + $0x7a98] sm:$0xff]
    %v4123 = vld [vmem:[#allocation4 + $0x7aa0] sm:$0xff]
    %v4124 = vld [vmem:[#allocation4 + $0x7aa8] sm:$0xff]
    %v4125 = vld [vmem:[#allocation4 + $0x7ab0] sm:$0xff]
    %v4126 = vld [vmem:[#allocation4 + $0x7ab8] sm:$0xff]
    %v4127 = vld [vmem:[#allocation4 + $0x7ac0] sm:$0xff]
    %v4128 = vld [vmem:[#allocation4 + $0x7ac8] sm:$0xff]
    %v4129 = vld [vmem:[#allocation4 + $0x7ad0] sm:$0xff]
    %v4130 = vld [vmem:[#allocation4 + $0x7ad8] sm:$0xff]
    %v4131 = vld [vmem:[#allocation4 + $0x7ae0] sm:$0xff]
    %v4132 = vld [vmem:[#allocation4 + $0x7ae8] sm:$0xff]
    %v4133 = vld [vmem:[#allocation4 + $0x7af0] sm:$0xff]
    %v4134 = vld [vmem:[#allocation4 + $0x7af8] sm:$0xff]
    %v4135 = vld [vmem:[#allocation4 + $0x7b00] sm:$0xff]
    %v4136 = vld [vmem:[#allocation4 + $0x7b08] sm:$0xff]
    %v4137 = vld [vmem:[#allocation4 + $0x7b10] sm:$0xff]
    %v4138 = vld [vmem:[#allocation4 + $0x7b18] sm:$0xff]
    %v4139 = vld [vmem:[#allocation4 + $0x7b20] sm:$0xff]
    %v4140 = vld [vmem:[#allocation4 + $0x7b28] sm:$0xff]
    %v4141 = vld [vmem:[#allocation4 + $0x7b30] sm:$0xff]
    %v4142 = vld [vmem:[#allocation4 + $0x7b38] sm:$0xff]
    %v4143 = vld [vmem:[#allocation4 + $0x7b40] sm:$0xff]
    %v4144 = vld [vmem:[#allocation4 + $0x7b48] sm:$0xff]
    %v4145 = vld [vmem:[#allocation4 + $0x7b50] sm:$0xff]
    %v4146 = vld [vmem:[#allocation4 + $0x7b58] sm:$0xff]
    %v4147 = vld [vmem:[#allocation4 + $0x7b60] sm:$0xff]
    %v4148 = vld [vmem:[#allocation4 + $0x7b68] sm:$0xff]
    %v4149 = vld [vmem:[#allocation4 + $0x7b70] sm:$0xff]
    %v4150 = vld [vmem:[#allocation4 + $0x7b78] sm:$0xff]
    %v4151 = vld [vmem:[#allocation4 + $0x7b80] sm:$0xff]
    %v4152 = vld [vmem:[#allocation4 + $0x7b88] sm:$0xff]
    %v4153 = vld [vmem:[#allocation4 + $0x7b90] sm:$0xff]
    %v4154 = vld [vmem:[#allocation4 + $0x7b98] sm:$0xff]
    %v4155 = vld [vmem:[#allocation4 + $0x7ba0] sm:$0xff]
    %v4156 = vld [vmem:[#allocation4 + $0x7ba8] sm:$0xff]
    %v4157 = vld [vmem:[#allocation4 + $0x7bb0] sm:$0xff]
    %v4158 = vld [vmem:[#allocation4 + $0x7bb8] sm:$0xff]
    %v4159 = vld [vmem:[#allocation4 + $0x7bc0] sm:$0xff]
    %v4160 = vld [vmem:[#allocation4 + $0x7bc8] sm:$0xff]
    %v4161 = vld [vmem:[#allocation4 + $0x7bd0] sm:$0xff]
    %v4162 = vld [vmem:[#allocation4 + $0x7bd8] sm:$0xff]
    %v4163 = vld [vmem:[#allocation4 + $0x7be0] sm:$0xff]
    %v4164 = vld [vmem:[#allocation4 + $0x7be8] sm:$0xff]
    %v4165 = vld [vmem:[#allocation4 + $0x7bf0] sm:$0xff]
    %v4166 = vld [vmem:[#allocation4 + $0x7bf8] sm:$0xff]
    %v4167 = vld [vmem:[#allocation4 + $0x7c00] sm:$0xff]
    %v4168 = vld [vmem:[#allocation4 + $0x7c08] sm:$0xff]
    %v4169 = vld [vmem:[#allocation4 + $0x7c10] sm:$0xff]
    %v4170 = vld [vmem:[#allocation4 + $0x7c18] sm:$0xff]
    %v4171 = vld [vmem:[#allocation4 + $0x7c20] sm:$0xff]
    %v4172 = vld [vmem:[#allocation4 + $0x7c28] sm:$0xff]
    %v4173 = vld [vmem:[#allocation4 + $0x7c30] sm:$0xff]
    %v4174 = vld [vmem:[#allocation4 + $0x7c38] sm:$0xff]
    %v4175 = vld [vmem:[#allocation4 + $0x7c40] sm:$0xff]
    %v4176 = vld [vmem:[#allocation4 + $0x7c48] sm:$0xff]
    %v4177 = vld [vmem:[#allocation4 + $0x7c50] sm:$0xff]
    %v4178 = vld [vmem:[#allocation4 + $0x7c58] sm:$0xff]
    %v4179 = vld [vmem:[#allocation4 + $0x7c60] sm:$0xff]
    %v4180 = vld [vmem:[#allocation4 + $0x7c68] sm:$0xff]
    %v4181 = vld [vmem:[#allocation4 + $0x7c70] sm:$0xff]
    %v4182 = vld [vmem:[#allocation4 + $0x7c78] sm:$0xff]
    %v4183 = vld [vmem:[#allocation4 + $0x7c80] sm:$0xff]
    %v4184 = vld [vmem:[#allocation4 + $0x7c88] sm:$0xff]
    %v4185 = vld [vmem:[#allocation4 + $0x7c90] sm:$0xff]
    %v4186 = vld [vmem:[#allocation4 + $0x7c98] sm:$0xff]
    %v4187 = vld [vmem:[#allocation4 + $0x7ca0] sm:$0xff]
    %v4188 = vld [vmem:[#allocation4 + $0x7ca8] sm:$0xff]
    %v4189 = vld [vmem:[#allocation4 + $0x7cb0] sm:$0xff]
    %v4190 = vld [vmem:[#allocation4 + $0x7cb8] sm:$0xff]
    %v4191 = vld [vmem:[#allocation4 + $0x7cc0] sm:$0xff]
    %v4192 = vld [vmem:[#allocation4 + $0x7cc8] sm:$0xff]
    %v4193 = vld [vmem:[#allocation4 + $0x7cd0] sm:$0xff]
    %v4194 = vld [vmem:[#allocation4 + $0x7cd8] sm:$0xff]
    %v4195 = vld [vmem:[#allocation4 + $0x7ce0] sm:$0xff]
    %v4196 = vld [vmem:[#allocation4 + $0x7ce8] sm:$0xff]
    %v4197 = vld [vmem:[#allocation4 + $0x7cf0] sm:$0xff]
    %v4198 = vld [vmem:[#allocation4 + $0x7cf8] sm:$0xff]
    %v4199 = vld [vmem:[#allocation4 + $0x7d00] sm:$0xff]
    %v4200 = vld [vmem:[#allocation4 + $0x7d08] sm:$0xff]
    %v4201 = vld [vmem:[#allocation4 + $0x7d10] sm:$0xff]
    %v4202 = vld [vmem:[#allocation4 + $0x7d18] sm:$0xff]
    %v4203 = vld [vmem:[#allocation4 + $0x7d20] sm:$0xff]
    %v4204 = vld [vmem:[#allocation4 + $0x7d28] sm:$0xff]
    %v4205 = vld [vmem:[#allocation4 + $0x7d30] sm:$0xff]
    %v4206 = vld [vmem:[#allocation4 + $0x7d38] sm:$0xff]
    %v4207 = vld [vmem:[#allocation4 + $0x7d40] sm:$0xff]
    %v4208 = vld [vmem:[#allocation4 + $0x7d48] sm:$0xff]
    %v4209 = vld [vmem:[#allocation4 + $0x7d50] sm:$0xff]
    %v4210 = vld [vmem:[#allocation4 + $0x7d58] sm:$0xff]
    %v4211 = vld [vmem:[#allocation4 + $0x7d60] sm:$0xff]
    %v4212 = vld [vmem:[#allocation4 + $0x7d68] sm:$0xff]
    %v4213 = vld [vmem:[#allocation4 + $0x7d70] sm:$0xff]
    %v4214 = vld [vmem:[#allocation4 + $0x7d78] sm:$0xff]
    %v4215 = vld [vmem:[#allocation4 + $0x7d80] sm:$0xff]
    %v4216 = vld [vmem:[#allocation4 + $0x7d88] sm:$0xff]
    %v4217 = vld [vmem:[#allocation4 + $0x7d90] sm:$0xff]
    %v4218 = vld [vmem:[#allocation4 + $0x7d98] sm:$0xff]
    %v4219 = vld [vmem:[#allocation4 + $0x7da0] sm:$0xff]
    %v4220 = vld [vmem:[#allocation4 + $0x7da8] sm:$0xff]
    %v4221 = vld [vmem:[#allocation4 + $0x7db0] sm:$0xff]
    %v4222 = vld [vmem:[#allocation4 + $0x7db8] sm:$0xff]
    %v4223 = vld [vmem:[#allocation4 + $0x7dc0] sm:$0xff]
    %v4224 = vld [vmem:[#allocation4 + $0x7dc8] sm:$0xff]
    %v4225 = vld [vmem:[#allocation4 + $0x7dd0] sm:$0xff]
    %v4226 = vld [vmem:[#allocation4 + $0x7dd8] sm:$0xff]
    %v4227 = vld [vmem:[#allocation4 + $0x7de0] sm:$0xff]
    %v4228 = vld [vmem:[#allocation4 + $0x7de8] sm:$0xff]
    %v4229 = vld [vmem:[#allocation4 + $0x7df0] sm:$0xff]
    %v4230 = vld [vmem:[#allocation4 + $0x7df8] sm:$0xff]
    %v4231 = vld [vmem:[#allocation4 + $0x7e00] sm:$0xff]
    %v4232 = vld [vmem:[#allocation4 + $0x7e08] sm:$0xff]
    %v4233 = vld [vmem:[#allocation4 + $0x7e10] sm:$0xff]
    %v4234 = vld [vmem:[#allocation4 + $0x7e18] sm:$0xff]
    %v4235 = vld [vmem:[#allocation4 + $0x7e20] sm:$0xff]
    %v4236 = vld [vmem:[#allocation4 + $0x7e28] sm:$0xff]
    %v4237 = vld [vmem:[#allocation4 + $0x7e30] sm:$0xff]
    %v4238 = vld [vmem:[#allocation4 + $0x7e38] sm:$0xff]
    %v4239 = vld [vmem:[#allocation4 + $0x7e40] sm:$0xff]
    %v4240 = vld [vmem:[#allocation4 + $0x7e48] sm:$0xff]
    %v4241 = vld [vmem:[#allocation4 + $0x7e50] sm:$0xff]
    %v4242 = vld [vmem:[#allocation4 + $0x7e58] sm:$0xff]
    %v4243 = vld [vmem:[#allocation4 + $0x7e60] sm:$0xff]
    %v4244 = vld [vmem:[#allocation4 + $0x7e68] sm:$0xff]
    %v4245 = vld [vmem:[#allocation4 + $0x7e70] sm:$0xff]
    %v4246 = vld [vmem:[#allocation4 + $0x7e78] sm:$0xff]
    %v4247 = vld [vmem:[#allocation4 + $0x7e80] sm:$0xff]
    %v4248 = vld [vmem:[#allocation4 + $0x7e88] sm:$0xff]
    %v4249 = vld [vmem:[#allocation4 + $0x7e90] sm:$0xff]
    %v4250 = vld [vmem:[#allocation4 + $0x7e98] sm:$0xff]
    %v4251 = vld [vmem:[#allocation4 + $0x7ea0] sm:$0xff]
    %v4252 = vld [vmem:[#allocation4 + $0x7ea8] sm:$0xff]
    %v4253 = vld [vmem:[#allocation4 + $0x7eb0] sm:$0xff]
    %v4254 = vld [vmem:[#allocation4 + $0x7eb8] sm:$0xff]
    %v4255 = vld [vmem:[#allocation4 + $0x7ec0] sm:$0xff]
    %v4256 = vld [vmem:[#allocation4 + $0x7ec8] sm:$0xff]
    %v4257 = vld [vmem:[#allocation4 + $0x7ed0] sm:$0xff]
    %v4258 = vld [vmem:[#allocation4 + $0x7ed8] sm:$0xff]
    %v4259 = vld [vmem:[#allocation4 + $0x7ee0] sm:$0xff]
    %v4260 = vld [vmem:[#allocation4 + $0x7ee8] sm:$0xff]
    %v4261 = vld [vmem:[#allocation4 + $0x7ef0] sm:$0xff]
    %v4262 = vld [vmem:[#allocation4 + $0x7ef8] sm:$0xff]
    %v4263 = vld [vmem:[#allocation4 + $0x7f00] sm:$0xff]
    %v4264 = vld [vmem:[#allocation4 + $0x7f08] sm:$0xff]
    %v4265 = vld [vmem:[#allocation4 + $0x7f10] sm:$0xff]
    %v4266 = vld [vmem:[#allocation4 + $0x7f18] sm:$0xff]
    %v4267 = vld [vmem:[#allocation4 + $0x7f20] sm:$0xff]
    %v4268 = vld [vmem:[#allocation4 + $0x7f28] sm:$0xff]
    %v4269 = vld [vmem:[#allocation4 + $0x7f30] sm:$0xff]
    %v4270 = vld [vmem:[#allocation4 + $0x7f38] sm:$0xff]
    %v4271 = vld [vmem:[#allocation4 + $0x7f40] sm:$0xff]
    %v4272 = vld [vmem:[#allocation4 + $0x7f48] sm:$0xff]
    %v4273 = vld [vmem:[#allocation4 + $0x7f50] sm:$0xff]
    %v4274 = vld [vmem:[#allocation4 + $0x7f58] sm:$0xff]
    %v4275 = vld [vmem:[#allocation4 + $0x7f60] sm:$0xff]
    %v4276 = vld [vmem:[#allocation4 + $0x7f68] sm:$0xff]
    %v4277 = vld [vmem:[#allocation4 + $0x7f70] sm:$0xff]
    %v4278 = vld [vmem:[#allocation4 + $0x7f78] sm:$0xff]
    %v4279 = vld [vmem:[#allocation4 + $0x7f80] sm:$0xff]
    %v4280 = vld [vmem:[#allocation4 + $0x7f88] sm:$0xff]
    %v4281 = vld [vmem:[#allocation4 + $0x7f90] sm:$0xff]
    %v4282 = vld [vmem:[#allocation4 + $0x7f98] sm:$0xff]
    %v4283 = vld [vmem:[#allocation4 + $0x7fa0] sm:$0xff]
    %v4284 = vld [vmem:[#allocation4 + $0x7fa8] sm:$0xff]
    %v4285 = vld [vmem:[#allocation4 + $0x7fb0] sm:$0xff]
    %v4286 = vld [vmem:[#allocation4 + $0x7fb8] sm:$0xff]
    %v4287 = vld [vmem:[#allocation4 + $0x7fc0] sm:$0xff]
    %v4288 = vld [vmem:[#allocation4 + $0x7fc8] sm:$0xff]
    %v4289 = vld [vmem:[#allocation4 + $0x7fd0] sm:$0xff]
    %v4290 = vld [vmem:[#allocation4 + $0x7fd8] sm:$0xff]
    %v4291 = vld [vmem:[#allocation4 + $0x7fe0] sm:$0xff]
    %v4292 = vld [vmem:[#allocation4 + $0x7fe8] sm:$0xff]
    %v4293 = vld [vmem:[#allocation4 + $0x7ff0] sm:$0xff]
    %v4294 = vld [vmem:[#allocation4 + $0x7ff8] sm:$0xff]
    %v4295 = vld [vmem:[#allocation6] sm:$0xff]
    %v4297 = vlaneseq
    %v4298 = vshrl.u32 %v4297, 7
    %v4299 = vsub.s32 0, %v4298
    %v4300 = vrot.slane %v4295, %v4299
    %v4301 = vlaneseq
    %v4302 = vshrl.u32 %v4301, 7
    %v4303 = vsub.s32 1, %v4302
    %v4304 = vrot.slane %v4295, %v4303
    %v4305 = vlaneseq
    %v4306 = vshrl.u32 %v4305, 7
    %v4307 = vsub.s32 2, %v4306
    %v4308 = vrot.slane %v4295, %v4307
    %v4309 = vlaneseq
    %v4310 = vshrl.u32 %v4309, 7
    %v4311 = vsub.s32 3, %v4310
    %v4312 = vrot.slane %v4295, %v4311
    %v4313 = vlaneseq
    %v4314 = vshrl.u32 %v4313, 7
    %v4315 = vsub.s32 4, %v4314
    %v4316 = vrot.slane %v4295, %v4315
    %v4317 = vlaneseq
    %v4318 = vshrl.u32 %v4317, 7
    %v4319 = vsub.s32 5, %v4318
    %v4320 = vrot.slane %v4295, %v4319
    %v4321 = vlaneseq
    %v4322 = vshrl.u32 %v4321, 7
    %v4323 = vsub.s32 6, %v4322
    %v4324 = vrot.slane %v4295, %v4323
    %v4325 = vlaneseq
    %v4326 = vshrl.u32 %v4325, 7
    %v4327 = vsub.s32 7, %v4326
    %v4328 = vrot.slane %v4295, %v4327
    %4337 = vmatprep.subr.mxu0 %v320
    %4338 = vmatpush1.msra.mxu0 %v319
    %4339 = vmatprep.subr.mxu0 %v312
    %4340 = vmatpush1.msra.mxu0 %v311
    %4341 = vmatprep.subr.mxu0 %v304
    %4342 = vmatpush1.msra.mxu0 %v303
    %4343 = vmatprep.subr.mxu0 %v296
    %4344 = vmatpush1.msra.mxu0 %v295
    %4345 = vmatprep.subr.mxu0 %v288
    %4346 = vmatpush1.msra.mxu0 %v287
    %4347 = vmatprep.subr.mxu0 %v280
    %4348 = vmatpush1.msra.mxu0 %v279
    %4349 = vmatprep.subr.mxu0 %v272
    %4350 = vmatpush1.msra.mxu0 %v271
    %4351 = vmatprep.subr.mxu0 %v264
    %4352 = vmatpush1.msra.mxu0 %v263
    %4353 = vmatprep.subr.mxu0 %v256
    %4354 = vmatpush1.msra.mxu0 %v255
    %4355 = vmatprep.subr.mxu0 %v248
    %4356 = vmatpush1.msra.mxu0 %v247
    %4357 = vmatprep.subr.mxu0 %v240
    %4358 = vmatpush1.msra.mxu0 %v239
    %4359 = vmatprep.subr.mxu0 %v232
    %4360 = vmatpush1.msra.mxu0 %v231
    %4361 = vmatprep.subr.mxu0 %v224
    %4362 = vmatpush1.msra.mxu0 %v223
    %4363 = vmatprep.subr.mxu0 %v216
    %4364 = vmatpush1.msra.mxu0 %v215
    %4365 = vmatprep.subr.mxu0 %v208
    %4366 = vmatpush1.msra.mxu0 %v207
    %4367 = vmatprep.subr.mxu0 %v200
    %4368 = vmatpush1.msra.mxu0 %v199
    %4369 = vmatprep.subr.mxu0 %v448
    %4370 = vmatpush2.msra.mxu0 %v447
    %4371 = vmatprep.subr.mxu0 %v440
    %4372 = vmatpush2.msra.mxu0 %v439
    %4373 = vmatprep.subr.mxu0 %v432
    %4374 = vmatpush2.msra.mxu0 %v431
    %4375 = vmatprep.subr.mxu0 %v424
    %4376 = vmatpush2.msra.mxu0 %v423
    %4377 = vmatprep.subr.mxu0 %v416
    %4378 = vmatpush2.msra.mxu0 %v415
    %4379 = vmatprep.subr.mxu0 %v408
    %4380 = vmatpush2.msra.mxu0 %v407
    %4381 = vmatprep.subr.mxu0 %v400
    %4382 = vmatpush2.msra.mxu0 %v399
    %4383 = vmatprep.subr.mxu0 %v392
    %4384 = vmatpush2.msra.mxu0 %v391
    %4385 = vmatprep.subr.mxu0 %v384
    %4386 = vmatpush2.msra.mxu0 %v383
    %4387 = vmatprep.subr.mxu0 %v376
    %4388 = vmatpush2.msra.mxu0 %v375
    %4389 = vmatprep.subr.mxu0 %v368
    %4390 = vmatpush2.msra.mxu0 %v367
    %4391 = vmatprep.subr.mxu0 %v360
    %4392 = vmatpush2.msra.mxu0 %v359
    %4393 = vmatprep.subr.mxu0 %v352
    %4394 = vmatpush2.msra.mxu0 %v351
    %4395 = vmatprep.subr.mxu0 %v344
    %4396 = vmatpush2.msra.mxu0 %v343
    %4397 = vmatprep.subr.mxu0 %v336
    %4398 = vmatpush2.msra.mxu0 %v335
    %4399 = vmatprep.subr.mxu0 %v328
    %4400 = vmatpush2.msra.mxu0 %v327
    %4401 = vmatprep.mubr.f32.mxu0 %v136
    %4402 = vmatmul.mubr.f32.gmra.mxu0 %v135
    %v4403 = vpop.f32.mrf.mxu0
    %v4404 = vadd.f32 %v4300, %v4403
    %v4405 = vpop.f32.mrf.mxu0
    %v4406 = vadd.f32 %v4304, %v4405
    %4407 = vmatprep.mubr.f32.mxu0 %v168
    %4408 = vmatmul.mubr.f32.gmra.mxu0 %v167
    %v4409 = vpop.f32.mrf.mxu0
    %v4410 = vadd.f32 %v4300, %v4409
    %v4411 = vpop.f32.mrf.mxu0
    %v4412 = vadd.f32 %v4304, %v4411
    %4413 = vdwg.mxu0
    %4414 = vmatprep.subr.mxu0 %v576
    %4415 = vmatpush1.msra.mxu0 %v575
    %4416 = vmatprep.subr.mxu0 %v568
    %4417 = vmatpush1.msra.mxu0 %v567
    %4418 = vmatprep.subr.mxu0 %v560
    %4419 = vmatpush1.msra.mxu0 %v559
    %4420 = vmatprep.subr.mxu0 %v552
    %4421 = vmatpush1.msra.mxu0 %v551
    %4422 = vmatprep.subr.mxu0 %v544
    %4423 = vmatpush1.msra.mxu0 %v543
    %4424 = vmatprep.subr.mxu0 %v536
    %4425 = vmatpush1.msra.mxu0 %v535
    %4426 = vmatprep.subr.mxu0 %v528
    %4427 = vmatpush1.msra.mxu0 %v527
    %4428 = vmatprep.subr.mxu0 %v520
    %4429 = vmatpush1.msra.mxu0 %v519
    %4430 = vmatprep.subr.mxu0 %v512
    %4431 = vmatpush1.msra.mxu0 %v511
    %4432 = vmatprep.subr.mxu0 %v504
    %4433 = vmatpush1.msra.mxu0 %v503
    %4434 = vmatprep.subr.mxu0 %v496
    %4435 = vmatpush1.msra.mxu0 %v495
    %4436 = vmatprep.subr.mxu0 %v488
    %4437 = vmatpush1.msra.mxu0 %v487
    %4438 = vmatprep.subr.mxu0 %v480
    %4439 = vmatpush1.msra.mxu0 %v479
    %4440 = vmatprep.subr.mxu0 %v472
    %4441 = vmatpush1.msra.mxu0 %v471
    %4442 = vmatprep.subr.mxu0 %v464
    %4443 = vmatpush1.msra.mxu0 %v463
    %4444 = vmatprep.subr.mxu0 %v456
    %4445 = vmatpush1.msra.mxu0 %v455
    %4446 = vmatprep.subr.mxu0 %v704
    %4447 = vmatpush2.msra.mxu0 %v703
    %4448 = vmatprep.subr.mxu0 %v696
    %4449 = vmatpush2.msra.mxu0 %v695
    %4450 = vmatprep.subr.mxu0 %v688
    %4451 = vmatpush2.msra.mxu0 %v687
    %4452 = vmatprep.subr.mxu0 %v680
    %4453 = vmatpush2.msra.mxu0 %v679
    %4454 = vmatprep.subr.mxu0 %v672
    %4455 = vmatpush2.msra.mxu0 %v671
    %4456 = vmatprep.subr.mxu0 %v664
    %4457 = vmatpush2.msra.mxu0 %v663
    %4458 = vmatprep.subr.mxu0 %v656
    %4459 = vmatpush2.msra.mxu0 %v655
    %4460 = vmatprep.subr.mxu0 %v648
    %4461 = vmatpush2.msra.mxu0 %v647
    %4462 = vmatprep.subr.mxu0 %v640
    %4463 = vmatpush2.msra.mxu0 %v639
    %4464 = vmatprep.subr.mxu0 %v632
    %4465 = vmatpush2.msra.mxu0 %v631
    %4466 = vmatprep.subr.mxu0 %v624
    %4467 = vmatpush2.msra.mxu0 %v623
    %4468 = vmatprep.subr.mxu0 %v616
    %4469 = vmatpush2.msra.mxu0 %v615
    %4470 = vmatprep.subr.mxu0 %v608
    %4471 = vmatpush2.msra.mxu0 %v607
    %4472 = vmatprep.subr.mxu0 %v600
    %4473 = vmatpush2.msra.mxu0 %v599
    %4474 = vmatprep.subr.mxu0 %v592
    %4475 = vmatpush2.msra.mxu0 %v591
    %4476 = vmatprep.subr.mxu0 %v584
    %4477 = vmatpush2.msra.mxu0 %v583
    %4478 = vmatprep.mubr.f32.mxu0 %v138
    %4479 = vmatmul.mubr.f32.gmra.mxu0 %v137
    %v4480 = vpop.f32.mrf.mxu0
    %v4481 = vadd.f32 %v4404, %v4480
    %v4482 = vpop.f32.mrf.mxu0
    %v4483 = vadd.f32 %v4406, %v4482
    %4484 = vmatprep.mubr.f32.mxu0 %v170
    %4485 = vmatmul.mubr.f32.gmra.mxu0 %v169
    %v4486 = vpop.f32.mrf.mxu0
    %v4487 = vadd.f32 %v4410, %v4486
    %v4488 = vpop.f32.mrf.mxu0
    %v4489 = vadd.f32 %v4412, %v4488
    %4490 = vdwg.mxu0
    %4491 = vmatprep.subr.mxu0 %v832
    %4492 = vmatpush1.msra.mxu0 %v831
    %4493 = vmatprep.subr.mxu0 %v824
    %4494 = vmatpush1.msra.mxu0 %v823
    %4495 = vmatprep.subr.mxu0 %v816
    %4496 = vmatpush1.msra.mxu0 %v815
    %4497 = vmatprep.subr.mxu0 %v808
    %4498 = vmatpush1.msra.mxu0 %v807
    %4499 = vmatprep.subr.mxu0 %v800
    %4500 = vmatpush1.msra.mxu0 %v799
    %4501 = vmatprep.subr.mxu0 %v792
    %4502 = vmatpush1.msra.mxu0 %v791
    %4503 = vmatprep.subr.mxu0 %v784
    %4504 = vmatpush1.msra.mxu0 %v783
    %4505 = vmatprep.subr.mxu0 %v776
    %4506 = vmatpush1.msra.mxu0 %v775
    %4507 = vmatprep.subr.mxu0 %v768
    %4508 = vmatpush1.msra.mxu0 %v767
    %4509 = vmatprep.subr.mxu0 %v760
    %4510 = vmatpush1.msra.mxu0 %v759
    %4511 = vmatprep.subr.mxu0 %v752
    %4512 = vmatpush1.msra.mxu0 %v751
    %4513 = vmatprep.subr.mxu0 %v744
    %4514 = vmatpush1.msra.mxu0 %v743
    %4515 = vmatprep.subr.mxu0 %v736
    %4516 = vmatpush1.msra.mxu0 %v735
    %4517 = vmatprep.subr.mxu0 %v728
    %4518 = vmatpush1.msra.mxu0 %v727
    %4519 = vmatprep.subr.mxu0 %v720
    %4520 = vmatpush1.msra.mxu0 %v719
    %4521 = vmatprep.subr.mxu0 %v712
    %4522 = vmatpush1.msra.mxu0 %v711
    %4523 = vmatprep.subr.mxu0 %v960
    %4524 = vmatpush2.msra.mxu0 %v959
    %4525 = vmatprep.subr.mxu0 %v952
    %4526 = vmatpush2.msra.mxu0 %v951
    %4527 = vmatprep.subr.mxu0 %v944
    %4528 = vmatpush2.msra.mxu0 %v943
    %4529 = vmatprep.subr.mxu0 %v936
    %4530 = vmatpush2.msra.mxu0 %v935
    %4531 = vmatprep.subr.mxu0 %v928
    %4532 = vmatpush2.msra.mxu0 %v927
    %4533 = vmatprep.subr.mxu0 %v920
    %4534 = vmatpush2.msra.mxu0 %v919
    %4535 = vmatprep.subr.mxu0 %v912
    %4536 = vmatpush2.msra.mxu0 %v911
    %4537 = vmatprep.subr.mxu0 %v904
    %4538 = vmatpush2.msra.mxu0 %v903
    %4539 = vmatprep.subr.mxu0 %v896
    %4540 = vmatpush2.msra.mxu0 %v895
    %4541 = vmatprep.subr.mxu0 %v888
    %4542 = vmatpush2.msra.mxu0 %v887
    %4543 = vmatprep.subr.mxu0 %v880
    %4544 = vmatpush2.msra.mxu0 %v879
    %4545 = vmatprep.subr.mxu0 %v872
    %4546 = vmatpush2.msra.mxu0 %v871
    %4547 = vmatprep.subr.mxu0 %v864
    %4548 = vmatpush2.msra.mxu0 %v863
    %4549 = vmatprep.subr.mxu0 %v856
    %4550 = vmatpush2.msra.mxu0 %v855
    %4551 = vmatprep.subr.mxu0 %v848
    %4552 = vmatpush2.msra.mxu0 %v847
    %4553 = vmatprep.subr.mxu0 %v840
    %4554 = vmatpush2.msra.mxu0 %v839
    %4555 = vmatprep.mubr.f32.mxu0 %v140
    %4556 = vmatmul.mubr.f32.gmra.mxu0 %v139
    %v4557 = vpop.f32.mrf.mxu0
    %v4558 = vadd.f32 %v4481, %v4557
    %v4559 = vpop.f32.mrf.mxu0
    %v4560 = vadd.f32 %v4483, %v4559
    %4561 = vmatprep.mubr.f32.mxu0 %v172
    %4562 = vmatmul.mubr.f32.gmra.mxu0 %v171
    %v4563 = vpop.f32.mrf.mxu0
    %v4564 = vadd.f32 %v4487, %v4563
    %v4565 = vpop.f32.mrf.mxu0
    %v4566 = vadd.f32 %v4489, %v4565
    %4567 = vdwg.mxu0
    %4568 = vmatprep.subr.mxu0 %v1088
    %4569 = vmatpush1.msra.mxu0 %v1087
    %4570 = vmatprep.subr.mxu0 %v1080
    %4571 = vmatpush1.msra.mxu0 %v1079
    %4572 = vmatprep.subr.mxu0 %v1072
    %4573 = vmatpush1.msra.mxu0 %v1071
    %4574 = vmatprep.subr.mxu0 %v1064
    %4575 = vmatpush1.msra.mxu0 %v1063
    %4576 = vmatprep.subr.mxu0 %v1056
    %4577 = vmatpush1.msra.mxu0 %v1055
    %4578 = vmatprep.subr.mxu0 %v1048
    %4579 = vmatpush1.msra.mxu0 %v1047
    %4580 = vmatprep.subr.mxu0 %v1040
    %4581 = vmatpush1.msra.mxu0 %v1039
    %4582 = vmatprep.subr.mxu0 %v1032
    %4583 = vmatpush1.msra.mxu0 %v1031
    %4584 = vmatprep.subr.mxu0 %v1024
    %4585 = vmatpush1.msra.mxu0 %v1023
    %4586 = vmatprep.subr.mxu0 %v1016
    %4587 = vmatpush1.msra.mxu0 %v1015
    %4588 = vmatprep.subr.mxu0 %v1008
    %4589 = vmatpush1.msra.mxu0 %v1007
    %4590 = vmatprep.subr.mxu0 %v1000
    %4591 = vmatpush1.msra.mxu0 %v999
    %4592 = vmatprep.subr.mxu0 %v992
    %4593 = vmatpush1.msra.mxu0 %v991
    %4594 = vmatprep.subr.mxu0 %v984
    %4595 = vmatpush1.msra.mxu0 %v983
    %4596 = vmatprep.subr.mxu0 %v976
    %4597 = vmatpush1.msra.mxu0 %v975
    %4598 = vmatprep.subr.mxu0 %v968
    %4599 = vmatpush1.msra.mxu0 %v967
    %4600 = vmatprep.subr.mxu0 %v1216
    %4601 = vmatpush2.msra.mxu0 %v1215
    %4602 = vmatprep.subr.mxu0 %v1208
    %4603 = vmatpush2.msra.mxu0 %v1207
    %4604 = vmatprep.subr.mxu0 %v1200
    %4605 = vmatpush2.msra.mxu0 %v1199
    %4606 = vmatprep.subr.mxu0 %v1192
    %4607 = vmatpush2.msra.mxu0 %v1191
    %4608 = vmatprep.subr.mxu0 %v1184
    %4609 = vmatpush2.msra.mxu0 %v1183
    %4610 = vmatprep.subr.mxu0 %v1176
    %4611 = vmatpush2.msra.mxu0 %v1175
    %4612 = vmatprep.subr.mxu0 %v1168
    %4613 = vmatpush2.msra.mxu0 %v1167
    %4614 = vmatprep.subr.mxu0 %v1160
    %4615 = vmatpush2.msra.mxu0 %v1159
    %4616 = vmatprep.subr.mxu0 %v1152
    %4617 = vmatpush2.msra.mxu0 %v1151
    %4618 = vmatprep.subr.mxu0 %v1144
    %4619 = vmatpush2.msra.mxu0 %v1143
    %4620 = vmatprep.subr.mxu0 %v1136
    %4621 = vmatpush2.msra.mxu0 %v1135
    %4622 = vmatprep.subr.mxu0 %v1128
    %4623 = vmatpush2.msra.mxu0 %v1127
    %4624 = vmatprep.subr.mxu0 %v1120
    %4625 = vmatpush2.msra.mxu0 %v1119
    %4626 = vmatprep.subr.mxu0 %v1112
    %4627 = vmatpush2.msra.mxu0 %v1111
    %4628 = vmatprep.subr.mxu0 %v1104
    %4629 = vmatpush2.msra.mxu0 %v1103
    %4630 = vmatprep.subr.mxu0 %v1096
    %4631 = vmatpush2.msra.mxu0 %v1095
    %4632 = vmatprep.mubr.f32.mxu0 %v142
    %4633 = vmatmul.mubr.f32.gmra.mxu0 %v141
    %v4634 = vpop.f32.mrf.mxu0
    %v4635 = vadd.f32 %v4558, %v4634
    %v4636 = vpop.f32.mrf.mxu0
    %v4637 = vadd.f32 %v4560, %v4636
    %4638 = vmatprep.mubr.f32.mxu0 %v174
    %4639 = vmatmul.mubr.f32.gmra.mxu0 %v173
    %v4640 = vpop.f32.mrf.mxu0
    %v4641 = vadd.f32 %v4564, %v4640
    %v4642 = vpop.f32.mrf.mxu0
    %v4643 = vadd.f32 %v4566, %v4642
    %4644 = vdwg.mxu0
    %4645 = vmatprep.subr.mxu0 %v1344
    %4646 = vmatpush1.msra.mxu0 %v1343
    %4647 = vmatprep.subr.mxu0 %v1336
    %4648 = vmatpush1.msra.mxu0 %v1335
    %4649 = vmatprep.subr.mxu0 %v1328
    %4650 = vmatpush1.msra.mxu0 %v1327
    %4651 = vmatprep.subr.mxu0 %v1320
    %4652 = vmatpush1.msra.mxu0 %v1319
    %4653 = vmatprep.subr.mxu0 %v1312
    %4654 = vmatpush1.msra.mxu0 %v1311
    %4655 = vmatprep.subr.mxu0 %v1304
    %4656 = vmatpush1.msra.mxu0 %v1303
    %4657 = vmatprep.subr.mxu0 %v1296
    %4658 = vmatpush1.msra.mxu0 %v1295
    %4659 = vmatprep.subr.mxu0 %v1288
    %4660 = vmatpush1.msra.mxu0 %v1287
    %4661 = vmatprep.subr.mxu0 %v1280
    %4662 = vmatpush1.msra.mxu0 %v1279
    %4663 = vmatprep.subr.mxu0 %v1272
    %4664 = vmatpush1.msra.mxu0 %v1271
    %4665 = vmatprep.subr.mxu0 %v1264
    %4666 = vmatpush1.msra.mxu0 %v1263
    %4667 = vmatprep.subr.mxu0 %v1256
    %4668 = vmatpush1.msra.mxu0 %v1255
    %4669 = vmatprep.subr.mxu0 %v1248
    %4670 = vmatpush1.msra.mxu0 %v1247
    %4671 = vmatprep.subr.mxu0 %v1240
    %4672 = vmatpush1.msra.mxu0 %v1239
    %4673 = vmatprep.subr.mxu0 %v1232
    %4674 = vmatpush1.msra.mxu0 %v1231
    %4675 = vmatprep.subr.mxu0 %v1224
    %4676 = vmatpush1.msra.mxu0 %v1223
    %4677 = vmatprep.subr.mxu0 %v1472
    %4678 = vmatpush2.msra.mxu0 %v1471
    %4679 = vmatprep.subr.mxu0 %v1464
    %4680 = vmatpush2.msra.mxu0 %v1463
    %4681 = vmatprep.subr.mxu0 %v1456
    %4682 = vmatpush2.msra.mxu0 %v1455
    %4683 = vmatprep.subr.mxu0 %v1448
    %4684 = vmatpush2.msra.mxu0 %v1447
    %4685 = vmatprep.subr.mxu0 %v1440
    %4686 = vmatpush2.msra.mxu0 %v1439
    %4687 = vmatprep.subr.mxu0 %v1432
    %4688 = vmatpush2.msra.mxu0 %v1431
    %4689 = vmatprep.subr.mxu0 %v1424
    %4690 = vmatpush2.msra.mxu0 %v1423
    %4691 = vmatprep.subr.mxu0 %v1416
    %4692 = vmatpush2.msra.mxu0 %v1415
    %4693 = vmatprep.subr.mxu0 %v1408
    %4694 = vmatpush2.msra.mxu0 %v1407
    %4695 = vmatprep.subr.mxu0 %v1400
    %4696 = vmatpush2.msra.mxu0 %v1399
    %4697 = vmatprep.subr.mxu0 %v1392
    %4698 = vmatpush2.msra.mxu0 %v1391
    %4699 = vmatprep.subr.mxu0 %v1384
    %4700 = vmatpush2.msra.mxu0 %v1383
    %4701 = vmatprep.subr.mxu0 %v1376
    %4702 = vmatpush2.msra.mxu0 %v1375
    %4703 = vmatprep.subr.mxu0 %v1368
    %4704 = vmatpush2.msra.mxu0 %v1367
    %4705 = vmatprep.subr.mxu0 %v1360
    %4706 = vmatpush2.msra.mxu0 %v1359
    %4707 = vmatprep.subr.mxu0 %v1352
    %4708 = vmatpush2.msra.mxu0 %v1351
    %4709 = vmatprep.mubr.f32.mxu0 %v144
    %4710 = vmatmul.mubr.f32.gmra.mxu0 %v143
    %v4711 = vpop.f32.mrf.mxu0
    %v4712 = vadd.f32 %v4635, %v4711
    %v4713 = vpop.f32.mrf.mxu0
    %v4714 = vadd.f32 %v4637, %v4713
    %4715 = vmatprep.mubr.f32.mxu0 %v176
    %4716 = vmatmul.mubr.f32.gmra.mxu0 %v175
    %v4717 = vpop.f32.mrf.mxu0
    %v4718 = vadd.f32 %v4641, %v4717
    %v4719 = vpop.f32.mrf.mxu0
    %v4720 = vadd.f32 %v4643, %v4719
    %4721 = vdwg.mxu0
    %4722 = vmatprep.subr.mxu0 %v1600
    %4723 = vmatpush1.msra.mxu0 %v1599
    %4724 = vmatprep.subr.mxu0 %v1592
    %4725 = vmatpush1.msra.mxu0 %v1591
    %4726 = vmatprep.subr.mxu0 %v1584
    %4727 = vmatpush1.msra.mxu0 %v1583
    %4728 = vmatprep.subr.mxu0 %v1576
    %4729 = vmatpush1.msra.mxu0 %v1575
    %4730 = vmatprep.subr.mxu0 %v1568
    %4731 = vmatpush1.msra.mxu0 %v1567
    %4732 = vmatprep.subr.mxu0 %v1560
    %4733 = vmatpush1.msra.mxu0 %v1559
    %4734 = vmatprep.subr.mxu0 %v1552
    %4735 = vmatpush1.msra.mxu0 %v1551
    %4736 = vmatprep.subr.mxu0 %v1544
    %4737 = vmatpush1.msra.mxu0 %v1543
    %4738 = vmatprep.subr.mxu0 %v1536
    %4739 = vmatpush1.msra.mxu0 %v1535
    %4740 = vmatprep.subr.mxu0 %v1528
    %4741 = vmatpush1.msra.mxu0 %v1527
    %4742 = vmatprep.subr.mxu0 %v1520
    %4743 = vmatpush1.msra.mxu0 %v1519
    %4744 = vmatprep.subr.mxu0 %v1512
    %4745 = vmatpush1.msra.mxu0 %v1511
    %4746 = vmatprep.subr.mxu0 %v1504
    %4747 = vmatpush1.msra.mxu0 %v1503
    %4748 = vmatprep.subr.mxu0 %v1496
    %4749 = vmatpush1.msra.mxu0 %v1495
    %4750 = vmatprep.subr.mxu0 %v1488
    %4751 = vmatpush1.msra.mxu0 %v1487
    %4752 = vmatprep.subr.mxu0 %v1480
    %4753 = vmatpush1.msra.mxu0 %v1479
    %4754 = vmatprep.subr.mxu0 %v1728
    %4755 = vmatpush2.msra.mxu0 %v1727
    %4756 = vmatprep.subr.mxu0 %v1720
    %4757 = vmatpush2.msra.mxu0 %v1719
    %4758 = vmatprep.subr.mxu0 %v1712
    %4759 = vmatpush2.msra.mxu0 %v1711
    %4760 = vmatprep.subr.mxu0 %v1704
    %4761 = vmatpush2.msra.mxu0 %v1703
    %4762 = vmatprep.subr.mxu0 %v1696
    %4763 = vmatpush2.msra.mxu0 %v1695
    %4764 = vmatprep.subr.mxu0 %v1688
    %4765 = vmatpush2.msra.mxu0 %v1687
    %4766 = vmatprep.subr.mxu0 %v1680
    %4767 = vmatpush2.msra.mxu0 %v1679
    %4768 = vmatprep.subr.mxu0 %v1672
    %4769 = vmatpush2.msra.mxu0 %v1671
    %4770 = vmatprep.subr.mxu0 %v1664
    %4771 = vmatpush2.msra.mxu0 %v1663
    %4772 = vmatprep.subr.mxu0 %v1656
    %4773 = vmatpush2.msra.mxu0 %v1655
    %4774 = vmatprep.subr.mxu0 %v1648
    %4775 = vmatpush2.msra.mxu0 %v1647
    %4776 = vmatprep.subr.mxu0 %v1640
    %4777 = vmatpush2.msra.mxu0 %v1639
    %4778 = vmatprep.subr.mxu0 %v1632
    %4779 = vmatpush2.msra.mxu0 %v1631
    %4780 = vmatprep.subr.mxu0 %v1624
    %4781 = vmatpush2.msra.mxu0 %v1623
    %4782 = vmatprep.subr.mxu0 %v1616
    %4783 = vmatpush2.msra.mxu0 %v1615
    %4784 = vmatprep.subr.mxu0 %v1608
    %4785 = vmatpush2.msra.mxu0 %v1607
    %4786 = vmatprep.mubr.f32.mxu0 %v146
    %4787 = vmatmul.mubr.f32.gmra.mxu0 %v145
    %v4788 = vpop.f32.mrf.mxu0
    %v4789 = vadd.f32 %v4712, %v4788
    %v4790 = vpop.f32.mrf.mxu0
    %v4791 = vadd.f32 %v4714, %v4790
    %4792 = vmatprep.mubr.f32.mxu0 %v178
    %4793 = vmatmul.mubr.f32.gmra.mxu0 %v177
    %v4794 = vpop.f32.mrf.mxu0
    %v4795 = vadd.f32 %v4718, %v4794
    %v4796 = vpop.f32.mrf.mxu0
    %v4797 = vadd.f32 %v4720, %v4796
    %4798 = vdwg.mxu0
    %4799 = vmatprep.subr.mxu0 %v1856
    %4800 = vmatpush1.msra.mxu0 %v1855
    %4801 = vmatprep.subr.mxu0 %v1848
    %4802 = vmatpush1.msra.mxu0 %v1847
    %4803 = vmatprep.subr.mxu0 %v1840
    %4804 = vmatpush1.msra.mxu0 %v1839
    %4805 = vmatprep.subr.mxu0 %v1832
    %4806 = vmatpush1.msra.mxu0 %v1831
    %4807 = vmatprep.subr.mxu0 %v1824
    %4808 = vmatpush1.msra.mxu0 %v1823
    %4809 = vmatprep.subr.mxu0 %v1816
    %4810 = vmatpush1.msra.mxu0 %v1815
    %4811 = vmatprep.subr.mxu0 %v1808
    %4812 = vmatpush1.msra.mxu0 %v1807
    %4813 = vmatprep.subr.mxu0 %v1800
    %4814 = vmatpush1.msra.mxu0 %v1799
    %4815 = vmatprep.subr.mxu0 %v1792
    %4816 = vmatpush1.msra.mxu0 %v1791
    %4817 = vmatprep.subr.mxu0 %v1784
    %4818 = vmatpush1.msra.mxu0 %v1783
    %4819 = vmatprep.subr.mxu0 %v1776
    %4820 = vmatpush1.msra.mxu0 %v1775
    %4821 = vmatprep.subr.mxu0 %v1768
    %4822 = vmatpush1.msra.mxu0 %v1767
    %4823 = vmatprep.subr.mxu0 %v1760
    %4824 = vmatpush1.msra.mxu0 %v1759
    %4825 = vmatprep.subr.mxu0 %v1752
    %4826 = vmatpush1.msra.mxu0 %v1751
    %4827 = vmatprep.subr.mxu0 %v1744
    %4828 = vmatpush1.msra.mxu0 %v1743
    %4829 = vmatprep.subr.mxu0 %v1736
    %4830 = vmatpush1.msra.mxu0 %v1735
    %4831 = vmatprep.subr.mxu0 %v1984
    %4832 = vmatpush2.msra.mxu0 %v1983
    %4833 = vmatprep.subr.mxu0 %v1976
    %4834 = vmatpush2.msra.mxu0 %v1975
    %4835 = vmatprep.subr.mxu0 %v1968
    %4836 = vmatpush2.msra.mxu0 %v1967
    %4837 = vmatprep.subr.mxu0 %v1960
    %4838 = vmatpush2.msra.mxu0 %v1959
    %4839 = vmatprep.subr.mxu0 %v1952
    %4840 = vmatpush2.msra.mxu0 %v1951
    %4841 = vmatprep.subr.mxu0 %v1944
    %4842 = vmatpush2.msra.mxu0 %v1943
    %4843 = vmatprep.subr.mxu0 %v1936
    %4844 = vmatpush2.msra.mxu0 %v1935
    %4845 = vmatprep.subr.mxu0 %v1928
    %4846 = vmatpush2.msra.mxu0 %v1927
    %4847 = vmatprep.subr.mxu0 %v1920
    %4848 = vmatpush2.msra.mxu0 %v1919
    %4849 = vmatprep.subr.mxu0 %v1912
    %4850 = vmatpush2.msra.mxu0 %v1911
    %4851 = vmatprep.subr.mxu0 %v1904
    %4852 = vmatpush2.msra.mxu0 %v1903
    %4853 = vmatprep.subr.mxu0 %v1896
    %4854 = vmatpush2.msra.mxu0 %v1895
    %4855 = vmatprep.subr.mxu0 %v1888
    %4856 = vmatpush2.msra.mxu0 %v1887
    %4857 = vmatprep.subr.mxu0 %v1880
    %4858 = vmatpush2.msra.mxu0 %v1879
    %4859 = vmatprep.subr.mxu0 %v1872
    %4860 = vmatpush2.msra.mxu0 %v1871
    %4861 = vmatprep.subr.mxu0 %v1864
    %4862 = vmatpush2.msra.mxu0 %v1863
    %4863 = vmatprep.mubr.f32.mxu0 %v148
    %4864 = vmatmul.mubr.f32.gmra.mxu0 %v147
    %v4865 = vpop.f32.mrf.mxu0
    %v4866 = vadd.f32 %v4789, %v4865
    %v4867 = vpop.f32.mrf.mxu0
    %v4868 = vadd.f32 %v4791, %v4867
    %4869 = vmatprep.mubr.f32.mxu0 %v180
    %4870 = vmatmul.mubr.f32.gmra.mxu0 %v179
    %v4871 = vpop.f32.mrf.mxu0
    %v4872 = vadd.f32 %v4795, %v4871
    %v4873 = vpop.f32.mrf.mxu0
    %v4874 = vadd.f32 %v4797, %v4873
    %4875 = vdwg.mxu0
    %4876 = vmatprep.subr.mxu0 %v2112
    %4877 = vmatpush1.msra.mxu0 %v2111
    %4878 = vmatprep.subr.mxu0 %v2104
    %4879 = vmatpush1.msra.mxu0 %v2103
    %4880 = vmatprep.subr.mxu0 %v2096
    %4881 = vmatpush1.msra.mxu0 %v2095
    %4882 = vmatprep.subr.mxu0 %v2088
    %4883 = vmatpush1.msra.mxu0 %v2087
    %4884 = vmatprep.subr.mxu0 %v2080
    %4885 = vmatpush1.msra.mxu0 %v2079
    %4886 = vmatprep.subr.mxu0 %v2072
    %4887 = vmatpush1.msra.mxu0 %v2071
    %4888 = vmatprep.subr.mxu0 %v2064
    %4889 = vmatpush1.msra.mxu0 %v2063
    %4890 = vmatprep.subr.mxu0 %v2056
    %4891 = vmatpush1.msra.mxu0 %v2055
    %4892 = vmatprep.subr.mxu0 %v2048
    %4893 = vmatpush1.msra.mxu0 %v2047
    %4894 = vmatprep.subr.mxu0 %v2040
    %4895 = vmatpush1.msra.mxu0 %v2039
    %4896 = vmatprep.subr.mxu0 %v2032
    %4897 = vmatpush1.msra.mxu0 %v2031
    %4898 = vmatprep.subr.mxu0 %v2024
    %4899 = vmatpush1.msra.mxu0 %v2023
    %4900 = vmatprep.subr.mxu0 %v2016
    %4901 = vmatpush1.msra.mxu0 %v2015
    %4902 = vmatprep.subr.mxu0 %v2008
    %4903 = vmatpush1.msra.mxu0 %v2007
    %4904 = vmatprep.subr.mxu0 %v2000
    %4905 = vmatpush1.msra.mxu0 %v1999
    %4906 = vmatprep.subr.mxu0 %v1992
    %4907 = vmatpush1.msra.mxu0 %v1991
    %4908 = vmatprep.subr.mxu0 %v2240
    %4909 = vmatpush2.msra.mxu0 %v2239
    %4910 = vmatprep.subr.mxu0 %v2232
    %4911 = vmatpush2.msra.mxu0 %v2231
    %4912 = vmatprep.subr.mxu0 %v2224
    %4913 = vmatpush2.msra.mxu0 %v2223
    %4914 = vmatprep.subr.mxu0 %v2216
    %4915 = vmatpush2.msra.mxu0 %v2215
    %4916 = vmatprep.subr.mxu0 %v2208
    %4917 = vmatpush2.msra.mxu0 %v2207
    %4918 = vmatprep.subr.mxu0 %v2200
    %4919 = vmatpush2.msra.mxu0 %v2199
    %4920 = vmatprep.subr.mxu0 %v2192
    %4921 = vmatpush2.msra.mxu0 %v2191
    %4922 = vmatprep.subr.mxu0 %v2184
    %4923 = vmatpush2.msra.mxu0 %v2183
    %4924 = vmatprep.subr.mxu0 %v2176
    %4925 = vmatpush2.msra.mxu0 %v2175
    %4926 = vmatprep.subr.mxu0 %v2168
    %4927 = vmatpush2.msra.mxu0 %v2167
    %4928 = vmatprep.subr.mxu0 %v2160
    %4929 = vmatpush2.msra.mxu0 %v2159
    %4930 = vmatprep.subr.mxu0 %v2152
    %4931 = vmatpush2.msra.mxu0 %v2151
    %4932 = vmatprep.subr.mxu0 %v2144
    %4933 = vmatpush2.msra.mxu0 %v2143
    %4934 = vmatprep.subr.mxu0 %v2136
    %4935 = vmatpush2.msra.mxu0 %v2135
    %4936 = vmatprep.subr.mxu0 %v2128
    %4937 = vmatpush2.msra.mxu0 %v2127
    %4938 = vmatprep.subr.mxu0 %v2120
    %4939 = vmatpush2.msra.mxu0 %v2119
    %4940 = vmatprep.mubr.f32.mxu0 %v150
    %4941 = vmatmul.mubr.f32.gmra.mxu0 %v149
    %v4942 = vpop.f32.mrf.mxu0
    %v4943 = vadd.f32 %v4866, %v4942
    %v4944 = vpop.f32.mrf.mxu0
    %v4945 = vadd.f32 %v4868, %v4944
    %4946 = vmatprep.mubr.f32.mxu0 %v182
    %4947 = vmatmul.mubr.f32.gmra.mxu0 %v181
    %v4948 = vpop.f32.mrf.mxu0
    %v4949 = vadd.f32 %v4872, %v4948
    %v4950 = vpop.f32.mrf.mxu0
    %v4951 = vadd.f32 %v4874, %v4950
    %4952 = vdwg.mxu0
    %4953 = vmatprep.subr.mxu0 %v2368
    %4954 = vmatpush1.msra.mxu0 %v2367
    %4955 = vmatprep.subr.mxu0 %v2360
    %4956 = vmatpush1.msra.mxu0 %v2359
    %4957 = vmatprep.subr.mxu0 %v2352
    %4958 = vmatpush1.msra.mxu0 %v2351
    %4959 = vmatprep.subr.mxu0 %v2344
    %4960 = vmatpush1.msra.mxu0 %v2343
    %4961 = vmatprep.subr.mxu0 %v2336
    %4962 = vmatpush1.msra.mxu0 %v2335
    %4963 = vmatprep.subr.mxu0 %v2328
    %4964 = vmatpush1.msra.mxu0 %v2327
    %4965 = vmatprep.subr.mxu0 %v2320
    %4966 = vmatpush1.msra.mxu0 %v2319
    %4967 = vmatprep.subr.mxu0 %v2312
    %4968 = vmatpush1.msra.mxu0 %v2311
    %4969 = vmatprep.subr.mxu0 %v2304
    %4970 = vmatpush1.msra.mxu0 %v2303
    %4971 = vmatprep.subr.mxu0 %v2296
    %4972 = vmatpush1.msra.mxu0 %v2295
    %4973 = vmatprep.subr.mxu0 %v2288
    %4974 = vmatpush1.msra.mxu0 %v2287
    %4975 = vmatprep.subr.mxu0 %v2280
    %4976 = vmatpush1.msra.mxu0 %v2279
    %4977 = vmatprep.subr.mxu0 %v2272
    %4978 = vmatpush1.msra.mxu0 %v2271
    %4979 = vmatprep.subr.mxu0 %v2264
    %4980 = vmatpush1.msra.mxu0 %v2263
    %4981 = vmatprep.subr.mxu0 %v2256
    %4982 = vmatpush1.msra.mxu0 %v2255
    %4983 = vmatprep.subr.mxu0 %v2248
    %4984 = vmatpush1.msra.mxu0 %v2247
    %4985 = vmatprep.subr.mxu0 %v2496
    %4986 = vmatpush2.msra.mxu0 %v2495
    %4987 = vmatprep.subr.mxu0 %v2488
    %4988 = vmatpush2.msra.mxu0 %v2487
    %4989 = vmatprep.subr.mxu0 %v2480
    %4990 = vmatpush2.msra.mxu0 %v2479
    %4991 = vmatprep.subr.mxu0 %v2472
    %4992 = vmatpush2.msra.mxu0 %v2471
    %4993 = vmatprep.subr.mxu0 %v2464
    %4994 = vmatpush2.msra.mxu0 %v2463
    %4995 = vmatprep.subr.mxu0 %v2456
    %4996 = vmatpush2.msra.mxu0 %v2455
    %4997 = vmatprep.subr.mxu0 %v2448
    %4998 = vmatpush2.msra.mxu0 %v2447
    %4999 = vmatprep.subr.mxu0 %v2440
    %5000 = vmatpush2.msra.mxu0 %v2439
    %5001 = vmatprep.subr.mxu0 %v2432
    %5002 = vmatpush2.msra.mxu0 %v2431
    %5003 = vmatprep.subr.mxu0 %v2424
    %5004 = vmatpush2.msra.mxu0 %v2423
    %5005 = vmatprep.subr.mxu0 %v2416
    %5006 = vmatpush2.msra.mxu0 %v2415
    %5007 = vmatprep.subr.mxu0 %v2408
    %5008 = vmatpush2.msra.mxu0 %v2407
    %5009 = vmatprep.subr.mxu0 %v2400
    %5010 = vmatpush2.msra.mxu0 %v2399
    %5011 = vmatprep.subr.mxu0 %v2392
    %5012 = vmatpush2.msra.mxu0 %v2391
    %5013 = vmatprep.subr.mxu0 %v2384
    %5014 = vmatpush2.msra.mxu0 %v2383
    %5015 = vmatprep.subr.mxu0 %v2376
    %5016 = vmatpush2.msra.mxu0 %v2375
    %5017 = vmatprep.mubr.f32.mxu0 %v152
    %5018 = vmatmul.mubr.f32.gmra.mxu0 %v151
    %v5019 = vpop.f32.mrf.mxu0
    %v5020 = vadd.f32 %v4943, %v5019
    %v5021 = vpop.f32.mrf.mxu0
    %v5022 = vadd.f32 %v4945, %v5021
    %5023 = vmatprep.mubr.f32.mxu0 %v184
    %5024 = vmatmul.mubr.f32.gmra.mxu0 %v183
    %v5025 = vpop.f32.mrf.mxu0
    %v5026 = vadd.f32 %v4949, %v5025
    %v5027 = vpop.f32.mrf.mxu0
    %v5028 = vadd.f32 %v4951, %v5027
    %5029 = vdwg.mxu0
    %5030 = vmatprep.subr.mxu0 %v2624
    %5031 = vmatpush1.msra.mxu0 %v2623
    %5032 = vmatprep.subr.mxu0 %v2616
    %5033 = vmatpush1.msra.mxu0 %v2615
    %5034 = vmatprep.subr.mxu0 %v2608
    %5035 = vmatpush1.msra.mxu0 %v2607
    %5036 = vmatprep.subr.mxu0 %v2600
    %5037 = vmatpush1.msra.mxu0 %v2599
    %5038 = vmatprep.subr.mxu0 %v2592
    %5039 = vmatpush1.msra.mxu0 %v2591
    %5040 = vmatprep.subr.mxu0 %v2584
    %5041 = vmatpush1.msra.mxu0 %v2583
    %5042 = vmatprep.subr.mxu0 %v2576
    %5043 = vmatpush1.msra.mxu0 %v2575
    %5044 = vmatprep.subr.mxu0 %v2568
    %5045 = vmatpush1.msra.mxu0 %v2567
    %5046 = vmatprep.subr.mxu0 %v2560
    %5047 = vmatpush1.msra.mxu0 %v2559
    %5048 = vmatprep.subr.mxu0 %v2552
    %5049 = vmatpush1.msra.mxu0 %v2551
    %5050 = vmatprep.subr.mxu0 %v2544
    %5051 = vmatpush1.msra.mxu0 %v2543
    %5052 = vmatprep.subr.mxu0 %v2536
    %5053 = vmatpush1.msra.mxu0 %v2535
    %5054 = vmatprep.subr.mxu0 %v2528
    %5055 = vmatpush1.msra.mxu0 %v2527
    %5056 = vmatprep.subr.mxu0 %v2520
    %5057 = vmatpush1.msra.mxu0 %v2519
    %5058 = vmatprep.subr.mxu0 %v2512
    %5059 = vmatpush1.msra.mxu0 %v2511
    %5060 = vmatprep.subr.mxu0 %v2504
    %5061 = vmatpush1.msra.mxu0 %v2503
    %5062 = vmatprep.subr.mxu0 %v2752
    %5063 = vmatpush2.msra.mxu0 %v2751
    %5064 = vmatprep.subr.mxu0 %v2744
    %5065 = vmatpush2.msra.mxu0 %v2743
    %5066 = vmatprep.subr.mxu0 %v2736
    %5067 = vmatpush2.msra.mxu0 %v2735
    %5068 = vmatprep.subr.mxu0 %v2728
    %5069 = vmatpush2.msra.mxu0 %v2727
    %5070 = vmatprep.subr.mxu0 %v2720
    %5071 = vmatpush2.msra.mxu0 %v2719
    %5072 = vmatprep.subr.mxu0 %v2712
    %5073 = vmatpush2.msra.mxu0 %v2711
    %5074 = vmatprep.subr.mxu0 %v2704
    %5075 = vmatpush2.msra.mxu0 %v2703
    %5076 = vmatprep.subr.mxu0 %v2696
    %5077 = vmatpush2.msra.mxu0 %v2695
    %5078 = vmatprep.subr.mxu0 %v2688
    %5079 = vmatpush2.msra.mxu0 %v2687
    %5080 = vmatprep.subr.mxu0 %v2680
    %5081 = vmatpush2.msra.mxu0 %v2679
    %5082 = vmatprep.subr.mxu0 %v2672
    %5083 = vmatpush2.msra.mxu0 %v2671
    %5084 = vmatprep.subr.mxu0 %v2664
    %5085 = vmatpush2.msra.mxu0 %v2663
    %5086 = vmatprep.subr.mxu0 %v2656
    %5087 = vmatpush2.msra.mxu0 %v2655
    %5088 = vmatprep.subr.mxu0 %v2648
    %5089 = vmatpush2.msra.mxu0 %v2647
    %5090 = vmatprep.subr.mxu0 %v2640
    %5091 = vmatpush2.msra.mxu0 %v2639
    %5092 = vmatprep.subr.mxu0 %v2632
    %5093 = vmatpush2.msra.mxu0 %v2631
    %5094 = vmatprep.mubr.f32.mxu0 %v154
    %5095 = vmatmul.mubr.f32.gmra.mxu0 %v153
    %v5096 = vpop.f32.mrf.mxu0
    %v5097 = vadd.f32 %v5020, %v5096
    %v5098 = vpop.f32.mrf.mxu0
    %v5099 = vadd.f32 %v5022, %v5098
    %5100 = vmatprep.mubr.f32.mxu0 %v186
    %5101 = vmatmul.mubr.f32.gmra.mxu0 %v185
    %v5102 = vpop.f32.mrf.mxu0
    %v5103 = vadd.f32 %v5026, %v5102
    %v5104 = vpop.f32.mrf.mxu0
    %v5105 = vadd.f32 %v5028, %v5104
    %5106 = vdwg.mxu0
    %5107 = vmatprep.subr.mxu0 %v2880
    %5108 = vmatpush1.msra.mxu0 %v2879
    %5109 = vmatprep.subr.mxu0 %v2872
    %5110 = vmatpush1.msra.mxu0 %v2871
    %5111 = vmatprep.subr.mxu0 %v2864
    %5112 = vmatpush1.msra.mxu0 %v2863
    %5113 = vmatprep.subr.mxu0 %v2856
    %5114 = vmatpush1.msra.mxu0 %v2855
    %5115 = vmatprep.subr.mxu0 %v2848
    %5116 = vmatpush1.msra.mxu0 %v2847
    %5117 = vmatprep.subr.mxu0 %v2840
    %5118 = vmatpush1.msra.mxu0 %v2839
    %5119 = vmatprep.subr.mxu0 %v2832
    %5120 = vmatpush1.msra.mxu0 %v2831
    %5121 = vmatprep.subr.mxu0 %v2824
    %5122 = vmatpush1.msra.mxu0 %v2823
    %5123 = vmatprep.subr.mxu0 %v2816
    %5124 = vmatpush1.msra.mxu0 %v2815
    %5125 = vmatprep.subr.mxu0 %v2808
    %5126 = vmatpush1.msra.mxu0 %v2807
    %5127 = vmatprep.subr.mxu0 %v2800
    %5128 = vmatpush1.msra.mxu0 %v2799
    %5129 = vmatprep.subr.mxu0 %v2792
    %5130 = vmatpush1.msra.mxu0 %v2791
    %5131 = vmatprep.subr.mxu0 %v2784
    %5132 = vmatpush1.msra.mxu0 %v2783
    %5133 = vmatprep.subr.mxu0 %v2776
    %5134 = vmatpush1.msra.mxu0 %v2775
    %5135 = vmatprep.subr.mxu0 %v2768
    %5136 = vmatpush1.msra.mxu0 %v2767
    %5137 = vmatprep.subr.mxu0 %v2760
    %5138 = vmatpush1.msra.mxu0 %v2759
    %5139 = vmatprep.subr.mxu0 %v3008
    %5140 = vmatpush2.msra.mxu0 %v3007
    %5141 = vmatprep.subr.mxu0 %v3000
    %5142 = vmatpush2.msra.mxu0 %v2999
    %5143 = vmatprep.subr.mxu0 %v2992
    %5144 = vmatpush2.msra.mxu0 %v2991
    %5145 = vmatprep.subr.mxu0 %v2984
    %5146 = vmatpush2.msra.mxu0 %v2983
    %5147 = vmatprep.subr.mxu0 %v2976
    %5148 = vmatpush2.msra.mxu0 %v2975
    %5149 = vmatprep.subr.mxu0 %v2968
    %5150 = vmatpush2.msra.mxu0 %v2967
    %5151 = vmatprep.subr.mxu0 %v2960
    %5152 = vmatpush2.msra.mxu0 %v2959
    %5153 = vmatprep.subr.mxu0 %v2952
    %5154 = vmatpush2.msra.mxu0 %v2951
    %5155 = vmatprep.subr.mxu0 %v2944
    %5156 = vmatpush2.msra.mxu0 %v2943
    %5157 = vmatprep.subr.mxu0 %v2936
    %5158 = vmatpush2.msra.mxu0 %v2935
    %5159 = vmatprep.subr.mxu0 %v2928
    %5160 = vmatpush2.msra.mxu0 %v2927
    %5161 = vmatprep.subr.mxu0 %v2920
    %5162 = vmatpush2.msra.mxu0 %v2919
    %5163 = vmatprep.subr.mxu0 %v2912
    %5164 = vmatpush2.msra.mxu0 %v2911
    %5165 = vmatprep.subr.mxu0 %v2904
    %5166 = vmatpush2.msra.mxu0 %v2903
    %5167 = vmatprep.subr.mxu0 %v2896
    %5168 = vmatpush2.msra.mxu0 %v2895
    %5169 = vmatprep.subr.mxu0 %v2888
    %5170 = vmatpush2.msra.mxu0 %v2887
    %5171 = vmatprep.mubr.f32.mxu0 %v156
    %5172 = vmatmul.mubr.f32.gmra.mxu0 %v155
    %v5173 = vpop.f32.mrf.mxu0
    %v5174 = vadd.f32 %v5097, %v5173
    %v5175 = vpop.f32.mrf.mxu0
    %v5176 = vadd.f32 %v5099, %v5175
    %5177 = vmatprep.mubr.f32.mxu0 %v188
    %5178 = vmatmul.mubr.f32.gmra.mxu0 %v187
    %v5179 = vpop.f32.mrf.mxu0
    %v5180 = vadd.f32 %v5103, %v5179
    %v5181 = vpop.f32.mrf.mxu0
    %v5182 = vadd.f32 %v5105, %v5181
    %5183 = vdwg.mxu0
    %5184 = vmatprep.subr.mxu0 %v3136
    %5185 = vmatpush1.msra.mxu0 %v3135
    %5186 = vmatprep.subr.mxu0 %v3128
    %5187 = vmatpush1.msra.mxu0 %v3127
    %5188 = vmatprep.subr.mxu0 %v3120
    %5189 = vmatpush1.msra.mxu0 %v3119
    %5190 = vmatprep.subr.mxu0 %v3112
    %5191 = vmatpush1.msra.mxu0 %v3111
    %5192 = vmatprep.subr.mxu0 %v3104
    %5193 = vmatpush1.msra.mxu0 %v3103
    %5194 = vmatprep.subr.mxu0 %v3096
    %5195 = vmatpush1.msra.mxu0 %v3095
    %5196 = vmatprep.subr.mxu0 %v3088
    %5197 = vmatpush1.msra.mxu0 %v3087
    %5198 = vmatprep.subr.mxu0 %v3080
    %5199 = vmatpush1.msra.mxu0 %v3079
    %5200 = vmatprep.subr.mxu0 %v3072
    %5201 = vmatpush1.msra.mxu0 %v3071
    %5202 = vmatprep.subr.mxu0 %v3064
    %5203 = vmatpush1.msra.mxu0 %v3063
    %5204 = vmatprep.subr.mxu0 %v3056
    %5205 = vmatpush1.msra.mxu0 %v3055
    %5206 = vmatprep.subr.mxu0 %v3048
    %5207 = vmatpush1.msra.mxu0 %v3047
    %5208 = vmatprep.subr.mxu0 %v3040
    %5209 = vmatpush1.msra.mxu0 %v3039
    %5210 = vmatprep.subr.mxu0 %v3032
    %5211 = vmatpush1.msra.mxu0 %v3031
    %5212 = vmatprep.subr.mxu0 %v3024
    %5213 = vmatpush1.msra.mxu0 %v3023
    %5214 = vmatprep.subr.mxu0 %v3016
    %5215 = vmatpush1.msra.mxu0 %v3015
    %5216 = vmatprep.subr.mxu0 %v3264
    %5217 = vmatpush2.msra.mxu0 %v3263
    %5218 = vmatprep.subr.mxu0 %v3256
    %5219 = vmatpush2.msra.mxu0 %v3255
    %5220 = vmatprep.subr.mxu0 %v3248
    %5221 = vmatpush2.msra.mxu0 %v3247
    %5222 = vmatprep.subr.mxu0 %v3240
    %5223 = vmatpush2.msra.mxu0 %v3239
    %5224 = vmatprep.subr.mxu0 %v3232
    %5225 = vmatpush2.msra.mxu0 %v3231
    %5226 = vmatprep.subr.mxu0 %v3224
    %5227 = vmatpush2.msra.mxu0 %v3223
    %5228 = vmatprep.subr.mxu0 %v3216
    %5229 = vmatpush2.msra.mxu0 %v3215
    %5230 = vmatprep.subr.mxu0 %v3208
    %5231 = vmatpush2.msra.mxu0 %v3207
    %5232 = vmatprep.subr.mxu0 %v3200
    %5233 = vmatpush2.msra.mxu0 %v3199
    %5234 = vmatprep.subr.mxu0 %v3192
    %5235 = vmatpush2.msra.mxu0 %v3191
    %5236 = vmatprep.subr.mxu0 %v3184
    %5237 = vmatpush2.msra.mxu0 %v3183
    %5238 = vmatprep.subr.mxu0 %v3176
    %5239 = vmatpush2.msra.mxu0 %v3175
    %5240 = vmatprep.subr.mxu0 %v3168
    %5241 = vmatpush2.msra.mxu0 %v3167
    %5242 = vmatprep.subr.mxu0 %v3160
    %5243 = vmatpush2.msra.mxu0 %v3159
    %5244 = vmatprep.subr.mxu0 %v3152
    %5245 = vmatpush2.msra.mxu0 %v3151
    %5246 = vmatprep.subr.mxu0 %v3144
    %5247 = vmatpush2.msra.mxu0 %v3143
    %5248 = vmatprep.mubr.f32.mxu0 %v158
    %5249 = vmatmul.mubr.f32.gmra.mxu0 %v157
    %v5250 = vpop.f32.mrf.mxu0
    %v5251 = vadd.f32 %v5174, %v5250
    %v5252 = vpop.f32.mrf.mxu0
    %v5253 = vadd.f32 %v5176, %v5252
    %5254 = vmatprep.mubr.f32.mxu0 %v190
    %5255 = vmatmul.mubr.f32.gmra.mxu0 %v189
    %v5256 = vpop.f32.mrf.mxu0
    %v5257 = vadd.f32 %v5180, %v5256
    %v5258 = vpop.f32.mrf.mxu0
    %v5259 = vadd.f32 %v5182, %v5258
    %5260 = vdwg.mxu0
    %5261 = vmatprep.subr.mxu0 %v3392
    %5262 = vmatpush1.msra.mxu0 %v3391
    %5263 = vmatprep.subr.mxu0 %v3384
    %5264 = vmatpush1.msra.mxu0 %v3383
    %5265 = vmatprep.subr.mxu0 %v3376
    %5266 = vmatpush1.msra.mxu0 %v3375
    %5267 = vmatprep.subr.mxu0 %v3368
    %5268 = vmatpush1.msra.mxu0 %v3367
    %5269 = vmatprep.subr.mxu0 %v3360
    %5270 = vmatpush1.msra.mxu0 %v3359
    %5271 = vmatprep.subr.mxu0 %v3352
    %5272 = vmatpush1.msra.mxu0 %v3351
    %5273 = vmatprep.subr.mxu0 %v3344
    %5274 = vmatpush1.msra.mxu0 %v3343
    %5275 = vmatprep.subr.mxu0 %v3336
    %5276 = vmatpush1.msra.mxu0 %v3335
    %5277 = vmatprep.subr.mxu0 %v3328
    %5278 = vmatpush1.msra.mxu0 %v3327
    %5279 = vmatprep.subr.mxu0 %v3320
    %5280 = vmatpush1.msra.mxu0 %v3319
    %5281 = vmatprep.subr.mxu0 %v3312
    %5282 = vmatpush1.msra.mxu0 %v3311
    %5283 = vmatprep.subr.mxu0 %v3304
    %5284 = vmatpush1.msra.mxu0 %v3303
    %5285 = vmatprep.subr.mxu0 %v3296
    %5286 = vmatpush1.msra.mxu0 %v3295
    %5287 = vmatprep.subr.mxu0 %v3288
    %5288 = vmatpush1.msra.mxu0 %v3287
    %5289 = vmatprep.subr.mxu0 %v3280
    %5290 = vmatpush1.msra.mxu0 %v3279
    %5291 = vmatprep.subr.mxu0 %v3272
    %5292 = vmatpush1.msra.mxu0 %v3271
    %5293 = vmatprep.subr.mxu0 %v3520
    %5294 = vmatpush2.msra.mxu0 %v3519
    %5295 = vmatprep.subr.mxu0 %v3512
    %5296 = vmatpush2.msra.mxu0 %v3511
    %5297 = vmatprep.subr.mxu0 %v3504
    %5298 = vmatpush2.msra.mxu0 %v3503
    %5299 = vmatprep.subr.mxu0 %v3496
    %5300 = vmatpush2.msra.mxu0 %v3495
    %5301 = vmatprep.subr.mxu0 %v3488
    %5302 = vmatpush2.msra.mxu0 %v3487
    %5303 = vmatprep.subr.mxu0 %v3480
    %5304 = vmatpush2.msra.mxu0 %v3479
    %5305 = vmatprep.subr.mxu0 %v3472
    %5306 = vmatpush2.msra.mxu0 %v3471
    %5307 = vmatprep.subr.mxu0 %v3464
    %5308 = vmatpush2.msra.mxu0 %v3463
    %5309 = vmatprep.subr.mxu0 %v3456
    %5310 = vmatpush2.msra.mxu0 %v3455
    %5311 = vmatprep.subr.mxu0 %v3448
    %5312 = vmatpush2.msra.mxu0 %v3447
    %5313 = vmatprep.subr.mxu0 %v3440
    %5314 = vmatpush2.msra.mxu0 %v3439
    %5315 = vmatprep.subr.mxu0 %v3432
    %5316 = vmatpush2.msra.mxu0 %v3431
    %5317 = vmatprep.subr.mxu0 %v3424
    %5318 = vmatpush2.msra.mxu0 %v3423
    %5319 = vmatprep.subr.mxu0 %v3416
    %5320 = vmatpush2.msra.mxu0 %v3415
    %5321 = vmatprep.subr.mxu0 %v3408
    %5322 = vmatpush2.msra.mxu0 %v3407
    %5323 = vmatprep.subr.mxu0 %v3400
    %5324 = vmatpush2.msra.mxu0 %v3399
    %5325 = vmatprep.mubr.f32.mxu0 %v160
    %5326 = vmatmul.mubr.f32.gmra.mxu0 %v159
    %v5327 = vpop.f32.mrf.mxu0
    %v5328 = vadd.f32 %v5251, %v5327
    %v5329 = vpop.f32.mrf.mxu0
    %v5330 = vadd.f32 %v5253, %v5329
    %5331 = vmatprep.mubr.f32.mxu0 %v192
    %5332 = vmatmul.mubr.f32.gmra.mxu0 %v191
    %v5333 = vpop.f32.mrf.mxu0
    %v5334 = vadd.f32 %v5257, %v5333
    %v5335 = vpop.f32.mrf.mxu0
    %v5336 = vadd.f32 %v5259, %v5335
    %5337 = vdwg.mxu0
    %5338 = vmatprep.subr.mxu0 %v3648
    %5339 = vmatpush1.msra.mxu0 %v3647
    %5340 = vmatprep.subr.mxu0 %v3640
    %5341 = vmatpush1.msra.mxu0 %v3639
    %5342 = vmatprep.subr.mxu0 %v3632
    %5343 = vmatpush1.msra.mxu0 %v3631
    %5344 = vmatprep.subr.mxu0 %v3624
    %5345 = vmatpush1.msra.mxu0 %v3623
    %5346 = vmatprep.subr.mxu0 %v3616
    %5347 = vmatpush1.msra.mxu0 %v3615
    %5348 = vmatprep.subr.mxu0 %v3608
    %5349 = vmatpush1.msra.mxu0 %v3607
    %5350 = vmatprep.subr.mxu0 %v3600
    %5351 = vmatpush1.msra.mxu0 %v3599
    %5352 = vmatprep.subr.mxu0 %v3592
    %5353 = vmatpush1.msra.mxu0 %v3591
    %5354 = vmatprep.subr.mxu0 %v3584
    %5355 = vmatpush1.msra.mxu0 %v3583
    %5356 = vmatprep.subr.mxu0 %v3576
    %5357 = vmatpush1.msra.mxu0 %v3575
    %5358 = vmatprep.subr.mxu0 %v3568
    %5359 = vmatpush1.msra.mxu0 %v3567
    %5360 = vmatprep.subr.mxu0 %v3560
    %5361 = vmatpush1.msra.mxu0 %v3559
    %5362 = vmatprep.subr.mxu0 %v3552
    %5363 = vmatpush1.msra.mxu0 %v3551
    %5364 = vmatprep.subr.mxu0 %v3544
    %5365 = vmatpush1.msra.mxu0 %v3543
    %5366 = vmatprep.subr.mxu0 %v3536
    %5367 = vmatpush1.msra.mxu0 %v3535
    %5368 = vmatprep.subr.mxu0 %v3528
    %5369 = vmatpush1.msra.mxu0 %v3527
    %5370 = vmatprep.subr.mxu0 %v3776
    %5371 = vmatpush2.msra.mxu0 %v3775
    %5372 = vmatprep.subr.mxu0 %v3768
    %5373 = vmatpush2.msra.mxu0 %v3767
    %5374 = vmatprep.subr.mxu0 %v3760
    %5375 = vmatpush2.msra.mxu0 %v3759
    %5376 = vmatprep.subr.mxu0 %v3752
    %5377 = vmatpush2.msra.mxu0 %v3751
    %5378 = vmatprep.subr.mxu0 %v3744
    %5379 = vmatpush2.msra.mxu0 %v3743
    %5380 = vmatprep.subr.mxu0 %v3736
    %5381 = vmatpush2.msra.mxu0 %v3735
    %5382 = vmatprep.subr.mxu0 %v3728
    %5383 = vmatpush2.msra.mxu0 %v3727
    %5384 = vmatprep.subr.mxu0 %v3720
    %5385 = vmatpush2.msra.mxu0 %v3719
    %5386 = vmatprep.subr.mxu0 %v3712
    %5387 = vmatpush2.msra.mxu0 %v3711
    %5388 = vmatprep.subr.mxu0 %v3704
    %5389 = vmatpush2.msra.mxu0 %v3703
    %5390 = vmatprep.subr.mxu0 %v3696
    %5391 = vmatpush2.msra.mxu0 %v3695
    %5392 = vmatprep.subr.mxu0 %v3688
    %5393 = vmatpush2.msra.mxu0 %v3687
    %5394 = vmatprep.subr.mxu0 %v3680
    %5395 = vmatpush2.msra.mxu0 %v3679
    %5396 = vmatprep.subr.mxu0 %v3672
    %5397 = vmatpush2.msra.mxu0 %v3671
    %5398 = vmatprep.subr.mxu0 %v3664
    %5399 = vmatpush2.msra.mxu0 %v3663
    %5400 = vmatprep.subr.mxu0 %v3656
    %5401 = vmatpush2.msra.mxu0 %v3655
    %5402 = vmatprep.mubr.f32.mxu0 %v162
    %5403 = vmatmul.mubr.f32.gmra.mxu0 %v161
    %v5404 = vpop.f32.mrf.mxu0
    %v5405 = vadd.f32 %v5328, %v5404
    %v5406 = vpop.f32.mrf.mxu0
    %v5407 = vadd.f32 %v5330, %v5406
    %5408 = vmatprep.mubr.f32.mxu0 %v194
    %5409 = vmatmul.mubr.f32.gmra.mxu0 %v193
    %v5410 = vpop.f32.mrf.mxu0
    %v5411 = vadd.f32 %v5334, %v5410
    %v5412 = vpop.f32.mrf.mxu0
    %v5413 = vadd.f32 %v5336, %v5412
    %5414 = vdwg.mxu0
    %5415 = vmatprep.subr.mxu0 %v3904
    %5416 = vmatpush1.msra.mxu0 %v3903
    %5417 = vmatprep.subr.mxu0 %v3896
    %5418 = vmatpush1.msra.mxu0 %v3895
    %5419 = vmatprep.subr.mxu0 %v3888
    %5420 = vmatpush1.msra.mxu0 %v3887
    %5421 = vmatprep.subr.mxu0 %v3880
    %5422 = vmatpush1.msra.mxu0 %v3879
    %5423 = vmatprep.subr.mxu0 %v3872
    %5424 = vmatpush1.msra.mxu0 %v3871
    %5425 = vmatprep.subr.mxu0 %v3864
    %5426 = vmatpush1.msra.mxu0 %v3863
    %5427 = vmatprep.subr.mxu0 %v3856
    %5428 = vmatpush1.msra.mxu0 %v3855
    %5429 = vmatprep.subr.mxu0 %v3848
    %5430 = vmatpush1.msra.mxu0 %v3847
    %5431 = vmatprep.subr.mxu0 %v3840
    %5432 = vmatpush1.msra.mxu0 %v3839
    %5433 = vmatprep.subr.mxu0 %v3832
    %5434 = vmatpush1.msra.mxu0 %v3831
    %5435 = vmatprep.subr.mxu0 %v3824
    %5436 = vmatpush1.msra.mxu0 %v3823
    %5437 = vmatprep.subr.mxu0 %v3816
    %5438 = vmatpush1.msra.mxu0 %v3815
    %5439 = vmatprep.subr.mxu0 %v3808
    %5440 = vmatpush1.msra.mxu0 %v3807
    %5441 = vmatprep.subr.mxu0 %v3800
    %5442 = vmatpush1.msra.mxu0 %v3799
    %5443 = vmatprep.subr.mxu0 %v3792
    %5444 = vmatpush1.msra.mxu0 %v3791
    %5445 = vmatprep.subr.mxu0 %v3784
    %5446 = vmatpush1.msra.mxu0 %v3783
    %5447 = vmatprep.subr.mxu0 %v4032
    %5448 = vmatpush2.msra.mxu0 %v4031
    %5449 = vmatprep.subr.mxu0 %v4024
    %5450 = vmatpush2.msra.mxu0 %v4023
    %5451 = vmatprep.subr.mxu0 %v4016
    %5452 = vmatpush2.msra.mxu0 %v4015
    %5453 = vmatprep.subr.mxu0 %v4008
    %5454 = vmatpush2.msra.mxu0 %v4007
    %5455 = vmatprep.subr.mxu0 %v4000
    %5456 = vmatpush2.msra.mxu0 %v3999
    %5457 = vmatprep.subr.mxu0 %v3992
    %5458 = vmatpush2.msra.mxu0 %v3991
    %5459 = vmatprep.subr.mxu0 %v3984
    %5460 = vmatpush2.msra.mxu0 %v3983
    %5461 = vmatprep.subr.mxu0 %v3976
    %5462 = vmatpush2.msra.mxu0 %v3975
    %5463 = vmatprep.subr.mxu0 %v3968
    %5464 = vmatpush2.msra.mxu0 %v3967
    %5465 = vmatprep.subr.mxu0 %v3960
    %5466 = vmatpush2.msra.mxu0 %v3959
    %5467 = vmatprep.subr.mxu0 %v3952
    %5468 = vmatpush2.msra.mxu0 %v3951
    %5469 = vmatprep.subr.mxu0 %v3944
    %5470 = vmatpush2.msra.mxu0 %v3943
    %5471 = vmatprep.subr.mxu0 %v3936
    %5472 = vmatpush2.msra.mxu0 %v3935
    %5473 = vmatprep.subr.mxu0 %v3928
    %5474 = vmatpush2.msra.mxu0 %v3927
    %5475 = vmatprep.subr.mxu0 %v3920
    %5476 = vmatpush2.msra.mxu0 %v3919
    %5477 = vmatprep.subr.mxu0 %v3912
    %5478 = vmatpush2.msra.mxu0 %v3911
    %5479 = vmatprep.mubr.f32.mxu0 %v164
    %5480 = vmatmul.mubr.f32.gmra.mxu0 %v163
    %v5481 = vpop.f32.mrf.mxu0
    %v5482 = vadd.f32 %v5405, %v5481
    %v5483 = vpop.f32.mrf.mxu0
    %v5484 = vadd.f32 %v5407, %v5483
    %5485 = vmatprep.mubr.f32.mxu0 %v196
    %5486 = vmatmul.mubr.f32.gmra.mxu0 %v195
    %v5487 = vpop.f32.mrf.mxu0
    %v5488 = vadd.f32 %v5411, %v5487
    %v5489 = vpop.f32.mrf.mxu0
    %v5490 = vadd.f32 %v5413, %v5489
    %5491 = vdwg.mxu0
    %5492 = vmatprep.subr.mxu0 %v4160
    %5493 = vmatpush1.msra.mxu0 %v4159
    %5494 = vmatprep.subr.mxu0 %v4152
    %5495 = vmatpush1.msra.mxu0 %v4151
    %5496 = vmatprep.subr.mxu0 %v4144
    %5497 = vmatpush1.msra.mxu0 %v4143
    %5498 = vmatprep.subr.mxu0 %v4136
    %5499 = vmatpush1.msra.mxu0 %v4135
    %5500 = vmatprep.subr.mxu0 %v4128
    %5501 = vmatpush1.msra.mxu0 %v4127
    %5502 = vmatprep.subr.mxu0 %v4120
    %5503 = vmatpush1.msra.mxu0 %v4119
    %5504 = vmatprep.subr.mxu0 %v4112
    %5505 = vmatpush1.msra.mxu0 %v4111
    %5506 = vmatprep.subr.mxu0 %v4104
    %5507 = vmatpush1.msra.mxu0 %v4103
    %5508 = vmatprep.subr.mxu0 %v4096
    %5509 = vmatpush1.msra.mxu0 %v4095
    %5510 = vmatprep.subr.mxu0 %v4088
    %5511 = vmatpush1.msra.mxu0 %v4087
    %5512 = vmatprep.subr.mxu0 %v4080
    %5513 = vmatpush1.msra.mxu0 %v4079
    %5514 = vmatprep.subr.mxu0 %v4072
    %5515 = vmatpush1.msra.mxu0 %v4071
    %5516 = vmatprep.subr.mxu0 %v4064
    %5517 = vmatpush1.msra.mxu0 %v4063
    %5518 = vmatprep.subr.mxu0 %v4056
    %5519 = vmatpush1.msra.mxu0 %v4055
    %5520 = vmatprep.subr.mxu0 %v4048
    %5521 = vmatpush1.msra.mxu0 %v4047
    %5522 = vmatprep.subr.mxu0 %v4040
    %5523 = vmatpush1.msra.mxu0 %v4039
    %5524 = vmatprep.subr.mxu0 %v4288
    %5525 = vmatpush2.msra.mxu0 %v4287
    %5526 = vmatprep.subr.mxu0 %v4280
    %5527 = vmatpush2.msra.mxu0 %v4279
    %5528 = vmatprep.subr.mxu0 %v4272
    %5529 = vmatpush2.msra.mxu0 %v4271
    %5530 = vmatprep.subr.mxu0 %v4264
    %5531 = vmatpush2.msra.mxu0 %v4263
    %5532 = vmatprep.subr.mxu0 %v4256
    %5533 = vmatpush2.msra.mxu0 %v4255
    %5534 = vmatprep.subr.mxu0 %v4248
    %5535 = vmatpush2.msra.mxu0 %v4247
    %5536 = vmatprep.subr.mxu0 %v4240
    %5537 = vmatpush2.msra.mxu0 %v4239
    %5538 = vmatprep.subr.mxu0 %v4232
    %5539 = vmatpush2.msra.mxu0 %v4231
    %5540 = vmatprep.subr.mxu0 %v4224
    %5541 = vmatpush2.msra.mxu0 %v4223
    %5542 = vmatprep.subr.mxu0 %v4216
    %5543 = vmatpush2.msra.mxu0 %v4215
    %5544 = vmatprep.subr.mxu0 %v4208
    %5545 = vmatpush2.msra.mxu0 %v4207
    %5546 = vmatprep.subr.mxu0 %v4200
    %5547 = vmatpush2.msra.mxu0 %v4199
    %5548 = vmatprep.subr.mxu0 %v4192
    %5549 = vmatpush2.msra.mxu0 %v4191
    %5550 = vmatprep.subr.mxu0 %v4184
    %5551 = vmatpush2.msra.mxu0 %v4183
    %5552 = vmatprep.subr.mxu0 %v4176
    %5553 = vmatpush2.msra.mxu0 %v4175
    %5554 = vmatprep.subr.mxu0 %v4168
    %5555 = vmatpush2.msra.mxu0 %v4167
    %5556 = vmatprep.mubr.f32.mxu0 %v166
    %5557 = vmatmul.mubr.f32.gmra.mxu0 %v165
    %v5558 = vpop.f32.mrf.mxu0
    %v5559 = vadd.f32 %v5482, %v5558
    %v5560 = vpop.f32.mrf.mxu0
    %v5561 = vadd.f32 %v5484, %v5560
    %5562 = vmatprep.mubr.f32.mxu0 %v198
    %5563 = vmatmul.mubr.f32.gmra.mxu0 %v197
    %v5564 = vpop.f32.mrf.mxu0
    %v5565 = vadd.f32 %v5488, %v5564
    %v5566 = vpop.f32.mrf.mxu0
    %v5567 = vadd.f32 %v5490, %v5566
    %5568 = vdwg.mxu0
    %5569 = vmatprep.subr.mxu0 %v322
    %5570 = vmatpush1.msra.mxu0 %v321
    %5571 = vmatprep.subr.mxu0 %v314
    %5572 = vmatpush1.msra.mxu0 %v313
    %5573 = vmatprep.subr.mxu0 %v306
    %5574 = vmatpush1.msra.mxu0 %v305
    %5575 = vmatprep.subr.mxu0 %v298
    %5576 = vmatpush1.msra.mxu0 %v297
    %5577 = vmatprep.subr.mxu0 %v290
    %5578 = vmatpush1.msra.mxu0 %v289
    %5579 = vmatprep.subr.mxu0 %v282
    %5580 = vmatpush1.msra.mxu0 %v281
    %5581 = vmatprep.subr.mxu0 %v274
    %5582 = vmatpush1.msra.mxu0 %v273
    %5583 = vmatprep.subr.mxu0 %v266
    %5584 = vmatpush1.msra.mxu0 %v265
    %5585 = vmatprep.subr.mxu0 %v258
    %5586 = vmatpush1.msra.mxu0 %v257
    %5587 = vmatprep.subr.mxu0 %v250
    %5588 = vmatpush1.msra.mxu0 %v249
    %5589 = vmatprep.subr.mxu0 %v242
    %5590 = vmatpush1.msra.mxu0 %v241
    %5591 = vmatprep.subr.mxu0 %v234
    %5592 = vmatpush1.msra.mxu0 %v233
    %5593 = vmatprep.subr.mxu0 %v226
    %5594 = vmatpush1.msra.mxu0 %v225
    %5595 = vmatprep.subr.mxu0 %v218
    %5596 = vmatpush1.msra.mxu0 %v217
    %5597 = vmatprep.subr.mxu0 %v210
    %5598 = vmatpush1.msra.mxu0 %v209
    %5599 = vmatprep.subr.mxu0 %v202
    %5600 = vmatpush1.msra.mxu0 %v201
    %5601 = vmatprep.subr.mxu0 %v450
    %5602 = vmatpush2.msra.mxu0 %v449
    %5603 = vmatprep.subr.mxu0 %v442
    %5604 = vmatpush2.msra.mxu0 %v441
    %5605 = vmatprep.subr.mxu0 %v434
    %5606 = vmatpush2.msra.mxu0 %v433
    %5607 = vmatprep.subr.mxu0 %v426
    %5608 = vmatpush2.msra.mxu0 %v425
    %5609 = vmatprep.subr.mxu0 %v418
    %5610 = vmatpush2.msra.mxu0 %v417
    %5611 = vmatprep.subr.mxu0 %v410
    %5612 = vmatpush2.msra.mxu0 %v409
    %5613 = vmatprep.subr.mxu0 %v402
    %5614 = vmatpush2.msra.mxu0 %v401
    %5615 = vmatprep.subr.mxu0 %v394
    %5616 = vmatpush2.msra.mxu0 %v393
    %5617 = vmatprep.subr.mxu0 %v386
    %5618 = vmatpush2.msra.mxu0 %v385
    %5619 = vmatprep.subr.mxu0 %v378
    %5620 = vmatpush2.msra.mxu0 %v377
    %5621 = vmatprep.subr.mxu0 %v370
    %5622 = vmatpush2.msra.mxu0 %v369
    %5623 = vmatprep.subr.mxu0 %v362
    %5624 = vmatpush2.msra.mxu0 %v361
    %5625 = vmatprep.subr.mxu0 %v354
    %5626 = vmatpush2.msra.mxu0 %v353
    %5627 = vmatprep.subr.mxu0 %v346
    %5628 = vmatpush2.msra.mxu0 %v345
    %5629 = vmatprep.subr.mxu0 %v338
    %5630 = vmatpush2.msra.mxu0 %v337
    %5631 = vmatprep.subr.mxu0 %v330
    %5632 = vmatpush2.msra.mxu0 %v329
    %5633 = vmatprep.mubr.f32.mxu0 %v136
    %5634 = vmatmul.mubr.f32.gmra.mxu0 %v135
    %v5635 = vpop.f32.mrf.mxu0
    %v5636 = vadd.f32 %v4308, %v5635
    %v5637 = vpop.f32.mrf.mxu0
    %v5638 = vadd.f32 %v4312, %v5637
    %5639 = vmatprep.mubr.f32.mxu0 %v168
    %5640 = vmatmul.mubr.f32.gmra.mxu0 %v167
    %v5641 = vpop.f32.mrf.mxu0
    %v5642 = vadd.f32 %v4308, %v5641
    %v5643 = vpop.f32.mrf.mxu0
    %v5644 = vadd.f32 %v4312, %v5643
    %5645 = vdwg.mxu0
    %5646 = vmatprep.subr.mxu0 %v578
    %5647 = vmatpush1.msra.mxu0 %v577
    %5648 = vmatprep.subr.mxu0 %v570
    %5649 = vmatpush1.msra.mxu0 %v569
    %5650 = vmatprep.subr.mxu0 %v562
    %5651 = vmatpush1.msra.mxu0 %v561
    %5652 = vmatprep.subr.mxu0 %v554
    %5653 = vmatpush1.msra.mxu0 %v553
    %5654 = vmatprep.subr.mxu0 %v546
    %5655 = vmatpush1.msra.mxu0 %v545
    %5656 = vmatprep.subr.mxu0 %v538
    %5657 = vmatpush1.msra.mxu0 %v537
    %5658 = vmatprep.subr.mxu0 %v530
    %5659 = vmatpush1.msra.mxu0 %v529
    %5660 = vmatprep.subr.mxu0 %v522
    %5661 = vmatpush1.msra.mxu0 %v521
    %5662 = vmatprep.subr.mxu0 %v514
    %5663 = vmatpush1.msra.mxu0 %v513
    %5664 = vmatprep.subr.mxu0 %v506
    %5665 = vmatpush1.msra.mxu0 %v505
    %5666 = vmatprep.subr.mxu0 %v498
    %5667 = vmatpush1.msra.mxu0 %v497
    %5668 = vmatprep.subr.mxu0 %v490
    %5669 = vmatpush1.msra.mxu0 %v489
    %5670 = vmatprep.subr.mxu0 %v482
    %5671 = vmatpush1.msra.mxu0 %v481
    %5672 = vmatprep.subr.mxu0 %v474
    %5673 = vmatpush1.msra.mxu0 %v473
    %5674 = vmatprep.subr.mxu0 %v466
    %5675 = vmatpush1.msra.mxu0 %v465
    %5676 = vmatprep.subr.mxu0 %v458
    %5677 = vmatpush1.msra.mxu0 %v457
    %5678 = vmatprep.subr.mxu0 %v706
    %5679 = vmatpush2.msra.mxu0 %v705
    %5680 = vmatprep.subr.mxu0 %v698
    %5681 = vmatpush2.msra.mxu0 %v697
    %5682 = vmatprep.subr.mxu0 %v690
    %5683 = vmatpush2.msra.mxu0 %v689
    %5684 = vmatprep.subr.mxu0 %v682
    %5685 = vmatpush2.msra.mxu0 %v681
    %5686 = vmatprep.subr.mxu0 %v674
    %5687 = vmatpush2.msra.mxu0 %v673
    %5688 = vmatprep.subr.mxu0 %v666
    %5689 = vmatpush2.msra.mxu0 %v665
    %5690 = vmatprep.subr.mxu0 %v658
    %5691 = vmatpush2.msra.mxu0 %v657
    %5692 = vmatprep.subr.mxu0 %v650
    %5693 = vmatpush2.msra.mxu0 %v649
    %5694 = vmatprep.subr.mxu0 %v642
    %5695 = vmatpush2.msra.mxu0 %v641
    %5696 = vmatprep.subr.mxu0 %v634
    %5697 = vmatpush2.msra.mxu0 %v633
    %5698 = vmatprep.subr.mxu0 %v626
    %5699 = vmatpush2.msra.mxu0 %v625
    %5700 = vmatprep.subr.mxu0 %v618
    %5701 = vmatpush2.msra.mxu0 %v617
    %5702 = vmatprep.subr.mxu0 %v610
    %5703 = vmatpush2.msra.mxu0 %v609
    %5704 = vmatprep.subr.mxu0 %v602
    %5705 = vmatpush2.msra.mxu0 %v601
    %5706 = vmatprep.subr.mxu0 %v594
    %5707 = vmatpush2.msra.mxu0 %v593
    %5708 = vmatprep.subr.mxu0 %v586
    %5709 = vmatpush2.msra.mxu0 %v585
    %5710 = vmatprep.mubr.f32.mxu0 %v138
    %5711 = vmatmul.mubr.f32.gmra.mxu0 %v137
    %v5712 = vpop.f32.mrf.mxu0
    %v5713 = vadd.f32 %v5636, %v5712
    %v5714 = vpop.f32.mrf.mxu0
    %v5715 = vadd.f32 %v5638, %v5714
    %5716 = vmatprep.mubr.f32.mxu0 %v170
    %5717 = vmatmul.mubr.f32.gmra.mxu0 %v169
    %v5718 = vpop.f32.mrf.mxu0
    %v5719 = vadd.f32 %v5642, %v5718
    %v5720 = vpop.f32.mrf.mxu0
    %v5721 = vadd.f32 %v5644, %v5720
    %5722 = vdwg.mxu0
    %5723 = vmatprep.subr.mxu0 %v834
    %5724 = vmatpush1.msra.mxu0 %v833
    %5725 = vmatprep.subr.mxu0 %v826
    %5726 = vmatpush1.msra.mxu0 %v825
    %5727 = vmatprep.subr.mxu0 %v818
    %5728 = vmatpush1.msra.mxu0 %v817
    %5729 = vmatprep.subr.mxu0 %v810
    %5730 = vmatpush1.msra.mxu0 %v809
    %5731 = vmatprep.subr.mxu0 %v802
    %5732 = vmatpush1.msra.mxu0 %v801
    %5733 = vmatprep.subr.mxu0 %v794
    %5734 = vmatpush1.msra.mxu0 %v793
    %5735 = vmatprep.subr.mxu0 %v786
    %5736 = vmatpush1.msra.mxu0 %v785
    %5737 = vmatprep.subr.mxu0 %v778
    %5738 = vmatpush1.msra.mxu0 %v777
    %5739 = vmatprep.subr.mxu0 %v770
    %5740 = vmatpush1.msra.mxu0 %v769
    %5741 = vmatprep.subr.mxu0 %v762
    %5742 = vmatpush1.msra.mxu0 %v761
    %5743 = vmatprep.subr.mxu0 %v754
    %5744 = vmatpush1.msra.mxu0 %v753
    %5745 = vmatprep.subr.mxu0 %v746
    %5746 = vmatpush1.msra.mxu0 %v745
    %5747 = vmatprep.subr.mxu0 %v738
    %5748 = vmatpush1.msra.mxu0 %v737
    %5749 = vmatprep.subr.mxu0 %v730
    %5750 = vmatpush1.msra.mxu0 %v729
    %5751 = vmatprep.subr.mxu0 %v722
    %5752 = vmatpush1.msra.mxu0 %v721
    %5753 = vmatprep.subr.mxu0 %v714
    %5754 = vmatpush1.msra.mxu0 %v713
    %5755 = vmatprep.subr.mxu0 %v962
    %5756 = vmatpush2.msra.mxu0 %v961
    %5757 = vmatprep.subr.mxu0 %v954
    %5758 = vmatpush2.msra.mxu0 %v953
    %5759 = vmatprep.subr.mxu0 %v946
    %5760 = vmatpush2.msra.mxu0 %v945
    %5761 = vmatprep.subr.mxu0 %v938
    %5762 = vmatpush2.msra.mxu0 %v937
    %5763 = vmatprep.subr.mxu0 %v930
    %5764 = vmatpush2.msra.mxu0 %v929
    %5765 = vmatprep.subr.mxu0 %v922
    %5766 = vmatpush2.msra.mxu0 %v921
    %5767 = vmatprep.subr.mxu0 %v914
    %5768 = vmatpush2.msra.mxu0 %v913
    %5769 = vmatprep.subr.mxu0 %v906
    %5770 = vmatpush2.msra.mxu0 %v905
    %5771 = vmatprep.subr.mxu0 %v898
    %5772 = vmatpush2.msra.mxu0 %v897
    %5773 = vmatprep.subr.mxu0 %v890
    %5774 = vmatpush2.msra.mxu0 %v889
    %5775 = vmatprep.subr.mxu0 %v882
    %5776 = vmatpush2.msra.mxu0 %v881
    %5777 = vmatprep.subr.mxu0 %v874
    %5778 = vmatpush2.msra.mxu0 %v873
    %5779 = vmatprep.subr.mxu0 %v866
    %5780 = vmatpush2.msra.mxu0 %v865
    %5781 = vmatprep.subr.mxu0 %v858
    %5782 = vmatpush2.msra.mxu0 %v857
    %5783 = vmatprep.subr.mxu0 %v850
    %5784 = vmatpush2.msra.mxu0 %v849
    %5785 = vmatprep.subr.mxu0 %v842
    %5786 = vmatpush2.msra.mxu0 %v841
    %5787 = vmatprep.mubr.f32.mxu0 %v140
    %5788 = vmatmul.mubr.f32.gmra.mxu0 %v139
    %v5789 = vpop.f32.mrf.mxu0
    %v5790 = vadd.f32 %v5713, %v5789
    %v5791 = vpop.f32.mrf.mxu0
    %v5792 = vadd.f32 %v5715, %v5791
    %5793 = vmatprep.mubr.f32.mxu0 %v172
    %5794 = vmatmul.mubr.f32.gmra.mxu0 %v171
    %v5795 = vpop.f32.mrf.mxu0
    %v5796 = vadd.f32 %v5719, %v5795
    %v5797 = vpop.f32.mrf.mxu0
    %v5798 = vadd.f32 %v5721, %v5797
    %5799 = vdwg.mxu0
    %5800 = vmatprep.subr.mxu0 %v1090
    %5801 = vmatpush1.msra.mxu0 %v1089
    %5802 = vmatprep.subr.mxu0 %v1082
    %5803 = vmatpush1.msra.mxu0 %v1081
    %5804 = vmatprep.subr.mxu0 %v1074
    %5805 = vmatpush1.msra.mxu0 %v1073
    %5806 = vmatprep.subr.mxu0 %v1066
    %5807 = vmatpush1.msra.mxu0 %v1065
    %5808 = vmatprep.subr.mxu0 %v1058
    %5809 = vmatpush1.msra.mxu0 %v1057
    %5810 = vmatprep.subr.mxu0 %v1050
    %5811 = vmatpush1.msra.mxu0 %v1049
    %5812 = vmatprep.subr.mxu0 %v1042
    %5813 = vmatpush1.msra.mxu0 %v1041
    %5814 = vmatprep.subr.mxu0 %v1034
    %5815 = vmatpush1.msra.mxu0 %v1033
    %5816 = vmatprep.subr.mxu0 %v1026
    %5817 = vmatpush1.msra.mxu0 %v1025
    %5818 = vmatprep.subr.mxu0 %v1018
    %5819 = vmatpush1.msra.mxu0 %v1017
    %5820 = vmatprep.subr.mxu0 %v1010
    %5821 = vmatpush1.msra.mxu0 %v1009
    %5822 = vmatprep.subr.mxu0 %v1002
    %5823 = vmatpush1.msra.mxu0 %v1001
    %5824 = vmatprep.subr.mxu0 %v994
    %5825 = vmatpush1.msra.mxu0 %v993
    %5826 = vmatprep.subr.mxu0 %v986
    %5827 = vmatpush1.msra.mxu0 %v985
    %5828 = vmatprep.subr.mxu0 %v978
    %5829 = vmatpush1.msra.mxu0 %v977
    %5830 = vmatprep.subr.mxu0 %v970
    %5831 = vmatpush1.msra.mxu0 %v969
    %5832 = vmatprep.subr.mxu0 %v1218
    %5833 = vmatpush2.msra.mxu0 %v1217
    %5834 = vmatprep.subr.mxu0 %v1210
    %5835 = vmatpush2.msra.mxu0 %v1209
    %5836 = vmatprep.subr.mxu0 %v1202
    %5837 = vmatpush2.msra.mxu0 %v1201
    %5838 = vmatprep.subr.mxu0 %v1194
    %5839 = vmatpush2.msra.mxu0 %v1193
    %5840 = vmatprep.subr.mxu0 %v1186
    %5841 = vmatpush2.msra.mxu0 %v1185
    %5842 = vmatprep.subr.mxu0 %v1178
    %5843 = vmatpush2.msra.mxu0 %v1177
    %5844 = vmatprep.subr.mxu0 %v1170
    %5845 = vmatpush2.msra.mxu0 %v1169
    %5846 = vmatprep.subr.mxu0 %v1162
    %5847 = vmatpush2.msra.mxu0 %v1161
    %5848 = vmatprep.subr.mxu0 %v1154
    %5849 = vmatpush2.msra.mxu0 %v1153
    %5850 = vmatprep.subr.mxu0 %v1146
    %5851 = vmatpush2.msra.mxu0 %v1145
    %5852 = vmatprep.subr.mxu0 %v1138
    %5853 = vmatpush2.msra.mxu0 %v1137
    %5854 = vmatprep.subr.mxu0 %v1130
    %5855 = vmatpush2.msra.mxu0 %v1129
    %5856 = vmatprep.subr.mxu0 %v1122
    %5857 = vmatpush2.msra.mxu0 %v1121
    %5858 = vmatprep.subr.mxu0 %v1114
    %5859 = vmatpush2.msra.mxu0 %v1113
    %5860 = vmatprep.subr.mxu0 %v1106
    %5861 = vmatpush2.msra.mxu0 %v1105
    %5862 = vmatprep.subr.mxu0 %v1098
    %5863 = vmatpush2.msra.mxu0 %v1097
    %5864 = vmatprep.mubr.f32.mxu0 %v142
    %5865 = vmatmul.mubr.f32.gmra.mxu0 %v141
    %v5866 = vpop.f32.mrf.mxu0
    %v5867 = vadd.f32 %v5790, %v5866
    %v5868 = vpop.f32.mrf.mxu0
    %v5869 = vadd.f32 %v5792, %v5868
    %5870 = vmatprep.mubr.f32.mxu0 %v174
    %5871 = vmatmul.mubr.f32.gmra.mxu0 %v173
    %v5872 = vpop.f32.mrf.mxu0
    %v5873 = vadd.f32 %v5796, %v5872
    %v5874 = vpop.f32.mrf.mxu0
    %v5875 = vadd.f32 %v5798, %v5874
    %5876 = vdwg.mxu0
    %5877 = vmatprep.subr.mxu0 %v1346
    %5878 = vmatpush1.msra.mxu0 %v1345
    %5879 = vmatprep.subr.mxu0 %v1338
    %5880 = vmatpush1.msra.mxu0 %v1337
    %5881 = vmatprep.subr.mxu0 %v1330
    %5882 = vmatpush1.msra.mxu0 %v1329
    %5883 = vmatprep.subr.mxu0 %v1322
    %5884 = vmatpush1.msra.mxu0 %v1321
    %5885 = vmatprep.subr.mxu0 %v1314
    %5886 = vmatpush1.msra.mxu0 %v1313
    %5887 = vmatprep.subr.mxu0 %v1306
    %5888 = vmatpush1.msra.mxu0 %v1305
    %5889 = vmatprep.subr.mxu0 %v1298
    %5890 = vmatpush1.msra.mxu0 %v1297
    %5891 = vmatprep.subr.mxu0 %v1290
    %5892 = vmatpush1.msra.mxu0 %v1289
    %5893 = vmatprep.subr.mxu0 %v1282
    %5894 = vmatpush1.msra.mxu0 %v1281
    %5895 = vmatprep.subr.mxu0 %v1274
    %5896 = vmatpush1.msra.mxu0 %v1273
    %5897 = vmatprep.subr.mxu0 %v1266
    %5898 = vmatpush1.msra.mxu0 %v1265
    %5899 = vmatprep.subr.mxu0 %v1258
    %5900 = vmatpush1.msra.mxu0 %v1257
    %5901 = vmatprep.subr.mxu0 %v1250
    %5902 = vmatpush1.msra.mxu0 %v1249
    %5903 = vmatprep.subr.mxu0 %v1242
    %5904 = vmatpush1.msra.mxu0 %v1241
    %5905 = vmatprep.subr.mxu0 %v1234
    %5906 = vmatpush1.msra.mxu0 %v1233
    %5907 = vmatprep.subr.mxu0 %v1226
    %5908 = vmatpush1.msra.mxu0 %v1225
    %5909 = vmatprep.subr.mxu0 %v1474
    %5910 = vmatpush2.msra.mxu0 %v1473
    %5911 = vmatprep.subr.mxu0 %v1466
    %5912 = vmatpush2.msra.mxu0 %v1465
    %5913 = vmatprep.subr.mxu0 %v1458
    %5914 = vmatpush2.msra.mxu0 %v1457
    %5915 = vmatprep.subr.mxu0 %v1450
    %5916 = vmatpush2.msra.mxu0 %v1449
    %5917 = vmatprep.subr.mxu0 %v1442
    %5918 = vmatpush2.msra.mxu0 %v1441
    %5919 = vmatprep.subr.mxu0 %v1434
    %5920 = vmatpush2.msra.mxu0 %v1433
    %5921 = vmatprep.subr.mxu0 %v1426
    %5922 = vmatpush2.msra.mxu0 %v1425
    %5923 = vmatprep.subr.mxu0 %v1418
    %5924 = vmatpush2.msra.mxu0 %v1417
    %5925 = vmatprep.subr.mxu0 %v1410
    %5926 = vmatpush2.msra.mxu0 %v1409
    %5927 = vmatprep.subr.mxu0 %v1402
    %5928 = vmatpush2.msra.mxu0 %v1401
    %5929 = vmatprep.subr.mxu0 %v1394
    %5930 = vmatpush2.msra.mxu0 %v1393
    %5931 = vmatprep.subr.mxu0 %v1386
    %5932 = vmatpush2.msra.mxu0 %v1385
    %5933 = vmatprep.subr.mxu0 %v1378
    %5934 = vmatpush2.msra.mxu0 %v1377
    %5935 = vmatprep.subr.mxu0 %v1370
    %5936 = vmatpush2.msra.mxu0 %v1369
    %5937 = vmatprep.subr.mxu0 %v1362
    %5938 = vmatpush2.msra.mxu0 %v1361
    %5939 = vmatprep.subr.mxu0 %v1354
    %5940 = vmatpush2.msra.mxu0 %v1353
    %5941 = vmatprep.mubr.f32.mxu0 %v144
    %5942 = vmatmul.mubr.f32.gmra.mxu0 %v143
    %v5943 = vpop.f32.mrf.mxu0
    %v5944 = vadd.f32 %v5867, %v5943
    %v5945 = vpop.f32.mrf.mxu0
    %v5946 = vadd.f32 %v5869, %v5945
    %5947 = vmatprep.mubr.f32.mxu0 %v176
    %5948 = vmatmul.mubr.f32.gmra.mxu0 %v175
    %v5949 = vpop.f32.mrf.mxu0
    %v5950 = vadd.f32 %v5873, %v5949
    %v5951 = vpop.f32.mrf.mxu0
    %v5952 = vadd.f32 %v5875, %v5951
    %5953 = vdwg.mxu0
    %5954 = vmatprep.subr.mxu0 %v1602
    %5955 = vmatpush1.msra.mxu0 %v1601
    %5956 = vmatprep.subr.mxu0 %v1594
    %5957 = vmatpush1.msra.mxu0 %v1593
    %5958 = vmatprep.subr.mxu0 %v1586
    %5959 = vmatpush1.msra.mxu0 %v1585
    %5960 = vmatprep.subr.mxu0 %v1578
    %5961 = vmatpush1.msra.mxu0 %v1577
    %5962 = vmatprep.subr.mxu0 %v1570
    %5963 = vmatpush1.msra.mxu0 %v1569
    %5964 = vmatprep.subr.mxu0 %v1562
    %5965 = vmatpush1.msra.mxu0 %v1561
    %5966 = vmatprep.subr.mxu0 %v1554
    %5967 = vmatpush1.msra.mxu0 %v1553
    %5968 = vmatprep.subr.mxu0 %v1546
    %5969 = vmatpush1.msra.mxu0 %v1545
    %5970 = vmatprep.subr.mxu0 %v1538
    %5971 = vmatpush1.msra.mxu0 %v1537
    %5972 = vmatprep.subr.mxu0 %v1530
    %5973 = vmatpush1.msra.mxu0 %v1529
    %5974 = vmatprep.subr.mxu0 %v1522
    %5975 = vmatpush1.msra.mxu0 %v1521
    %5976 = vmatprep.subr.mxu0 %v1514
    %5977 = vmatpush1.msra.mxu0 %v1513
    %5978 = vmatprep.subr.mxu0 %v1506
    %5979 = vmatpush1.msra.mxu0 %v1505
    %5980 = vmatprep.subr.mxu0 %v1498
    %5981 = vmatpush1.msra.mxu0 %v1497
    %5982 = vmatprep.subr.mxu0 %v1490
    %5983 = vmatpush1.msra.mxu0 %v1489
    %5984 = vmatprep.subr.mxu0 %v1482
    %5985 = vmatpush1.msra.mxu0 %v1481
    %5986 = vmatprep.subr.mxu0 %v1730
    %5987 = vmatpush2.msra.mxu0 %v1729
    %5988 = vmatprep.subr.mxu0 %v1722
    %5989 = vmatpush2.msra.mxu0 %v1721
    %5990 = vmatprep.subr.mxu0 %v1714
    %5991 = vmatpush2.msra.mxu0 %v1713
    %5992 = vmatprep.subr.mxu0 %v1706
    %5993 = vmatpush2.msra.mxu0 %v1705
    %5994 = vmatprep.subr.mxu0 %v1698
    %5995 = vmatpush2.msra.mxu0 %v1697
    %5996 = vmatprep.subr.mxu0 %v1690
    %5997 = vmatpush2.msra.mxu0 %v1689
    %5998 = vmatprep.subr.mxu0 %v1682
    %5999 = vmatpush2.msra.mxu0 %v1681
    %6000 = vmatprep.subr.mxu0 %v1674
    %6001 = vmatpush2.msra.mxu0 %v1673
    %6002 = vmatprep.subr.mxu0 %v1666
    %6003 = vmatpush2.msra.mxu0 %v1665
    %6004 = vmatprep.subr.mxu0 %v1658
    %6005 = vmatpush2.msra.mxu0 %v1657
    %6006 = vmatprep.subr.mxu0 %v1650
    %6007 = vmatpush2.msra.mxu0 %v1649
    %6008 = vmatprep.subr.mxu0 %v1642
    %6009 = vmatpush2.msra.mxu0 %v1641
    %6010 = vmatprep.subr.mxu0 %v1634
    %6011 = vmatpush2.msra.mxu0 %v1633
    %6012 = vmatprep.subr.mxu0 %v1626
    %6013 = vmatpush2.msra.mxu0 %v1625
    %6014 = vmatprep.subr.mxu0 %v1618
    %6015 = vmatpush2.msra.mxu0 %v1617
    %6016 = vmatprep.subr.mxu0 %v1610
    %6017 = vmatpush2.msra.mxu0 %v1609
    %6018 = vmatprep.mubr.f32.mxu0 %v146
    %6019 = vmatmul.mubr.f32.gmra.mxu0 %v145
    %v6020 = vpop.f32.mrf.mxu0
    %v6021 = vadd.f32 %v5944, %v6020
    %v6022 = vpop.f32.mrf.mxu0
    %v6023 = vadd.f32 %v5946, %v6022
    %6024 = vmatprep.mubr.f32.mxu0 %v178
    %6025 = vmatmul.mubr.f32.gmra.mxu0 %v177
    %v6026 = vpop.f32.mrf.mxu0
    %v6027 = vadd.f32 %v5950, %v6026
    %v6028 = vpop.f32.mrf.mxu0
    %v6029 = vadd.f32 %v5952, %v6028
    %6030 = vdwg.mxu0
    %6031 = vmatprep.subr.mxu0 %v1858
    %6032 = vmatpush1.msra.mxu0 %v1857
    %6033 = vmatprep.subr.mxu0 %v1850
    %6034 = vmatpush1.msra.mxu0 %v1849
    %6035 = vmatprep.subr.mxu0 %v1842
    %6036 = vmatpush1.msra.mxu0 %v1841
    %6037 = vmatprep.subr.mxu0 %v1834
    %6038 = vmatpush1.msra.mxu0 %v1833
    %6039 = vmatprep.subr.mxu0 %v1826
    %6040 = vmatpush1.msra.mxu0 %v1825
    %6041 = vmatprep.subr.mxu0 %v1818
    %6042 = vmatpush1.msra.mxu0 %v1817
    %6043 = vmatprep.subr.mxu0 %v1810
    %6044 = vmatpush1.msra.mxu0 %v1809
    %6045 = vmatprep.subr.mxu0 %v1802
    %6046 = vmatpush1.msra.mxu0 %v1801
    %6047 = vmatprep.subr.mxu0 %v1794
    %6048 = vmatpush1.msra.mxu0 %v1793
    %6049 = vmatprep.subr.mxu0 %v1786
    %6050 = vmatpush1.msra.mxu0 %v1785
    %6051 = vmatprep.subr.mxu0 %v1778
    %6052 = vmatpush1.msra.mxu0 %v1777
    %6053 = vmatprep.subr.mxu0 %v1770
    %6054 = vmatpush1.msra.mxu0 %v1769
    %6055 = vmatprep.subr.mxu0 %v1762
    %6056 = vmatpush1.msra.mxu0 %v1761
    %6057 = vmatprep.subr.mxu0 %v1754
    %6058 = vmatpush1.msra.mxu0 %v1753
    %6059 = vmatprep.subr.mxu0 %v1746
    %6060 = vmatpush1.msra.mxu0 %v1745
    %6061 = vmatprep.subr.mxu0 %v1738
    %6062 = vmatpush1.msra.mxu0 %v1737
    %6063 = vmatprep.subr.mxu0 %v1986
    %6064 = vmatpush2.msra.mxu0 %v1985
    %6065 = vmatprep.subr.mxu0 %v1978
    %6066 = vmatpush2.msra.mxu0 %v1977
    %6067 = vmatprep.subr.mxu0 %v1970
    %6068 = vmatpush2.msra.mxu0 %v1969
    %6069 = vmatprep.subr.mxu0 %v1962
    %6070 = vmatpush2.msra.mxu0 %v1961
    %6071 = vmatprep.subr.mxu0 %v1954
    %6072 = vmatpush2.msra.mxu0 %v1953
    %6073 = vmatprep.subr.mxu0 %v1946
    %6074 = vmatpush2.msra.mxu0 %v1945
    %6075 = vmatprep.subr.mxu0 %v1938
    %6076 = vmatpush2.msra.mxu0 %v1937
    %6077 = vmatprep.subr.mxu0 %v1930
    %6078 = vmatpush2.msra.mxu0 %v1929
    %6079 = vmatprep.subr.mxu0 %v1922
    %6080 = vmatpush2.msra.mxu0 %v1921
    %6081 = vmatprep.subr.mxu0 %v1914
    %6082 = vmatpush2.msra.mxu0 %v1913
    %6083 = vmatprep.subr.mxu0 %v1906
    %6084 = vmatpush2.msra.mxu0 %v1905
    %6085 = vmatprep.subr.mxu0 %v1898
    %6086 = vmatpush2.msra.mxu0 %v1897
    %6087 = vmatprep.subr.mxu0 %v1890
    %6088 = vmatpush2.msra.mxu0 %v1889
    %6089 = vmatprep.subr.mxu0 %v1882
    %6090 = vmatpush2.msra.mxu0 %v1881
    %6091 = vmatprep.subr.mxu0 %v1874
    %6092 = vmatpush2.msra.mxu0 %v1873
    %6093 = vmatprep.subr.mxu0 %v1866
    %6094 = vmatpush2.msra.mxu0 %v1865
    %6095 = vmatprep.mubr.f32.mxu0 %v148
    %6096 = vmatmul.mubr.f32.gmra.mxu0 %v147
    %v6097 = vpop.f32.mrf.mxu0
    %v6098 = vadd.f32 %v6021, %v6097
    %v6099 = vpop.f32.mrf.mxu0
    %v6100 = vadd.f32 %v6023, %v6099
    %6101 = vmatprep.mubr.f32.mxu0 %v180
    %6102 = vmatmul.mubr.f32.gmra.mxu0 %v179
    %v6103 = vpop.f32.mrf.mxu0
    %v6104 = vadd.f32 %v6027, %v6103
    %v6105 = vpop.f32.mrf.mxu0
    %v6106 = vadd.f32 %v6029, %v6105
    %6107 = vdwg.mxu0
    %6108 = vmatprep.subr.mxu0 %v2114
    %6109 = vmatpush1.msra.mxu0 %v2113
    %6110 = vmatprep.subr.mxu0 %v2106
    %6111 = vmatpush1.msra.mxu0 %v2105
    %6112 = vmatprep.subr.mxu0 %v2098
    %6113 = vmatpush1.msra.mxu0 %v2097
    %6114 = vmatprep.subr.mxu0 %v2090
    %6115 = vmatpush1.msra.mxu0 %v2089
    %6116 = vmatprep.subr.mxu0 %v2082
    %6117 = vmatpush1.msra.mxu0 %v2081
    %6118 = vmatprep.subr.mxu0 %v2074
    %6119 = vmatpush1.msra.mxu0 %v2073
    %6120 = vmatprep.subr.mxu0 %v2066
    %6121 = vmatpush1.msra.mxu0 %v2065
    %6122 = vmatprep.subr.mxu0 %v2058
    %6123 = vmatpush1.msra.mxu0 %v2057
    %6124 = vmatprep.subr.mxu0 %v2050
    %6125 = vmatpush1.msra.mxu0 %v2049
    %6126 = vmatprep.subr.mxu0 %v2042
    %6127 = vmatpush1.msra.mxu0 %v2041
    %6128 = vmatprep.subr.mxu0 %v2034
    %6129 = vmatpush1.msra.mxu0 %v2033
    %6130 = vmatprep.subr.mxu0 %v2026
    %6131 = vmatpush1.msra.mxu0 %v2025
    %6132 = vmatprep.subr.mxu0 %v2018
    %6133 = vmatpush1.msra.mxu0 %v2017
    %6134 = vmatprep.subr.mxu0 %v2010
    %6135 = vmatpush1.msra.mxu0 %v2009
    %6136 = vmatprep.subr.mxu0 %v2002
    %6137 = vmatpush1.msra.mxu0 %v2001
    %6138 = vmatprep.subr.mxu0 %v1994
    %6139 = vmatpush1.msra.mxu0 %v1993
    %6140 = vmatprep.subr.mxu0 %v2242
    %6141 = vmatpush2.msra.mxu0 %v2241
    %6142 = vmatprep.subr.mxu0 %v2234
    %6143 = vmatpush2.msra.mxu0 %v2233
    %6144 = vmatprep.subr.mxu0 %v2226
    %6145 = vmatpush2.msra.mxu0 %v2225
    %6146 = vmatprep.subr.mxu0 %v2218
    %6147 = vmatpush2.msra.mxu0 %v2217
    %6148 = vmatprep.subr.mxu0 %v2210
    %6149 = vmatpush2.msra.mxu0 %v2209
    %6150 = vmatprep.subr.mxu0 %v2202
    %6151 = vmatpush2.msra.mxu0 %v2201
    %6152 = vmatprep.subr.mxu0 %v2194
    %6153 = vmatpush2.msra.mxu0 %v2193
    %6154 = vmatprep.subr.mxu0 %v2186
    %6155 = vmatpush2.msra.mxu0 %v2185
    %6156 = vmatprep.subr.mxu0 %v2178
    %6157 = vmatpush2.msra.mxu0 %v2177
    %6158 = vmatprep.subr.mxu0 %v2170
    %6159 = vmatpush2.msra.mxu0 %v2169
    %6160 = vmatprep.subr.mxu0 %v2162
    %6161 = vmatpush2.msra.mxu0 %v2161
    %6162 = vmatprep.subr.mxu0 %v2154
    %6163 = vmatpush2.msra.mxu0 %v2153
    %6164 = vmatprep.subr.mxu0 %v2146
    %6165 = vmatpush2.msra.mxu0 %v2145
    %6166 = vmatprep.subr.mxu0 %v2138
    %6167 = vmatpush2.msra.mxu0 %v2137
    %6168 = vmatprep.subr.mxu0 %v2130
    %6169 = vmatpush2.msra.mxu0 %v2129
    %6170 = vmatprep.subr.mxu0 %v2122
    %6171 = vmatpush2.msra.mxu0 %v2121
    %6172 = vmatprep.mubr.f32.mxu0 %v150
    %6173 = vmatmul.mubr.f32.gmra.mxu0 %v149
    %v6174 = vpop.f32.mrf.mxu0
    %v6175 = vadd.f32 %v6098, %v6174
    %v6176 = vpop.f32.mrf.mxu0
    %v6177 = vadd.f32 %v6100, %v6176
    %6178 = vmatprep.mubr.f32.mxu0 %v182
    %6179 = vmatmul.mubr.f32.gmra.mxu0 %v181
    %v6180 = vpop.f32.mrf.mxu0
    %v6181 = vadd.f32 %v6104, %v6180
    %v6182 = vpop.f32.mrf.mxu0
    %v6183 = vadd.f32 %v6106, %v6182
    %6184 = vdwg.mxu0
    %6185 = vmatprep.subr.mxu0 %v2370
    %6186 = vmatpush1.msra.mxu0 %v2369
    %6187 = vmatprep.subr.mxu0 %v2362
    %6188 = vmatpush1.msra.mxu0 %v2361
    %6189 = vmatprep.subr.mxu0 %v2354
    %6190 = vmatpush1.msra.mxu0 %v2353
    %6191 = vmatprep.subr.mxu0 %v2346
    %6192 = vmatpush1.msra.mxu0 %v2345
    %6193 = vmatprep.subr.mxu0 %v2338
    %6194 = vmatpush1.msra.mxu0 %v2337
    %6195 = vmatprep.subr.mxu0 %v2330
    %6196 = vmatpush1.msra.mxu0 %v2329
    %6197 = vmatprep.subr.mxu0 %v2322
    %6198 = vmatpush1.msra.mxu0 %v2321
    %6199 = vmatprep.subr.mxu0 %v2314
    %6200 = vmatpush1.msra.mxu0 %v2313
    %6201 = vmatprep.subr.mxu0 %v2306
    %6202 = vmatpush1.msra.mxu0 %v2305
    %6203 = vmatprep.subr.mxu0 %v2298
    %6204 = vmatpush1.msra.mxu0 %v2297
    %6205 = vmatprep.subr.mxu0 %v2290
    %6206 = vmatpush1.msra.mxu0 %v2289
    %6207 = vmatprep.subr.mxu0 %v2282
    %6208 = vmatpush1.msra.mxu0 %v2281
    %6209 = vmatprep.subr.mxu0 %v2274
    %6210 = vmatpush1.msra.mxu0 %v2273
    %6211 = vmatprep.subr.mxu0 %v2266
    %6212 = vmatpush1.msra.mxu0 %v2265
    %6213 = vmatprep.subr.mxu0 %v2258
    %6214 = vmatpush1.msra.mxu0 %v2257
    %6215 = vmatprep.subr.mxu0 %v2250
    %6216 = vmatpush1.msra.mxu0 %v2249
    %6217 = vmatprep.subr.mxu0 %v2498
    %6218 = vmatpush2.msra.mxu0 %v2497
    %6219 = vmatprep.subr.mxu0 %v2490
    %6220 = vmatpush2.msra.mxu0 %v2489
    %6221 = vmatprep.subr.mxu0 %v2482
    %6222 = vmatpush2.msra.mxu0 %v2481
    %6223 = vmatprep.subr.mxu0 %v2474
    %6224 = vmatpush2.msra.mxu0 %v2473
    %6225 = vmatprep.subr.mxu0 %v2466
    %6226 = vmatpush2.msra.mxu0 %v2465
    %6227 = vmatprep.subr.mxu0 %v2458
    %6228 = vmatpush2.msra.mxu0 %v2457
    %6229 = vmatprep.subr.mxu0 %v2450
    %6230 = vmatpush2.msra.mxu0 %v2449
    %6231 = vmatprep.subr.mxu0 %v2442
    %6232 = vmatpush2.msra.mxu0 %v2441
    %6233 = vmatprep.subr.mxu0 %v2434
    %6234 = vmatpush2.msra.mxu0 %v2433
    %6235 = vmatprep.subr.mxu0 %v2426
    %6236 = vmatpush2.msra.mxu0 %v2425
    %6237 = vmatprep.subr.mxu0 %v2418
    %6238 = vmatpush2.msra.mxu0 %v2417
    %6239 = vmatprep.subr.mxu0 %v2410
    %6240 = vmatpush2.msra.mxu0 %v2409
    %6241 = vmatprep.subr.mxu0 %v2402
    %6242 = vmatpush2.msra.mxu0 %v2401
    %6243 = vmatprep.subr.mxu0 %v2394
    %6244 = vmatpush2.msra.mxu0 %v2393
    %6245 = vmatprep.subr.mxu0 %v2386
    %6246 = vmatpush2.msra.mxu0 %v2385
    %6247 = vmatprep.subr.mxu0 %v2378
    %6248 = vmatpush2.msra.mxu0 %v2377
    %6249 = vmatprep.mubr.f32.mxu0 %v152
    %6250 = vmatmul.mubr.f32.gmra.mxu0 %v151
    %v6251 = vpop.f32.mrf.mxu0
    %v6252 = vadd.f32 %v6175, %v6251
    %v6253 = vpop.f32.mrf.mxu0
    %v6254 = vadd.f32 %v6177, %v6253
    %6255 = vmatprep.mubr.f32.mxu0 %v184
    %6256 = vmatmul.mubr.f32.gmra.mxu0 %v183
    %v6257 = vpop.f32.mrf.mxu0
    %v6258 = vadd.f32 %v6181, %v6257
    %v6259 = vpop.f32.mrf.mxu0
    %v6260 = vadd.f32 %v6183, %v6259
    %6261 = vdwg.mxu0
    %6262 = vmatprep.subr.mxu0 %v2626
    %6263 = vmatpush1.msra.mxu0 %v2625
    %6264 = vmatprep.subr.mxu0 %v2618
    %6265 = vmatpush1.msra.mxu0 %v2617
    %6266 = vmatprep.subr.mxu0 %v2610
    %6267 = vmatpush1.msra.mxu0 %v2609
    %6268 = vmatprep.subr.mxu0 %v2602
    %6269 = vmatpush1.msra.mxu0 %v2601
    %6270 = vmatprep.subr.mxu0 %v2594
    %6271 = vmatpush1.msra.mxu0 %v2593
    %6272 = vmatprep.subr.mxu0 %v2586
    %6273 = vmatpush1.msra.mxu0 %v2585
    %6274 = vmatprep.subr.mxu0 %v2578
    %6275 = vmatpush1.msra.mxu0 %v2577
    %6276 = vmatprep.subr.mxu0 %v2570
    %6277 = vmatpush1.msra.mxu0 %v2569
    %6278 = vmatprep.subr.mxu0 %v2562
    %6279 = vmatpush1.msra.mxu0 %v2561
    %6280 = vmatprep.subr.mxu0 %v2554
    %6281 = vmatpush1.msra.mxu0 %v2553
    %6282 = vmatprep.subr.mxu0 %v2546
    %6283 = vmatpush1.msra.mxu0 %v2545
    %6284 = vmatprep.subr.mxu0 %v2538
    %6285 = vmatpush1.msra.mxu0 %v2537
    %6286 = vmatprep.subr.mxu0 %v2530
    %6287 = vmatpush1.msra.mxu0 %v2529
    %6288 = vmatprep.subr.mxu0 %v2522
    %6289 = vmatpush1.msra.mxu0 %v2521
    %6290 = vmatprep.subr.mxu0 %v2514
    %6291 = vmatpush1.msra.mxu0 %v2513
    %6292 = vmatprep.subr.mxu0 %v2506
    %6293 = vmatpush1.msra.mxu0 %v2505
    %6294 = vmatprep.subr.mxu0 %v2754
    %6295 = vmatpush2.msra.mxu0 %v2753
    %6296 = vmatprep.subr.mxu0 %v2746
    %6297 = vmatpush2.msra.mxu0 %v2745
    %6298 = vmatprep.subr.mxu0 %v2738
    %6299 = vmatpush2.msra.mxu0 %v2737
    %6300 = vmatprep.subr.mxu0 %v2730
    %6301 = vmatpush2.msra.mxu0 %v2729
    %6302 = vmatprep.subr.mxu0 %v2722
    %6303 = vmatpush2.msra.mxu0 %v2721
    %6304 = vmatprep.subr.mxu0 %v2714
    %6305 = vmatpush2.msra.mxu0 %v2713
    %6306 = vmatprep.subr.mxu0 %v2706
    %6307 = vmatpush2.msra.mxu0 %v2705
    %6308 = vmatprep.subr.mxu0 %v2698
    %6309 = vmatpush2.msra.mxu0 %v2697
    %6310 = vmatprep.subr.mxu0 %v2690
    %6311 = vmatpush2.msra.mxu0 %v2689
    %6312 = vmatprep.subr.mxu0 %v2682
    %6313 = vmatpush2.msra.mxu0 %v2681
    %6314 = vmatprep.subr.mxu0 %v2674
    %6315 = vmatpush2.msra.mxu0 %v2673
    %6316 = vmatprep.subr.mxu0 %v2666
    %6317 = vmatpush2.msra.mxu0 %v2665
    %6318 = vmatprep.subr.mxu0 %v2658
    %6319 = vmatpush2.msra.mxu0 %v2657
    %6320 = vmatprep.subr.mxu0 %v2650
    %6321 = vmatpush2.msra.mxu0 %v2649
    %6322 = vmatprep.subr.mxu0 %v2642
    %6323 = vmatpush2.msra.mxu0 %v2641
    %6324 = vmatprep.subr.mxu0 %v2634
    %6325 = vmatpush2.msra.mxu0 %v2633
    %6326 = vmatprep.mubr.f32.mxu0 %v154
    %6327 = vmatmul.mubr.f32.gmra.mxu0 %v153
    %v6328 = vpop.f32.mrf.mxu0
    %v6329 = vadd.f32 %v6252, %v6328
    %v6330 = vpop.f32.mrf.mxu0
    %v6331 = vadd.f32 %v6254, %v6330
    %6332 = vmatprep.mubr.f32.mxu0 %v186
    %6333 = vmatmul.mubr.f32.gmra.mxu0 %v185
    %v6334 = vpop.f32.mrf.mxu0
    %v6335 = vadd.f32 %v6258, %v6334
    %v6336 = vpop.f32.mrf.mxu0
    %v6337 = vadd.f32 %v6260, %v6336
    %6338 = vdwg.mxu0
    %6339 = vmatprep.subr.mxu0 %v2882
    %6340 = vmatpush1.msra.mxu0 %v2881
    %6341 = vmatprep.subr.mxu0 %v2874
    %6342 = vmatpush1.msra.mxu0 %v2873
    %6343 = vmatprep.subr.mxu0 %v2866
    %6344 = vmatpush1.msra.mxu0 %v2865
    %6345 = vmatprep.subr.mxu0 %v2858
    %6346 = vmatpush1.msra.mxu0 %v2857
    %6347 = vmatprep.subr.mxu0 %v2850
    %6348 = vmatpush1.msra.mxu0 %v2849
    %6349 = vmatprep.subr.mxu0 %v2842
    %6350 = vmatpush1.msra.mxu0 %v2841
    %6351 = vmatprep.subr.mxu0 %v2834
    %6352 = vmatpush1.msra.mxu0 %v2833
    %6353 = vmatprep.subr.mxu0 %v2826
    %6354 = vmatpush1.msra.mxu0 %v2825
    %6355 = vmatprep.subr.mxu0 %v2818
    %6356 = vmatpush1.msra.mxu0 %v2817
    %6357 = vmatprep.subr.mxu0 %v2810
    %6358 = vmatpush1.msra.mxu0 %v2809
    %6359 = vmatprep.subr.mxu0 %v2802
    %6360 = vmatpush1.msra.mxu0 %v2801
    %6361 = vmatprep.subr.mxu0 %v2794
    %6362 = vmatpush1.msra.mxu0 %v2793
    %6363 = vmatprep.subr.mxu0 %v2786
    %6364 = vmatpush1.msra.mxu0 %v2785
    %6365 = vmatprep.subr.mxu0 %v2778
    %6366 = vmatpush1.msra.mxu0 %v2777
    %6367 = vmatprep.subr.mxu0 %v2770
    %6368 = vmatpush1.msra.mxu0 %v2769
    %6369 = vmatprep.subr.mxu0 %v2762
    %6370 = vmatpush1.msra.mxu0 %v2761
    %6371 = vmatprep.subr.mxu0 %v3010
    %6372 = vmatpush2.msra.mxu0 %v3009
    %6373 = vmatprep.subr.mxu0 %v3002
    %6374 = vmatpush2.msra.mxu0 %v3001
    %6375 = vmatprep.subr.mxu0 %v2994
    %6376 = vmatpush2.msra.mxu0 %v2993
    %6377 = vmatprep.subr.mxu0 %v2986
    %6378 = vmatpush2.msra.mxu0 %v2985
    %6379 = vmatprep.subr.mxu0 %v2978
    %6380 = vmatpush2.msra.mxu0 %v2977
    %6381 = vmatprep.subr.mxu0 %v2970
    %6382 = vmatpush2.msra.mxu0 %v2969
    %6383 = vmatprep.subr.mxu0 %v2962
    %6384 = vmatpush2.msra.mxu0 %v2961
    %6385 = vmatprep.subr.mxu0 %v2954
    %6386 = vmatpush2.msra.mxu0 %v2953
    %6387 = vmatprep.subr.mxu0 %v2946
    %6388 = vmatpush2.msra.mxu0 %v2945
    %6389 = vmatprep.subr.mxu0 %v2938
    %6390 = vmatpush2.msra.mxu0 %v2937
    %6391 = vmatprep.subr.mxu0 %v2930
    %6392 = vmatpush2.msra.mxu0 %v2929
    %6393 = vmatprep.subr.mxu0 %v2922
    %6394 = vmatpush2.msra.mxu0 %v2921
    %6395 = vmatprep.subr.mxu0 %v2914
    %6396 = vmatpush2.msra.mxu0 %v2913
    %6397 = vmatprep.subr.mxu0 %v2906
    %6398 = vmatpush2.msra.mxu0 %v2905
    %6399 = vmatprep.subr.mxu0 %v2898
    %6400 = vmatpush2.msra.mxu0 %v2897
    %6401 = vmatprep.subr.mxu0 %v2890
    %6402 = vmatpush2.msra.mxu0 %v2889
    %6403 = vmatprep.mubr.f32.mxu0 %v156
    %6404 = vmatmul.mubr.f32.gmra.mxu0 %v155
    %v6405 = vpop.f32.mrf.mxu0
    %v6406 = vadd.f32 %v6329, %v6405
    %v6407 = vpop.f32.mrf.mxu0
    %v6408 = vadd.f32 %v6331, %v6407
    %6409 = vmatprep.mubr.f32.mxu0 %v188
    %6410 = vmatmul.mubr.f32.gmra.mxu0 %v187
    %v6411 = vpop.f32.mrf.mxu0
    %v6412 = vadd.f32 %v6335, %v6411
    %v6413 = vpop.f32.mrf.mxu0
    %v6414 = vadd.f32 %v6337, %v6413
    %6415 = vdwg.mxu0
    %6416 = vmatprep.subr.mxu0 %v3138
    %6417 = vmatpush1.msra.mxu0 %v3137
    %6418 = vmatprep.subr.mxu0 %v3130
    %6419 = vmatpush1.msra.mxu0 %v3129
    %6420 = vmatprep.subr.mxu0 %v3122
    %6421 = vmatpush1.msra.mxu0 %v3121
    %6422 = vmatprep.subr.mxu0 %v3114
    %6423 = vmatpush1.msra.mxu0 %v3113
    %6424 = vmatprep.subr.mxu0 %v3106
    %6425 = vmatpush1.msra.mxu0 %v3105
    %6426 = vmatprep.subr.mxu0 %v3098
    %6427 = vmatpush1.msra.mxu0 %v3097
    %6428 = vmatprep.subr.mxu0 %v3090
    %6429 = vmatpush1.msra.mxu0 %v3089
    %6430 = vmatprep.subr.mxu0 %v3082
    %6431 = vmatpush1.msra.mxu0 %v3081
    %6432 = vmatprep.subr.mxu0 %v3074
    %6433 = vmatpush1.msra.mxu0 %v3073
    %6434 = vmatprep.subr.mxu0 %v3066
    %6435 = vmatpush1.msra.mxu0 %v3065
    %6436 = vmatprep.subr.mxu0 %v3058
    %6437 = vmatpush1.msra.mxu0 %v3057
    %6438 = vmatprep.subr.mxu0 %v3050
    %6439 = vmatpush1.msra.mxu0 %v3049
    %6440 = vmatprep.subr.mxu0 %v3042
    %6441 = vmatpush1.msra.mxu0 %v3041
    %6442 = vmatprep.subr.mxu0 %v3034
    %6443 = vmatpush1.msra.mxu0 %v3033
    %6444 = vmatprep.subr.mxu0 %v3026
    %6445 = vmatpush1.msra.mxu0 %v3025
    %6446 = vmatprep.subr.mxu0 %v3018
    %6447 = vmatpush1.msra.mxu0 %v3017
    %6448 = vmatprep.subr.mxu0 %v3266
    %6449 = vmatpush2.msra.mxu0 %v3265
    %6450 = vmatprep.subr.mxu0 %v3258
    %6451 = vmatpush2.msra.mxu0 %v3257
    %6452 = vmatprep.subr.mxu0 %v3250
    %6453 = vmatpush2.msra.mxu0 %v3249
    %6454 = vmatprep.subr.mxu0 %v3242
    %6455 = vmatpush2.msra.mxu0 %v3241
    %6456 = vmatprep.subr.mxu0 %v3234
    %6457 = vmatpush2.msra.mxu0 %v3233
    %6458 = vmatprep.subr.mxu0 %v3226
    %6459 = vmatpush2.msra.mxu0 %v3225
    %6460 = vmatprep.subr.mxu0 %v3218
    %6461 = vmatpush2.msra.mxu0 %v3217
    %6462 = vmatprep.subr.mxu0 %v3210
    %6463 = vmatpush2.msra.mxu0 %v3209
    %6464 = vmatprep.subr.mxu0 %v3202
    %6465 = vmatpush2.msra.mxu0 %v3201
    %6466 = vmatprep.subr.mxu0 %v3194
    %6467 = vmatpush2.msra.mxu0 %v3193
    %6468 = vmatprep.subr.mxu0 %v3186
    %6469 = vmatpush2.msra.mxu0 %v3185
    %6470 = vmatprep.subr.mxu0 %v3178
    %6471 = vmatpush2.msra.mxu0 %v3177
    %6472 = vmatprep.subr.mxu0 %v3170
    %6473 = vmatpush2.msra.mxu0 %v3169
    %6474 = vmatprep.subr.mxu0 %v3162
    %6475 = vmatpush2.msra.mxu0 %v3161
    %6476 = vmatprep.subr.mxu0 %v3154
    %6477 = vmatpush2.msra.mxu0 %v3153
    %6478 = vmatprep.subr.mxu0 %v3146
    %6479 = vmatpush2.msra.mxu0 %v3145
    %6480 = vmatprep.mubr.f32.mxu0 %v158
    %6481 = vmatmul.mubr.f32.gmra.mxu0 %v157
    %v6482 = vpop.f32.mrf.mxu0
    %v6483 = vadd.f32 %v6406, %v6482
    %v6484 = vpop.f32.mrf.mxu0
    %v6485 = vadd.f32 %v6408, %v6484
    %6486 = vmatprep.mubr.f32.mxu0 %v190
    %6487 = vmatmul.mubr.f32.gmra.mxu0 %v189
    %v6488 = vpop.f32.mrf.mxu0
    %v6489 = vadd.f32 %v6412, %v6488
    %v6490 = vpop.f32.mrf.mxu0
    %v6491 = vadd.f32 %v6414, %v6490
    %6492 = vdwg.mxu0
    %6493 = vmatprep.subr.mxu0 %v3394
    %6494 = vmatpush1.msra.mxu0 %v3393
    %6495 = vmatprep.subr.mxu0 %v3386
    %6496 = vmatpush1.msra.mxu0 %v3385
    %6497 = vmatprep.subr.mxu0 %v3378
    %6498 = vmatpush1.msra.mxu0 %v3377
    %6499 = vmatprep.subr.mxu0 %v3370
    %6500 = vmatpush1.msra.mxu0 %v3369
    %6501 = vmatprep.subr.mxu0 %v3362
    %6502 = vmatpush1.msra.mxu0 %v3361
    %6503 = vmatprep.subr.mxu0 %v3354
    %6504 = vmatpush1.msra.mxu0 %v3353
    %6505 = vmatprep.subr.mxu0 %v3346
    %6506 = vmatpush1.msra.mxu0 %v3345
    %6507 = vmatprep.subr.mxu0 %v3338
    %6508 = vmatpush1.msra.mxu0 %v3337
    %6509 = vmatprep.subr.mxu0 %v3330
    %6510 = vmatpush1.msra.mxu0 %v3329
    %6511 = vmatprep.subr.mxu0 %v3322
    %6512 = vmatpush1.msra.mxu0 %v3321
    %6513 = vmatprep.subr.mxu0 %v3314
    %6514 = vmatpush1.msra.mxu0 %v3313
    %6515 = vmatprep.subr.mxu0 %v3306
    %6516 = vmatpush1.msra.mxu0 %v3305
    %6517 = vmatprep.subr.mxu0 %v3298
    %6518 = vmatpush1.msra.mxu0 %v3297
    %6519 = vmatprep.subr.mxu0 %v3290
    %6520 = vmatpush1.msra.mxu0 %v3289
    %6521 = vmatprep.subr.mxu0 %v3282
    %6522 = vmatpush1.msra.mxu0 %v3281
    %6523 = vmatprep.subr.mxu0 %v3274
    %6524 = vmatpush1.msra.mxu0 %v3273
    %6525 = vmatprep.subr.mxu0 %v3522
    %6526 = vmatpush2.msra.mxu0 %v3521
    %6527 = vmatprep.subr.mxu0 %v3514
    %6528 = vmatpush2.msra.mxu0 %v3513
    %6529 = vmatprep.subr.mxu0 %v3506
    %6530 = vmatpush2.msra.mxu0 %v3505
    %6531 = vmatprep.subr.mxu0 %v3498
    %6532 = vmatpush2.msra.mxu0 %v3497
    %6533 = vmatprep.subr.mxu0 %v3490
    %6534 = vmatpush2.msra.mxu0 %v3489
    %6535 = vmatprep.subr.mxu0 %v3482
    %6536 = vmatpush2.msra.mxu0 %v3481
    %6537 = vmatprep.subr.mxu0 %v3474
    %6538 = vmatpush2.msra.mxu0 %v3473
    %6539 = vmatprep.subr.mxu0 %v3466
    %6540 = vmatpush2.msra.mxu0 %v3465
    %6541 = vmatprep.subr.mxu0 %v3458
    %6542 = vmatpush2.msra.mxu0 %v3457
    %6543 = vmatprep.subr.mxu0 %v3450
    %6544 = vmatpush2.msra.mxu0 %v3449
    %6545 = vmatprep.subr.mxu0 %v3442
    %6546 = vmatpush2.msra.mxu0 %v3441
    %6547 = vmatprep.subr.mxu0 %v3434
    %6548 = vmatpush2.msra.mxu0 %v3433
    %6549 = vmatprep.subr.mxu0 %v3426
    %6550 = vmatpush2.msra.mxu0 %v3425
    %6551 = vmatprep.subr.mxu0 %v3418
    %6552 = vmatpush2.msra.mxu0 %v3417
    %6553 = vmatprep.subr.mxu0 %v3410
    %6554 = vmatpush2.msra.mxu0 %v3409
    %6555 = vmatprep.subr.mxu0 %v3402
    %6556 = vmatpush2.msra.mxu0 %v3401
    %6557 = vmatprep.mubr.f32.mxu0 %v160
    %6558 = vmatmul.mubr.f32.gmra.mxu0 %v159
    %v6559 = vpop.f32.mrf.mxu0
    %v6560 = vadd.f32 %v6483, %v6559
    %v6561 = vpop.f32.mrf.mxu0
    %v6562 = vadd.f32 %v6485, %v6561
    %6563 = vmatprep.mubr.f32.mxu0 %v192
    %6564 = vmatmul.mubr.f32.gmra.mxu0 %v191
    %v6565 = vpop.f32.mrf.mxu0
    %v6566 = vadd.f32 %v6489, %v6565
    %v6567 = vpop.f32.mrf.mxu0
    %v6568 = vadd.f32 %v6491, %v6567
    %6569 = vdwg.mxu0
    %6570 = vmatprep.subr.mxu0 %v3650
    %6571 = vmatpush1.msra.mxu0 %v3649
    %6572 = vmatprep.subr.mxu0 %v3642
    %6573 = vmatpush1.msra.mxu0 %v3641
    %6574 = vmatprep.subr.mxu0 %v3634
    %6575 = vmatpush1.msra.mxu0 %v3633
    %6576 = vmatprep.subr.mxu0 %v3626
    %6577 = vmatpush1.msra.mxu0 %v3625
    %6578 = vmatprep.subr.mxu0 %v3618
    %6579 = vmatpush1.msra.mxu0 %v3617
    %6580 = vmatprep.subr.mxu0 %v3610
    %6581 = vmatpush1.msra.mxu0 %v3609
    %6582 = vmatprep.subr.mxu0 %v3602
    %6583 = vmatpush1.msra.mxu0 %v3601
    %6584 = vmatprep.subr.mxu0 %v3594
    %6585 = vmatpush1.msra.mxu0 %v3593
    %6586 = vmatprep.subr.mxu0 %v3586
    %6587 = vmatpush1.msra.mxu0 %v3585
    %6588 = vmatprep.subr.mxu0 %v3578
    %6589 = vmatpush1.msra.mxu0 %v3577
    %6590 = vmatprep.subr.mxu0 %v3570
    %6591 = vmatpush1.msra.mxu0 %v3569
    %6592 = vmatprep.subr.mxu0 %v3562
    %6593 = vmatpush1.msra.mxu0 %v3561
    %6594 = vmatprep.subr.mxu0 %v3554
    %6595 = vmatpush1.msra.mxu0 %v3553
    %6596 = vmatprep.subr.mxu0 %v3546
    %6597 = vmatpush1.msra.mxu0 %v3545
    %6598 = vmatprep.subr.mxu0 %v3538
    %6599 = vmatpush1.msra.mxu0 %v3537
    %6600 = vmatprep.subr.mxu0 %v3530
    %6601 = vmatpush1.msra.mxu0 %v3529
    %6602 = vmatprep.subr.mxu0 %v3778
    %6603 = vmatpush2.msra.mxu0 %v3777
    %6604 = vmatprep.subr.mxu0 %v3770
    %6605 = vmatpush2.msra.mxu0 %v3769
    %6606 = vmatprep.subr.mxu0 %v3762
    %6607 = vmatpush2.msra.mxu0 %v3761
    %6608 = vmatprep.subr.mxu0 %v3754
    %6609 = vmatpush2.msra.mxu0 %v3753
    %6610 = vmatprep.subr.mxu0 %v3746
    %6611 = vmatpush2.msra.mxu0 %v3745
    %6612 = vmatprep.subr.mxu0 %v3738
    %6613 = vmatpush2.msra.mxu0 %v3737
    %6614 = vmatprep.subr.mxu0 %v3730
    %6615 = vmatpush2.msra.mxu0 %v3729
    %6616 = vmatprep.subr.mxu0 %v3722
    %6617 = vmatpush2.msra.mxu0 %v3721
    %6618 = vmatprep.subr.mxu0 %v3714
    %6619 = vmatpush2.msra.mxu0 %v3713
    %6620 = vmatprep.subr.mxu0 %v3706
    %6621 = vmatpush2.msra.mxu0 %v3705
    %6622 = vmatprep.subr.mxu0 %v3698
    %6623 = vmatpush2.msra.mxu0 %v3697
    %6624 = vmatprep.subr.mxu0 %v3690
    %6625 = vmatpush2.msra.mxu0 %v3689
    %6626 = vmatprep.subr.mxu0 %v3682
    %6627 = vmatpush2.msra.mxu0 %v3681
    %6628 = vmatprep.subr.mxu0 %v3674
    %6629 = vmatpush2.msra.mxu0 %v3673
    %6630 = vmatprep.subr.mxu0 %v3666
    %6631 = vmatpush2.msra.mxu0 %v3665
    %6632 = vmatprep.subr.mxu0 %v3658
    %6633 = vmatpush2.msra.mxu0 %v3657
    %6634 = vmatprep.mubr.f32.mxu0 %v162
    %6635 = vmatmul.mubr.f32.gmra.mxu0 %v161
    %v6636 = vpop.f32.mrf.mxu0
    %v6637 = vadd.f32 %v6560, %v6636
    %v6638 = vpop.f32.mrf.mxu0
    %v6639 = vadd.f32 %v6562, %v6638
    %6640 = vmatprep.mubr.f32.mxu0 %v194
    %6641 = vmatmul.mubr.f32.gmra.mxu0 %v193
    %v6642 = vpop.f32.mrf.mxu0
    %v6643 = vadd.f32 %v6566, %v6642
    %v6644 = vpop.f32.mrf.mxu0
    %v6645 = vadd.f32 %v6568, %v6644
    %6646 = vdwg.mxu0
    %6647 = vmatprep.subr.mxu0 %v3906
    %6648 = vmatpush1.msra.mxu0 %v3905
    %6649 = vmatprep.subr.mxu0 %v3898
    %6650 = vmatpush1.msra.mxu0 %v3897
    %6651 = vmatprep.subr.mxu0 %v3890
    %6652 = vmatpush1.msra.mxu0 %v3889
    %6653 = vmatprep.subr.mxu0 %v3882
    %6654 = vmatpush1.msra.mxu0 %v3881
    %6655 = vmatprep.subr.mxu0 %v3874
    %6656 = vmatpush1.msra.mxu0 %v3873
    %6657 = vmatprep.subr.mxu0 %v3866
    %6658 = vmatpush1.msra.mxu0 %v3865
    %6659 = vmatprep.subr.mxu0 %v3858
    %6660 = vmatpush1.msra.mxu0 %v3857
    %6661 = vmatprep.subr.mxu0 %v3850
    %6662 = vmatpush1.msra.mxu0 %v3849
    %6663 = vmatprep.subr.mxu0 %v3842
    %6664 = vmatpush1.msra.mxu0 %v3841
    %6665 = vmatprep.subr.mxu0 %v3834
    %6666 = vmatpush1.msra.mxu0 %v3833
    %6667 = vmatprep.subr.mxu0 %v3826
    %6668 = vmatpush1.msra.mxu0 %v3825
    %6669 = vmatprep.subr.mxu0 %v3818
    %6670 = vmatpush1.msra.mxu0 %v3817
    %6671 = vmatprep.subr.mxu0 %v3810
    %6672 = vmatpush1.msra.mxu0 %v3809
    %6673 = vmatprep.subr.mxu0 %v3802
    %6674 = vmatpush1.msra.mxu0 %v3801
    %6675 = vmatprep.subr.mxu0 %v3794
    %6676 = vmatpush1.msra.mxu0 %v3793
    %6677 = vmatprep.subr.mxu0 %v3786
    %6678 = vmatpush1.msra.mxu0 %v3785
    %6679 = vmatprep.subr.mxu0 %v4034
    %6680 = vmatpush2.msra.mxu0 %v4033
    %6681 = vmatprep.subr.mxu0 %v4026
    %6682 = vmatpush2.msra.mxu0 %v4025
    %6683 = vmatprep.subr.mxu0 %v4018
    %6684 = vmatpush2.msra.mxu0 %v4017
    %6685 = vmatprep.subr.mxu0 %v4010
    %6686 = vmatpush2.msra.mxu0 %v4009
    %6687 = vmatprep.subr.mxu0 %v4002
    %6688 = vmatpush2.msra.mxu0 %v4001
    %6689 = vmatprep.subr.mxu0 %v3994
    %6690 = vmatpush2.msra.mxu0 %v3993
    %6691 = vmatprep.subr.mxu0 %v3986
    %6692 = vmatpush2.msra.mxu0 %v3985
    %6693 = vmatprep.subr.mxu0 %v3978
    %6694 = vmatpush2.msra.mxu0 %v3977
    %6695 = vmatprep.subr.mxu0 %v3970
    %6696 = vmatpush2.msra.mxu0 %v3969
    %6697 = vmatprep.subr.mxu0 %v3962
    %6698 = vmatpush2.msra.mxu0 %v3961
    %6699 = vmatprep.subr.mxu0 %v3954
    %6700 = vmatpush2.msra.mxu0 %v3953
    %6701 = vmatprep.subr.mxu0 %v3946
    %6702 = vmatpush2.msra.mxu0 %v3945
    %6703 = vmatprep.subr.mxu0 %v3938
    %6704 = vmatpush2.msra.mxu0 %v3937
    %6705 = vmatprep.subr.mxu0 %v3930
    %6706 = vmatpush2.msra.mxu0 %v3929
    %6707 = vmatprep.subr.mxu0 %v3922
    %6708 = vmatpush2.msra.mxu0 %v3921
    %6709 = vmatprep.subr.mxu0 %v3914
    %6710 = vmatpush2.msra.mxu0 %v3913
    %6711 = vmatprep.mubr.f32.mxu0 %v164
    %6712 = vmatmul.mubr.f32.gmra.mxu0 %v163
    %v6713 = vpop.f32.mrf.mxu0
    %v6714 = vadd.f32 %v6637, %v6713
    %v6715 = vpop.f32.mrf.mxu0
    %v6716 = vadd.f32 %v6639, %v6715
    %6717 = vmatprep.mubr.f32.mxu0 %v196
    %6718 = vmatmul.mubr.f32.gmra.mxu0 %v195
    %v6719 = vpop.f32.mrf.mxu0
    %v6720 = vadd.f32 %v6643, %v6719
    %v6721 = vpop.f32.mrf.mxu0
    %v6722 = vadd.f32 %v6645, %v6721
    %6723 = vdwg.mxu0
    %6724 = vmatprep.subr.mxu0 %v4162
    %6725 = vmatpush1.msra.mxu0 %v4161
    %6726 = vmatprep.subr.mxu0 %v4154
    %6727 = vmatpush1.msra.mxu0 %v4153
    %6728 = vmatprep.subr.mxu0 %v4146
    %6729 = vmatpush1.msra.mxu0 %v4145
    %6730 = vmatprep.subr.mxu0 %v4138
    %6731 = vmatpush1.msra.mxu0 %v4137
    %6732 = vmatprep.subr.mxu0 %v4130
    %6733 = vmatpush1.msra.mxu0 %v4129
    %6734 = vmatprep.subr.mxu0 %v4122
    %6735 = vmatpush1.msra.mxu0 %v4121
    %6736 = vmatprep.subr.mxu0 %v4114
    %6737 = vmatpush1.msra.mxu0 %v4113
    %6738 = vmatprep.subr.mxu0 %v4106
    %6739 = vmatpush1.msra.mxu0 %v4105
    %6740 = vmatprep.subr.mxu0 %v4098
    %6741 = vmatpush1.msra.mxu0 %v4097
    %6742 = vmatprep.subr.mxu0 %v4090
    %6743 = vmatpush1.msra.mxu0 %v4089
    %6744 = vmatprep.subr.mxu0 %v4082
    %6745 = vmatpush1.msra.mxu0 %v4081
    %6746 = vmatprep.subr.mxu0 %v4074
    %6747 = vmatpush1.msra.mxu0 %v4073
    %6748 = vmatprep.subr.mxu0 %v4066
    %6749 = vmatpush1.msra.mxu0 %v4065
    %6750 = vmatprep.subr.mxu0 %v4058
    %6751 = vmatpush1.msra.mxu0 %v4057
    %6752 = vmatprep.subr.mxu0 %v4050
    %6753 = vmatpush1.msra.mxu0 %v4049
    %6754 = vmatprep.subr.mxu0 %v4042
    %6755 = vmatpush1.msra.mxu0 %v4041
    %6756 = vmatprep.subr.mxu0 %v4290
    %6757 = vmatpush2.msra.mxu0 %v4289
    %6758 = vmatprep.subr.mxu0 %v4282
    %6759 = vmatpush2.msra.mxu0 %v4281
    %6760 = vmatprep.subr.mxu0 %v4274
    %6761 = vmatpush2.msra.mxu0 %v4273
    %6762 = vmatprep.subr.mxu0 %v4266
    %6763 = vmatpush2.msra.mxu0 %v4265
    %6764 = vmatprep.subr.mxu0 %v4258
    %6765 = vmatpush2.msra.mxu0 %v4257
    %6766 = vmatprep.subr.mxu0 %v4250
    %6767 = vmatpush2.msra.mxu0 %v4249
    %6768 = vmatprep.subr.mxu0 %v4242
    %6769 = vmatpush2.msra.mxu0 %v4241
    %6770 = vmatprep.subr.mxu0 %v4234
    %6771 = vmatpush2.msra.mxu0 %v4233
    %6772 = vmatprep.subr.mxu0 %v4226
    %6773 = vmatpush2.msra.mxu0 %v4225
    %6774 = vmatprep.subr.mxu0 %v4218
    %6775 = vmatpush2.msra.mxu0 %v4217
    %6776 = vmatprep.subr.mxu0 %v4210
    %6777 = vmatpush2.msra.mxu0 %v4209
    %6778 = vmatprep.subr.mxu0 %v4202
    %6779 = vmatpush2.msra.mxu0 %v4201
    %6780 = vmatprep.subr.mxu0 %v4194
    %6781 = vmatpush2.msra.mxu0 %v4193
    %6782 = vmatprep.subr.mxu0 %v4186
    %6783 = vmatpush2.msra.mxu0 %v4185
    %6784 = vmatprep.subr.mxu0 %v4178
    %6785 = vmatpush2.msra.mxu0 %v4177
    %6786 = vmatprep.subr.mxu0 %v4170
    %6787 = vmatpush2.msra.mxu0 %v4169
    %6788 = vmatprep.mubr.f32.mxu0 %v166
    %6789 = vmatmul.mubr.f32.gmra.mxu0 %v165
    %v6790 = vpop.f32.mrf.mxu0
    %v6791 = vadd.f32 %v6714, %v6790
    %v6792 = vpop.f32.mrf.mxu0
    %v6793 = vadd.f32 %v6716, %v6792
    %6794 = vmatprep.mubr.f32.mxu0 %v198
    %6795 = vmatmul.mubr.f32.gmra.mxu0 %v197
    %v6796 = vpop.f32.mrf.mxu0
    %v6797 = vadd.f32 %v6720, %v6796
    %v6798 = vpop.f32.mrf.mxu0
    %v6799 = vadd.f32 %v6722, %v6798
    %6800 = vdwg.mxu0
    %6801 = vmatprep.subr.mxu0 %v324
    %6802 = vmatpush1.msra.mxu0 %v323
    %6803 = vmatprep.subr.mxu0 %v316
    %6804 = vmatpush1.msra.mxu0 %v315
    %6805 = vmatprep.subr.mxu0 %v308
    %6806 = vmatpush1.msra.mxu0 %v307
    %6807 = vmatprep.subr.mxu0 %v300
    %6808 = vmatpush1.msra.mxu0 %v299
    %6809 = vmatprep.subr.mxu0 %v292
    %6810 = vmatpush1.msra.mxu0 %v291
    %6811 = vmatprep.subr.mxu0 %v284
    %6812 = vmatpush1.msra.mxu0 %v283
    %6813 = vmatprep.subr.mxu0 %v276
    %6814 = vmatpush1.msra.mxu0 %v275
    %6815 = vmatprep.subr.mxu0 %v268
    %6816 = vmatpush1.msra.mxu0 %v267
    %6817 = vmatprep.subr.mxu0 %v260
    %6818 = vmatpush1.msra.mxu0 %v259
    %6819 = vmatprep.subr.mxu0 %v252
    %6820 = vmatpush1.msra.mxu0 %v251
    %6821 = vmatprep.subr.mxu0 %v244
    %6822 = vmatpush1.msra.mxu0 %v243
    %6823 = vmatprep.subr.mxu0 %v236
    %6824 = vmatpush1.msra.mxu0 %v235
    %6825 = vmatprep.subr.mxu0 %v228
    %6826 = vmatpush1.msra.mxu0 %v227
    %6827 = vmatprep.subr.mxu0 %v220
    %6828 = vmatpush1.msra.mxu0 %v219
    %6829 = vmatprep.subr.mxu0 %v212
    %6830 = vmatpush1.msra.mxu0 %v211
    %6831 = vmatprep.subr.mxu0 %v204
    %6832 = vmatpush1.msra.mxu0 %v203
    %6833 = vmatprep.subr.mxu0 %v452
    %6834 = vmatpush2.msra.mxu0 %v451
    %6835 = vmatprep.subr.mxu0 %v444
    %6836 = vmatpush2.msra.mxu0 %v443
    %6837 = vmatprep.subr.mxu0 %v436
    %6838 = vmatpush2.msra.mxu0 %v435
    %6839 = vmatprep.subr.mxu0 %v428
    %6840 = vmatpush2.msra.mxu0 %v427
    %6841 = vmatprep.subr.mxu0 %v420
    %6842 = vmatpush2.msra.mxu0 %v419
    %6843 = vmatprep.subr.mxu0 %v412
    %6844 = vmatpush2.msra.mxu0 %v411
    %6845 = vmatprep.subr.mxu0 %v404
    %6846 = vmatpush2.msra.mxu0 %v403
    %6847 = vmatprep.subr.mxu0 %v396
    %6848 = vmatpush2.msra.mxu0 %v395
    %6849 = vmatprep.subr.mxu0 %v388
    %6850 = vmatpush2.msra.mxu0 %v387
    %6851 = vmatprep.subr.mxu0 %v380
    %6852 = vmatpush2.msra.mxu0 %v379
    %6853 = vmatprep.subr.mxu0 %v372
    %6854 = vmatpush2.msra.mxu0 %v371
    %6855 = vmatprep.subr.mxu0 %v364
    %6856 = vmatpush2.msra.mxu0 %v363
    %6857 = vmatprep.subr.mxu0 %v356
    %6858 = vmatpush2.msra.mxu0 %v355
    %6859 = vmatprep.subr.mxu0 %v348
    %6860 = vmatpush2.msra.mxu0 %v347
    %6861 = vmatprep.subr.mxu0 %v340
    %6862 = vmatpush2.msra.mxu0 %v339
    %6863 = vmatprep.subr.mxu0 %v332
    %6864 = vmatpush2.msra.mxu0 %v331
    %6865 = vmatprep.mubr.f32.mxu0 %v136
    %6866 = vmatmul.mubr.f32.gmra.mxu0 %v135
    %v6867 = vpop.f32.mrf.mxu0
    %v6868 = vadd.f32 %v4316, %v6867
    %v6869 = vpop.f32.mrf.mxu0
    %v6870 = vadd.f32 %v4320, %v6869
    %6871 = vmatprep.mubr.f32.mxu0 %v168
    %6872 = vmatmul.mubr.f32.gmra.mxu0 %v167
    %v6873 = vpop.f32.mrf.mxu0
    %v6874 = vadd.f32 %v4316, %v6873
    %v6875 = vpop.f32.mrf.mxu0
    %v6876 = vadd.f32 %v4320, %v6875
    %6877 = vdwg.mxu0
    %6878 = vmatprep.subr.mxu0 %v580
    %6879 = vmatpush1.msra.mxu0 %v579
    %6880 = vmatprep.subr.mxu0 %v572
    %6881 = vmatpush1.msra.mxu0 %v571
    %6882 = vmatprep.subr.mxu0 %v564
    %6883 = vmatpush1.msra.mxu0 %v563
    %6884 = vmatprep.subr.mxu0 %v556
    %6885 = vmatpush1.msra.mxu0 %v555
    %6886 = vmatprep.subr.mxu0 %v548
    %6887 = vmatpush1.msra.mxu0 %v547
    %6888 = vmatprep.subr.mxu0 %v540
    %6889 = vmatpush1.msra.mxu0 %v539
    %6890 = vmatprep.subr.mxu0 %v532
    %6891 = vmatpush1.msra.mxu0 %v531
    %6892 = vmatprep.subr.mxu0 %v524
    %6893 = vmatpush1.msra.mxu0 %v523
    %6894 = vmatprep.subr.mxu0 %v516
    %6895 = vmatpush1.msra.mxu0 %v515
    %6896 = vmatprep.subr.mxu0 %v508
    %6897 = vmatpush1.msra.mxu0 %v507
    %6898 = vmatprep.subr.mxu0 %v500
    %6899 = vmatpush1.msra.mxu0 %v499
    %6900 = vmatprep.subr.mxu0 %v492
    %6901 = vmatpush1.msra.mxu0 %v491
    %6902 = vmatprep.subr.mxu0 %v484
    %6903 = vmatpush1.msra.mxu0 %v483
    %6904 = vmatprep.subr.mxu0 %v476
    %6905 = vmatpush1.msra.mxu0 %v475
    %6906 = vmatprep.subr.mxu0 %v468
    %6907 = vmatpush1.msra.mxu0 %v467
    %6908 = vmatprep.subr.mxu0 %v460
    %6909 = vmatpush1.msra.mxu0 %v459
    %6910 = vmatprep.subr.mxu0 %v708
    %6911 = vmatpush2.msra.mxu0 %v707
    %6912 = vmatprep.subr.mxu0 %v700
    %6913 = vmatpush2.msra.mxu0 %v699
    %6914 = vmatprep.subr.mxu0 %v692
    %6915 = vmatpush2.msra.mxu0 %v691
    %6916 = vmatprep.subr.mxu0 %v684
    %6917 = vmatpush2.msra.mxu0 %v683
    %6918 = vmatprep.subr.mxu0 %v676
    %6919 = vmatpush2.msra.mxu0 %v675
    %6920 = vmatprep.subr.mxu0 %v668
    %6921 = vmatpush2.msra.mxu0 %v667
    %6922 = vmatprep.subr.mxu0 %v660
    %6923 = vmatpush2.msra.mxu0 %v659
    %6924 = vmatprep.subr.mxu0 %v652
    %6925 = vmatpush2.msra.mxu0 %v651
    %6926 = vmatprep.subr.mxu0 %v644
    %6927 = vmatpush2.msra.mxu0 %v643
    %6928 = vmatprep.subr.mxu0 %v636
    %6929 = vmatpush2.msra.mxu0 %v635
    %6930 = vmatprep.subr.mxu0 %v628
    %6931 = vmatpush2.msra.mxu0 %v627
    %6932 = vmatprep.subr.mxu0 %v620
    %6933 = vmatpush2.msra.mxu0 %v619
    %6934 = vmatprep.subr.mxu0 %v612
    %6935 = vmatpush2.msra.mxu0 %v611
    %6936 = vmatprep.subr.mxu0 %v604
    %6937 = vmatpush2.msra.mxu0 %v603
    %6938 = vmatprep.subr.mxu0 %v596
    %6939 = vmatpush2.msra.mxu0 %v595
    %6940 = vmatprep.subr.mxu0 %v588
    %6941 = vmatpush2.msra.mxu0 %v587
    %6942 = vmatprep.mubr.f32.mxu0 %v138
    %6943 = vmatmul.mubr.f32.gmra.mxu0 %v137
    %v6944 = vpop.f32.mrf.mxu0
    %v6945 = vadd.f32 %v6868, %v6944
    %v6946 = vpop.f32.mrf.mxu0
    %v6947 = vadd.f32 %v6870, %v6946
    %6948 = vmatprep.mubr.f32.mxu0 %v170
    %6949 = vmatmul.mubr.f32.gmra.mxu0 %v169
    %v6950 = vpop.f32.mrf.mxu0
    %v6951 = vadd.f32 %v6874, %v6950
    %v6952 = vpop.f32.mrf.mxu0
    %v6953 = vadd.f32 %v6876, %v6952
    %6954 = vdwg.mxu0
    %6955 = vmatprep.subr.mxu0 %v836
    %6956 = vmatpush1.msra.mxu0 %v835
    %6957 = vmatprep.subr.mxu0 %v828
    %6958 = vmatpush1.msra.mxu0 %v827
    %6959 = vmatprep.subr.mxu0 %v820
    %6960 = vmatpush1.msra.mxu0 %v819
    %6961 = vmatprep.subr.mxu0 %v812
    %6962 = vmatpush1.msra.mxu0 %v811
    %6963 = vmatprep.subr.mxu0 %v804
    %6964 = vmatpush1.msra.mxu0 %v803
    %6965 = vmatprep.subr.mxu0 %v796
    %6966 = vmatpush1.msra.mxu0 %v795
    %6967 = vmatprep.subr.mxu0 %v788
    %6968 = vmatpush1.msra.mxu0 %v787
    %6969 = vmatprep.subr.mxu0 %v780
    %6970 = vmatpush1.msra.mxu0 %v779
    %6971 = vmatprep.subr.mxu0 %v772
    %6972 = vmatpush1.msra.mxu0 %v771
    %6973 = vmatprep.subr.mxu0 %v764
    %6974 = vmatpush1.msra.mxu0 %v763
    %6975 = vmatprep.subr.mxu0 %v756
    %6976 = vmatpush1.msra.mxu0 %v755
    %6977 = vmatprep.subr.mxu0 %v748
    %6978 = vmatpush1.msra.mxu0 %v747
    %6979 = vmatprep.subr.mxu0 %v740
    %6980 = vmatpush1.msra.mxu0 %v739
    %6981 = vmatprep.subr.mxu0 %v732
    %6982 = vmatpush1.msra.mxu0 %v731
    %6983 = vmatprep.subr.mxu0 %v724
    %6984 = vmatpush1.msra.mxu0 %v723
    %6985 = vmatprep.subr.mxu0 %v716
    %6986 = vmatpush1.msra.mxu0 %v715
    %6987 = vmatprep.subr.mxu0 %v964
    %6988 = vmatpush2.msra.mxu0 %v963
    %6989 = vmatprep.subr.mxu0 %v956
    %6990 = vmatpush2.msra.mxu0 %v955
    %6991 = vmatprep.subr.mxu0 %v948
    %6992 = vmatpush2.msra.mxu0 %v947
    %6993 = vmatprep.subr.mxu0 %v940
    %6994 = vmatpush2.msra.mxu0 %v939
    %6995 = vmatprep.subr.mxu0 %v932
    %6996 = vmatpush2.msra.mxu0 %v931
    %6997 = vmatprep.subr.mxu0 %v924
    %6998 = vmatpush2.msra.mxu0 %v923
    %6999 = vmatprep.subr.mxu0 %v916
    %7000 = vmatpush2.msra.mxu0 %v915
    %7001 = vmatprep.subr.mxu0 %v908
    %7002 = vmatpush2.msra.mxu0 %v907
    %7003 = vmatprep.subr.mxu0 %v900
    %7004 = vmatpush2.msra.mxu0 %v899
    %7005 = vmatprep.subr.mxu0 %v892
    %7006 = vmatpush2.msra.mxu0 %v891
    %7007 = vmatprep.subr.mxu0 %v884
    %7008 = vmatpush2.msra.mxu0 %v883
    %7009 = vmatprep.subr.mxu0 %v876
    %7010 = vmatpush2.msra.mxu0 %v875
    %7011 = vmatprep.subr.mxu0 %v868
    %7012 = vmatpush2.msra.mxu0 %v867
    %7013 = vmatprep.subr.mxu0 %v860
    %7014 = vmatpush2.msra.mxu0 %v859
    %7015 = vmatprep.subr.mxu0 %v852
    %7016 = vmatpush2.msra.mxu0 %v851
    %7017 = vmatprep.subr.mxu0 %v844
    %7018 = vmatpush2.msra.mxu0 %v843
    %7019 = vmatprep.mubr.f32.mxu0 %v140
    %7020 = vmatmul.mubr.f32.gmra.mxu0 %v139
    %v7021 = vpop.f32.mrf.mxu0
    %v7022 = vadd.f32 %v6945, %v7021
    %v7023 = vpop.f32.mrf.mxu0
    %v7024 = vadd.f32 %v6947, %v7023
    %7025 = vmatprep.mubr.f32.mxu0 %v172
    %7026 = vmatmul.mubr.f32.gmra.mxu0 %v171
    %v7027 = vpop.f32.mrf.mxu0
    %v7028 = vadd.f32 %v6951, %v7027
    %v7029 = vpop.f32.mrf.mxu0
    %v7030 = vadd.f32 %v6953, %v7029
    %7031 = vdwg.mxu0
    %7032 = vmatprep.subr.mxu0 %v1092
    %7033 = vmatpush1.msra.mxu0 %v1091
    %7034 = vmatprep.subr.mxu0 %v1084
    %7035 = vmatpush1.msra.mxu0 %v1083
    %7036 = vmatprep.subr.mxu0 %v1076
    %7037 = vmatpush1.msra.mxu0 %v1075
    %7038 = vmatprep.subr.mxu0 %v1068
    %7039 = vmatpush1.msra.mxu0 %v1067
    %7040 = vmatprep.subr.mxu0 %v1060
    %7041 = vmatpush1.msra.mxu0 %v1059
    %7042 = vmatprep.subr.mxu0 %v1052
    %7043 = vmatpush1.msra.mxu0 %v1051
    %7044 = vmatprep.subr.mxu0 %v1044
    %7045 = vmatpush1.msra.mxu0 %v1043
    %7046 = vmatprep.subr.mxu0 %v1036
    %7047 = vmatpush1.msra.mxu0 %v1035
    %7048 = vmatprep.subr.mxu0 %v1028
    %7049 = vmatpush1.msra.mxu0 %v1027
    %7050 = vmatprep.subr.mxu0 %v1020
    %7051 = vmatpush1.msra.mxu0 %v1019
    %7052 = vmatprep.subr.mxu0 %v1012
    %7053 = vmatpush1.msra.mxu0 %v1011
    %7054 = vmatprep.subr.mxu0 %v1004
    %7055 = vmatpush1.msra.mxu0 %v1003
    %7056 = vmatprep.subr.mxu0 %v996
    %7057 = vmatpush1.msra.mxu0 %v995
    %7058 = vmatprep.subr.mxu0 %v988
    %7059 = vmatpush1.msra.mxu0 %v987
    %7060 = vmatprep.subr.mxu0 %v980
    %7061 = vmatpush1.msra.mxu0 %v979
    %7062 = vmatprep.subr.mxu0 %v972
    %7063 = vmatpush1.msra.mxu0 %v971
    %7064 = vmatprep.subr.mxu0 %v1220
    %7065 = vmatpush2.msra.mxu0 %v1219
    %7066 = vmatprep.subr.mxu0 %v1212
    %7067 = vmatpush2.msra.mxu0 %v1211
    %7068 = vmatprep.subr.mxu0 %v1204
    %7069 = vmatpush2.msra.mxu0 %v1203
    %7070 = vmatprep.subr.mxu0 %v1196
    %7071 = vmatpush2.msra.mxu0 %v1195
    %7072 = vmatprep.subr.mxu0 %v1188
    %7073 = vmatpush2.msra.mxu0 %v1187
    %7074 = vmatprep.subr.mxu0 %v1180
    %7075 = vmatpush2.msra.mxu0 %v1179
    %7076 = vmatprep.subr.mxu0 %v1172
    %7077 = vmatpush2.msra.mxu0 %v1171
    %7078 = vmatprep.subr.mxu0 %v1164
    %7079 = vmatpush2.msra.mxu0 %v1163
    %7080 = vmatprep.subr.mxu0 %v1156
    %7081 = vmatpush2.msra.mxu0 %v1155
    %7082 = vmatprep.subr.mxu0 %v1148
    %7083 = vmatpush2.msra.mxu0 %v1147
    %7084 = vmatprep.subr.mxu0 %v1140
    %7085 = vmatpush2.msra.mxu0 %v1139
    %7086 = vmatprep.subr.mxu0 %v1132
    %7087 = vmatpush2.msra.mxu0 %v1131
    %7088 = vmatprep.subr.mxu0 %v1124
    %7089 = vmatpush2.msra.mxu0 %v1123
    %7090 = vmatprep.subr.mxu0 %v1116
    %7091 = vmatpush2.msra.mxu0 %v1115
    %7092 = vmatprep.subr.mxu0 %v1108
    %7093 = vmatpush2.msra.mxu0 %v1107
    %7094 = vmatprep.subr.mxu0 %v1100
    %7095 = vmatpush2.msra.mxu0 %v1099
    %7096 = vmatprep.mubr.f32.mxu0 %v142
    %7097 = vmatmul.mubr.f32.gmra.mxu0 %v141
    %v7098 = vpop.f32.mrf.mxu0
    %v7099 = vadd.f32 %v7022, %v7098
    %v7100 = vpop.f32.mrf.mxu0
    %v7101 = vadd.f32 %v7024, %v7100
    %7102 = vmatprep.mubr.f32.mxu0 %v174
    %7103 = vmatmul.mubr.f32.gmra.mxu0 %v173
    %v7104 = vpop.f32.mrf.mxu0
    %v7105 = vadd.f32 %v7028, %v7104
    %v7106 = vpop.f32.mrf.mxu0
    %v7107 = vadd.f32 %v7030, %v7106
    %7108 = vdwg.mxu0
    %7109 = vmatprep.subr.mxu0 %v1348
    %7110 = vmatpush1.msra.mxu0 %v1347
    %7111 = vmatprep.subr.mxu0 %v1340
    %7112 = vmatpush1.msra.mxu0 %v1339
    %7113 = vmatprep.subr.mxu0 %v1332
    %7114 = vmatpush1.msra.mxu0 %v1331
    %7115 = vmatprep.subr.mxu0 %v1324
    %7116 = vmatpush1.msra.mxu0 %v1323
    %7117 = vmatprep.subr.mxu0 %v1316
    %7118 = vmatpush1.msra.mxu0 %v1315
    %7119 = vmatprep.subr.mxu0 %v1308
    %7120 = vmatpush1.msra.mxu0 %v1307
    %7121 = vmatprep.subr.mxu0 %v1300
    %7122 = vmatpush1.msra.mxu0 %v1299
    %7123 = vmatprep.subr.mxu0 %v1292
    %7124 = vmatpush1.msra.mxu0 %v1291
    %7125 = vmatprep.subr.mxu0 %v1284
    %7126 = vmatpush1.msra.mxu0 %v1283
    %7127 = vmatprep.subr.mxu0 %v1276
    %7128 = vmatpush1.msra.mxu0 %v1275
    %7129 = vmatprep.subr.mxu0 %v1268
    %7130 = vmatpush1.msra.mxu0 %v1267
    %7131 = vmatprep.subr.mxu0 %v1260
    %7132 = vmatpush1.msra.mxu0 %v1259
    %7133 = vmatprep.subr.mxu0 %v1252
    %7134 = vmatpush1.msra.mxu0 %v1251
    %7135 = vmatprep.subr.mxu0 %v1244
    %7136 = vmatpush1.msra.mxu0 %v1243
    %7137 = vmatprep.subr.mxu0 %v1236
    %7138 = vmatpush1.msra.mxu0 %v1235
    %7139 = vmatprep.subr.mxu0 %v1228
    %7140 = vmatpush1.msra.mxu0 %v1227
    %7141 = vmatprep.subr.mxu0 %v1476
    %7142 = vmatpush2.msra.mxu0 %v1475
    %7143 = vmatprep.subr.mxu0 %v1468
    %7144 = vmatpush2.msra.mxu0 %v1467
    %7145 = vmatprep.subr.mxu0 %v1460
    %7146 = vmatpush2.msra.mxu0 %v1459
    %7147 = vmatprep.subr.mxu0 %v1452
    %7148 = vmatpush2.msra.mxu0 %v1451
    %7149 = vmatprep.subr.mxu0 %v1444
    %7150 = vmatpush2.msra.mxu0 %v1443
    %7151 = vmatprep.subr.mxu0 %v1436
    %7152 = vmatpush2.msra.mxu0 %v1435
    %7153 = vmatprep.subr.mxu0 %v1428
    %7154 = vmatpush2.msra.mxu0 %v1427
    %7155 = vmatprep.subr.mxu0 %v1420
    %7156 = vmatpush2.msra.mxu0 %v1419
    %7157 = vmatprep.subr.mxu0 %v1412
    %7158 = vmatpush2.msra.mxu0 %v1411
    %7159 = vmatprep.subr.mxu0 %v1404
    %7160 = vmatpush2.msra.mxu0 %v1403
    %7161 = vmatprep.subr.mxu0 %v1396
    %7162 = vmatpush2.msra.mxu0 %v1395
    %7163 = vmatprep.subr.mxu0 %v1388
    %7164 = vmatpush2.msra.mxu0 %v1387
    %7165 = vmatprep.subr.mxu0 %v1380
    %7166 = vmatpush2.msra.mxu0 %v1379
    %7167 = vmatprep.subr.mxu0 %v1372
    %7168 = vmatpush2.msra.mxu0 %v1371
    %7169 = vmatprep.subr.mxu0 %v1364
    %7170 = vmatpush2.msra.mxu0 %v1363
    %7171 = vmatprep.subr.mxu0 %v1356
    %7172 = vmatpush2.msra.mxu0 %v1355
    %7173 = vmatprep.mubr.f32.mxu0 %v144
    %7174 = vmatmul.mubr.f32.gmra.mxu0 %v143
    %v7175 = vpop.f32.mrf.mxu0
    %v7176 = vadd.f32 %v7099, %v7175
    %v7177 = vpop.f32.mrf.mxu0
    %v7178 = vadd.f32 %v7101, %v7177
    %7179 = vmatprep.mubr.f32.mxu0 %v176
    %7180 = vmatmul.mubr.f32.gmra.mxu0 %v175
    %v7181 = vpop.f32.mrf.mxu0
    %v7182 = vadd.f32 %v7105, %v7181
    %v7183 = vpop.f32.mrf.mxu0
    %v7184 = vadd.f32 %v7107, %v7183
    %7185 = vdwg.mxu0
    %7186 = vmatprep.subr.mxu0 %v1604
    %7187 = vmatpush1.msra.mxu0 %v1603
    %7188 = vmatprep.subr.mxu0 %v1596
    %7189 = vmatpush1.msra.mxu0 %v1595
    %7190 = vmatprep.subr.mxu0 %v1588
    %7191 = vmatpush1.msra.mxu0 %v1587
    %7192 = vmatprep.subr.mxu0 %v1580
    %7193 = vmatpush1.msra.mxu0 %v1579
    %7194 = vmatprep.subr.mxu0 %v1572
    %7195 = vmatpush1.msra.mxu0 %v1571
    %7196 = vmatprep.subr.mxu0 %v1564
    %7197 = vmatpush1.msra.mxu0 %v1563
    %7198 = vmatprep.subr.mxu0 %v1556
    %7199 = vmatpush1.msra.mxu0 %v1555
    %7200 = vmatprep.subr.mxu0 %v1548
    %7201 = vmatpush1.msra.mxu0 %v1547
    %7202 = vmatprep.subr.mxu0 %v1540
    %7203 = vmatpush1.msra.mxu0 %v1539
    %7204 = vmatprep.subr.mxu0 %v1532
    %7205 = vmatpush1.msra.mxu0 %v1531
    %7206 = vmatprep.subr.mxu0 %v1524
    %7207 = vmatpush1.msra.mxu0 %v1523
    %7208 = vmatprep.subr.mxu0 %v1516
    %7209 = vmatpush1.msra.mxu0 %v1515
    %7210 = vmatprep.subr.mxu0 %v1508
    %7211 = vmatpush1.msra.mxu0 %v1507
    %7212 = vmatprep.subr.mxu0 %v1500
    %7213 = vmatpush1.msra.mxu0 %v1499
    %7214 = vmatprep.subr.mxu0 %v1492
    %7215 = vmatpush1.msra.mxu0 %v1491
    %7216 = vmatprep.subr.mxu0 %v1484
    %7217 = vmatpush1.msra.mxu0 %v1483
    %7218 = vmatprep.subr.mxu0 %v1732
    %7219 = vmatpush2.msra.mxu0 %v1731
    %7220 = vmatprep.subr.mxu0 %v1724
    %7221 = vmatpush2.msra.mxu0 %v1723
    %7222 = vmatprep.subr.mxu0 %v1716
    %7223 = vmatpush2.msra.mxu0 %v1715
    %7224 = vmatprep.subr.mxu0 %v1708
    %7225 = vmatpush2.msra.mxu0 %v1707
    %7226 = vmatprep.subr.mxu0 %v1700
    %7227 = vmatpush2.msra.mxu0 %v1699
    %7228 = vmatprep.subr.mxu0 %v1692
    %7229 = vmatpush2.msra.mxu0 %v1691
    %7230 = vmatprep.subr.mxu0 %v1684
    %7231 = vmatpush2.msra.mxu0 %v1683
    %7232 = vmatprep.subr.mxu0 %v1676
    %7233 = vmatpush2.msra.mxu0 %v1675
    %7234 = vmatprep.subr.mxu0 %v1668
    %7235 = vmatpush2.msra.mxu0 %v1667
    %7236 = vmatprep.subr.mxu0 %v1660
    %7237 = vmatpush2.msra.mxu0 %v1659
    %7238 = vmatprep.subr.mxu0 %v1652
    %7239 = vmatpush2.msra.mxu0 %v1651
    %7240 = vmatprep.subr.mxu0 %v1644
    %7241 = vmatpush2.msra.mxu0 %v1643
    %7242 = vmatprep.subr.mxu0 %v1636
    %7243 = vmatpush2.msra.mxu0 %v1635
    %7244 = vmatprep.subr.mxu0 %v1628
    %7245 = vmatpush2.msra.mxu0 %v1627
    %7246 = vmatprep.subr.mxu0 %v1620
    %7247 = vmatpush2.msra.mxu0 %v1619
    %7248 = vmatprep.subr.mxu0 %v1612
    %7249 = vmatpush2.msra.mxu0 %v1611
    %7250 = vmatprep.mubr.f32.mxu0 %v146
    %7251 = vmatmul.mubr.f32.gmra.mxu0 %v145
    %v7252 = vpop.f32.mrf.mxu0
    %v7253 = vadd.f32 %v7176, %v7252
    %v7254 = vpop.f32.mrf.mxu0
    %v7255 = vadd.f32 %v7178, %v7254
    %7256 = vmatprep.mubr.f32.mxu0 %v178
    %7257 = vmatmul.mubr.f32.gmra.mxu0 %v177
    %v7258 = vpop.f32.mrf.mxu0
    %v7259 = vadd.f32 %v7182, %v7258
    %v7260 = vpop.f32.mrf.mxu0
    %v7261 = vadd.f32 %v7184, %v7260
    %7262 = vdwg.mxu0
    %7263 = vmatprep.subr.mxu0 %v1860
    %7264 = vmatpush1.msra.mxu0 %v1859
    %7265 = vmatprep.subr.mxu0 %v1852
    %7266 = vmatpush1.msra.mxu0 %v1851
    %7267 = vmatprep.subr.mxu0 %v1844
    %7268 = vmatpush1.msra.mxu0 %v1843
    %7269 = vmatprep.subr.mxu0 %v1836
    %7270 = vmatpush1.msra.mxu0 %v1835
    %7271 = vmatprep.subr.mxu0 %v1828
    %7272 = vmatpush1.msra.mxu0 %v1827
    %7273 = vmatprep.subr.mxu0 %v1820
    %7274 = vmatpush1.msra.mxu0 %v1819
    %7275 = vmatprep.subr.mxu0 %v1812
    %7276 = vmatpush1.msra.mxu0 %v1811
    %7277 = vmatprep.subr.mxu0 %v1804
    %7278 = vmatpush1.msra.mxu0 %v1803
    %7279 = vmatprep.subr.mxu0 %v1796
    %7280 = vmatpush1.msra.mxu0 %v1795
    %7281 = vmatprep.subr.mxu0 %v1788
    %7282 = vmatpush1.msra.mxu0 %v1787
    %7283 = vmatprep.subr.mxu0 %v1780
    %7284 = vmatpush1.msra.mxu0 %v1779
    %7285 = vmatprep.subr.mxu0 %v1772
    %7286 = vmatpush1.msra.mxu0 %v1771
    %7287 = vmatprep.subr.mxu0 %v1764
    %7288 = vmatpush1.msra.mxu0 %v1763
    %7289 = vmatprep.subr.mxu0 %v1756
    %7290 = vmatpush1.msra.mxu0 %v1755
    %7291 = vmatprep.subr.mxu0 %v1748
    %7292 = vmatpush1.msra.mxu0 %v1747
    %7293 = vmatprep.subr.mxu0 %v1740
    %7294 = vmatpush1.msra.mxu0 %v1739
    %7295 = vmatprep.subr.mxu0 %v1988
    %7296 = vmatpush2.msra.mxu0 %v1987
    %7297 = vmatprep.subr.mxu0 %v1980
    %7298 = vmatpush2.msra.mxu0 %v1979
    %7299 = vmatprep.subr.mxu0 %v1972
    %7300 = vmatpush2.msra.mxu0 %v1971
    %7301 = vmatprep.subr.mxu0 %v1964
    %7302 = vmatpush2.msra.mxu0 %v1963
    %7303 = vmatprep.subr.mxu0 %v1956
    %7304 = vmatpush2.msra.mxu0 %v1955
    %7305 = vmatprep.subr.mxu0 %v1948
    %7306 = vmatpush2.msra.mxu0 %v1947
    %7307 = vmatprep.subr.mxu0 %v1940
    %7308 = vmatpush2.msra.mxu0 %v1939
    %7309 = vmatprep.subr.mxu0 %v1932
    %7310 = vmatpush2.msra.mxu0 %v1931
    %7311 = vmatprep.subr.mxu0 %v1924
    %7312 = vmatpush2.msra.mxu0 %v1923
    %7313 = vmatprep.subr.mxu0 %v1916
    %7314 = vmatpush2.msra.mxu0 %v1915
    %7315 = vmatprep.subr.mxu0 %v1908
    %7316 = vmatpush2.msra.mxu0 %v1907
    %7317 = vmatprep.subr.mxu0 %v1900
    %7318 = vmatpush2.msra.mxu0 %v1899
    %7319 = vmatprep.subr.mxu0 %v1892
    %7320 = vmatpush2.msra.mxu0 %v1891
    %7321 = vmatprep.subr.mxu0 %v1884
    %7322 = vmatpush2.msra.mxu0 %v1883
    %7323 = vmatprep.subr.mxu0 %v1876
    %7324 = vmatpush2.msra.mxu0 %v1875
    %7325 = vmatprep.subr.mxu0 %v1868
    %7326 = vmatpush2.msra.mxu0 %v1867
    %7327 = vmatprep.mubr.f32.mxu0 %v148
    %7328 = vmatmul.mubr.f32.gmra.mxu0 %v147
    %v7329 = vpop.f32.mrf.mxu0
    %v7330 = vadd.f32 %v7253, %v7329
    %v7331 = vpop.f32.mrf.mxu0
    %v7332 = vadd.f32 %v7255, %v7331
    %7333 = vmatprep.mubr.f32.mxu0 %v180
    %7334 = vmatmul.mubr.f32.gmra.mxu0 %v179
    %v7335 = vpop.f32.mrf.mxu0
    %v7336 = vadd.f32 %v7259, %v7335
    %v7337 = vpop.f32.mrf.mxu0
    %v7338 = vadd.f32 %v7261, %v7337
    %7339 = vdwg.mxu0
    %7340 = vmatprep.subr.mxu0 %v2116
    %7341 = vmatpush1.msra.mxu0 %v2115
    %7342 = vmatprep.subr.mxu0 %v2108
    %7343 = vmatpush1.msra.mxu0 %v2107
    %7344 = vmatprep.subr.mxu0 %v2100
    %7345 = vmatpush1.msra.mxu0 %v2099
    %7346 = vmatprep.subr.mxu0 %v2092
    %7347 = vmatpush1.msra.mxu0 %v2091
    %7348 = vmatprep.subr.mxu0 %v2084
    %7349 = vmatpush1.msra.mxu0 %v2083
    %7350 = vmatprep.subr.mxu0 %v2076
    %7351 = vmatpush1.msra.mxu0 %v2075
    %7352 = vmatprep.subr.mxu0 %v2068
    %7353 = vmatpush1.msra.mxu0 %v2067
    %7354 = vmatprep.subr.mxu0 %v2060
    %7355 = vmatpush1.msra.mxu0 %v2059
    %7356 = vmatprep.subr.mxu0 %v2052
    %7357 = vmatpush1.msra.mxu0 %v2051
    %7358 = vmatprep.subr.mxu0 %v2044
    %7359 = vmatpush1.msra.mxu0 %v2043
    %7360 = vmatprep.subr.mxu0 %v2036
    %7361 = vmatpush1.msra.mxu0 %v2035
    %7362 = vmatprep.subr.mxu0 %v2028
    %7363 = vmatpush1.msra.mxu0 %v2027
    %7364 = vmatprep.subr.mxu0 %v2020
    %7365 = vmatpush1.msra.mxu0 %v2019
    %7366 = vmatprep.subr.mxu0 %v2012
    %7367 = vmatpush1.msra.mxu0 %v2011
    %7368 = vmatprep.subr.mxu0 %v2004
    %7369 = vmatpush1.msra.mxu0 %v2003
    %7370 = vmatprep.subr.mxu0 %v1996
    %7371 = vmatpush1.msra.mxu0 %v1995
    %7372 = vmatprep.subr.mxu0 %v2244
    %7373 = vmatpush2.msra.mxu0 %v2243
    %7374 = vmatprep.subr.mxu0 %v2236
    %7375 = vmatpush2.msra.mxu0 %v2235
    %7376 = vmatprep.subr.mxu0 %v2228
    %7377 = vmatpush2.msra.mxu0 %v2227
    %7378 = vmatprep.subr.mxu0 %v2220
    %7379 = vmatpush2.msra.mxu0 %v2219
    %7380 = vmatprep.subr.mxu0 %v2212
    %7381 = vmatpush2.msra.mxu0 %v2211
    %7382 = vmatprep.subr.mxu0 %v2204
    %7383 = vmatpush2.msra.mxu0 %v2203
    %7384 = vmatprep.subr.mxu0 %v2196
    %7385 = vmatpush2.msra.mxu0 %v2195
    %7386 = vmatprep.subr.mxu0 %v2188
    %7387 = vmatpush2.msra.mxu0 %v2187
    %7388 = vmatprep.subr.mxu0 %v2180
    %7389 = vmatpush2.msra.mxu0 %v2179
    %7390 = vmatprep.subr.mxu0 %v2172
    %7391 = vmatpush2.msra.mxu0 %v2171
    %7392 = vmatprep.subr.mxu0 %v2164
    %7393 = vmatpush2.msra.mxu0 %v2163
    %7394 = vmatprep.subr.mxu0 %v2156
    %7395 = vmatpush2.msra.mxu0 %v2155
    %7396 = vmatprep.subr.mxu0 %v2148
    %7397 = vmatpush2.msra.mxu0 %v2147
    %7398 = vmatprep.subr.mxu0 %v2140
    %7399 = vmatpush2.msra.mxu0 %v2139
    %7400 = vmatprep.subr.mxu0 %v2132
    %7401 = vmatpush2.msra.mxu0 %v2131
    %7402 = vmatprep.subr.mxu0 %v2124
    %7403 = vmatpush2.msra.mxu0 %v2123
    %7404 = vmatprep.mubr.f32.mxu0 %v150
    %7405 = vmatmul.mubr.f32.gmra.mxu0 %v149
    %v7406 = vpop.f32.mrf.mxu0
    %v7407 = vadd.f32 %v7330, %v7406
    %v7408 = vpop.f32.mrf.mxu0
    %v7409 = vadd.f32 %v7332, %v7408
    %7410 = vmatprep.mubr.f32.mxu0 %v182
    %7411 = vmatmul.mubr.f32.gmra.mxu0 %v181
    %v7412 = vpop.f32.mrf.mxu0
    %v7413 = vadd.f32 %v7336, %v7412
    %v7414 = vpop.f32.mrf.mxu0
    %v7415 = vadd.f32 %v7338, %v7414
    %7416 = vdwg.mxu0
    %7417 = vmatprep.subr.mxu0 %v2372
    %7418 = vmatpush1.msra.mxu0 %v2371
    %7419 = vmatprep.subr.mxu0 %v2364
    %7420 = vmatpush1.msra.mxu0 %v2363
    %7421 = vmatprep.subr.mxu0 %v2356
    %7422 = vmatpush1.msra.mxu0 %v2355
    %7423 = vmatprep.subr.mxu0 %v2348
    %7424 = vmatpush1.msra.mxu0 %v2347
    %7425 = vmatprep.subr.mxu0 %v2340
    %7426 = vmatpush1.msra.mxu0 %v2339
    %7427 = vmatprep.subr.mxu0 %v2332
    %7428 = vmatpush1.msra.mxu0 %v2331
    %7429 = vmatprep.subr.mxu0 %v2324
    %7430 = vmatpush1.msra.mxu0 %v2323
    %7431 = vmatprep.subr.mxu0 %v2316
    %7432 = vmatpush1.msra.mxu0 %v2315
    %7433 = vmatprep.subr.mxu0 %v2308
    %7434 = vmatpush1.msra.mxu0 %v2307
    %7435 = vmatprep.subr.mxu0 %v2300
    %7436 = vmatpush1.msra.mxu0 %v2299
    %7437 = vmatprep.subr.mxu0 %v2292
    %7438 = vmatpush1.msra.mxu0 %v2291
    %7439 = vmatprep.subr.mxu0 %v2284
    %7440 = vmatpush1.msra.mxu0 %v2283
    %7441 = vmatprep.subr.mxu0 %v2276
    %7442 = vmatpush1.msra.mxu0 %v2275
    %7443 = vmatprep.subr.mxu0 %v2268
    %7444 = vmatpush1.msra.mxu0 %v2267
    %7445 = vmatprep.subr.mxu0 %v2260
    %7446 = vmatpush1.msra.mxu0 %v2259
    %7447 = vmatprep.subr.mxu0 %v2252
    %7448 = vmatpush1.msra.mxu0 %v2251
    %7449 = vmatprep.subr.mxu0 %v2500
    %7450 = vmatpush2.msra.mxu0 %v2499
    %7451 = vmatprep.subr.mxu0 %v2492
    %7452 = vmatpush2.msra.mxu0 %v2491
    %7453 = vmatprep.subr.mxu0 %v2484
    %7454 = vmatpush2.msra.mxu0 %v2483
    %7455 = vmatprep.subr.mxu0 %v2476
    %7456 = vmatpush2.msra.mxu0 %v2475
    %7457 = vmatprep.subr.mxu0 %v2468
    %7458 = vmatpush2.msra.mxu0 %v2467
    %7459 = vmatprep.subr.mxu0 %v2460
    %7460 = vmatpush2.msra.mxu0 %v2459
    %7461 = vmatprep.subr.mxu0 %v2452
    %7462 = vmatpush2.msra.mxu0 %v2451
    %7463 = vmatprep.subr.mxu0 %v2444
    %7464 = vmatpush2.msra.mxu0 %v2443
    %7465 = vmatprep.subr.mxu0 %v2436
    %7466 = vmatpush2.msra.mxu0 %v2435
    %7467 = vmatprep.subr.mxu0 %v2428
    %7468 = vmatpush2.msra.mxu0 %v2427
    %7469 = vmatprep.subr.mxu0 %v2420
    %7470 = vmatpush2.msra.mxu0 %v2419
    %7471 = vmatprep.subr.mxu0 %v2412
    %7472 = vmatpush2.msra.mxu0 %v2411
    %7473 = vmatprep.subr.mxu0 %v2404
    %7474 = vmatpush2.msra.mxu0 %v2403
    %7475 = vmatprep.subr.mxu0 %v2396
    %7476 = vmatpush2.msra.mxu0 %v2395
    %7477 = vmatprep.subr.mxu0 %v2388
    %7478 = vmatpush2.msra.mxu0 %v2387
    %7479 = vmatprep.subr.mxu0 %v2380
    %7480 = vmatpush2.msra.mxu0 %v2379
    %7481 = vmatprep.mubr.f32.mxu0 %v152
    %7482 = vmatmul.mubr.f32.gmra.mxu0 %v151
    %v7483 = vpop.f32.mrf.mxu0
    %v7484 = vadd.f32 %v7407, %v7483
    %v7485 = vpop.f32.mrf.mxu0
    %v7486 = vadd.f32 %v7409, %v7485
    %7487 = vmatprep.mubr.f32.mxu0 %v184
    %7488 = vmatmul.mubr.f32.gmra.mxu0 %v183
    %v7489 = vpop.f32.mrf.mxu0
    %v7490 = vadd.f32 %v7413, %v7489
    %v7491 = vpop.f32.mrf.mxu0
    %v7492 = vadd.f32 %v7415, %v7491
    %7493 = vdwg.mxu0
    %7494 = vmatprep.subr.mxu0 %v2628
    %7495 = vmatpush1.msra.mxu0 %v2627
    %7496 = vmatprep.subr.mxu0 %v2620
    %7497 = vmatpush1.msra.mxu0 %v2619
    %7498 = vmatprep.subr.mxu0 %v2612
    %7499 = vmatpush1.msra.mxu0 %v2611
    %7500 = vmatprep.subr.mxu0 %v2604
    %7501 = vmatpush1.msra.mxu0 %v2603
    %7502 = vmatprep.subr.mxu0 %v2596
    %7503 = vmatpush1.msra.mxu0 %v2595
    %7504 = vmatprep.subr.mxu0 %v2588
    %7505 = vmatpush1.msra.mxu0 %v2587
    %7506 = vmatprep.subr.mxu0 %v2580
    %7507 = vmatpush1.msra.mxu0 %v2579
    %7508 = vmatprep.subr.mxu0 %v2572
    %7509 = vmatpush1.msra.mxu0 %v2571
    %7510 = vmatprep.subr.mxu0 %v2564
    %7511 = vmatpush1.msra.mxu0 %v2563
    %7512 = vmatprep.subr.mxu0 %v2556
    %7513 = vmatpush1.msra.mxu0 %v2555
    %7514 = vmatprep.subr.mxu0 %v2548
    %7515 = vmatpush1.msra.mxu0 %v2547
    %7516 = vmatprep.subr.mxu0 %v2540
    %7517 = vmatpush1.msra.mxu0 %v2539
    %7518 = vmatprep.subr.mxu0 %v2532
    %7519 = vmatpush1.msra.mxu0 %v2531
    %7520 = vmatprep.subr.mxu0 %v2524
    %7521 = vmatpush1.msra.mxu0 %v2523
    %7522 = vmatprep.subr.mxu0 %v2516
    %7523 = vmatpush1.msra.mxu0 %v2515
    %7524 = vmatprep.subr.mxu0 %v2508
    %7525 = vmatpush1.msra.mxu0 %v2507
    %7526 = vmatprep.subr.mxu0 %v2756
    %7527 = vmatpush2.msra.mxu0 %v2755
    %7528 = vmatprep.subr.mxu0 %v2748
    %7529 = vmatpush2.msra.mxu0 %v2747
    %7530 = vmatprep.subr.mxu0 %v2740
    %7531 = vmatpush2.msra.mxu0 %v2739
    %7532 = vmatprep.subr.mxu0 %v2732
    %7533 = vmatpush2.msra.mxu0 %v2731
    %7534 = vmatprep.subr.mxu0 %v2724
    %7535 = vmatpush2.msra.mxu0 %v2723
    %7536 = vmatprep.subr.mxu0 %v2716
    %7537 = vmatpush2.msra.mxu0 %v2715
    %7538 = vmatprep.subr.mxu0 %v2708
    %7539 = vmatpush2.msra.mxu0 %v2707
    %7540 = vmatprep.subr.mxu0 %v2700
    %7541 = vmatpush2.msra.mxu0 %v2699
    %7542 = vmatprep.subr.mxu0 %v2692
    %7543 = vmatpush2.msra.mxu0 %v2691
    %7544 = vmatprep.subr.mxu0 %v2684
    %7545 = vmatpush2.msra.mxu0 %v2683
    %7546 = vmatprep.subr.mxu0 %v2676
    %7547 = vmatpush2.msra.mxu0 %v2675
    %7548 = vmatprep.subr.mxu0 %v2668
    %7549 = vmatpush2.msra.mxu0 %v2667
    %7550 = vmatprep.subr.mxu0 %v2660
    %7551 = vmatpush2.msra.mxu0 %v2659
    %7552 = vmatprep.subr.mxu0 %v2652
    %7553 = vmatpush2.msra.mxu0 %v2651
    %7554 = vmatprep.subr.mxu0 %v2644
    %7555 = vmatpush2.msra.mxu0 %v2643
    %7556 = vmatprep.subr.mxu0 %v2636
    %7557 = vmatpush2.msra.mxu0 %v2635
    %7558 = vmatprep.mubr.f32.mxu0 %v154
    %7559 = vmatmul.mubr.f32.gmra.mxu0 %v153
    %v7560 = vpop.f32.mrf.mxu0
    %v7561 = vadd.f32 %v7484, %v7560
    %v7562 = vpop.f32.mrf.mxu0
    %v7563 = vadd.f32 %v7486, %v7562
    %7564 = vmatprep.mubr.f32.mxu0 %v186
    %7565 = vmatmul.mubr.f32.gmra.mxu0 %v185
    %v7566 = vpop.f32.mrf.mxu0
    %v7567 = vadd.f32 %v7490, %v7566
    %v7568 = vpop.f32.mrf.mxu0
    %v7569 = vadd.f32 %v7492, %v7568
    %7570 = vdwg.mxu0
    %7571 = vmatprep.subr.mxu0 %v2884
    %7572 = vmatpush1.msra.mxu0 %v2883
    %7573 = vmatprep.subr.mxu0 %v2876
    %7574 = vmatpush1.msra.mxu0 %v2875
    %7575 = vmatprep.subr.mxu0 %v2868
    %7576 = vmatpush1.msra.mxu0 %v2867
    %7577 = vmatprep.subr.mxu0 %v2860
    %7578 = vmatpush1.msra.mxu0 %v2859
    %7579 = vmatprep.subr.mxu0 %v2852
    %7580 = vmatpush1.msra.mxu0 %v2851
    %7581 = vmatprep.subr.mxu0 %v2844
    %7582 = vmatpush1.msra.mxu0 %v2843
    %7583 = vmatprep.subr.mxu0 %v2836
    %7584 = vmatpush1.msra.mxu0 %v2835
    %7585 = vmatprep.subr.mxu0 %v2828
    %7586 = vmatpush1.msra.mxu0 %v2827
    %7587 = vmatprep.subr.mxu0 %v2820
    %7588 = vmatpush1.msra.mxu0 %v2819
    %7589 = vmatprep.subr.mxu0 %v2812
    %7590 = vmatpush1.msra.mxu0 %v2811
    %7591 = vmatprep.subr.mxu0 %v2804
    %7592 = vmatpush1.msra.mxu0 %v2803
    %7593 = vmatprep.subr.mxu0 %v2796
    %7594 = vmatpush1.msra.mxu0 %v2795
    %7595 = vmatprep.subr.mxu0 %v2788
    %7596 = vmatpush1.msra.mxu0 %v2787
    %7597 = vmatprep.subr.mxu0 %v2780
    %7598 = vmatpush1.msra.mxu0 %v2779
    %7599 = vmatprep.subr.mxu0 %v2772
    %7600 = vmatpush1.msra.mxu0 %v2771
    %7601 = vmatprep.subr.mxu0 %v2764
    %7602 = vmatpush1.msra.mxu0 %v2763
    %7603 = vmatprep.subr.mxu0 %v3012
    %7604 = vmatpush2.msra.mxu0 %v3011
    %7605 = vmatprep.subr.mxu0 %v3004
    %7606 = vmatpush2.msra.mxu0 %v3003
    %7607 = vmatprep.subr.mxu0 %v2996
    %7608 = vmatpush2.msra.mxu0 %v2995
    %7609 = vmatprep.subr.mxu0 %v2988
    %7610 = vmatpush2.msra.mxu0 %v2987
    %7611 = vmatprep.subr.mxu0 %v2980
    %7612 = vmatpush2.msra.mxu0 %v2979
    %7613 = vmatprep.subr.mxu0 %v2972
    %7614 = vmatpush2.msra.mxu0 %v2971
    %7615 = vmatprep.subr.mxu0 %v2964
    %7616 = vmatpush2.msra.mxu0 %v2963
    %7617 = vmatprep.subr.mxu0 %v2956
    %7618 = vmatpush2.msra.mxu0 %v2955
    %7619 = vmatprep.subr.mxu0 %v2948
    %7620 = vmatpush2.msra.mxu0 %v2947
    %7621 = vmatprep.subr.mxu0 %v2940
    %7622 = vmatpush2.msra.mxu0 %v2939
    %7623 = vmatprep.subr.mxu0 %v2932
    %7624 = vmatpush2.msra.mxu0 %v2931
    %7625 = vmatprep.subr.mxu0 %v2924
    %7626 = vmatpush2.msra.mxu0 %v2923
    %7627 = vmatprep.subr.mxu0 %v2916
    %7628 = vmatpush2.msra.mxu0 %v2915
    %7629 = vmatprep.subr.mxu0 %v2908
    %7630 = vmatpush2.msra.mxu0 %v2907
    %7631 = vmatprep.subr.mxu0 %v2900
    %7632 = vmatpush2.msra.mxu0 %v2899
    %7633 = vmatprep.subr.mxu0 %v2892
    %7634 = vmatpush2.msra.mxu0 %v2891
    %7635 = vmatprep.mubr.f32.mxu0 %v156
    %7636 = vmatmul.mubr.f32.gmra.mxu0 %v155
    %v7637 = vpop.f32.mrf.mxu0
    %v7638 = vadd.f32 %v7561, %v7637
    %v7639 = vpop.f32.mrf.mxu0
    %v7640 = vadd.f32 %v7563, %v7639
    %7641 = vmatprep.mubr.f32.mxu0 %v188
    %7642 = vmatmul.mubr.f32.gmra.mxu0 %v187
    %v7643 = vpop.f32.mrf.mxu0
    %v7644 = vadd.f32 %v7567, %v7643
    %v7645 = vpop.f32.mrf.mxu0
    %v7646 = vadd.f32 %v7569, %v7645
    %7647 = vdwg.mxu0
    %7648 = vmatprep.subr.mxu0 %v3140
    %7649 = vmatpush1.msra.mxu0 %v3139
    %7650 = vmatprep.subr.mxu0 %v3132
    %7651 = vmatpush1.msra.mxu0 %v3131
    %7652 = vmatprep.subr.mxu0 %v3124
    %7653 = vmatpush1.msra.mxu0 %v3123
    %7654 = vmatprep.subr.mxu0 %v3116
    %7655 = vmatpush1.msra.mxu0 %v3115
    %7656 = vmatprep.subr.mxu0 %v3108
    %7657 = vmatpush1.msra.mxu0 %v3107
    %7658 = vmatprep.subr.mxu0 %v3100
    %7659 = vmatpush1.msra.mxu0 %v3099
    %7660 = vmatprep.subr.mxu0 %v3092
    %7661 = vmatpush1.msra.mxu0 %v3091
    %7662 = vmatprep.subr.mxu0 %v3084
    %7663 = vmatpush1.msra.mxu0 %v3083
    %7664 = vmatprep.subr.mxu0 %v3076
    %7665 = vmatpush1.msra.mxu0 %v3075
    %7666 = vmatprep.subr.mxu0 %v3068
    %7667 = vmatpush1.msra.mxu0 %v3067
    %7668 = vmatprep.subr.mxu0 %v3060
    %7669 = vmatpush1.msra.mxu0 %v3059
    %7670 = vmatprep.subr.mxu0 %v3052
    %7671 = vmatpush1.msra.mxu0 %v3051
    %7672 = vmatprep.subr.mxu0 %v3044
    %7673 = vmatpush1.msra.mxu0 %v3043
    %7674 = vmatprep.subr.mxu0 %v3036
    %7675 = vmatpush1.msra.mxu0 %v3035
    %7676 = vmatprep.subr.mxu0 %v3028
    %7677 = vmatpush1.msra.mxu0 %v3027
    %7678 = vmatprep.subr.mxu0 %v3020
    %7679 = vmatpush1.msra.mxu0 %v3019
    %7680 = vmatprep.subr.mxu0 %v3268
    %7681 = vmatpush2.msra.mxu0 %v3267
    %7682 = vmatprep.subr.mxu0 %v3260
    %7683 = vmatpush2.msra.mxu0 %v3259
    %7684 = vmatprep.subr.mxu0 %v3252
    %7685 = vmatpush2.msra.mxu0 %v3251
    %7686 = vmatprep.subr.mxu0 %v3244
    %7687 = vmatpush2.msra.mxu0 %v3243
    %7688 = vmatprep.subr.mxu0 %v3236
    %7689 = vmatpush2.msra.mxu0 %v3235
    %7690 = vmatprep.subr.mxu0 %v3228
    %7691 = vmatpush2.msra.mxu0 %v3227
    %7692 = vmatprep.subr.mxu0 %v3220
    %7693 = vmatpush2.msra.mxu0 %v3219
    %7694 = vmatprep.subr.mxu0 %v3212
    %7695 = vmatpush2.msra.mxu0 %v3211
    %7696 = vmatprep.subr.mxu0 %v3204
    %7697 = vmatpush2.msra.mxu0 %v3203
    %7698 = vmatprep.subr.mxu0 %v3196
    %7699 = vmatpush2.msra.mxu0 %v3195
    %7700 = vmatprep.subr.mxu0 %v3188
    %7701 = vmatpush2.msra.mxu0 %v3187
    %7702 = vmatprep.subr.mxu0 %v3180
    %7703 = vmatpush2.msra.mxu0 %v3179
    %7704 = vmatprep.subr.mxu0 %v3172
    %7705 = vmatpush2.msra.mxu0 %v3171
    %7706 = vmatprep.subr.mxu0 %v3164
    %7707 = vmatpush2.msra.mxu0 %v3163
    %7708 = vmatprep.subr.mxu0 %v3156
    %7709 = vmatpush2.msra.mxu0 %v3155
    %7710 = vmatprep.subr.mxu0 %v3148
    %7711 = vmatpush2.msra.mxu0 %v3147
    %7712 = vmatprep.mubr.f32.mxu0 %v158
    %7713 = vmatmul.mubr.f32.gmra.mxu0 %v157
    %v7714 = vpop.f32.mrf.mxu0
    %v7715 = vadd.f32 %v7638, %v7714
    %v7716 = vpop.f32.mrf.mxu0
    %v7717 = vadd.f32 %v7640, %v7716
    %7718 = vmatprep.mubr.f32.mxu0 %v190
    %7719 = vmatmul.mubr.f32.gmra.mxu0 %v189
    %v7720 = vpop.f32.mrf.mxu0
    %v7721 = vadd.f32 %v7644, %v7720
    %v7722 = vpop.f32.mrf.mxu0
    %v7723 = vadd.f32 %v7646, %v7722
    %7724 = vdwg.mxu0
    %7725 = vmatprep.subr.mxu0 %v3396
    %7726 = vmatpush1.msra.mxu0 %v3395
    %7727 = vmatprep.subr.mxu0 %v3388
    %7728 = vmatpush1.msra.mxu0 %v3387
    %7729 = vmatprep.subr.mxu0 %v3380
    %7730 = vmatpush1.msra.mxu0 %v3379
    %7731 = vmatprep.subr.mxu0 %v3372
    %7732 = vmatpush1.msra.mxu0 %v3371
    %7733 = vmatprep.subr.mxu0 %v3364
    %7734 = vmatpush1.msra.mxu0 %v3363
    %7735 = vmatprep.subr.mxu0 %v3356
    %7736 = vmatpush1.msra.mxu0 %v3355
    %7737 = vmatprep.subr.mxu0 %v3348
    %7738 = vmatpush1.msra.mxu0 %v3347
    %7739 = vmatprep.subr.mxu0 %v3340
    %7740 = vmatpush1.msra.mxu0 %v3339
    %7741 = vmatprep.subr.mxu0 %v3332
    %7742 = vmatpush1.msra.mxu0 %v3331
    %7743 = vmatprep.subr.mxu0 %v3324
    %7744 = vmatpush1.msra.mxu0 %v3323
    %7745 = vmatprep.subr.mxu0 %v3316
    %7746 = vmatpush1.msra.mxu0 %v3315
    %7747 = vmatprep.subr.mxu0 %v3308
    %7748 = vmatpush1.msra.mxu0 %v3307
    %7749 = vmatprep.subr.mxu0 %v3300
    %7750 = vmatpush1.msra.mxu0 %v3299
    %7751 = vmatprep.subr.mxu0 %v3292
    %7752 = vmatpush1.msra.mxu0 %v3291
    %7753 = vmatprep.subr.mxu0 %v3284
    %7754 = vmatpush1.msra.mxu0 %v3283
    %7755 = vmatprep.subr.mxu0 %v3276
    %7756 = vmatpush1.msra.mxu0 %v3275
    %7757 = vmatprep.subr.mxu0 %v3524
    %7758 = vmatpush2.msra.mxu0 %v3523
    %7759 = vmatprep.subr.mxu0 %v3516
    %7760 = vmatpush2.msra.mxu0 %v3515
    %7761 = vmatprep.subr.mxu0 %v3508
    %7762 = vmatpush2.msra.mxu0 %v3507
    %7763 = vmatprep.subr.mxu0 %v3500
    %7764 = vmatpush2.msra.mxu0 %v3499
    %7765 = vmatprep.subr.mxu0 %v3492
    %7766 = vmatpush2.msra.mxu0 %v3491
    %7767 = vmatprep.subr.mxu0 %v3484
    %7768 = vmatpush2.msra.mxu0 %v3483
    %7769 = vmatprep.subr.mxu0 %v3476
    %7770 = vmatpush2.msra.mxu0 %v3475
    %7771 = vmatprep.subr.mxu0 %v3468
    %7772 = vmatpush2.msra.mxu0 %v3467
    %7773 = vmatprep.subr.mxu0 %v3460
    %7774 = vmatpush2.msra.mxu0 %v3459
    %7775 = vmatprep.subr.mxu0 %v3452
    %7776 = vmatpush2.msra.mxu0 %v3451
    %7777 = vmatprep.subr.mxu0 %v3444
    %7778 = vmatpush2.msra.mxu0 %v3443
    %7779 = vmatprep.subr.mxu0 %v3436
    %7780 = vmatpush2.msra.mxu0 %v3435
    %7781 = vmatprep.subr.mxu0 %v3428
    %7782 = vmatpush2.msra.mxu0 %v3427
    %7783 = vmatprep.subr.mxu0 %v3420
    %7784 = vmatpush2.msra.mxu0 %v3419
    %7785 = vmatprep.subr.mxu0 %v3412
    %7786 = vmatpush2.msra.mxu0 %v3411
    %7787 = vmatprep.subr.mxu0 %v3404
    %7788 = vmatpush2.msra.mxu0 %v3403
    %7789 = vmatprep.mubr.f32.mxu0 %v160
    %7790 = vmatmul.mubr.f32.gmra.mxu0 %v159
    %v7791 = vpop.f32.mrf.mxu0
    %v7792 = vadd.f32 %v7715, %v7791
    %v7793 = vpop.f32.mrf.mxu0
    %v7794 = vadd.f32 %v7717, %v7793
    %7795 = vmatprep.mubr.f32.mxu0 %v192
    %7796 = vmatmul.mubr.f32.gmra.mxu0 %v191
    %v7797 = vpop.f32.mrf.mxu0
    %v7798 = vadd.f32 %v7721, %v7797
    %v7799 = vpop.f32.mrf.mxu0
    %v7800 = vadd.f32 %v7723, %v7799
    %7801 = vdwg.mxu0
    %7802 = vmatprep.subr.mxu0 %v3652
    %7803 = vmatpush1.msra.mxu0 %v3651
    %7804 = vmatprep.subr.mxu0 %v3644
    %7805 = vmatpush1.msra.mxu0 %v3643
    %7806 = vmatprep.subr.mxu0 %v3636
    %7807 = vmatpush1.msra.mxu0 %v3635
    %7808 = vmatprep.subr.mxu0 %v3628
    %7809 = vmatpush1.msra.mxu0 %v3627
    %7810 = vmatprep.subr.mxu0 %v3620
    %7811 = vmatpush1.msra.mxu0 %v3619
    %7812 = vmatprep.subr.mxu0 %v3612
    %7813 = vmatpush1.msra.mxu0 %v3611
    %7814 = vmatprep.subr.mxu0 %v3604
    %7815 = vmatpush1.msra.mxu0 %v3603
    %7816 = vmatprep.subr.mxu0 %v3596
    %7817 = vmatpush1.msra.mxu0 %v3595
    %7818 = vmatprep.subr.mxu0 %v3588
    %7819 = vmatpush1.msra.mxu0 %v3587
    %7820 = vmatprep.subr.mxu0 %v3580
    %7821 = vmatpush1.msra.mxu0 %v3579
    %7822 = vmatprep.subr.mxu0 %v3572
    %7823 = vmatpush1.msra.mxu0 %v3571
    %7824 = vmatprep.subr.mxu0 %v3564
    %7825 = vmatpush1.msra.mxu0 %v3563
    %7826 = vmatprep.subr.mxu0 %v3556
    %7827 = vmatpush1.msra.mxu0 %v3555
    %7828 = vmatprep.subr.mxu0 %v3548
    %7829 = vmatpush1.msra.mxu0 %v3547
    %7830 = vmatprep.subr.mxu0 %v3540
    %7831 = vmatpush1.msra.mxu0 %v3539
    %7832 = vmatprep.subr.mxu0 %v3532
    %7833 = vmatpush1.msra.mxu0 %v3531
    %7834 = vmatprep.subr.mxu0 %v3780
    %7835 = vmatpush2.msra.mxu0 %v3779
    %7836 = vmatprep.subr.mxu0 %v3772
    %7837 = vmatpush2.msra.mxu0 %v3771
    %7838 = vmatprep.subr.mxu0 %v3764
    %7839 = vmatpush2.msra.mxu0 %v3763
    %7840 = vmatprep.subr.mxu0 %v3756
    %7841 = vmatpush2.msra.mxu0 %v3755
    %7842 = vmatprep.subr.mxu0 %v3748
    %7843 = vmatpush2.msra.mxu0 %v3747
    %7844 = vmatprep.subr.mxu0 %v3740
    %7845 = vmatpush2.msra.mxu0 %v3739
    %7846 = vmatprep.subr.mxu0 %v3732
    %7847 = vmatpush2.msra.mxu0 %v3731
    %7848 = vmatprep.subr.mxu0 %v3724
    %7849 = vmatpush2.msra.mxu0 %v3723
    %7850 = vmatprep.subr.mxu0 %v3716
    %7851 = vmatpush2.msra.mxu0 %v3715
    %7852 = vmatprep.subr.mxu0 %v3708
    %7853 = vmatpush2.msra.mxu0 %v3707
    %7854 = vmatprep.subr.mxu0 %v3700
    %7855 = vmatpush2.msra.mxu0 %v3699
    %7856 = vmatprep.subr.mxu0 %v3692
    %7857 = vmatpush2.msra.mxu0 %v3691
    %7858 = vmatprep.subr.mxu0 %v3684
    %7859 = vmatpush2.msra.mxu0 %v3683
    %7860 = vmatprep.subr.mxu0 %v3676
    %7861 = vmatpush2.msra.mxu0 %v3675
    %7862 = vmatprep.subr.mxu0 %v3668
    %7863 = vmatpush2.msra.mxu0 %v3667
    %7864 = vmatprep.subr.mxu0 %v3660
    %7865 = vmatpush2.msra.mxu0 %v3659
    %7866 = vmatprep.mubr.f32.mxu0 %v162
    %7867 = vmatmul.mubr.f32.gmra.mxu0 %v161
    %v7868 = vpop.f32.mrf.mxu0
    %v7869 = vadd.f32 %v7792, %v7868
    %v7870 = vpop.f32.mrf.mxu0
    %v7871 = vadd.f32 %v7794, %v7870
    %7872 = vmatprep.mubr.f32.mxu0 %v194
    %7873 = vmatmul.mubr.f32.gmra.mxu0 %v193
    %v7874 = vpop.f32.mrf.mxu0
    %v7875 = vadd.f32 %v7798, %v7874
    %v7876 = vpop.f32.mrf.mxu0
    %v7877 = vadd.f32 %v7800, %v7876
    %7878 = vdwg.mxu0
    %7879 = vmatprep.subr.mxu0 %v3908
    %7880 = vmatpush1.msra.mxu0 %v3907
    %7881 = vmatprep.subr.mxu0 %v3900
    %7882 = vmatpush1.msra.mxu0 %v3899
    %7883 = vmatprep.subr.mxu0 %v3892
    %7884 = vmatpush1.msra.mxu0 %v3891
    %7885 = vmatprep.subr.mxu0 %v3884
    %7886 = vmatpush1.msra.mxu0 %v3883
    %7887 = vmatprep.subr.mxu0 %v3876
    %7888 = vmatpush1.msra.mxu0 %v3875
    %7889 = vmatprep.subr.mxu0 %v3868
    %7890 = vmatpush1.msra.mxu0 %v3867
    %7891 = vmatprep.subr.mxu0 %v3860
    %7892 = vmatpush1.msra.mxu0 %v3859
    %7893 = vmatprep.subr.mxu0 %v3852
    %7894 = vmatpush1.msra.mxu0 %v3851
    %7895 = vmatprep.subr.mxu0 %v3844
    %7896 = vmatpush1.msra.mxu0 %v3843
    %7897 = vmatprep.subr.mxu0 %v3836
    %7898 = vmatpush1.msra.mxu0 %v3835
    %7899 = vmatprep.subr.mxu0 %v3828
    %7900 = vmatpush1.msra.mxu0 %v3827
    %7901 = vmatprep.subr.mxu0 %v3820
    %7902 = vmatpush1.msra.mxu0 %v3819
    %7903 = vmatprep.subr.mxu0 %v3812
    %7904 = vmatpush1.msra.mxu0 %v3811
    %7905 = vmatprep.subr.mxu0 %v3804
    %7906 = vmatpush1.msra.mxu0 %v3803
    %7907 = vmatprep.subr.mxu0 %v3796
    %7908 = vmatpush1.msra.mxu0 %v3795
    %7909 = vmatprep.subr.mxu0 %v3788
    %7910 = vmatpush1.msra.mxu0 %v3787
    %7911 = vmatprep.subr.mxu0 %v4036
    %7912 = vmatpush2.msra.mxu0 %v4035
    %7913 = vmatprep.subr.mxu0 %v4028
    %7914 = vmatpush2.msra.mxu0 %v4027
    %7915 = vmatprep.subr.mxu0 %v4020
    %7916 = vmatpush2.msra.mxu0 %v4019
    %7917 = vmatprep.subr.mxu0 %v4012
    %7918 = vmatpush2.msra.mxu0 %v4011
    %7919 = vmatprep.subr.mxu0 %v4004
    %7920 = vmatpush2.msra.mxu0 %v4003
    %7921 = vmatprep.subr.mxu0 %v3996
    %7922 = vmatpush2.msra.mxu0 %v3995
    %7923 = vmatprep.subr.mxu0 %v3988
    %7924 = vmatpush2.msra.mxu0 %v3987
    %7925 = vmatprep.subr.mxu0 %v3980
    %7926 = vmatpush2.msra.mxu0 %v3979
    %7927 = vmatprep.subr.mxu0 %v3972
    %7928 = vmatpush2.msra.mxu0 %v3971
    %7929 = vmatprep.subr.mxu0 %v3964
    %7930 = vmatpush2.msra.mxu0 %v3963
    %7931 = vmatprep.subr.mxu0 %v3956
    %7932 = vmatpush2.msra.mxu0 %v3955
    %7933 = vmatprep.subr.mxu0 %v3948
    %7934 = vmatpush2.msra.mxu0 %v3947
    %7935 = vmatprep.subr.mxu0 %v3940
    %7936 = vmatpush2.msra.mxu0 %v3939
    %7937 = vmatprep.subr.mxu0 %v3932
    %7938 = vmatpush2.msra.mxu0 %v3931
    %7939 = vmatprep.subr.mxu0 %v3924
    %7940 = vmatpush2.msra.mxu0 %v3923
    %7941 = vmatprep.subr.mxu0 %v3916
    %7942 = vmatpush2.msra.mxu0 %v3915
    %7943 = vmatprep.mubr.f32.mxu0 %v164
    %7944 = vmatmul.mubr.f32.gmra.mxu0 %v163
    %v7945 = vpop.f32.mrf.mxu0
    %v7946 = vadd.f32 %v7869, %v7945
    %v7947 = vpop.f32.mrf.mxu0
    %v7948 = vadd.f32 %v7871, %v7947
    %7949 = vmatprep.mubr.f32.mxu0 %v196
    %7950 = vmatmul.mubr.f32.gmra.mxu0 %v195
    %v7951 = vpop.f32.mrf.mxu0
    %v7952 = vadd.f32 %v7875, %v7951
    %v7953 = vpop.f32.mrf.mxu0
    %v7954 = vadd.f32 %v7877, %v7953
    %7955 = vdwg.mxu0
    %7956 = vmatprep.subr.mxu0 %v4164
    %7957 = vmatpush1.msra.mxu0 %v4163
    %7958 = vmatprep.subr.mxu0 %v4156
    %7959 = vmatpush1.msra.mxu0 %v4155
    %7960 = vmatprep.subr.mxu0 %v4148
    %7961 = vmatpush1.msra.mxu0 %v4147
    %7962 = vmatprep.subr.mxu0 %v4140
    %7963 = vmatpush1.msra.mxu0 %v4139
    %7964 = vmatprep.subr.mxu0 %v4132
    %7965 = vmatpush1.msra.mxu0 %v4131
    %7966 = vmatprep.subr.mxu0 %v4124
    %7967 = vmatpush1.msra.mxu0 %v4123
    %7968 = vmatprep.subr.mxu0 %v4116
    %7969 = vmatpush1.msra.mxu0 %v4115
    %7970 = vmatprep.subr.mxu0 %v4108
    %7971 = vmatpush1.msra.mxu0 %v4107
    %7972 = vmatprep.subr.mxu0 %v4100
    %7973 = vmatpush1.msra.mxu0 %v4099
    %7974 = vmatprep.subr.mxu0 %v4092
    %7975 = vmatpush1.msra.mxu0 %v4091
    %7976 = vmatprep.subr.mxu0 %v4084
    %7977 = vmatpush1.msra.mxu0 %v4083
    %7978 = vmatprep.subr.mxu0 %v4076
    %7979 = vmatpush1.msra.mxu0 %v4075
    %7980 = vmatprep.subr.mxu0 %v4068
    %7981 = vmatpush1.msra.mxu0 %v4067
    %7982 = vmatprep.subr.mxu0 %v4060
    %7983 = vmatpush1.msra.mxu0 %v4059
    %7984 = vmatprep.subr.mxu0 %v4052
    %7985 = vmatpush1.msra.mxu0 %v4051
    %7986 = vmatprep.subr.mxu0 %v4044
    %7987 = vmatpush1.msra.mxu0 %v4043
    %7988 = vmatprep.subr.mxu0 %v4292
    %7989 = vmatpush2.msra.mxu0 %v4291
    %7990 = vmatprep.subr.mxu0 %v4284
    %7991 = vmatpush2.msra.mxu0 %v4283
    %7992 = vmatprep.subr.mxu0 %v4276
    %7993 = vmatpush2.msra.mxu0 %v4275
    %7994 = vmatprep.subr.mxu0 %v4268
    %7995 = vmatpush2.msra.mxu0 %v4267
    %7996 = vmatprep.subr.mxu0 %v4260
    %7997 = vmatpush2.msra.mxu0 %v4259
    %7998 = vmatprep.subr.mxu0 %v4252
    %7999 = vmatpush2.msra.mxu0 %v4251
    %8000 = vmatprep.subr.mxu0 %v4244
    %8001 = vmatpush2.msra.mxu0 %v4243
    %8002 = vmatprep.subr.mxu0 %v4236
    %8003 = vmatpush2.msra.mxu0 %v4235
    %8004 = vmatprep.subr.mxu0 %v4228
    %8005 = vmatpush2.msra.mxu0 %v4227
    %8006 = vmatprep.subr.mxu0 %v4220
    %8007 = vmatpush2.msra.mxu0 %v4219
    %8008 = vmatprep.subr.mxu0 %v4212
    %8009 = vmatpush2.msra.mxu0 %v4211
    %8010 = vmatprep.subr.mxu0 %v4204
    %8011 = vmatpush2.msra.mxu0 %v4203
    %8012 = vmatprep.subr.mxu0 %v4196
    %8013 = vmatpush2.msra.mxu0 %v4195
    %8014 = vmatprep.subr.mxu0 %v4188
    %8015 = vmatpush2.msra.mxu0 %v4187
    %8016 = vmatprep.subr.mxu0 %v4180
    %8017 = vmatpush2.msra.mxu0 %v4179
    %8018 = vmatprep.subr.mxu0 %v4172
    %8019 = vmatpush2.msra.mxu0 %v4171
    %8020 = vmatprep.mubr.f32.mxu0 %v166
    %8021 = vmatmul.mubr.f32.gmra.mxu0 %v165
    %v8022 = vpop.f32.mrf.mxu0
    %v8023 = vadd.f32 %v7946, %v8022
    %v8024 = vpop.f32.mrf.mxu0
    %v8025 = vadd.f32 %v7948, %v8024
    %8026 = vmatprep.mubr.f32.mxu0 %v198
    %8027 = vmatmul.mubr.f32.gmra.mxu0 %v197
    %v8028 = vpop.f32.mrf.mxu0
    %v8029 = vadd.f32 %v7952, %v8028
    %v8030 = vpop.f32.mrf.mxu0
    %v8031 = vadd.f32 %v7954, %v8030
    %8032 = vdwg.mxu0
    %8033 = vmatprep.subr.mxu0 %v326
    %8034 = vmatpush1.msra.mxu0 %v325
    %8035 = vmatprep.subr.mxu0 %v318
    %8036 = vmatpush1.msra.mxu0 %v317
    %8037 = vmatprep.subr.mxu0 %v310
    %8038 = vmatpush1.msra.mxu0 %v309
    %8039 = vmatprep.subr.mxu0 %v302
    %8040 = vmatpush1.msra.mxu0 %v301
    %8041 = vmatprep.subr.mxu0 %v294
    %8042 = vmatpush1.msra.mxu0 %v293
    %8043 = vmatprep.subr.mxu0 %v286
    %8044 = vmatpush1.msra.mxu0 %v285
    %8045 = vmatprep.subr.mxu0 %v278
    %8046 = vmatpush1.msra.mxu0 %v277
    %8047 = vmatprep.subr.mxu0 %v270
    %8048 = vmatpush1.msra.mxu0 %v269
    %8049 = vmatprep.subr.mxu0 %v262
    %8050 = vmatpush1.msra.mxu0 %v261
    %8051 = vmatprep.subr.mxu0 %v254
    %8052 = vmatpush1.msra.mxu0 %v253
    %8053 = vmatprep.subr.mxu0 %v246
    %8054 = vmatpush1.msra.mxu0 %v245
    %8055 = vmatprep.subr.mxu0 %v238
    %8056 = vmatpush1.msra.mxu0 %v237
    %8057 = vmatprep.subr.mxu0 %v230
    %8058 = vmatpush1.msra.mxu0 %v229
    %8059 = vmatprep.subr.mxu0 %v222
    %8060 = vmatpush1.msra.mxu0 %v221
    %8061 = vmatprep.subr.mxu0 %v214
    %8062 = vmatpush1.msra.mxu0 %v213
    %8063 = vmatprep.subr.mxu0 %v206
    %8064 = vmatpush1.msra.mxu0 %v205
    %8065 = vmatprep.subr.mxu0 %v454
    %8066 = vmatpush2.msra.mxu0 %v453
    %8067 = vmatprep.subr.mxu0 %v446
    %8068 = vmatpush2.msra.mxu0 %v445
    %8069 = vmatprep.subr.mxu0 %v438
    %8070 = vmatpush2.msra.mxu0 %v437
    %8071 = vmatprep.subr.mxu0 %v430
    %8072 = vmatpush2.msra.mxu0 %v429
    %8073 = vmatprep.subr.mxu0 %v422
    %8074 = vmatpush2.msra.mxu0 %v421
    %8075 = vmatprep.subr.mxu0 %v414
    %8076 = vmatpush2.msra.mxu0 %v413
    %8077 = vmatprep.subr.mxu0 %v406
    %8078 = vmatpush2.msra.mxu0 %v405
    %8079 = vmatprep.subr.mxu0 %v398
    %8080 = vmatpush2.msra.mxu0 %v397
    %8081 = vmatprep.subr.mxu0 %v390
    %8082 = vmatpush2.msra.mxu0 %v389
    %8083 = vmatprep.subr.mxu0 %v382
    %8084 = vmatpush2.msra.mxu0 %v381
    %8085 = vmatprep.subr.mxu0 %v374
    %8086 = vmatpush2.msra.mxu0 %v373
    %8087 = vmatprep.subr.mxu0 %v366
    %8088 = vmatpush2.msra.mxu0 %v365
    %8089 = vmatprep.subr.mxu0 %v358
    %8090 = vmatpush2.msra.mxu0 %v357
    %8091 = vmatprep.subr.mxu0 %v350
    %8092 = vmatpush2.msra.mxu0 %v349
    %8093 = vmatprep.subr.mxu0 %v342
    %8094 = vmatpush2.msra.mxu0 %v341
    %8095 = vmatprep.subr.mxu0 %v334
    %8096 = vmatpush2.msra.mxu0 %v333
    %8097 = vmatprep.mubr.f32.mxu0 %v136
    %8098 = vmatmul.mubr.f32.gmra.mxu0 %v135
    %v8099 = vpop.f32.mrf.mxu0
    %v8100 = vadd.f32 %v4324, %v8099
    %v8101 = vpop.f32.mrf.mxu0
    %v8102 = vadd.f32 %v4328, %v8101
    %8103 = vmatprep.mubr.f32.mxu0 %v168
    %8104 = vmatmul.mubr.f32.gmra.mxu0 %v167
    %v8105 = vpop.f32.mrf.mxu0
    %v8106 = vadd.f32 %v4324, %v8105
    %v8107 = vpop.f32.mrf.mxu0
    %v8108 = vadd.f32 %v4328, %v8107
    %8109 = vdwg.mxu0
    %8110 = vmatprep.subr.mxu0 %v582
    %8111 = vmatpush1.msra.mxu0 %v581
    %8112 = vmatprep.subr.mxu0 %v574
    %8113 = vmatpush1.msra.mxu0 %v573
    %8114 = vmatprep.subr.mxu0 %v566
    %8115 = vmatpush1.msra.mxu0 %v565
    %8116 = vmatprep.subr.mxu0 %v558
    %8117 = vmatpush1.msra.mxu0 %v557
    %8118 = vmatprep.subr.mxu0 %v550
    %8119 = vmatpush1.msra.mxu0 %v549
    %8120 = vmatprep.subr.mxu0 %v542
    %8121 = vmatpush1.msra.mxu0 %v541
    %8122 = vmatprep.subr.mxu0 %v534
    %8123 = vmatpush1.msra.mxu0 %v533
    %8124 = vmatprep.subr.mxu0 %v526
    %8125 = vmatpush1.msra.mxu0 %v525
    %8126 = vmatprep.subr.mxu0 %v518
    %8127 = vmatpush1.msra.mxu0 %v517
    %8128 = vmatprep.subr.mxu0 %v510
    %8129 = vmatpush1.msra.mxu0 %v509
    %8130 = vmatprep.subr.mxu0 %v502
    %8131 = vmatpush1.msra.mxu0 %v501
    %8132 = vmatprep.subr.mxu0 %v494
    %8133 = vmatpush1.msra.mxu0 %v493
    %8134 = vmatprep.subr.mxu0 %v486
    %8135 = vmatpush1.msra.mxu0 %v485
    %8136 = vmatprep.subr.mxu0 %v478
    %8137 = vmatpush1.msra.mxu0 %v477
    %8138 = vmatprep.subr.mxu0 %v470
    %8139 = vmatpush1.msra.mxu0 %v469
    %8140 = vmatprep.subr.mxu0 %v462
    %8141 = vmatpush1.msra.mxu0 %v461
    %8142 = vmatprep.subr.mxu0 %v710
    %8143 = vmatpush2.msra.mxu0 %v709
    %8144 = vmatprep.subr.mxu0 %v702
    %8145 = vmatpush2.msra.mxu0 %v701
    %8146 = vmatprep.subr.mxu0 %v694
    %8147 = vmatpush2.msra.mxu0 %v693
    %8148 = vmatprep.subr.mxu0 %v686
    %8149 = vmatpush2.msra.mxu0 %v685
    %8150 = vmatprep.subr.mxu0 %v678
    %8151 = vmatpush2.msra.mxu0 %v677
    %8152 = vmatprep.subr.mxu0 %v670
    %8153 = vmatpush2.msra.mxu0 %v669
    %8154 = vmatprep.subr.mxu0 %v662
    %8155 = vmatpush2.msra.mxu0 %v661
    %8156 = vmatprep.subr.mxu0 %v654
    %8157 = vmatpush2.msra.mxu0 %v653
    %8158 = vmatprep.subr.mxu0 %v646
    %8159 = vmatpush2.msra.mxu0 %v645
    %8160 = vmatprep.subr.mxu0 %v638
    %8161 = vmatpush2.msra.mxu0 %v637
    %8162 = vmatprep.subr.mxu0 %v630
    %8163 = vmatpush2.msra.mxu0 %v629
    %8164 = vmatprep.subr.mxu0 %v622
    %8165 = vmatpush2.msra.mxu0 %v621
    %8166 = vmatprep.subr.mxu0 %v614
    %8167 = vmatpush2.msra.mxu0 %v613
    %8168 = vmatprep.subr.mxu0 %v606
    %8169 = vmatpush2.msra.mxu0 %v605
    %8170 = vmatprep.subr.mxu0 %v598
    %8171 = vmatpush2.msra.mxu0 %v597
    %8172 = vmatprep.subr.mxu0 %v590
    %8173 = vmatpush2.msra.mxu0 %v589
    %8174 = vmatprep.mubr.f32.mxu0 %v138
    %8175 = vmatmul.mubr.f32.gmra.mxu0 %v137
    %v8176 = vpop.f32.mrf.mxu0
    %v8177 = vadd.f32 %v8100, %v8176
    %v8178 = vpop.f32.mrf.mxu0
    %v8179 = vadd.f32 %v8102, %v8178
    %8180 = vmatprep.mubr.f32.mxu0 %v170
    %8181 = vmatmul.mubr.f32.gmra.mxu0 %v169
    %v8182 = vpop.f32.mrf.mxu0
    %v8183 = vadd.f32 %v8106, %v8182
    %v8184 = vpop.f32.mrf.mxu0
    %v8185 = vadd.f32 %v8108, %v8184
    %8186 = vdwg.mxu0
    %8187 = vmatprep.subr.mxu0 %v838
    %8188 = vmatpush1.msra.mxu0 %v837
    %8189 = vmatprep.subr.mxu0 %v830
    %8190 = vmatpush1.msra.mxu0 %v829
    %8191 = vmatprep.subr.mxu0 %v822
    %8192 = vmatpush1.msra.mxu0 %v821
    %8193 = vmatprep.subr.mxu0 %v814
    %8194 = vmatpush1.msra.mxu0 %v813
    %8195 = vmatprep.subr.mxu0 %v806
    %8196 = vmatpush1.msra.mxu0 %v805
    %8197 = vmatprep.subr.mxu0 %v798
    %8198 = vmatpush1.msra.mxu0 %v797
    %8199 = vmatprep.subr.mxu0 %v790
    %8200 = vmatpush1.msra.mxu0 %v789
    %8201 = vmatprep.subr.mxu0 %v782
    %8202 = vmatpush1.msra.mxu0 %v781
    %8203 = vmatprep.subr.mxu0 %v774
    %8204 = vmatpush1.msra.mxu0 %v773
    %8205 = vmatprep.subr.mxu0 %v766
    %8206 = vmatpush1.msra.mxu0 %v765
    %8207 = vmatprep.subr.mxu0 %v758
    %8208 = vmatpush1.msra.mxu0 %v757
    %8209 = vmatprep.subr.mxu0 %v750
    %8210 = vmatpush1.msra.mxu0 %v749
    %8211 = vmatprep.subr.mxu0 %v742
    %8212 = vmatpush1.msra.mxu0 %v741
    %8213 = vmatprep.subr.mxu0 %v734
    %8214 = vmatpush1.msra.mxu0 %v733
    %8215 = vmatprep.subr.mxu0 %v726
    %8216 = vmatpush1.msra.mxu0 %v725
    %8217 = vmatprep.subr.mxu0 %v718
    %8218 = vmatpush1.msra.mxu0 %v717
    %8219 = vmatprep.subr.mxu0 %v966
    %8220 = vmatpush2.msra.mxu0 %v965
    %8221 = vmatprep.subr.mxu0 %v958
    %8222 = vmatpush2.msra.mxu0 %v957
    %8223 = vmatprep.subr.mxu0 %v950
    %8224 = vmatpush2.msra.mxu0 %v949
    %8225 = vmatprep.subr.mxu0 %v942
    %8226 = vmatpush2.msra.mxu0 %v941
    %8227 = vmatprep.subr.mxu0 %v934
    %8228 = vmatpush2.msra.mxu0 %v933
    %8229 = vmatprep.subr.mxu0 %v926
    %8230 = vmatpush2.msra.mxu0 %v925
    %8231 = vmatprep.subr.mxu0 %v918
    %8232 = vmatpush2.msra.mxu0 %v917
    %8233 = vmatprep.subr.mxu0 %v910
    %8234 = vmatpush2.msra.mxu0 %v909
    %8235 = vmatprep.subr.mxu0 %v902
    %8236 = vmatpush2.msra.mxu0 %v901
    %8237 = vmatprep.subr.mxu0 %v894
    %8238 = vmatpush2.msra.mxu0 %v893
    %8239 = vmatprep.subr.mxu0 %v886
    %8240 = vmatpush2.msra.mxu0 %v885
    %8241 = vmatprep.subr.mxu0 %v878
    %8242 = vmatpush2.msra.mxu0 %v877
    %8243 = vmatprep.subr.mxu0 %v870
    %8244 = vmatpush2.msra.mxu0 %v869
    %8245 = vmatprep.subr.mxu0 %v862
    %8246 = vmatpush2.msra.mxu0 %v861
    %8247 = vmatprep.subr.mxu0 %v854
    %8248 = vmatpush2.msra.mxu0 %v853
    %8249 = vmatprep.subr.mxu0 %v846
    %8250 = vmatpush2.msra.mxu0 %v845
    %8251 = vmatprep.mubr.f32.mxu0 %v140
    %8252 = vmatmul.mubr.f32.gmra.mxu0 %v139
    %v8253 = vpop.f32.mrf.mxu0
    %v8254 = vadd.f32 %v8177, %v8253
    %v8255 = vpop.f32.mrf.mxu0
    %v8256 = vadd.f32 %v8179, %v8255
    %8257 = vmatprep.mubr.f32.mxu0 %v172
    %8258 = vmatmul.mubr.f32.gmra.mxu0 %v171
    %v8259 = vpop.f32.mrf.mxu0
    %v8260 = vadd.f32 %v8183, %v8259
    %v8261 = vpop.f32.mrf.mxu0
    %v8262 = vadd.f32 %v8185, %v8261
    %8263 = vdwg.mxu0
    %8264 = vmatprep.subr.mxu0 %v1094
    %8265 = vmatpush1.msra.mxu0 %v1093
    %8266 = vmatprep.subr.mxu0 %v1086
    %8267 = vmatpush1.msra.mxu0 %v1085
    %8268 = vmatprep.subr.mxu0 %v1078
    %8269 = vmatpush1.msra.mxu0 %v1077
    %8270 = vmatprep.subr.mxu0 %v1070
    %8271 = vmatpush1.msra.mxu0 %v1069
    %8272 = vmatprep.subr.mxu0 %v1062
    %8273 = vmatpush1.msra.mxu0 %v1061
    %8274 = vmatprep.subr.mxu0 %v1054
    %8275 = vmatpush1.msra.mxu0 %v1053
    %8276 = vmatprep.subr.mxu0 %v1046
    %8277 = vmatpush1.msra.mxu0 %v1045
    %8278 = vmatprep.subr.mxu0 %v1038
    %8279 = vmatpush1.msra.mxu0 %v1037
    %8280 = vmatprep.subr.mxu0 %v1030
    %8281 = vmatpush1.msra.mxu0 %v1029
    %8282 = vmatprep.subr.mxu0 %v1022
    %8283 = vmatpush1.msra.mxu0 %v1021
    %8284 = vmatprep.subr.mxu0 %v1014
    %8285 = vmatpush1.msra.mxu0 %v1013
    %8286 = vmatprep.subr.mxu0 %v1006
    %8287 = vmatpush1.msra.mxu0 %v1005
    %8288 = vmatprep.subr.mxu0 %v998
    %8289 = vmatpush1.msra.mxu0 %v997
    %8290 = vmatprep.subr.mxu0 %v990
    %8291 = vmatpush1.msra.mxu0 %v989
    %8292 = vmatprep.subr.mxu0 %v982
    %8293 = vmatpush1.msra.mxu0 %v981
    %8294 = vmatprep.subr.mxu0 %v974
    %8295 = vmatpush1.msra.mxu0 %v973
    %8296 = vmatprep.subr.mxu0 %v1222
    %8297 = vmatpush2.msra.mxu0 %v1221
    %8298 = vmatprep.subr.mxu0 %v1214
    %8299 = vmatpush2.msra.mxu0 %v1213
    %8300 = vmatprep.subr.mxu0 %v1206
    %8301 = vmatpush2.msra.mxu0 %v1205
    %8302 = vmatprep.subr.mxu0 %v1198
    %8303 = vmatpush2.msra.mxu0 %v1197
    %8304 = vmatprep.subr.mxu0 %v1190
    %8305 = vmatpush2.msra.mxu0 %v1189
    %8306 = vmatprep.subr.mxu0 %v1182
    %8307 = vmatpush2.msra.mxu0 %v1181
    %8308 = vmatprep.subr.mxu0 %v1174
    %8309 = vmatpush2.msra.mxu0 %v1173
    %8310 = vmatprep.subr.mxu0 %v1166
    %8311 = vmatpush2.msra.mxu0 %v1165
    %8312 = vmatprep.subr.mxu0 %v1158
    %8313 = vmatpush2.msra.mxu0 %v1157
    %8314 = vmatprep.subr.mxu0 %v1150
    %8315 = vmatpush2.msra.mxu0 %v1149
    %8316 = vmatprep.subr.mxu0 %v1142
    %8317 = vmatpush2.msra.mxu0 %v1141
    %8318 = vmatprep.subr.mxu0 %v1134
    %8319 = vmatpush2.msra.mxu0 %v1133
    %8320 = vmatprep.subr.mxu0 %v1126
    %8321 = vmatpush2.msra.mxu0 %v1125
    %8322 = vmatprep.subr.mxu0 %v1118
    %8323 = vmatpush2.msra.mxu0 %v1117
    %8324 = vmatprep.subr.mxu0 %v1110
    %8325 = vmatpush2.msra.mxu0 %v1109
    %8326 = vmatprep.subr.mxu0 %v1102
    %8327 = vmatpush2.msra.mxu0 %v1101
    %8328 = vmatprep.mubr.f32.mxu0 %v142
    %8329 = vmatmul.mubr.f32.gmra.mxu0 %v141
    %v8330 = vpop.f32.mrf.mxu0
    %v8331 = vadd.f32 %v8254, %v8330
    %v8332 = vpop.f32.mrf.mxu0
    %v8333 = vadd.f32 %v8256, %v8332
    %8334 = vmatprep.mubr.f32.mxu0 %v174
    %8335 = vmatmul.mubr.f32.gmra.mxu0 %v173
    %v8336 = vpop.f32.mrf.mxu0
    %v8337 = vadd.f32 %v8260, %v8336
    %v8338 = vpop.f32.mrf.mxu0
    %v8339 = vadd.f32 %v8262, %v8338
    %8340 = vdwg.mxu0
    %8341 = vmatprep.subr.mxu0 %v1350
    %8342 = vmatpush1.msra.mxu0 %v1349
    %8343 = vmatprep.subr.mxu0 %v1342
    %8344 = vmatpush1.msra.mxu0 %v1341
    %8345 = vmatprep.subr.mxu0 %v1334
    %8346 = vmatpush1.msra.mxu0 %v1333
    %8347 = vmatprep.subr.mxu0 %v1326
    %8348 = vmatpush1.msra.mxu0 %v1325
    %8349 = vmatprep.subr.mxu0 %v1318
    %8350 = vmatpush1.msra.mxu0 %v1317
    %8351 = vmatprep.subr.mxu0 %v1310
    %8352 = vmatpush1.msra.mxu0 %v1309
    %8353 = vmatprep.subr.mxu0 %v1302
    %8354 = vmatpush1.msra.mxu0 %v1301
    %8355 = vmatprep.subr.mxu0 %v1294
    %8356 = vmatpush1.msra.mxu0 %v1293
    %8357 = vmatprep.subr.mxu0 %v1286
    %8358 = vmatpush1.msra.mxu0 %v1285
    %8359 = vmatprep.subr.mxu0 %v1278
    %8360 = vmatpush1.msra.mxu0 %v1277
    %8361 = vmatprep.subr.mxu0 %v1270
    %8362 = vmatpush1.msra.mxu0 %v1269
    %8363 = vmatprep.subr.mxu0 %v1262
    %8364 = vmatpush1.msra.mxu0 %v1261
    %8365 = vmatprep.subr.mxu0 %v1254
    %8366 = vmatpush1.msra.mxu0 %v1253
    %8367 = vmatprep.subr.mxu0 %v1246
    %8368 = vmatpush1.msra.mxu0 %v1245
    %8369 = vmatprep.subr.mxu0 %v1238
    %8370 = vmatpush1.msra.mxu0 %v1237
    %8371 = vmatprep.subr.mxu0 %v1230
    %8372 = vmatpush1.msra.mxu0 %v1229
    %8373 = vmatprep.subr.mxu0 %v1478
    %8374 = vmatpush2.msra.mxu0 %v1477
    %8375 = vmatprep.subr.mxu0 %v1470
    %8376 = vmatpush2.msra.mxu0 %v1469
    %8377 = vmatprep.subr.mxu0 %v1462
    %8378 = vmatpush2.msra.mxu0 %v1461
    %8379 = vmatprep.subr.mxu0 %v1454
    %8380 = vmatpush2.msra.mxu0 %v1453
    %8381 = vmatprep.subr.mxu0 %v1446
    %8382 = vmatpush2.msra.mxu0 %v1445
    %8383 = vmatprep.subr.mxu0 %v1438
    %8384 = vmatpush2.msra.mxu0 %v1437
    %8385 = vmatprep.subr.mxu0 %v1430
    %8386 = vmatpush2.msra.mxu0 %v1429
    %8387 = vmatprep.subr.mxu0 %v1422
    %8388 = vmatpush2.msra.mxu0 %v1421
    %8389 = vmatprep.subr.mxu0 %v1414
    %8390 = vmatpush2.msra.mxu0 %v1413
    %8391 = vmatprep.subr.mxu0 %v1406
    %8392 = vmatpush2.msra.mxu0 %v1405
    %8393 = vmatprep.subr.mxu0 %v1398
    %8394 = vmatpush2.msra.mxu0 %v1397
    %8395 = vmatprep.subr.mxu0 %v1390
    %8396 = vmatpush2.msra.mxu0 %v1389
    %8397 = vmatprep.subr.mxu0 %v1382
    %8398 = vmatpush2.msra.mxu0 %v1381
    %8399 = vmatprep.subr.mxu0 %v1374
    %8400 = vmatpush2.msra.mxu0 %v1373
    %8401 = vmatprep.subr.mxu0 %v1366
    %8402 = vmatpush2.msra.mxu0 %v1365
    %8403 = vmatprep.subr.mxu0 %v1358
    %8404 = vmatpush2.msra.mxu0 %v1357
    %8405 = vmatprep.mubr.f32.mxu0 %v144
    %8406 = vmatmul.mubr.f32.gmra.mxu0 %v143
    %v8407 = vpop.f32.mrf.mxu0
    %v8408 = vadd.f32 %v8331, %v8407
    %v8409 = vpop.f32.mrf.mxu0
    %v8410 = vadd.f32 %v8333, %v8409
    %8411 = vmatprep.mubr.f32.mxu0 %v176
    %8412 = vmatmul.mubr.f32.gmra.mxu0 %v175
    %v8413 = vpop.f32.mrf.mxu0
    %v8414 = vadd.f32 %v8337, %v8413
    %v8415 = vpop.f32.mrf.mxu0
    %v8416 = vadd.f32 %v8339, %v8415
    %8417 = vdwg.mxu0
    %8418 = vmatprep.subr.mxu0 %v1606
    %8419 = vmatpush1.msra.mxu0 %v1605
    %8420 = vmatprep.subr.mxu0 %v1598
    %8421 = vmatpush1.msra.mxu0 %v1597
    %8422 = vmatprep.subr.mxu0 %v1590
    %8423 = vmatpush1.msra.mxu0 %v1589
    %8424 = vmatprep.subr.mxu0 %v1582
    %8425 = vmatpush1.msra.mxu0 %v1581
    %8426 = vmatprep.subr.mxu0 %v1574
    %8427 = vmatpush1.msra.mxu0 %v1573
    %8428 = vmatprep.subr.mxu0 %v1566
    %8429 = vmatpush1.msra.mxu0 %v1565
    %8430 = vmatprep.subr.mxu0 %v1558
    %8431 = vmatpush1.msra.mxu0 %v1557
    %8432 = vmatprep.subr.mxu0 %v1550
    %8433 = vmatpush1.msra.mxu0 %v1549
    %8434 = vmatprep.subr.mxu0 %v1542
    %8435 = vmatpush1.msra.mxu0 %v1541
    %8436 = vmatprep.subr.mxu0 %v1534
    %8437 = vmatpush1.msra.mxu0 %v1533
    %8438 = vmatprep.subr.mxu0 %v1526
    %8439 = vmatpush1.msra.mxu0 %v1525
    %8440 = vmatprep.subr.mxu0 %v1518
    %8441 = vmatpush1.msra.mxu0 %v1517
    %8442 = vmatprep.subr.mxu0 %v1510
    %8443 = vmatpush1.msra.mxu0 %v1509
    %8444 = vmatprep.subr.mxu0 %v1502
    %8445 = vmatpush1.msra.mxu0 %v1501
    %8446 = vmatprep.subr.mxu0 %v1494
    %8447 = vmatpush1.msra.mxu0 %v1493
    %8448 = vmatprep.subr.mxu0 %v1486
    %8449 = vmatpush1.msra.mxu0 %v1485
    %8450 = vmatprep.subr.mxu0 %v1734
    %8451 = vmatpush2.msra.mxu0 %v1733
    %8452 = vmatprep.subr.mxu0 %v1726
    %8453 = vmatpush2.msra.mxu0 %v1725
    %8454 = vmatprep.subr.mxu0 %v1718
    %8455 = vmatpush2.msra.mxu0 %v1717
    %8456 = vmatprep.subr.mxu0 %v1710
    %8457 = vmatpush2.msra.mxu0 %v1709
    %8458 = vmatprep.subr.mxu0 %v1702
    %8459 = vmatpush2.msra.mxu0 %v1701
    %8460 = vmatprep.subr.mxu0 %v1694
    %8461 = vmatpush2.msra.mxu0 %v1693
    %8462 = vmatprep.subr.mxu0 %v1686
    %8463 = vmatpush2.msra.mxu0 %v1685
    %8464 = vmatprep.subr.mxu0 %v1678
    %8465 = vmatpush2.msra.mxu0 %v1677
    %8466 = vmatprep.subr.mxu0 %v1670
    %8467 = vmatpush2.msra.mxu0 %v1669
    %8468 = vmatprep.subr.mxu0 %v1662
    %8469 = vmatpush2.msra.mxu0 %v1661
    %8470 = vmatprep.subr.mxu0 %v1654
    %8471 = vmatpush2.msra.mxu0 %v1653
    %8472 = vmatprep.subr.mxu0 %v1646
    %8473 = vmatpush2.msra.mxu0 %v1645
    %8474 = vmatprep.subr.mxu0 %v1638
    %8475 = vmatpush2.msra.mxu0 %v1637
    %8476 = vmatprep.subr.mxu0 %v1630
    %8477 = vmatpush2.msra.mxu0 %v1629
    %8478 = vmatprep.subr.mxu0 %v1622
    %8479 = vmatpush2.msra.mxu0 %v1621
    %8480 = vmatprep.subr.mxu0 %v1614
    %8481 = vmatpush2.msra.mxu0 %v1613
    %8482 = vmatprep.mubr.f32.mxu0 %v146
    %8483 = vmatmul.mubr.f32.gmra.mxu0 %v145
    %v8484 = vpop.f32.mrf.mxu0
    %v8485 = vadd.f32 %v8408, %v8484
    %v8486 = vpop.f32.mrf.mxu0
    %v8487 = vadd.f32 %v8410, %v8486
    %8488 = vmatprep.mubr.f32.mxu0 %v178
    %8489 = vmatmul.mubr.f32.gmra.mxu0 %v177
    %v8490 = vpop.f32.mrf.mxu0
    %v8491 = vadd.f32 %v8414, %v8490
    %v8492 = vpop.f32.mrf.mxu0
    %v8493 = vadd.f32 %v8416, %v8492
    %8494 = vdwg.mxu0
    %8495 = vmatprep.subr.mxu0 %v1862
    %8496 = vmatpush1.msra.mxu0 %v1861
    %8497 = vmatprep.subr.mxu0 %v1854
    %8498 = vmatpush1.msra.mxu0 %v1853
    %8499 = vmatprep.subr.mxu0 %v1846
    %8500 = vmatpush1.msra.mxu0 %v1845
    %8501 = vmatprep.subr.mxu0 %v1838
    %8502 = vmatpush1.msra.mxu0 %v1837
    %8503 = vmatprep.subr.mxu0 %v1830
    %8504 = vmatpush1.msra.mxu0 %v1829
    %8505 = vmatprep.subr.mxu0 %v1822
    %8506 = vmatpush1.msra.mxu0 %v1821
    %8507 = vmatprep.subr.mxu0 %v1814
    %8508 = vmatpush1.msra.mxu0 %v1813
    %8509 = vmatprep.subr.mxu0 %v1806
    %8510 = vmatpush1.msra.mxu0 %v1805
    %8511 = vmatprep.subr.mxu0 %v1798
    %8512 = vmatpush1.msra.mxu0 %v1797
    %8513 = vmatprep.subr.mxu0 %v1790
    %8514 = vmatpush1.msra.mxu0 %v1789
    %8515 = vmatprep.subr.mxu0 %v1782
    %8516 = vmatpush1.msra.mxu0 %v1781
    %8517 = vmatprep.subr.mxu0 %v1774
    %8518 = vmatpush1.msra.mxu0 %v1773
    %8519 = vmatprep.subr.mxu0 %v1766
    %8520 = vmatpush1.msra.mxu0 %v1765
    %8521 = vmatprep.subr.mxu0 %v1758
    %8522 = vmatpush1.msra.mxu0 %v1757
    %8523 = vmatprep.subr.mxu0 %v1750
    %8524 = vmatpush1.msra.mxu0 %v1749
    %8525 = vmatprep.subr.mxu0 %v1742
    %8526 = vmatpush1.msra.mxu0 %v1741
    %8527 = vmatprep.subr.mxu0 %v1990
    %8528 = vmatpush2.msra.mxu0 %v1989
    %8529 = vmatprep.subr.mxu0 %v1982
    %8530 = vmatpush2.msra.mxu0 %v1981
    %8531 = vmatprep.subr.mxu0 %v1974
    %8532 = vmatpush2.msra.mxu0 %v1973
    %8533 = vmatprep.subr.mxu0 %v1966
    %8534 = vmatpush2.msra.mxu0 %v1965
    %8535 = vmatprep.subr.mxu0 %v1958
    %8536 = vmatpush2.msra.mxu0 %v1957
    %8537 = vmatprep.subr.mxu0 %v1950
    %8538 = vmatpush2.msra.mxu0 %v1949
    %8539 = vmatprep.subr.mxu0 %v1942
    %8540 = vmatpush2.msra.mxu0 %v1941
    %8541 = vmatprep.subr.mxu0 %v1934
    %8542 = vmatpush2.msra.mxu0 %v1933
    %8543 = vmatprep.subr.mxu0 %v1926
    %8544 = vmatpush2.msra.mxu0 %v1925
    %8545 = vmatprep.subr.mxu0 %v1918
    %8546 = vmatpush2.msra.mxu0 %v1917
    %8547 = vmatprep.subr.mxu0 %v1910
    %8548 = vmatpush2.msra.mxu0 %v1909
    %8549 = vmatprep.subr.mxu0 %v1902
    %8550 = vmatpush2.msra.mxu0 %v1901
    %8551 = vmatprep.subr.mxu0 %v1894
    %8552 = vmatpush2.msra.mxu0 %v1893
    %8553 = vmatprep.subr.mxu0 %v1886
    %8554 = vmatpush2.msra.mxu0 %v1885
    %8555 = vmatprep.subr.mxu0 %v1878
    %8556 = vmatpush2.msra.mxu0 %v1877
    %8557 = vmatprep.subr.mxu0 %v1870
    %8558 = vmatpush2.msra.mxu0 %v1869
    %8559 = vmatprep.mubr.f32.mxu0 %v148
    %8560 = vmatmul.mubr.f32.gmra.mxu0 %v147
    %v8561 = vpop.f32.mrf.mxu0
    %v8562 = vadd.f32 %v8485, %v8561
    %v8563 = vpop.f32.mrf.mxu0
    %v8564 = vadd.f32 %v8487, %v8563
    %8565 = vmatprep.mubr.f32.mxu0 %v180
    %8566 = vmatmul.mubr.f32.gmra.mxu0 %v179
    %v8567 = vpop.f32.mrf.mxu0
    %v8568 = vadd.f32 %v8491, %v8567
    %v8569 = vpop.f32.mrf.mxu0
    %v8570 = vadd.f32 %v8493, %v8569
    %8571 = vdwg.mxu0
    %8572 = vmatprep.subr.mxu0 %v2118
    %8573 = vmatpush1.msra.mxu0 %v2117
    %8574 = vmatprep.subr.mxu0 %v2110
    %8575 = vmatpush1.msra.mxu0 %v2109
    %8576 = vmatprep.subr.mxu0 %v2102
    %8577 = vmatpush1.msra.mxu0 %v2101
    %8578 = vmatprep.subr.mxu0 %v2094
    %8579 = vmatpush1.msra.mxu0 %v2093
    %8580 = vmatprep.subr.mxu0 %v2086
    %8581 = vmatpush1.msra.mxu0 %v2085
    %8582 = vmatprep.subr.mxu0 %v2078
    %8583 = vmatpush1.msra.mxu0 %v2077
    %8584 = vmatprep.subr.mxu0 %v2070
    %8585 = vmatpush1.msra.mxu0 %v2069
    %8586 = vmatprep.subr.mxu0 %v2062
    %8587 = vmatpush1.msra.mxu0 %v2061
    %8588 = vmatprep.subr.mxu0 %v2054
    %8589 = vmatpush1.msra.mxu0 %v2053
    %8590 = vmatprep.subr.mxu0 %v2046
    %8591 = vmatpush1.msra.mxu0 %v2045
    %8592 = vmatprep.subr.mxu0 %v2038
    %8593 = vmatpush1.msra.mxu0 %v2037
    %8594 = vmatprep.subr.mxu0 %v2030
    %8595 = vmatpush1.msra.mxu0 %v2029
    %8596 = vmatprep.subr.mxu0 %v2022
    %8597 = vmatpush1.msra.mxu0 %v2021
    %8598 = vmatprep.subr.mxu0 %v2014
    %8599 = vmatpush1.msra.mxu0 %v2013
    %8600 = vmatprep.subr.mxu0 %v2006
    %8601 = vmatpush1.msra.mxu0 %v2005
    %8602 = vmatprep.subr.mxu0 %v1998
    %8603 = vmatpush1.msra.mxu0 %v1997
    %8604 = vmatprep.subr.mxu0 %v2246
    %8605 = vmatpush2.msra.mxu0 %v2245
    %8606 = vmatprep.subr.mxu0 %v2238
    %8607 = vmatpush2.msra.mxu0 %v2237
    %8608 = vmatprep.subr.mxu0 %v2230
    %8609 = vmatpush2.msra.mxu0 %v2229
    %8610 = vmatprep.subr.mxu0 %v2222
    %8611 = vmatpush2.msra.mxu0 %v2221
    %8612 = vmatprep.subr.mxu0 %v2214
    %8613 = vmatpush2.msra.mxu0 %v2213
    %8614 = vmatprep.subr.mxu0 %v2206
    %8615 = vmatpush2.msra.mxu0 %v2205
    %8616 = vmatprep.subr.mxu0 %v2198
    %8617 = vmatpush2.msra.mxu0 %v2197
    %8618 = vmatprep.subr.mxu0 %v2190
    %8619 = vmatpush2.msra.mxu0 %v2189
    %8620 = vmatprep.subr.mxu0 %v2182
    %8621 = vmatpush2.msra.mxu0 %v2181
    %8622 = vmatprep.subr.mxu0 %v2174
    %8623 = vmatpush2.msra.mxu0 %v2173
    %8624 = vmatprep.subr.mxu0 %v2166
    %8625 = vmatpush2.msra.mxu0 %v2165
    %8626 = vmatprep.subr.mxu0 %v2158
    %8627 = vmatpush2.msra.mxu0 %v2157
    %8628 = vmatprep.subr.mxu0 %v2150
    %8629 = vmatpush2.msra.mxu0 %v2149
    %8630 = vmatprep.subr.mxu0 %v2142
    %8631 = vmatpush2.msra.mxu0 %v2141
    %8632 = vmatprep.subr.mxu0 %v2134
    %8633 = vmatpush2.msra.mxu0 %v2133
    %8634 = vmatprep.subr.mxu0 %v2126
    %8635 = vmatpush2.msra.mxu0 %v2125
    %8636 = vmatprep.mubr.f32.mxu0 %v150
    %8637 = vmatmul.mubr.f32.gmra.mxu0 %v149
    %v8638 = vpop.f32.mrf.mxu0
    %v8639 = vadd.f32 %v8562, %v8638
    %v8640 = vpop.f32.mrf.mxu0
    %v8641 = vadd.f32 %v8564, %v8640
    %8642 = vmatprep.mubr.f32.mxu0 %v182
    %8643 = vmatmul.mubr.f32.gmra.mxu0 %v181
    %v8644 = vpop.f32.mrf.mxu0
    %v8645 = vadd.f32 %v8568, %v8644
    %v8646 = vpop.f32.mrf.mxu0
    %v8647 = vadd.f32 %v8570, %v8646
    %8648 = vdwg.mxu0
    %8649 = vmatprep.subr.mxu0 %v2374
    %8650 = vmatpush1.msra.mxu0 %v2373
    %8651 = vmatprep.subr.mxu0 %v2366
    %8652 = vmatpush1.msra.mxu0 %v2365
    %8653 = vmatprep.subr.mxu0 %v2358
    %8654 = vmatpush1.msra.mxu0 %v2357
    %8655 = vmatprep.subr.mxu0 %v2350
    %8656 = vmatpush1.msra.mxu0 %v2349
    %8657 = vmatprep.subr.mxu0 %v2342
    %8658 = vmatpush1.msra.mxu0 %v2341
    %8659 = vmatprep.subr.mxu0 %v2334
    %8660 = vmatpush1.msra.mxu0 %v2333
    %8661 = vmatprep.subr.mxu0 %v2326
    %8662 = vmatpush1.msra.mxu0 %v2325
    %8663 = vmatprep.subr.mxu0 %v2318
    %8664 = vmatpush1.msra.mxu0 %v2317
    %8665 = vmatprep.subr.mxu0 %v2310
    %8666 = vmatpush1.msra.mxu0 %v2309
    %8667 = vmatprep.subr.mxu0 %v2302
    %8668 = vmatpush1.msra.mxu0 %v2301
    %8669 = vmatprep.subr.mxu0 %v2294
    %8670 = vmatpush1.msra.mxu0 %v2293
    %8671 = vmatprep.subr.mxu0 %v2286
    %8672 = vmatpush1.msra.mxu0 %v2285
    %8673 = vmatprep.subr.mxu0 %v2278
    %8674 = vmatpush1.msra.mxu0 %v2277
    %8675 = vmatprep.subr.mxu0 %v2270
    %8676 = vmatpush1.msra.mxu0 %v2269
    %8677 = vmatprep.subr.mxu0 %v2262
    %8678 = vmatpush1.msra.mxu0 %v2261
    %8679 = vmatprep.subr.mxu0 %v2254
    %8680 = vmatpush1.msra.mxu0 %v2253
    %8681 = vmatprep.subr.mxu0 %v2502
    %8682 = vmatpush2.msra.mxu0 %v2501
    %8683 = vmatprep.subr.mxu0 %v2494
    %8684 = vmatpush2.msra.mxu0 %v2493
    %8685 = vmatprep.subr.mxu0 %v2486
    %8686 = vmatpush2.msra.mxu0 %v2485
    %8687 = vmatprep.subr.mxu0 %v2478
    %8688 = vmatpush2.msra.mxu0 %v2477
    %8689 = vmatprep.subr.mxu0 %v2470
    %8690 = vmatpush2.msra.mxu0 %v2469
    %8691 = vmatprep.subr.mxu0 %v2462
    %8692 = vmatpush2.msra.mxu0 %v2461
    %8693 = vmatprep.subr.mxu0 %v2454
    %8694 = vmatpush2.msra.mxu0 %v2453
    %8695 = vmatprep.subr.mxu0 %v2446
    %8696 = vmatpush2.msra.mxu0 %v2445
    %8697 = vmatprep.subr.mxu0 %v2438
    %8698 = vmatpush2.msra.mxu0 %v2437
    %8699 = vmatprep.subr.mxu0 %v2430
    %8700 = vmatpush2.msra.mxu0 %v2429
    %8701 = vmatprep.subr.mxu0 %v2422
    %8702 = vmatpush2.msra.mxu0 %v2421
    %8703 = vmatprep.subr.mxu0 %v2414
    %8704 = vmatpush2.msra.mxu0 %v2413
    %8705 = vmatprep.subr.mxu0 %v2406
    %8706 = vmatpush2.msra.mxu0 %v2405
    %8707 = vmatprep.subr.mxu0 %v2398
    %8708 = vmatpush2.msra.mxu0 %v2397
    %8709 = vmatprep.subr.mxu0 %v2390
    %8710 = vmatpush2.msra.mxu0 %v2389
    %8711 = vmatprep.subr.mxu0 %v2382
    %8712 = vmatpush2.msra.mxu0 %v2381
    %8713 = vmatprep.mubr.f32.mxu0 %v152
    %8714 = vmatmul.mubr.f32.gmra.mxu0 %v151
    %v8715 = vpop.f32.mrf.mxu0
    %v8716 = vadd.f32 %v8639, %v8715
    %v8717 = vpop.f32.mrf.mxu0
    %v8718 = vadd.f32 %v8641, %v8717
    %8719 = vmatprep.mubr.f32.mxu0 %v184
    %8720 = vmatmul.mubr.f32.gmra.mxu0 %v183
    %v8721 = vpop.f32.mrf.mxu0
    %v8722 = vadd.f32 %v8645, %v8721
    %v8723 = vpop.f32.mrf.mxu0
    %v8724 = vadd.f32 %v8647, %v8723
    %8725 = vdwg.mxu0
    %8726 = vmatprep.subr.mxu0 %v2630
    %8727 = vmatpush1.msra.mxu0 %v2629
    %8728 = vmatprep.subr.mxu0 %v2622
    %8729 = vmatpush1.msra.mxu0 %v2621
    %8730 = vmatprep.subr.mxu0 %v2614
    %8731 = vmatpush1.msra.mxu0 %v2613
    %8732 = vmatprep.subr.mxu0 %v2606
    %8733 = vmatpush1.msra.mxu0 %v2605
    %8734 = vmatprep.subr.mxu0 %v2598
    %8735 = vmatpush1.msra.mxu0 %v2597
    %8736 = vmatprep.subr.mxu0 %v2590
    %8737 = vmatpush1.msra.mxu0 %v2589
    %8738 = vmatprep.subr.mxu0 %v2582
    %8739 = vmatpush1.msra.mxu0 %v2581
    %8740 = vmatprep.subr.mxu0 %v2574
    %8741 = vmatpush1.msra.mxu0 %v2573
    %8742 = vmatprep.subr.mxu0 %v2566
    %8743 = vmatpush1.msra.mxu0 %v2565
    %8744 = vmatprep.subr.mxu0 %v2558
    %8745 = vmatpush1.msra.mxu0 %v2557
    %8746 = vmatprep.subr.mxu0 %v2550
    %8747 = vmatpush1.msra.mxu0 %v2549
    %8748 = vmatprep.subr.mxu0 %v2542
    %8749 = vmatpush1.msra.mxu0 %v2541
    %8750 = vmatprep.subr.mxu0 %v2534
    %8751 = vmatpush1.msra.mxu0 %v2533
    %8752 = vmatprep.subr.mxu0 %v2526
    %8753 = vmatpush1.msra.mxu0 %v2525
    %8754 = vmatprep.subr.mxu0 %v2518
    %8755 = vmatpush1.msra.mxu0 %v2517
    %8756 = vmatprep.subr.mxu0 %v2510
    %8757 = vmatpush1.msra.mxu0 %v2509
    %8758 = vmatprep.subr.mxu0 %v2758
    %8759 = vmatpush2.msra.mxu0 %v2757
    %8760 = vmatprep.subr.mxu0 %v2750
    %8761 = vmatpush2.msra.mxu0 %v2749
    %8762 = vmatprep.subr.mxu0 %v2742
    %8763 = vmatpush2.msra.mxu0 %v2741
    %8764 = vmatprep.subr.mxu0 %v2734
    %8765 = vmatpush2.msra.mxu0 %v2733
    %8766 = vmatprep.subr.mxu0 %v2726
    %8767 = vmatpush2.msra.mxu0 %v2725
    %8768 = vmatprep.subr.mxu0 %v2718
    %8769 = vmatpush2.msra.mxu0 %v2717
    %8770 = vmatprep.subr.mxu0 %v2710
    %8771 = vmatpush2.msra.mxu0 %v2709
    %8772 = vmatprep.subr.mxu0 %v2702
    %8773 = vmatpush2.msra.mxu0 %v2701
    %8774 = vmatprep.subr.mxu0 %v2694
    %8775 = vmatpush2.msra.mxu0 %v2693
    %8776 = vmatprep.subr.mxu0 %v2686
    %8777 = vmatpush2.msra.mxu0 %v2685
    %8778 = vmatprep.subr.mxu0 %v2678
    %8779 = vmatpush2.msra.mxu0 %v2677
    %8780 = vmatprep.subr.mxu0 %v2670
    %8781 = vmatpush2.msra.mxu0 %v2669
    %8782 = vmatprep.subr.mxu0 %v2662
    %8783 = vmatpush2.msra.mxu0 %v2661
    %8784 = vmatprep.subr.mxu0 %v2654
    %8785 = vmatpush2.msra.mxu0 %v2653
    %8786 = vmatprep.subr.mxu0 %v2646
    %8787 = vmatpush2.msra.mxu0 %v2645
    %8788 = vmatprep.subr.mxu0 %v2638
    %8789 = vmatpush2.msra.mxu0 %v2637
    %8790 = vmatprep.mubr.f32.mxu0 %v154
    %8791 = vmatmul.mubr.f32.gmra.mxu0 %v153
    %v8792 = vpop.f32.mrf.mxu0
    %v8793 = vadd.f32 %v8716, %v8792
    %v8794 = vpop.f32.mrf.mxu0
    %v8795 = vadd.f32 %v8718, %v8794
    %8796 = vmatprep.mubr.f32.mxu0 %v186
    %8797 = vmatmul.mubr.f32.gmra.mxu0 %v185
    %v8798 = vpop.f32.mrf.mxu0
    %v8799 = vadd.f32 %v8722, %v8798
    %v8800 = vpop.f32.mrf.mxu0
    %v8801 = vadd.f32 %v8724, %v8800
    %8802 = vdwg.mxu0
    %8803 = vmatprep.subr.mxu0 %v2886
    %8804 = vmatpush1.msra.mxu0 %v2885
    %8805 = vmatprep.subr.mxu0 %v2878
    %8806 = vmatpush1.msra.mxu0 %v2877
    %8807 = vmatprep.subr.mxu0 %v2870
    %8808 = vmatpush1.msra.mxu0 %v2869
    %8809 = vmatprep.subr.mxu0 %v2862
    %8810 = vmatpush1.msra.mxu0 %v2861
    %8811 = vmatprep.subr.mxu0 %v2854
    %8812 = vmatpush1.msra.mxu0 %v2853
    %8813 = vmatprep.subr.mxu0 %v2846
    %8814 = vmatpush1.msra.mxu0 %v2845
    %8815 = vmatprep.subr.mxu0 %v2838
    %8816 = vmatpush1.msra.mxu0 %v2837
    %8817 = vmatprep.subr.mxu0 %v2830
    %8818 = vmatpush1.msra.mxu0 %v2829
    %8819 = vmatprep.subr.mxu0 %v2822
    %8820 = vmatpush1.msra.mxu0 %v2821
    %8821 = vmatprep.subr.mxu0 %v2814
    %8822 = vmatpush1.msra.mxu0 %v2813
    %8823 = vmatprep.subr.mxu0 %v2806
    %8824 = vmatpush1.msra.mxu0 %v2805
    %8825 = vmatprep.subr.mxu0 %v2798
    %8826 = vmatpush1.msra.mxu0 %v2797
    %8827 = vmatprep.subr.mxu0 %v2790
    %8828 = vmatpush1.msra.mxu0 %v2789
    %8829 = vmatprep.subr.mxu0 %v2782
    %8830 = vmatpush1.msra.mxu0 %v2781
    %8831 = vmatprep.subr.mxu0 %v2774
    %8832 = vmatpush1.msra.mxu0 %v2773
    %8833 = vmatprep.subr.mxu0 %v2766
    %8834 = vmatpush1.msra.mxu0 %v2765
    %8835 = vmatprep.subr.mxu0 %v3014
    %8836 = vmatpush2.msra.mxu0 %v3013
    %8837 = vmatprep.subr.mxu0 %v3006
    %8838 = vmatpush2.msra.mxu0 %v3005
    %8839 = vmatprep.subr.mxu0 %v2998
    %8840 = vmatpush2.msra.mxu0 %v2997
    %8841 = vmatprep.subr.mxu0 %v2990
    %8842 = vmatpush2.msra.mxu0 %v2989
    %8843 = vmatprep.subr.mxu0 %v2982
    %8844 = vmatpush2.msra.mxu0 %v2981
    %8845 = vmatprep.subr.mxu0 %v2974
    %8846 = vmatpush2.msra.mxu0 %v2973
    %8847 = vmatprep.subr.mxu0 %v2966
    %8848 = vmatpush2.msra.mxu0 %v2965
    %8849 = vmatprep.subr.mxu0 %v2958
    %8850 = vmatpush2.msra.mxu0 %v2957
    %8851 = vmatprep.subr.mxu0 %v2950
    %8852 = vmatpush2.msra.mxu0 %v2949
    %8853 = vmatprep.subr.mxu0 %v2942
    %8854 = vmatpush2.msra.mxu0 %v2941
    %8855 = vmatprep.subr.mxu0 %v2934
    %8856 = vmatpush2.msra.mxu0 %v2933
    %8857 = vmatprep.subr.mxu0 %v2926
    %8858 = vmatpush2.msra.mxu0 %v2925
    %8859 = vmatprep.subr.mxu0 %v2918
    %8860 = vmatpush2.msra.mxu0 %v2917
    %8861 = vmatprep.subr.mxu0 %v2910
    %8862 = vmatpush2.msra.mxu0 %v2909
    %8863 = vmatprep.subr.mxu0 %v2902
    %8864 = vmatpush2.msra.mxu0 %v2901
    %8865 = vmatprep.subr.mxu0 %v2894
    %8866 = vmatpush2.msra.mxu0 %v2893
    %8867 = vmatprep.mubr.f32.mxu0 %v156
    %8868 = vmatmul.mubr.f32.gmra.mxu0 %v155
    %v8869 = vpop.f32.mrf.mxu0
    %v8870 = vadd.f32 %v8793, %v8869
    %v8871 = vpop.f32.mrf.mxu0
    %v8872 = vadd.f32 %v8795, %v8871
    %8873 = vmatprep.mubr.f32.mxu0 %v188
    %8874 = vmatmul.mubr.f32.gmra.mxu0 %v187
    %v8875 = vpop.f32.mrf.mxu0
    %v8876 = vadd.f32 %v8799, %v8875
    %v8877 = vpop.f32.mrf.mxu0
    %v8878 = vadd.f32 %v8801, %v8877
    %8879 = vdwg.mxu0
    %8880 = vmatprep.subr.mxu0 %v3142
    %8881 = vmatpush1.msra.mxu0 %v3141
    %8882 = vmatprep.subr.mxu0 %v3134
    %8883 = vmatpush1.msra.mxu0 %v3133
    %8884 = vmatprep.subr.mxu0 %v3126
    %8885 = vmatpush1.msra.mxu0 %v3125
    %8886 = vmatprep.subr.mxu0 %v3118
    %8887 = vmatpush1.msra.mxu0 %v3117
    %8888 = vmatprep.subr.mxu0 %v3110
    %8889 = vmatpush1.msra.mxu0 %v3109
    %8890 = vmatprep.subr.mxu0 %v3102
    %8891 = vmatpush1.msra.mxu0 %v3101
    %8892 = vmatprep.subr.mxu0 %v3094
    %8893 = vmatpush1.msra.mxu0 %v3093
    %8894 = vmatprep.subr.mxu0 %v3086
    %8895 = vmatpush1.msra.mxu0 %v3085
    %8896 = vmatprep.subr.mxu0 %v3078
    %8897 = vmatpush1.msra.mxu0 %v3077
    %8898 = vmatprep.subr.mxu0 %v3070
    %8899 = vmatpush1.msra.mxu0 %v3069
    %8900 = vmatprep.subr.mxu0 %v3062
    %8901 = vmatpush1.msra.mxu0 %v3061
    %8902 = vmatprep.subr.mxu0 %v3054
    %8903 = vmatpush1.msra.mxu0 %v3053
    %8904 = vmatprep.subr.mxu0 %v3046
    %8905 = vmatpush1.msra.mxu0 %v3045
    %8906 = vmatprep.subr.mxu0 %v3038
    %8907 = vmatpush1.msra.mxu0 %v3037
    %8908 = vmatprep.subr.mxu0 %v3030
    %8909 = vmatpush1.msra.mxu0 %v3029
    %8910 = vmatprep.subr.mxu0 %v3022
    %8911 = vmatpush1.msra.mxu0 %v3021
    %8912 = vmatprep.subr.mxu0 %v3270
    %8913 = vmatpush2.msra.mxu0 %v3269
    %8914 = vmatprep.subr.mxu0 %v3262
    %8915 = vmatpush2.msra.mxu0 %v3261
    %8916 = vmatprep.subr.mxu0 %v3254
    %8917 = vmatpush2.msra.mxu0 %v3253
    %8918 = vmatprep.subr.mxu0 %v3246
    %8919 = vmatpush2.msra.mxu0 %v3245
    %8920 = vmatprep.subr.mxu0 %v3238
    %8921 = vmatpush2.msra.mxu0 %v3237
    %8922 = vmatprep.subr.mxu0 %v3230
    %8923 = vmatpush2.msra.mxu0 %v3229
    %8924 = vmatprep.subr.mxu0 %v3222
    %8925 = vmatpush2.msra.mxu0 %v3221
    %8926 = vmatprep.subr.mxu0 %v3214
    %8927 = vmatpush2.msra.mxu0 %v3213
    %8928 = vmatprep.subr.mxu0 %v3206
    %8929 = vmatpush2.msra.mxu0 %v3205
    %8930 = vmatprep.subr.mxu0 %v3198
    %8931 = vmatpush2.msra.mxu0 %v3197
    %8932 = vmatprep.subr.mxu0 %v3190
    %8933 = vmatpush2.msra.mxu0 %v3189
    %8934 = vmatprep.subr.mxu0 %v3182
    %8935 = vmatpush2.msra.mxu0 %v3181
    %8936 = vmatprep.subr.mxu0 %v3174
    %8937 = vmatpush2.msra.mxu0 %v3173
    %8938 = vmatprep.subr.mxu0 %v3166
    %8939 = vmatpush2.msra.mxu0 %v3165
    %8940 = vmatprep.subr.mxu0 %v3158
    %8941 = vmatpush2.msra.mxu0 %v3157
    %8942 = vmatprep.subr.mxu0 %v3150
    %8943 = vmatpush2.msra.mxu0 %v3149
    %8944 = vmatprep.mubr.f32.mxu0 %v158
    %8945 = vmatmul.mubr.f32.gmra.mxu0 %v157
    %v8946 = vpop.f32.mrf.mxu0
    %v8947 = vadd.f32 %v8870, %v8946
    %v8948 = vpop.f32.mrf.mxu0
    %v8949 = vadd.f32 %v8872, %v8948
    %8950 = vmatprep.mubr.f32.mxu0 %v190
    %8951 = vmatmul.mubr.f32.gmra.mxu0 %v189
    %v8952 = vpop.f32.mrf.mxu0
    %v8953 = vadd.f32 %v8876, %v8952
    %v8954 = vpop.f32.mrf.mxu0
    %v8955 = vadd.f32 %v8878, %v8954
    %8956 = vdwg.mxu0
    %8957 = vmatprep.subr.mxu0 %v3398
    %8958 = vmatpush1.msra.mxu0 %v3397
    %8959 = vmatprep.subr.mxu0 %v3390
    %8960 = vmatpush1.msra.mxu0 %v3389
    %8961 = vmatprep.subr.mxu0 %v3382
    %8962 = vmatpush1.msra.mxu0 %v3381
    %8963 = vmatprep.subr.mxu0 %v3374
    %8964 = vmatpush1.msra.mxu0 %v3373
    %8965 = vmatprep.subr.mxu0 %v3366
    %8966 = vmatpush1.msra.mxu0 %v3365
    %8967 = vmatprep.subr.mxu0 %v3358
    %8968 = vmatpush1.msra.mxu0 %v3357
    %8969 = vmatprep.subr.mxu0 %v3350
    %8970 = vmatpush1.msra.mxu0 %v3349
    %8971 = vmatprep.subr.mxu0 %v3342
    %8972 = vmatpush1.msra.mxu0 %v3341
    %8973 = vmatprep.subr.mxu0 %v3334
    %8974 = vmatpush1.msra.mxu0 %v3333
    %8975 = vmatprep.subr.mxu0 %v3326
    %8976 = vmatpush1.msra.mxu0 %v3325
    %8977 = vmatprep.subr.mxu0 %v3318
    %8978 = vmatpush1.msra.mxu0 %v3317
    %8979 = vmatprep.subr.mxu0 %v3310
    %8980 = vmatpush1.msra.mxu0 %v3309
    %8981 = vmatprep.subr.mxu0 %v3302
    %8982 = vmatpush1.msra.mxu0 %v3301
    %8983 = vmatprep.subr.mxu0 %v3294
    %8984 = vmatpush1.msra.mxu0 %v3293
    %8985 = vmatprep.subr.mxu0 %v3286
    %8986 = vmatpush1.msra.mxu0 %v3285
    %8987 = vmatprep.subr.mxu0 %v3278
    %8988 = vmatpush1.msra.mxu0 %v3277
    %8989 = vmatprep.subr.mxu0 %v3526
    %8990 = vmatpush2.msra.mxu0 %v3525
    %8991 = vmatprep.subr.mxu0 %v3518
    %8992 = vmatpush2.msra.mxu0 %v3517
    %8993 = vmatprep.subr.mxu0 %v3510
    %8994 = vmatpush2.msra.mxu0 %v3509
    %8995 = vmatprep.subr.mxu0 %v3502
    %8996 = vmatpush2.msra.mxu0 %v3501
    %8997 = vmatprep.subr.mxu0 %v3494
    %8998 = vmatpush2.msra.mxu0 %v3493
    %8999 = vmatprep.subr.mxu0 %v3486
    %9000 = vmatpush2.msra.mxu0 %v3485
    %9001 = vmatprep.subr.mxu0 %v3478
    %9002 = vmatpush2.msra.mxu0 %v3477
    %9003 = vmatprep.subr.mxu0 %v3470
    %9004 = vmatpush2.msra.mxu0 %v3469
    %9005 = vmatprep.subr.mxu0 %v3462
    %9006 = vmatpush2.msra.mxu0 %v3461
    %9007 = vmatprep.subr.mxu0 %v3454
    %9008 = vmatpush2.msra.mxu0 %v3453
    %9009 = vmatprep.subr.mxu0 %v3446
    %9010 = vmatpush2.msra.mxu0 %v3445
    %9011 = vmatprep.subr.mxu0 %v3438
    %9012 = vmatpush2.msra.mxu0 %v3437
    %9013 = vmatprep.subr.mxu0 %v3430
    %9014 = vmatpush2.msra.mxu0 %v3429
    %9015 = vmatprep.subr.mxu0 %v3422
    %9016 = vmatpush2.msra.mxu0 %v3421
    %9017 = vmatprep.subr.mxu0 %v3414
    %9018 = vmatpush2.msra.mxu0 %v3413
    %9019 = vmatprep.subr.mxu0 %v3406
    %9020 = vmatpush2.msra.mxu0 %v3405
    %9021 = vmatprep.mubr.f32.mxu0 %v160
    %9022 = vmatmul.mubr.f32.gmra.mxu0 %v159
    %v9023 = vpop.f32.mrf.mxu0
    %v9024 = vadd.f32 %v8947, %v9023
    %v9025 = vpop.f32.mrf.mxu0
    %v9026 = vadd.f32 %v8949, %v9025
    %9027 = vmatprep.mubr.f32.mxu0 %v192
    %9028 = vmatmul.mubr.f32.gmra.mxu0 %v191
    %v9029 = vpop.f32.mrf.mxu0
    %v9030 = vadd.f32 %v8953, %v9029
    %v9031 = vpop.f32.mrf.mxu0
    %v9032 = vadd.f32 %v8955, %v9031
    %9033 = vdwg.mxu0
    %9034 = vmatprep.subr.mxu0 %v3654
    %9035 = vmatpush1.msra.mxu0 %v3653
    %9036 = vmatprep.subr.mxu0 %v3646
    %9037 = vmatpush1.msra.mxu0 %v3645
    %9038 = vmatprep.subr.mxu0 %v3638
    %9039 = vmatpush1.msra.mxu0 %v3637
    %9040 = vmatprep.subr.mxu0 %v3630
    %9041 = vmatpush1.msra.mxu0 %v3629
    %9042 = vmatprep.subr.mxu0 %v3622
    %9043 = vmatpush1.msra.mxu0 %v3621
    %9044 = vmatprep.subr.mxu0 %v3614
    %9045 = vmatpush1.msra.mxu0 %v3613
    %9046 = vmatprep.subr.mxu0 %v3606
    %9047 = vmatpush1.msra.mxu0 %v3605
    %9048 = vmatprep.subr.mxu0 %v3598
    %9049 = vmatpush1.msra.mxu0 %v3597
    %9050 = vmatprep.subr.mxu0 %v3590
    %9051 = vmatpush1.msra.mxu0 %v3589
    %9052 = vmatprep.subr.mxu0 %v3582
    %9053 = vmatpush1.msra.mxu0 %v3581
    %9054 = vmatprep.subr.mxu0 %v3574
    %9055 = vmatpush1.msra.mxu0 %v3573
    %9056 = vmatprep.subr.mxu0 %v3566
    %9057 = vmatpush1.msra.mxu0 %v3565
    %9058 = vmatprep.subr.mxu0 %v3558
    %9059 = vmatpush1.msra.mxu0 %v3557
    %9060 = vmatprep.subr.mxu0 %v3550
    %9061 = vmatpush1.msra.mxu0 %v3549
    %9062 = vmatprep.subr.mxu0 %v3542
    %9063 = vmatpush1.msra.mxu0 %v3541
    %9064 = vmatprep.subr.mxu0 %v3534
    %9065 = vmatpush1.msra.mxu0 %v3533
    %9066 = vmatprep.subr.mxu0 %v3782
    %9067 = vmatpush2.msra.mxu0 %v3781
    %9068 = vmatprep.subr.mxu0 %v3774
    %9069 = vmatpush2.msra.mxu0 %v3773
    %9070 = vmatprep.subr.mxu0 %v3766
    %9071 = vmatpush2.msra.mxu0 %v3765
    %9072 = vmatprep.subr.mxu0 %v3758
    %9073 = vmatpush2.msra.mxu0 %v3757
    %9074 = vmatprep.subr.mxu0 %v3750
    %9075 = vmatpush2.msra.mxu0 %v3749
    %9076 = vmatprep.subr.mxu0 %v3742
    %9077 = vmatpush2.msra.mxu0 %v3741
    %9078 = vmatprep.subr.mxu0 %v3734
    %9079 = vmatpush2.msra.mxu0 %v3733
    %9080 = vmatprep.subr.mxu0 %v3726
    %9081 = vmatpush2.msra.mxu0 %v3725
    %9082 = vmatprep.subr.mxu0 %v3718
    %9083 = vmatpush2.msra.mxu0 %v3717
    %9084 = vmatprep.subr.mxu0 %v3710
    %9085 = vmatpush2.msra.mxu0 %v3709
    %9086 = vmatprep.subr.mxu0 %v3702
    %9087 = vmatpush2.msra.mxu0 %v3701
    %9088 = vmatprep.subr.mxu0 %v3694
    %9089 = vmatpush2.msra.mxu0 %v3693
    %9090 = vmatprep.subr.mxu0 %v3686
    %9091 = vmatpush2.msra.mxu0 %v3685
    %9092 = vmatprep.subr.mxu0 %v3678
    %9093 = vmatpush2.msra.mxu0 %v3677
    %9094 = vmatprep.subr.mxu0 %v3670
    %9095 = vmatpush2.msra.mxu0 %v3669
    %9096 = vmatprep.subr.mxu0 %v3662
    %9097 = vmatpush2.msra.mxu0 %v3661
    %9098 = vmatprep.mubr.f32.mxu0 %v162
    %9099 = vmatmul.mubr.f32.gmra.mxu0 %v161
    %v9100 = vpop.f32.mrf.mxu0
    %v9101 = vadd.f32 %v9024, %v9100
    %v9102 = vpop.f32.mrf.mxu0
    %v9103 = vadd.f32 %v9026, %v9102
    %9104 = vmatprep.mubr.f32.mxu0 %v194
    %9105 = vmatmul.mubr.f32.gmra.mxu0 %v193
    %v9106 = vpop.f32.mrf.mxu0
    %v9107 = vadd.f32 %v9030, %v9106
    %v9108 = vpop.f32.mrf.mxu0
    %v9109 = vadd.f32 %v9032, %v9108
    %9110 = vdwg.mxu0
    %9111 = vmatprep.subr.mxu0 %v3910
    %9112 = vmatpush1.msra.mxu0 %v3909
    %9113 = vmatprep.subr.mxu0 %v3902
    %9114 = vmatpush1.msra.mxu0 %v3901
    %9115 = vmatprep.subr.mxu0 %v3894
    %9116 = vmatpush1.msra.mxu0 %v3893
    %9117 = vmatprep.subr.mxu0 %v3886
    %9118 = vmatpush1.msra.mxu0 %v3885
    %9119 = vmatprep.subr.mxu0 %v3878
    %9120 = vmatpush1.msra.mxu0 %v3877
    %9121 = vmatprep.subr.mxu0 %v3870
    %9122 = vmatpush1.msra.mxu0 %v3869
    %9123 = vmatprep.subr.mxu0 %v3862
    %9124 = vmatpush1.msra.mxu0 %v3861
    %9125 = vmatprep.subr.mxu0 %v3854
    %9126 = vmatpush1.msra.mxu0 %v3853
    %9127 = vmatprep.subr.mxu0 %v3846
    %9128 = vmatpush1.msra.mxu0 %v3845
    %9129 = vmatprep.subr.mxu0 %v3838
    %9130 = vmatpush1.msra.mxu0 %v3837
    %9131 = vmatprep.subr.mxu0 %v3830
    %9132 = vmatpush1.msra.mxu0 %v3829
    %9133 = vmatprep.subr.mxu0 %v3822
    %9134 = vmatpush1.msra.mxu0 %v3821
    %9135 = vmatprep.subr.mxu0 %v3814
    %9136 = vmatpush1.msra.mxu0 %v3813
    %9137 = vmatprep.subr.mxu0 %v3806
    %9138 = vmatpush1.msra.mxu0 %v3805
    %9139 = vmatprep.subr.mxu0 %v3798
    %9140 = vmatpush1.msra.mxu0 %v3797
    %9141 = vmatprep.subr.mxu0 %v3790
    %9142 = vmatpush1.msra.mxu0 %v3789
    %9143 = vmatprep.subr.mxu0 %v4038
    %9144 = vmatpush2.msra.mxu0 %v4037
    %9145 = vmatprep.subr.mxu0 %v4030
    %9146 = vmatpush2.msra.mxu0 %v4029
    %9147 = vmatprep.subr.mxu0 %v4022
    %9148 = vmatpush2.msra.mxu0 %v4021
    %9149 = vmatprep.subr.mxu0 %v4014
    %9150 = vmatpush2.msra.mxu0 %v4013
    %9151 = vmatprep.subr.mxu0 %v4006
    %9152 = vmatpush2.msra.mxu0 %v4005
    %9153 = vmatprep.subr.mxu0 %v3998
    %9154 = vmatpush2.msra.mxu0 %v3997
    %9155 = vmatprep.subr.mxu0 %v3990
    %9156 = vmatpush2.msra.mxu0 %v3989
    %9157 = vmatprep.subr.mxu0 %v3982
    %9158 = vmatpush2.msra.mxu0 %v3981
    %9159 = vmatprep.subr.mxu0 %v3974
    %9160 = vmatpush2.msra.mxu0 %v3973
    %9161 = vmatprep.subr.mxu0 %v3966
    %9162 = vmatpush2.msra.mxu0 %v3965
    %9163 = vmatprep.subr.mxu0 %v3958
    %9164 = vmatpush2.msra.mxu0 %v3957
    %9165 = vmatprep.subr.mxu0 %v3950
    %9166 = vmatpush2.msra.mxu0 %v3949
    %9167 = vmatprep.subr.mxu0 %v3942
    %9168 = vmatpush2.msra.mxu0 %v3941
    %9169 = vmatprep.subr.mxu0 %v3934
    %9170 = vmatpush2.msra.mxu0 %v3933
    %9171 = vmatprep.subr.mxu0 %v3926
    %9172 = vmatpush2.msra.mxu0 %v3925
    %9173 = vmatprep.subr.mxu0 %v3918
    %9174 = vmatpush2.msra.mxu0 %v3917
    %9175 = vmatprep.mubr.f32.mxu0 %v164
    %9176 = vmatmul.mubr.f32.gmra.mxu0 %v163
    %v9177 = vpop.f32.mrf.mxu0
    %v9178 = vadd.f32 %v9101, %v9177
    %v9179 = vpop.f32.mrf.mxu0
    %v9180 = vadd.f32 %v9103, %v9179
    %9181 = vmatprep.mubr.f32.mxu0 %v196
    %9182 = vmatmul.mubr.f32.gmra.mxu0 %v195
    %v9183 = vpop.f32.mrf.mxu0
    %v9184 = vadd.f32 %v9107, %v9183
    %v9185 = vpop.f32.mrf.mxu0
    %v9186 = vadd.f32 %v9109, %v9185
    %9187 = vdwg.mxu0
    %9188 = vmatprep.subr.mxu0 %v4166
    %9189 = vmatpush1.msra.mxu0 %v4165
    %9190 = vmatprep.subr.mxu0 %v4158
    %9191 = vmatpush1.msra.mxu0 %v4157
    %9192 = vmatprep.subr.mxu0 %v4150
    %9193 = vmatpush1.msra.mxu0 %v4149
    %9194 = vmatprep.subr.mxu0 %v4142
    %9195 = vmatpush1.msra.mxu0 %v4141
    %9196 = vmatprep.subr.mxu0 %v4134
    %9197 = vmatpush1.msra.mxu0 %v4133
    %9198 = vmatprep.subr.mxu0 %v4126
    %9199 = vmatpush1.msra.mxu0 %v4125
    %9200 = vmatprep.subr.mxu0 %v4118
    %9201 = vmatpush1.msra.mxu0 %v4117
    %9202 = vmatprep.subr.mxu0 %v4110
    %9203 = vmatpush1.msra.mxu0 %v4109
    %9204 = vmatprep.subr.mxu0 %v4102
    %9205 = vmatpush1.msra.mxu0 %v4101
    %9206 = vmatprep.subr.mxu0 %v4094
    %9207 = vmatpush1.msra.mxu0 %v4093
    %9208 = vmatprep.subr.mxu0 %v4086
    %9209 = vmatpush1.msra.mxu0 %v4085
    %9210 = vmatprep.subr.mxu0 %v4078
    %9211 = vmatpush1.msra.mxu0 %v4077
    %9212 = vmatprep.subr.mxu0 %v4070
    %9213 = vmatpush1.msra.mxu0 %v4069
    %9214 = vmatprep.subr.mxu0 %v4062
    %9215 = vmatpush1.msra.mxu0 %v4061
    %9216 = vmatprep.subr.mxu0 %v4054
    %9217 = vmatpush1.msra.mxu0 %v4053
    %9218 = vmatprep.subr.mxu0 %v4046
    %9219 = vmatpush1.msra.mxu0 %v4045
    %9220 = vmatprep.subr.mxu0 %v4294
    %9221 = vmatpush2.msra.mxu0 %v4293
    %9222 = vmatprep.subr.mxu0 %v4286
    %9223 = vmatpush2.msra.mxu0 %v4285
    %9224 = vmatprep.subr.mxu0 %v4278
    %9225 = vmatpush2.msra.mxu0 %v4277
    %9226 = vmatprep.subr.mxu0 %v4270
    %9227 = vmatpush2.msra.mxu0 %v4269
    %9228 = vmatprep.subr.mxu0 %v4262
    %9229 = vmatpush2.msra.mxu0 %v4261
    %9230 = vmatprep.subr.mxu0 %v4254
    %9231 = vmatpush2.msra.mxu0 %v4253
    %9232 = vmatprep.subr.mxu0 %v4246
    %9233 = vmatpush2.msra.mxu0 %v4245
    %9234 = vmatprep.subr.mxu0 %v4238
    %9235 = vmatpush2.msra.mxu0 %v4237
    %9236 = vmatprep.subr.mxu0 %v4230
    %9237 = vmatpush2.msra.mxu0 %v4229
    %9238 = vmatprep.subr.mxu0 %v4222
    %9239 = vmatpush2.msra.mxu0 %v4221
    %9240 = vmatprep.subr.mxu0 %v4214
    %9241 = vmatpush2.msra.mxu0 %v4213
    %9242 = vmatprep.subr.mxu0 %v4206
    %9243 = vmatpush2.msra.mxu0 %v4205
    %9244 = vmatprep.subr.mxu0 %v4198
    %9245 = vmatpush2.msra.mxu0 %v4197
    %9246 = vmatprep.subr.mxu0 %v4190
    %9247 = vmatpush2.msra.mxu0 %v4189
    %9248 = vmatprep.subr.mxu0 %v4182
    %9249 = vmatpush2.msra.mxu0 %v4181
    %9250 = vmatprep.subr.mxu0 %v4174
    %9251 = vmatpush2.msra.mxu0 %v4173
    %9252 = vmatprep.mubr.f32.mxu0 %v166
    %9253 = vmatmul.mubr.f32.gmra.mxu0 %v165
    %v9254 = vpop.f32.mrf.mxu0
    %v9255 = vadd.f32 %v9178, %v9254
    %v9256 = vpop.f32.mrf.mxu0
    %v9257 = vadd.f32 %v9180, %v9256
    %9258 = vmatprep.mubr.f32.mxu0 %v198
    %9259 = vmatmul.mubr.f32.gmra.mxu0 %v197
    %v9260 = vpop.f32.mrf.mxu0
    %v9261 = vadd.f32 %v9184, %v9260
    %v9262 = vpop.f32.mrf.mxu0
    %v9263 = vadd.f32 %v9186, %v9262
    %9264 = vdwg.mxu0
    %v9265 = vmax.f32 %v5559, 0.0
    %v9266 = vmax.f32 %v5561, 0.0
    %v9267 = vmax.f32 %v6791, 0.0
    %v9268 = vmax.f32 %v6793, 0.0
    %v9269 = vmax.f32 %v8023, 0.0
    %v9270 = vmax.f32 %v8025, 0.0
    %v9271 = vmax.f32 %v9255, 0.0
    %v9272 = vmax.f32 %v9257, 0.0
    %v9273 = vmax.f32 %v5565, 0.0
    %v9274 = vmax.f32 %v5567, 0.0
    %v9275 = vmax.f32 %v6797, 0.0
    %v9276 = vmax.f32 %v6799, 0.0
    %v9277 = vmax.f32 %v8029, 0.0
    %v9278 = vmax.f32 %v8031, 0.0
    %v9279 = vmax.f32 %v9261, 0.0
    %v9280 = vmax.f32 %v9263, 0.0
    %v9281 = vld [vmem:[%s3] sm:$0xff]
    %v9282 = vld [vmem:[%s3 + $0x8] sm:$0xff]
    %v9283 = vld [vmem:[%s3 + $0x10] sm:$0xff]
    %v9284 = vld [vmem:[%s3 + $0x18] sm:$0xff]
    %v9285 = vld [vmem:[%s3 + $0x20] sm:$0xff]
    %v9286 = vld [vmem:[%s3 + $0x28] sm:$0xff]
    %v9287 = vld [vmem:[%s3 + $0x30] sm:$0xff]
    %v9288 = vld [vmem:[%s3 + $0x38] sm:$0xff]
    %v9289 = vld [vmem:[%s3 + $0x40] sm:$0xff]
    %v9290 = vld [vmem:[%s3 + $0x48] sm:$0xff]
    %v9291 = vld [vmem:[%s3 + $0x50] sm:$0xff]
    %v9292 = vld [vmem:[%s3 + $0x58] sm:$0xff]
    %v9293 = vld [vmem:[%s3 + $0x60] sm:$0xff]
    %v9294 = vld [vmem:[%s3 + $0x68] sm:$0xff]
    %v9295 = vld [vmem:[%s3 + $0x70] sm:$0xff]
    %v9296 = vld [vmem:[%s3 + $0x78] sm:$0xff]
    %v9297 = vld [vmem:[%s3 + $0x80] sm:$0xff]
    %v9298 = vld [vmem:[%s3 + $0x88] sm:$0xff]
    %v9299 = vld [vmem:[%s3 + $0x90] sm:$0xff]
    %v9300 = vld [vmem:[%s3 + $0x98] sm:$0xff]
    %v9301 = vld [vmem:[%s3 + $0xa0] sm:$0xff]
    %v9302 = vld [vmem:[%s3 + $0xa8] sm:$0xff]
    %v9303 = vld [vmem:[%s3 + $0xb0] sm:$0xff]
    %v9304 = vld [vmem:[%s3 + $0xb8] sm:$0xff]
    %v9305 = vld [vmem:[%s3 + $0xc0] sm:$0xff]
    %v9306 = vld [vmem:[%s3 + $0xc8] sm:$0xff]
    %v9307 = vld [vmem:[%s3 + $0xd0] sm:$0xff]
    %v9308 = vld [vmem:[%s3 + $0xd8] sm:$0xff]
    %v9309 = vld [vmem:[%s3 + $0xe0] sm:$0xff]
    %v9310 = vld [vmem:[%s3 + $0xe8] sm:$0xff]
    %v9311 = vld [vmem:[%s3 + $0xf0] sm:$0xff]
    %v9312 = vld [vmem:[%s3 + $0xf8] sm:$0xff]
    %v9313 = vld [vmem:[%s3 + $0x100] sm:$0xff]
    %v9314 = vld [vmem:[%s3 + $0x108] sm:$0xff]
    %v9315 = vld [vmem:[%s3 + $0x110] sm:$0xff]
    %v9316 = vld [vmem:[%s3 + $0x118] sm:$0xff]
    %v9317 = vld [vmem:[%s3 + $0x120] sm:$0xff]
    %v9318 = vld [vmem:[%s3 + $0x128] sm:$0xff]
    %v9319 = vld [vmem:[%s3 + $0x130] sm:$0xff]
    %v9320 = vld [vmem:[%s3 + $0x138] sm:$0xff]
    %v9321 = vld [vmem:[%s3 + $0x140] sm:$0xff]
    %v9322 = vld [vmem:[%s3 + $0x148] sm:$0xff]
    %v9323 = vld [vmem:[%s3 + $0x150] sm:$0xff]
    %v9324 = vld [vmem:[%s3 + $0x158] sm:$0xff]
    %v9325 = vld [vmem:[%s3 + $0x160] sm:$0xff]
    %v9326 = vld [vmem:[%s3 + $0x168] sm:$0xff]
    %v9327 = vld [vmem:[%s3 + $0x170] sm:$0xff]
    %v9328 = vld [vmem:[%s3 + $0x178] sm:$0xff]
    %v9329 = vld [vmem:[%s3 + $0x180] sm:$0xff]
    %v9330 = vld [vmem:[%s3 + $0x188] sm:$0xff]
    %v9331 = vld [vmem:[%s3 + $0x190] sm:$0xff]
    %v9332 = vld [vmem:[%s3 + $0x198] sm:$0xff]
    %v9333 = vld [vmem:[%s3 + $0x1a0] sm:$0xff]
    %v9334 = vld [vmem:[%s3 + $0x1a8] sm:$0xff]
    %v9335 = vld [vmem:[%s3 + $0x1b0] sm:$0xff]
    %v9336 = vld [vmem:[%s3 + $0x1b8] sm:$0xff]
    %v9337 = vld [vmem:[%s3 + $0x1c0] sm:$0xff]
    %v9338 = vld [vmem:[%s3 + $0x1c8] sm:$0xff]
    %v9339 = vld [vmem:[%s3 + $0x1d0] sm:$0xff]
    %v9340 = vld [vmem:[%s3 + $0x1d8] sm:$0xff]
    %v9341 = vld [vmem:[%s3 + $0x1e0] sm:$0xff]
    %v9342 = vld [vmem:[%s3 + $0x1e8] sm:$0xff]
    %v9343 = vld [vmem:[%s3 + $0x1f0] sm:$0xff]
    %v9344 = vld [vmem:[%s3 + $0x1f8] sm:$0xff]
    %v9345 = vld [vmem:[%s3 + $0x200] sm:$0xff]
    %v9346 = vld [vmem:[%s3 + $0x208] sm:$0xff]
    %v9347 = vld [vmem:[%s3 + $0x210] sm:$0xff]
    %v9348 = vld [vmem:[%s3 + $0x218] sm:$0xff]
    %v9349 = vld [vmem:[%s3 + $0x220] sm:$0xff]
    %v9350 = vld [vmem:[%s3 + $0x228] sm:$0xff]
    %v9351 = vld [vmem:[%s3 + $0x230] sm:$0xff]
    %v9352 = vld [vmem:[%s3 + $0x238] sm:$0xff]
    %v9353 = vld [vmem:[%s3 + $0x240] sm:$0xff]
    %v9354 = vld [vmem:[%s3 + $0x248] sm:$0xff]
    %v9355 = vld [vmem:[%s3 + $0x250] sm:$0xff]
    %v9356 = vld [vmem:[%s3 + $0x258] sm:$0xff]
    %v9357 = vld [vmem:[%s3 + $0x260] sm:$0xff]
    %v9358 = vld [vmem:[%s3 + $0x268] sm:$0xff]
    %v9359 = vld [vmem:[%s3 + $0x270] sm:$0xff]
    %v9360 = vld [vmem:[%s3 + $0x278] sm:$0xff]
    %v9361 = vld [vmem:[%s3 + $0x280] sm:$0xff]
    %v9362 = vld [vmem:[%s3 + $0x288] sm:$0xff]
    %v9363 = vld [vmem:[%s3 + $0x290] sm:$0xff]
    %v9364 = vld [vmem:[%s3 + $0x298] sm:$0xff]
    %v9365 = vld [vmem:[%s3 + $0x2a0] sm:$0xff]
    %v9366 = vld [vmem:[%s3 + $0x2a8] sm:$0xff]
    %v9367 = vld [vmem:[%s3 + $0x2b0] sm:$0xff]
    %v9368 = vld [vmem:[%s3 + $0x2b8] sm:$0xff]
    %v9369 = vld [vmem:[%s3 + $0x2c0] sm:$0xff]
    %v9370 = vld [vmem:[%s3 + $0x2c8] sm:$0xff]
    %v9371 = vld [vmem:[%s3 + $0x2d0] sm:$0xff]
    %v9372 = vld [vmem:[%s3 + $0x2d8] sm:$0xff]
    %v9373 = vld [vmem:[%s3 + $0x2e0] sm:$0xff]
    %v9374 = vld [vmem:[%s3 + $0x2e8] sm:$0xff]
    %v9375 = vld [vmem:[%s3 + $0x2f0] sm:$0xff]
    %v9376 = vld [vmem:[%s3 + $0x2f8] sm:$0xff]
    %v9377 = vld [vmem:[%s3 + $0x300] sm:$0xff]
    %v9378 = vld [vmem:[%s3 + $0x308] sm:$0xff]
    %v9379 = vld [vmem:[%s3 + $0x310] sm:$0xff]
    %v9380 = vld [vmem:[%s3 + $0x318] sm:$0xff]
    %v9381 = vld [vmem:[%s3 + $0x320] sm:$0xff]
    %v9382 = vld [vmem:[%s3 + $0x328] sm:$0xff]
    %v9383 = vld [vmem:[%s3 + $0x330] sm:$0xff]
    %v9384 = vld [vmem:[%s3 + $0x338] sm:$0xff]
    %v9385 = vld [vmem:[%s3 + $0x340] sm:$0xff]
    %v9386 = vld [vmem:[%s3 + $0x348] sm:$0xff]
    %v9387 = vld [vmem:[%s3 + $0x350] sm:$0xff]
    %v9388 = vld [vmem:[%s3 + $0x358] sm:$0xff]
    %v9389 = vld [vmem:[%s3 + $0x360] sm:$0xff]
    %v9390 = vld [vmem:[%s3 + $0x368] sm:$0xff]
    %v9391 = vld [vmem:[%s3 + $0x370] sm:$0xff]
    %v9392 = vld [vmem:[%s3 + $0x378] sm:$0xff]
    %v9393 = vld [vmem:[%s3 + $0x380] sm:$0xff]
    %v9394 = vld [vmem:[%s3 + $0x388] sm:$0xff]
    %v9395 = vld [vmem:[%s3 + $0x390] sm:$0xff]
    %v9396 = vld [vmem:[%s3 + $0x398] sm:$0xff]
    %v9397 = vld [vmem:[%s3 + $0x3a0] sm:$0xff]
    %v9398 = vld [vmem:[%s3 + $0x3a8] sm:$0xff]
    %v9399 = vld [vmem:[%s3 + $0x3b0] sm:$0xff]
    %v9400 = vld [vmem:[%s3 + $0x3b8] sm:$0xff]
    %v9401 = vld [vmem:[%s3 + $0x3c0] sm:$0xff]
    %v9402 = vld [vmem:[%s3 + $0x3c8] sm:$0xff]
    %v9403 = vld [vmem:[%s3 + $0x3d0] sm:$0xff]
    %v9404 = vld [vmem:[%s3 + $0x3d8] sm:$0xff]
    %v9405 = vld [vmem:[%s3 + $0x3e0] sm:$0xff]
    %v9406 = vld [vmem:[%s3 + $0x3e8] sm:$0xff]
    %v9407 = vld [vmem:[%s3 + $0x3f0] sm:$0xff]
    %v9408 = vld [vmem:[%s3 + $0x3f8] sm:$0xff]
    %v9409 = vld [vmem:[#allocation7] sm:$0x1]
    %v9411 = vlaneseq
    %v9412 = vshrl.u32 %v9411, 7
    %v9413 = vsub.s32 0, %v9412
    %v9414 = vrot.slane %v9409, %v9413
    %9416 = vmatprep.subr.mxu0 0.0
    %9417 = vmatpush1.msra.mxu0 %v9296
    %9418 = vmatprep.subr.mxu0 0.0
    %9419 = vmatpush1.msra.mxu0 %v9295
    %9420 = vmatprep.subr.mxu0 0.0
    %9421 = vmatpush1.msra.mxu0 %v9294
    %9422 = vmatprep.subr.mxu0 0.0
    %9423 = vmatpush1.msra.mxu0 %v9293
    %9424 = vmatprep.subr.mxu0 0.0
    %9425 = vmatpush1.msra.mxu0 %v9292
    %9426 = vmatprep.subr.mxu0 0.0
    %9427 = vmatpush1.msra.mxu0 %v9291
    %9428 = vmatprep.subr.mxu0 0.0
    %9429 = vmatpush1.msra.mxu0 %v9290
    %9430 = vmatprep.subr.mxu0 0.0
    %9431 = vmatpush1.msra.mxu0 %v9289
    %9432 = vmatprep.subr.mxu0 0.0
    %9433 = vmatpush1.msra.mxu0 %v9288
    %9434 = vmatprep.subr.mxu0 0.0
    %9435 = vmatpush1.msra.mxu0 %v9287
    %9436 = vmatprep.subr.mxu0 0.0
    %9437 = vmatpush1.msra.mxu0 %v9286
    %9438 = vmatprep.subr.mxu0 0.0
    %9439 = vmatpush1.msra.mxu0 %v9285
    %9440 = vmatprep.subr.mxu0 0.0
    %9441 = vmatpush1.msra.mxu0 %v9284
    %9442 = vmatprep.subr.mxu0 0.0
    %9443 = vmatpush1.msra.mxu0 %v9283
    %9444 = vmatprep.subr.mxu0 0.0
    %9445 = vmatpush1.msra.mxu0 %v9282
    %9446 = vmatprep.subr.mxu0 0.0
    %9447 = vmatpush1.msra.mxu0 %v9281
    %9448 = vmatprep.subr.mxu0 0.0
    %9449 = vmatpush2.msra.mxu0 %v9312
    %9450 = vmatprep.subr.mxu0 0.0
    %9451 = vmatpush2.msra.mxu0 %v9311
    %9452 = vmatprep.subr.mxu0 0.0
    %9453 = vmatpush2.msra.mxu0 %v9310
    %9454 = vmatprep.subr.mxu0 0.0
    %9455 = vmatpush2.msra.mxu0 %v9309
    %9456 = vmatprep.subr.mxu0 0.0
    %9457 = vmatpush2.msra.mxu0 %v9308
    %9458 = vmatprep.subr.mxu0 0.0
    %9459 = vmatpush2.msra.mxu0 %v9307
    %9460 = vmatprep.subr.mxu0 0.0
    %9461 = vmatpush2.msra.mxu0 %v9306
    %9462 = vmatprep.subr.mxu0 0.0
    %9463 = vmatpush2.msra.mxu0 %v9305
    %9464 = vmatprep.subr.mxu0 0.0
    %9465 = vmatpush2.msra.mxu0 %v9304
    %9466 = vmatprep.subr.mxu0 0.0
    %9467 = vmatpush2.msra.mxu0 %v9303
    %9468 = vmatprep.subr.mxu0 0.0
    %9469 = vmatpush2.msra.mxu0 %v9302
    %9470 = vmatprep.subr.mxu0 0.0
    %9471 = vmatpush2.msra.mxu0 %v9301
    %9472 = vmatprep.subr.mxu0 0.0
    %9473 = vmatpush2.msra.mxu0 %v9300
    %9474 = vmatprep.subr.mxu0 0.0
    %9475 = vmatpush2.msra.mxu0 %v9299
    %9476 = vmatprep.subr.mxu0 0.0
    %9477 = vmatpush2.msra.mxu0 %v9298
    %9478 = vmatprep.subr.mxu0 0.0
    %9479 = vmatpush2.msra.mxu0 %v9297
    %9480 = vmatprep.mubr.f32.mxu0 %v9266
    %9481 = vmatmul.mubr.f32.gmra.mxu0 %v9265
    %v9482 = vpop.f32.mrf.mxu0
    %v9483 = vadd.f32 %v9414, %v9482
    %v9484 = vpop.f32.mrf.mxu0
    %9485 = vmatprep.mubr.f32.mxu0 %v9274
    %9486 = vmatmul.mubr.f32.gmra.mxu0 %v9273
    %v9487 = vpop.f32.mrf.mxu0
    %v9488 = vadd.f32 %v9414, %v9487
    %v9489 = vpop.f32.mrf.mxu0
    %9490 = vdwg.mxu0
    %9491 = vmatprep.subr.mxu0 0.0
    %9492 = vmatpush1.msra.mxu0 %v9328
    %9493 = vmatprep.subr.mxu0 0.0
    %9494 = vmatpush1.msra.mxu0 %v9327
    %9495 = vmatprep.subr.mxu0 0.0
    %9496 = vmatpush1.msra.mxu0 %v9326
    %9497 = vmatprep.subr.mxu0 0.0
    %9498 = vmatpush1.msra.mxu0 %v9325
    %9499 = vmatprep.subr.mxu0 0.0
    %9500 = vmatpush1.msra.mxu0 %v9324
    %9501 = vmatprep.subr.mxu0 0.0
    %9502 = vmatpush1.msra.mxu0 %v9323
    %9503 = vmatprep.subr.mxu0 0.0
    %9504 = vmatpush1.msra.mxu0 %v9322
    %9505 = vmatprep.subr.mxu0 0.0
    %9506 = vmatpush1.msra.mxu0 %v9321
    %9507 = vmatprep.subr.mxu0 0.0
    %9508 = vmatpush1.msra.mxu0 %v9320
    %9509 = vmatprep.subr.mxu0 0.0
    %9510 = vmatpush1.msra.mxu0 %v9319
    %9511 = vmatprep.subr.mxu0 0.0
    %9512 = vmatpush1.msra.mxu0 %v9318
    %9513 = vmatprep.subr.mxu0 0.0
    %9514 = vmatpush1.msra.mxu0 %v9317
    %9515 = vmatprep.subr.mxu0 0.0
    %9516 = vmatpush1.msra.mxu0 %v9316
    %9517 = vmatprep.subr.mxu0 0.0
    %9518 = vmatpush1.msra.mxu0 %v9315
    %9519 = vmatprep.subr.mxu0 0.0
    %9520 = vmatpush1.msra.mxu0 %v9314
    %9521 = vmatprep.subr.mxu0 0.0
    %9522 = vmatpush1.msra.mxu0 %v9313
    %9523 = vmatprep.subr.mxu0 0.0
    %9524 = vmatpush2.msra.mxu0 %v9344
    %9525 = vmatprep.subr.mxu0 0.0
    %9526 = vmatpush2.msra.mxu0 %v9343
    %9527 = vmatprep.subr.mxu0 0.0
    %9528 = vmatpush2.msra.mxu0 %v9342
    %9529 = vmatprep.subr.mxu0 0.0
    %9530 = vmatpush2.msra.mxu0 %v9341
    %9531 = vmatprep.subr.mxu0 0.0
    %9532 = vmatpush2.msra.mxu0 %v9340
    %9533 = vmatprep.subr.mxu0 0.0
    %9534 = vmatpush2.msra.mxu0 %v9339
    %9535 = vmatprep.subr.mxu0 0.0
    %9536 = vmatpush2.msra.mxu0 %v9338
    %9537 = vmatprep.subr.mxu0 0.0
    %9538 = vmatpush2.msra.mxu0 %v9337
    %9539 = vmatprep.subr.mxu0 0.0
    %9540 = vmatpush2.msra.mxu0 %v9336
    %9541 = vmatprep.subr.mxu0 0.0
    %9542 = vmatpush2.msra.mxu0 %v9335
    %9543 = vmatprep.subr.mxu0 0.0
    %9544 = vmatpush2.msra.mxu0 %v9334
    %9545 = vmatprep.subr.mxu0 0.0
    %9546 = vmatpush2.msra.mxu0 %v9333
    %9547 = vmatprep.subr.mxu0 0.0
    %9548 = vmatpush2.msra.mxu0 %v9332
    %9549 = vmatprep.subr.mxu0 0.0
    %9550 = vmatpush2.msra.mxu0 %v9331
    %9551 = vmatprep.subr.mxu0 0.0
    %9552 = vmatpush2.msra.mxu0 %v9330
    %9553 = vmatprep.subr.mxu0 0.0
    %9554 = vmatpush2.msra.mxu0 %v9329
    %9555 = vmatprep.mubr.f32.mxu0 %v9268
    %9556 = vmatmul.mubr.f32.gmra.mxu0 %v9267
    %v9557 = vpop.f32.mrf.mxu0
    %v9558 = vadd.f32 %v9483, %v9557
    %v9559 = vpop.f32.mrf.mxu0
    %9560 = vmatprep.mubr.f32.mxu0 %v9276
    %9561 = vmatmul.mubr.f32.gmra.mxu0 %v9275
    %v9562 = vpop.f32.mrf.mxu0
    %v9563 = vadd.f32 %v9488, %v9562
    %v9564 = vpop.f32.mrf.mxu0
    %9565 = vdwg.mxu0
    %9566 = vmatprep.subr.mxu0 0.0
    %9567 = vmatpush1.msra.mxu0 %v9360
    %9568 = vmatprep.subr.mxu0 0.0
    %9569 = vmatpush1.msra.mxu0 %v9359
    %9570 = vmatprep.subr.mxu0 0.0
    %9571 = vmatpush1.msra.mxu0 %v9358
    %9572 = vmatprep.subr.mxu0 0.0
    %9573 = vmatpush1.msra.mxu0 %v9357
    %9574 = vmatprep.subr.mxu0 0.0
    %9575 = vmatpush1.msra.mxu0 %v9356
    %9576 = vmatprep.subr.mxu0 0.0
    %9577 = vmatpush1.msra.mxu0 %v9355
    %9578 = vmatprep.subr.mxu0 0.0
    %9579 = vmatpush1.msra.mxu0 %v9354
    %9580 = vmatprep.subr.mxu0 0.0
    %9581 = vmatpush1.msra.mxu0 %v9353
    %9582 = vmatprep.subr.mxu0 0.0
    %9583 = vmatpush1.msra.mxu0 %v9352
    %9584 = vmatprep.subr.mxu0 0.0
    %9585 = vmatpush1.msra.mxu0 %v9351
    %9586 = vmatprep.subr.mxu0 0.0
    %9587 = vmatpush1.msra.mxu0 %v9350
    %9588 = vmatprep.subr.mxu0 0.0
    %9589 = vmatpush1.msra.mxu0 %v9349
    %9590 = vmatprep.subr.mxu0 0.0
    %9591 = vmatpush1.msra.mxu0 %v9348
    %9592 = vmatprep.subr.mxu0 0.0
    %9593 = vmatpush1.msra.mxu0 %v9347
    %9594 = vmatprep.subr.mxu0 0.0
    %9595 = vmatpush1.msra.mxu0 %v9346
    %9596 = vmatprep.subr.mxu0 0.0
    %9597 = vmatpush1.msra.mxu0 %v9345
    %9598 = vmatprep.subr.mxu0 0.0
    %9599 = vmatpush2.msra.mxu0 %v9376
    %9600 = vmatprep.subr.mxu0 0.0
    %9601 = vmatpush2.msra.mxu0 %v9375
    %9602 = vmatprep.subr.mxu0 0.0
    %9603 = vmatpush2.msra.mxu0 %v9374
    %9604 = vmatprep.subr.mxu0 0.0
    %9605 = vmatpush2.msra.mxu0 %v9373
    %9606 = vmatprep.subr.mxu0 0.0
    %9607 = vmatpush2.msra.mxu0 %v9372
    %9608 = vmatprep.subr.mxu0 0.0
    %9609 = vmatpush2.msra.mxu0 %v9371
    %9610 = vmatprep.subr.mxu0 0.0
    %9611 = vmatpush2.msra.mxu0 %v9370
    %9612 = vmatprep.subr.mxu0 0.0
    %9613 = vmatpush2.msra.mxu0 %v9369
    %9614 = vmatprep.subr.mxu0 0.0
    %9615 = vmatpush2.msra.mxu0 %v9368
    %9616 = vmatprep.subr.mxu0 0.0
    %9617 = vmatpush2.msra.mxu0 %v9367
    %9618 = vmatprep.subr.mxu0 0.0
    %9619 = vmatpush2.msra.mxu0 %v9366
    %9620 = vmatprep.subr.mxu0 0.0
    %9621 = vmatpush2.msra.mxu0 %v9365
    %9622 = vmatprep.subr.mxu0 0.0
    %9623 = vmatpush2.msra.mxu0 %v9364
    %9624 = vmatprep.subr.mxu0 0.0
    %9625 = vmatpush2.msra.mxu0 %v9363
    %9626 = vmatprep.subr.mxu0 0.0
    %9627 = vmatpush2.msra.mxu0 %v9362
    %9628 = vmatprep.subr.mxu0 0.0
    %9629 = vmatpush2.msra.mxu0 %v9361
    %9630 = vmatprep.mubr.f32.mxu0 %v9270
    %9631 = vmatmul.mubr.f32.gmra.mxu0 %v9269
    %v9632 = vpop.f32.mrf.mxu0
    %v9633 = vadd.f32 %v9558, %v9632
    %v9634 = vpop.f32.mrf.mxu0
    %9635 = vmatprep.mubr.f32.mxu0 %v9278
    %9636 = vmatmul.mubr.f32.gmra.mxu0 %v9277
    %v9637 = vpop.f32.mrf.mxu0
    %v9638 = vadd.f32 %v9563, %v9637
    %v9639 = vpop.f32.mrf.mxu0
    %9640 = vdwg.mxu0
    %9641 = vmatprep.subr.mxu0 0.0
    %9642 = vmatpush1.msra.mxu0 %v9392
    %9643 = vmatprep.subr.mxu0 0.0
    %9644 = vmatpush1.msra.mxu0 %v9391
    %9645 = vmatprep.subr.mxu0 0.0
    %9646 = vmatpush1.msra.mxu0 %v9390
    %9647 = vmatprep.subr.mxu0 0.0
    %9648 = vmatpush1.msra.mxu0 %v9389
    %9649 = vmatprep.subr.mxu0 0.0
    %9650 = vmatpush1.msra.mxu0 %v9388
    %9651 = vmatprep.subr.mxu0 0.0
    %9652 = vmatpush1.msra.mxu0 %v9387
    %9653 = vmatprep.subr.mxu0 0.0
    %9654 = vmatpush1.msra.mxu0 %v9386
    %9655 = vmatprep.subr.mxu0 0.0
    %9656 = vmatpush1.msra.mxu0 %v9385
    %9657 = vmatprep.subr.mxu0 0.0
    %9658 = vmatpush1.msra.mxu0 %v9384
    %9659 = vmatprep.subr.mxu0 0.0
    %9660 = vmatpush1.msra.mxu0 %v9383
    %9661 = vmatprep.subr.mxu0 0.0
    %9662 = vmatpush1.msra.mxu0 %v9382
    %9663 = vmatprep.subr.mxu0 0.0
    %9664 = vmatpush1.msra.mxu0 %v9381
    %9665 = vmatprep.subr.mxu0 0.0
    %9666 = vmatpush1.msra.mxu0 %v9380
    %9667 = vmatprep.subr.mxu0 0.0
    %9668 = vmatpush1.msra.mxu0 %v9379
    %9669 = vmatprep.subr.mxu0 0.0
    %9670 = vmatpush1.msra.mxu0 %v9378
    %9671 = vmatprep.subr.mxu0 0.0
    %9672 = vmatpush1.msra.mxu0 %v9377
    %9673 = vmatprep.subr.mxu0 0.0
    %9674 = vmatpush2.msra.mxu0 %v9408
    %9675 = vmatprep.subr.mxu0 0.0
    %9676 = vmatpush2.msra.mxu0 %v9407
    %9677 = vmatprep.subr.mxu0 0.0
    %9678 = vmatpush2.msra.mxu0 %v9406
    %9679 = vmatprep.subr.mxu0 0.0
    %9680 = vmatpush2.msra.mxu0 %v9405
    %9681 = vmatprep.subr.mxu0 0.0
    %9682 = vmatpush2.msra.mxu0 %v9404
    %9683 = vmatprep.subr.mxu0 0.0
    %9684 = vmatpush2.msra.mxu0 %v9403
    %9685 = vmatprep.subr.mxu0 0.0
    %9686 = vmatpush2.msra.mxu0 %v9402
    %9687 = vmatprep.subr.mxu0 0.0
    %9688 = vmatpush2.msra.mxu0 %v9401
    %9689 = vmatprep.subr.mxu0 0.0
    %9690 = vmatpush2.msra.mxu0 %v9400
    %9691 = vmatprep.subr.mxu0 0.0
    %9692 = vmatpush2.msra.mxu0 %v9399
    %9693 = vmatprep.subr.mxu0 0.0
    %9694 = vmatpush2.msra.mxu0 %v9398
    %9695 = vmatprep.subr.mxu0 0.0
    %9696 = vmatpush2.msra.mxu0 %v9397
    %9697 = vmatprep.subr.mxu0 0.0
    %9698 = vmatpush2.msra.mxu0 %v9396
    %9699 = vmatprep.subr.mxu0 0.0
    %9700 = vmatpush2.msra.mxu0 %v9395
    %9701 = vmatprep.subr.mxu0 0.0
    %9702 = vmatpush2.msra.mxu0 %v9394
    %9703 = vmatprep.subr.mxu0 0.0
    %9704 = vmatpush2.msra.mxu0 %v9393
    %9705 = vmatprep.mubr.f32.mxu0 %v9272
    %9706 = vmatmul.mubr.f32.gmra.mxu0 %v9271
    %v9707 = vpop.f32.mrf.mxu0
    %v9708 = vadd.f32 %v9633, %v9707
    %v9709 = vpop.f32.mrf.mxu0
    %9710 = vmatprep.mubr.f32.mxu0 %v9280
    %9711 = vmatmul.mubr.f32.gmra.mxu0 %v9279
    %v9712 = vpop.f32.mrf.mxu0
    %v9713 = vadd.f32 %v9638, %v9712
    %v9714 = vpop.f32.mrf.mxu0
    %9715 = vdwg.mxu0
    %v9716 = vxor.u32 %v9708, 2147483648
    %v9717 = vxor.u32 %v9713, 2147483648
    %v9718 = vmul.f32 %v9716, 1.442695
    %v9719 = vpow.pop %v9718
    %v9720 = vmul.f32 %v9717, 1.442695
    %v9721 = vpow.pop %v9720
    %v9722 = vadd.f32 %v9719, 1.0
    %v9723 = vadd.f32 %v9721, 1.0
    %v9724 = vrcp.pop %v9722
    %v9725 = vmul.f32 1.0, %v9724
    %v9726 = vrcp.pop %v9723
    %v9727 = vmul.f32 1.0, %v9726
    %vm9728 = vcmask 15360
    %9729 = vst.msk [vmem:[%s5] sm:$0xff] %vm9728, %v9725
    %9730 = vst.msk [vmem:[%s5 + $0x8] sm:$0xff] %vm9728, %v9727
    // Predicated region
    $region38: #{caiaclsf_forward.1} parent=1 // pred_check
      _
    $region39: #{caiaclsf_forward.1} parent=1 // pred_check_branch
      %9732 = sbr.rel (0) target = $region41
    $region40: #{caiaclsf_forward.1} parent=1 // pred_region
      _
    $region41: #{caiaclsf_forward.1} parent=1 // pred_fallthru
      _
    // Predicated region
    $region42: #{caiaclsf_forward.1} parent=1 // pred_check
      _
    $region43: #{caiaclsf_forward.1} parent=1 // pred_check_branch
      %9734 = sbr.rel (0) target = $region45
    $region44: #{caiaclsf_forward.1} parent=1 // pred_region
      _
    $region45: #{caiaclsf_forward.1} parent=1 // pred_fallthru
      _
    %9735 = vsyncpa [#allocation3], 1
    %9736 = vsyncpa [#allocation5], 1
    %9737 = vsyncpa [#allocation8], 1

</llo_original>
